<compile_context>
chip_gen: v6e
topology: v6e:2x2x1
jax: 0.10.0
libtpu: 0.0.40
codegen_flags: <defaults>
</compile_context>

<pallas_src>
import functools
import math

import jax
import jax.numpy as jnp
from jax.experimental import pallas as pl
from jax.experimental.pallas import tpu as pltpu


# ------------------------------ fused kernel -------------------------------

def _fused_forward_kernel(*refs, num_layers, num_heads, seq_len, batch_block):
    """refs = [x, embed_w, embed_b, (12 refs per layer)..., fc_w, fc_b, out]."""
    x_ref = refs[0]
    embed_w_ref, embed_b_ref = refs[1], refs[2]
    layer_refs = refs[3:3 + 12 * num_layers]
    fc_w_ref, fc_b_ref = refs[3 + 12 * num_layers], refs[4 + 12 * num_layers]
    o_ref = refs[5 + 12 * num_layers]

    S = seq_len
    Bblk = batch_block
    E = embed_w_ref.shape[1]
    Dh = E // num_heads
    bf16 = jnp.bfloat16

    def layer_norm(y, g_ref, b_ref):
        # eps=1e-5 (PyTorch default); f32 throughout.
        mu = jnp.mean(y, axis=-1, keepdims=True)
        var = jnp.mean(jnp.square(y - mu), axis=-1, keepdims=True)
        return (y - mu) * jax.lax.rsqrt(var + 1e-5) * g_ref[...] + b_ref[...]

    # ---- embedding: all Bblk*S rows in one matmul ----
    x_bf = x_ref[0].astype(bf16)                                     # (N, Din)
    h = jnp.dot(x_bf, embed_w_ref[...],
                preferred_element_type=jnp.float32) + embed_b_ref[...]  # (N, E) f32

    for l in range(num_layers):
        (wqkv_r, bqkv_r, wo_r, bo_r, ln1g_r, ln1b_r,
         w1_r, b1_r, w2_r, b2_r, ln2g_r, ln2b_r) = layer_refs[12 * l:12 * (l + 1)]

        # ---- multi-head self-attention (dropout = identity in eval mode) ----
        h_bf = h.astype(bf16)                                        # hoisted cast
        qkv = jnp.dot(h_bf, wqkv_r[...],
                      preferred_element_type=jnp.float32) + bqkv_r[...]  # (N, 3E) f32
        qkv_bf = qkv.astype(bf16)                                    # cast once, slice later

        attn_rows = []
        for b in range(Bblk):                                        # per-batch scores only
            r0 = b * S
            acc = None
            for hh in range(num_heads):
                # 1/sqrt(Dh) is pre-folded into the q columns of wqkv/bqkv.
                q = qkv_bf[r0:r0 + S, hh * Dh:(hh + 1) * Dh]
                k = qkv_bf[r0:r0 + S, E + hh * Dh:E + (hh + 1) * Dh]
                v = qkv_bf[r0:r0 + S, 2 * E + hh * Dh:2 * E + (hh + 1) * Dh]
                # q @ k^T without materializing k.T
                s = jax.lax.dot_general(q, k, (((1,), (1,)), ((), ())),
                                        preferred_element_type=jnp.float32)  # (S, S) f32
                s = s - jnp.max(s, axis=-1, keepdims=True)
                p = jnp.exp(s)
                p = p * pl.reciprocal(jnp.sum(p, axis=-1, keepdims=True),
                                      approx=True)
                pv = jnp.dot(p.astype(bf16), v,
                             preferred_element_type=jnp.float32)     # (S, Dh) f32
                # fold this head straight into the out-projection (no lane concat)
                contrib = jnp.dot(pv.astype(bf16), wo_r[hh],
                                  preferred_element_type=jnp.float32)  # (S, E) f32
                acc = contrib if acc is None else acc + contrib
            attn_rows.append(acc)
        attn = attn_rows[0] if Bblk == 1 else jnp.concatenate(attn_rows, axis=0)
        h = layer_norm(h + attn + bo_r[...], ln1g_r, ln1b_r)         # post-norm

        # ---- feed-forward: Linear -> ReLU -> Linear (torch default act) ----
        h_bf = h.astype(bf16)
        ff = jnp.maximum(jnp.dot(h_bf, w1_r[...],
                                 preferred_element_type=jnp.float32) + b1_r[...],
                         0.0)                                        # (N, ff) f32, VMEM-resident
        ff = jnp.dot(ff.astype(bf16), w2_r[...],
                     preferred_element_type=jnp.float32) + b2_r[...]
        h = layer_norm(h + ff, ln2g_r, ln2b_r)

    # ---- mean over the sequence axis per batch element, then final Linear ----
    pooled = [jnp.mean(h[b * S:(b + 1) * S, :], axis=0, keepdims=True)
              for b in range(Bblk)]
    m = pooled[0] if Bblk == 1 else jnp.concatenate(pooled, axis=0)  # (Bblk, E) f32
    o_ref[0] = jnp.dot(m.astype(bf16), fc_w_ref[...],
                       preferred_element_type=jnp.float32) + fc_b_ref[...]


# ------------------------------ wrapper -------------------------------------

def _replicated_spec(arr):
    """Whole-array block, same block for every grid step (no re-fetch)."""
    zeros = (0,) * arr.ndim
    return pl.BlockSpec(arr.shape, lambda b, _z=zeros: _z)


def simple_transformer_forward(params, x, *, num_batch_blocks=1):
    # layout: x is (B, S, input_dim); 2-D (B, input_dim) becomes (B, 1, input_dim)
    if x.ndim == 2:
        x = x[:, None, :]
    x = x.astype(jnp.float32)
    B, S, Din = x.shape
    E = params["embed_w"].shape[1]
    H = params["num_heads"]
    assert E % H == 0, "hidden_dim must be divisible by num_heads"
    assert B % num_batch_blocks == 0, "batch must divide evenly into batch blocks"
    Bblk = B // num_batch_blocks
    Dh = E // H
    scale = 1.0 / math.sqrt(Dh)
    num_layers = len(params["layers"])
    bf16 = jnp.bfloat16

    # Merge batch rows into the matmul row dimension: one (Bblk*S, Din) slab
    # per grid step (default: a single step holding all B*S rows).
    x_blocks = x.reshape(num_batch_blocks, Bblk * S, Din)

    inputs = [
        x_blocks,
        params["embed_w"].astype(bf16),
        params["embed_b"].reshape(1, E).astype(jnp.float32),
    ]
    for lyr in params["layers"]:
        in_proj_w = lyr["in_proj_w"].astype(jnp.float32)
        in_proj_b = lyr["in_proj_b"].astype(jnp.float32)
        # Fold 1/sqrt(Dh) into the q columns (torch (q,k,v) packing) -> free at runtime.
        in_proj_w = in_proj_w.at[:, :E].multiply(scale)
        in_proj_b = in_proj_b.at[:E].multiply(scale)
        inputs += [
            in_proj_w.astype(bf16),
            in_proj_b.reshape(1, 3 * E),
            # out_proj reshaped to (H, Dh, E): per-head slab is a clean leading-axis load
            lyr["out_proj_w"].astype(bf16).reshape(H, Dh, E),
            lyr["out_proj_b"].reshape(1, E).astype(jnp.float32),
            lyr["ln1_g"].reshape(1, E).astype(jnp.float32),
            lyr["ln1_b"].reshape(1, E).astype(jnp.float32),
            lyr["lin1_w"].astype(bf16),
            lyr["lin1_b"].reshape(1, -1).astype(jnp.float32),
            lyr["lin2_w"].astype(bf16),
            lyr["lin2_b"].reshape(1, E).astype(jnp.float32),
            lyr["ln2_g"].reshape(1, E).astype(jnp.float32),
            lyr["ln2_b"].reshape(1, E).astype(jnp.float32),
        ]
    inputs += [params["fc_w"].astype(bf16),
               params["fc_b"].reshape(1, E).astype(jnp.float32)]

    in_specs = [pl.BlockSpec((1, Bblk * S, Din), lambda b: (b, 0, 0))]
    in_specs += [_replicated_spec(a) for a in inputs[1:]]

    out = pl.pallas_call(
        functools.partial(_fused_forward_kernel, num_layers=num_layers,
                          num_heads=H, seq_len=S, batch_block=Bblk),
        out_shape=jax.ShapeDtypeStruct((num_batch_blocks, Bblk, E), jnp.float32),
        grid=(num_batch_blocks,),
        in_specs=in_specs,
        out_specs=pl.BlockSpec((1, Bblk, E), lambda b: (b, 0, 0)),
        compiler_params=pltpu.CompilerParams(
            dimension_semantics=("parallel",),   # shards batch blocks across TCs on v7x
            vmem_limit_bytes=32 * 1024 * 1024,   # tiny footprint; safe on 64 MiB v7x
        ),
    )(*inputs)
    return out.reshape(B, E)


# ------------------------------ params --------------------------------------

def init_params(key, input_dim, hidden_dim, num_heads, num_layers, ff_dim):
    keys = jax.random.split(key, 4 + num_layers)

    def w(k, shape, scale=0.02):
        return scale * jax.random.normal(k, shape, dtype=jnp.float32)

    params = {
        "num_heads": num_heads,
        "embed_w": w(keys[0], (input_dim, hidden_dim)),
        "embed_b": jnp.zeros((hidden_dim,), jnp.float32),
        "fc_w": w(keys[1], (hidden_dim, hidden_dim)),
        "fc_b": jnp.zeros((hidden_dim,), jnp.float32),
        "layers": [],
    }
    for i in range(num_layers):
        lk = jax.random.split(keys[4 + i], 4)
        params["layers"].append({
            "in_proj_w": w(lk[0], (hidden_dim, 3 * hidden_dim)),
            "in_proj_b": jnp.zeros((3 * hidden_dim,), jnp.float32),
            "out_proj_w": w(lk[1], (hidden_dim, hidden_dim)),
            "out_proj_b": jnp.zeros((hidden_dim,), jnp.float32),
            "ln1_g": jnp.ones((hidden_dim,), jnp.float32),
            "ln1_b": jnp.zeros((hidden_dim,), jnp.float32),
            "lin1_w": w(lk[2], (hidden_dim, ff_dim)),
            "lin1_b": jnp.zeros((ff_dim,), jnp.float32),
            "lin2_w": w(lk[3], (ff_dim, hidden_dim)),
            "lin2_b": jnp.zeros((hidden_dim,), jnp.float32),
            "ln2_g": jnp.ones((hidden_dim,), jnp.float32),
            "ln2_b": jnp.zeros((hidden_dim,), jnp.float32),
        })
    return params


if __name__ == "__main__":
    B, S = 2, 8
    input_dim, hidden_dim, num_heads, num_layers = 16, 32, 4, 2
    ff_dim = 2048  # nn.TransformerEncoderLayer default dim_feedforward

    key = jax.random.PRNGKey(0)
    pkey, xkey = jax.random.split(key)
    params = init_params(pkey, input_dim, hidden_dim, num_heads, num_layers, ff_dim)
    x = jax.random.normal(xkey, (B, S, input_dim), dtype=jnp.float32)

    out = simple_transformer_forward(params, x)   # single fused grid step (B*S rows)
    jax.block_until_ready(out)
    assert out.shape == (B, hidden_dim) and out.dtype == jnp.float32
    assert bool(jnp.all(jnp.isfinite(out)))
    print("KERNEL_OK")
</pallas_src>

<mosaic_0001>
module attributes {stable_mosaic.version = 11 : i64} {
  func.func @_fused_forward_kernel(%arg0: i32, %arg1: memref<1x16x16xf32, #tpu.memory_space<vmem>>, %arg2: memref<16x32xbf16, #tpu.memory_space<vmem>>, %arg3: memref<1x32xf32, #tpu.memory_space<vmem>>, %arg4: memref<32x96xbf16, #tpu.memory_space<vmem>>, %arg5: memref<1x96xf32, #tpu.memory_space<vmem>>, %arg6: memref<4x8x32xbf16, #tpu.memory_space<vmem>>, %arg7: memref<1x32xf32, #tpu.memory_space<vmem>>, %arg8: memref<1x32xf32, #tpu.memory_space<vmem>>, %arg9: memref<1x32xf32, #tpu.memory_space<vmem>>, %arg10: memref<32x2048xbf16, #tpu.memory_space<vmem>>, %arg11: memref<1x2048xf32, #tpu.memory_space<vmem>>, %arg12: memref<2048x32xbf16, #tpu.memory_space<vmem>>, %arg13: memref<1x32xf32, #tpu.memory_space<vmem>>, %arg14: memref<1x32xf32, #tpu.memory_space<vmem>>, %arg15: memref<1x32xf32, #tpu.memory_space<vmem>>, %arg16: memref<32x96xbf16, #tpu.memory_space<vmem>>, %arg17: memref<1x96xf32, #tpu.memory_space<vmem>>, %arg18: memref<4x8x32xbf16, #tpu.memory_space<vmem>>, %arg19: memref<1x32xf32, #tpu.memory_space<vmem>>, %arg20: memref<1x32xf32, #tpu.memory_space<vmem>>, %arg21: memref<1x32xf32, #tpu.memory_space<vmem>>, %arg22: memref<32x2048xbf16, #tpu.memory_space<vmem>>, %arg23: memref<1x2048xf32, #tpu.memory_space<vmem>>, %arg24: memref<2048x32xbf16, #tpu.memory_space<vmem>>, %arg25: memref<1x32xf32, #tpu.memory_space<vmem>>, %arg26: memref<1x32xf32, #tpu.memory_space<vmem>>, %arg27: memref<1x32xf32, #tpu.memory_space<vmem>>, %arg28: memref<32x32xbf16, #tpu.memory_space<vmem>>, %arg29: memref<1x32xf32, #tpu.memory_space<vmem>>, %arg30: memref<1x2x32xf32, #tpu.memory_space<vmem>>) attributes {dimension_semantics = [#tpu.dimension_semantics<parallel>], iteration_bounds = array<i64: 1>, scalar_prefetch = 0 : i64, scratch_operands = 0 : i64, tpu.core_type = #tpu.core_type<tc>, window_params = [{transform_indices = @transform_0, window_bounds = array<i64: 1, 16, 16>}, {pipeline_mode = #tpu.pipeline_mode<synchronous>, transform_indices = @transform_1, window_bounds = array<i64: 16, 32>}, {pipeline_mode = #tpu.pipeline_mode<synchronous>, transform_indices = @transform_2, window_bounds = array<i64: 1, 32>}, {pipeline_mode = #tpu.pipeline_mode<synchronous>, transform_indices = @transform_3, window_bounds = array<i64: 32, 96>}, {pipeline_mode = #tpu.pipeline_mode<synchronous>, transform_indices = @transform_4, window_bounds = array<i64: 1, 96>}, {pipeline_mode = #tpu.pipeline_mode<synchronous>, transform_indices = @transform_5, window_bounds = array<i64: 4, 8, 32>}, {pipeline_mode = #tpu.pipeline_mode<synchronous>, transform_indices = @transform_6, window_bounds = array<i64: 1, 32>}, {pipeline_mode = #tpu.pipeline_mode<synchronous>, transform_indices = @transform_7, window_bounds = array<i64: 1, 32>}, {pipeline_mode = #tpu.pipeline_mode<synchronous>, transform_indices = @transform_8, window_bounds = array<i64: 1, 32>}, {pipeline_mode = #tpu.pipeline_mode<synchronous>, transform_indices = @transform_9, window_bounds = array<i64: 32, 2048>}, {pipeline_mode = #tpu.pipeline_mode<synchronous>, transform_indices = @transform_10, window_bounds = array<i64: 1, 2048>}, {pipeline_mode = #tpu.pipeline_mode<synchronous>, transform_indices = @transform_11, window_bounds = array<i64: 2048, 32>}, {pipeline_mode = #tpu.pipeline_mode<synchronous>, transform_indices = @transform_12, window_bounds = array<i64: 1, 32>}, {pipeline_mode = #tpu.pipeline_mode<synchronous>, transform_indices = @transform_13, window_bounds = array<i64: 1, 32>}, {pipeline_mode = #tpu.pipeline_mode<synchronous>, transform_indices = @transform_14, window_bounds = array<i64: 1, 32>}, {pipeline_mode = #tpu.pipeline_mode<synchronous>, transform_indices = @transform_15, window_bounds = array<i64: 32, 96>}, {pipeline_mode = #tpu.pipeline_mode<synchronous>, transform_indices = @transform_16, window_bounds = array<i64: 1, 96>}, {pipeline_mode = #tpu.pipeline_mode<synchronous>, transform_indices = @transform_17, window_bounds = array<i64: 4, 8, 32>}, {pipeline_mode = #tpu.pipeline_mode<synchronous>, transform_indices = @transform_18, window_bounds = array<i64: 1, 32>}, {pipeline_mode = #tpu.pipeline_mode<synchronous>, transform_indices = @transform_19, window_bounds = array<i64: 1, 32>}, {pipeline_mode = #tpu.pipeline_mode<synchronous>, transform_indices = @transform_20, window_bounds = array<i64: 1, 32>}, {pipeline_mode = #tpu.pipeline_mode<synchronous>, transform_indices = @transform_21, window_bounds = array<i64: 32, 2048>}, {pipeline_mode = #tpu.pipeline_mode<synchronous>, transform_indices = @transform_22, window_bounds = array<i64: 1, 2048>}, {pipeline_mode = #tpu.pipeline_mode<synchronous>, transform_indices = @transform_23, window_bounds = array<i64: 2048, 32>}, {pipeline_mode = #tpu.pipeline_mode<synchronous>, transform_indices = @transform_24, window_bounds = array<i64: 1, 32>}, {pipeline_mode = #tpu.pipeline_mode<synchronous>, transform_indices = @transform_25, window_bounds = array<i64: 1, 32>}, {pipeline_mode = #tpu.pipeline_mode<synchronous>, transform_indices = @transform_26, window_bounds = array<i64: 1, 32>}, {pipeline_mode = #tpu.pipeline_mode<synchronous>, transform_indices = @transform_27, window_bounds = array<i64: 32, 32>}, {pipeline_mode = #tpu.pipeline_mode<synchronous>, transform_indices = @transform_28, window_bounds = array<i64: 1, 32>}, {transform_indices = @transform_29, window_bounds = array<i64: 1, 2, 32>}]} {
    %c0 = arith.constant 0 : index
    %c0_0 = arith.constant 0 : index
    %c0_1 = arith.constant 0 : index
    %0 = vector.load %arg1[%c0, %c0_0, %c0_1] : memref<1x16x16xf32, #tpu.memory_space<vmem>>, vector<1x16x16xf32>
    %1 = vector.shape_cast %0 : vector<1x16x16xf32> to vector<16x16xf32>
    %2 = arith.truncf %1 : vector<16x16xf32> to vector<16x16xbf16>
    %c0_2 = arith.constant 0 : index
    %c0_3 = arith.constant 0 : index
    %3 = vector.load %arg2[%c0_2, %c0_3] : memref<16x32xbf16, #tpu.memory_space<vmem>>, vector<16x32xbf16>
    %cst = arith.constant dense<0.000000e+00> : vector<16x32xf32>
    %4 = tpu.matmul %2, %3, %cst {dimension_numbers = #tpu.dot_dimension_numbers<[1], [0], [0], [1], [0, 0, 1, 1], [], []>} : vector<16x16xbf16>, vector<16x32xbf16>, vector<16x32xf32> -> vector<16x32xf32>
    %c0_4 = arith.constant 0 : index
    %c0_5 = arith.constant 0 : index
    %5 = vector.load %arg3[%c0_4, %c0_5] : memref<1x32xf32, #tpu.memory_space<vmem>>, vector<1x32xf32>
    %6 = vector.broadcast %5 : vector<1x32xf32> to vector<16x32xf32>
    %7 = arith.addf %4, %6 : vector<16x32xf32>
    %8 = arith.truncf %7 : vector<16x32xf32> to vector<16x32xbf16>
    %c0_6 = arith.constant 0 : index
    %c0_7 = arith.constant 0 : index
    %9 = vector.load %arg4[%c0_6, %c0_7] : memref<32x96xbf16, #tpu.memory_space<vmem>>, vector<32x96xbf16>
    %cst_8 = arith.constant dense<0.000000e+00> : vector<16x96xf32>
    %10 = tpu.matmul %8, %9, %cst_8 {dimension_numbers = #tpu.dot_dimension_numbers<[1], [0], [0], [1], [0, 0, 1, 1], [], []>} : vector<16x32xbf16>, vector<32x96xbf16>, vector<16x96xf32> -> vector<16x96xf32>
    %c0_9 = arith.constant 0 : index
    %c0_10 = arith.constant 0 : index
    %11 = vector.load %arg5[%c0_9, %c0_10] : memref<1x96xf32, #tpu.memory_space<vmem>>, vector<1x96xf32>
    %12 = vector.broadcast %11 : vector<1x96xf32> to vector<16x96xf32>
    %13 = arith.addf %10, %12 : vector<16x96xf32>
    %14 = arith.truncf %13 : vector<16x96xf32> to vector<16x96xbf16>
    %15 = vector.extract_strided_slice %14 {offsets = [0, 0], sizes = [8, 8], strides = [1, 1]} : vector<16x96xbf16> to vector<8x8xbf16>
    %16 = vector.extract_strided_slice %14 {offsets = [0, 32], sizes = [8, 8], strides = [1, 1]} : vector<16x96xbf16> to vector<8x8xbf16>
    %17 = vector.extract_strided_slice %14 {offsets = [0, 64], sizes = [8, 8], strides = [1, 1]} : vector<16x96xbf16> to vector<8x8xbf16>
    %cst_11 = arith.constant dense<0.000000e+00> : vector<8x8xf32>
    %18 = tpu.matmul %15, %16, %cst_11 {dimension_numbers = #tpu.dot_dimension_numbers<[1], [1], [0], [0], [0, 0, 1, 0], [], []>} : vector<8x8xbf16>, vector<8x8xbf16>, vector<8x8xf32> -> vector<8x8xf32>
    %cst_12 = arith.constant dense<0xFF800000> : vector<8xf32>
    %19 = vector.multi_reduction <maximumf>, %18, %cst_12 [1] : vector<8x8xf32> to vector<8xf32>
    %20 = vector.shape_cast %19 : vector<8xf32> to vector<8x1xf32>
    %21 = vector.broadcast %20 : vector<8x1xf32> to vector<8x8xf32>
    %22 = arith.subf %18, %21 : vector<8x8xf32>
    %23 = math.exp %22 : vector<8x8xf32>
    %cst_13 = arith.constant dense<0.000000e+00> : vector<8xf32>
    %24 = vector.multi_reduction <add>, %23, %cst_13 [1] : vector<8x8xf32> to vector<8xf32>
    %25 = vector.shape_cast %24 : vector<8xf32> to vector<8x1xf32>
    %26 = tpu.reciprocal %25 {approx = true} : vector<8x1xf32> -> vector<8x1xf32>
    %27 = vector.broadcast %26 : vector<8x1xf32> to vector<8x8xf32>
    %28 = arith.mulf %23, %27 : vector<8x8xf32>
    %29 = arith.truncf %28 : vector<8x8xf32> to vector<8x8xbf16>
    %cst_14 = arith.constant dense<0.000000e+00> : vector<8x8xf32>
    %30 = tpu.matmul %29, %17, %cst_14 {dimension_numbers = #tpu.dot_dimension_numbers<[1], [0], [0], [1], [0, 0, 1, 1], [], []>} : vector<8x8xbf16>, vector<8x8xbf16>, vector<8x8xf32> -> vector<8x8xf32>
    %31 = arith.truncf %30 : vector<8x8xf32> to vector<8x8xbf16>
    %c0_15 = arith.constant 0 : index
    %c0_16 = arith.constant 0 : index
    %c0_17 = arith.constant 0 : index
    %32 = vector.load %arg6[%c0_15, %c0_16, %c0_17] : memref<4x8x32xbf16, #tpu.memory_space<vmem>>, vector<1x8x32xbf16>
    %33 = vector.shape_cast %32 : vector<1x8x32xbf16> to vector<8x32xbf16>
    %cst_18 = arith.constant dense<0.000000e+00> : vector<8x32xf32>
    %34 = tpu.matmul %31, %33, %cst_18 {dimension_numbers = #tpu.dot_dimension_numbers<[1], [0], [0], [1], [0, 0, 1, 1], [], []>} : vector<8x8xbf16>, vector<8x32xbf16>, vector<8x32xf32> -> vector<8x32xf32>
    %35 = vector.extract_strided_slice %14 {offsets = [0, 8], sizes = [8, 8], strides = [1, 1]} : vector<16x96xbf16> to vector<8x8xbf16>
    %36 = vector.extract_strided_slice %14 {offsets = [0, 40], sizes = [8, 8], strides = [1, 1]} : vector<16x96xbf16> to vector<8x8xbf16>
    %37 = vector.extract_strided_slice %14 {offsets = [0, 72], sizes = [8, 8], strides = [1, 1]} : vector<16x96xbf16> to vector<8x8xbf16>
    %cst_19 = arith.constant dense<0.000000e+00> : vector<8x8xf32>
    %38 = tpu.matmul %35, %36, %cst_19 {dimension_numbers = #tpu.dot_dimension_numbers<[1], [1], [0], [0], [0, 0, 1, 0], [], []>} : vector<8x8xbf16>, vector<8x8xbf16>, vector<8x8xf32> -> vector<8x8xf32>
    %cst_20 = arith.constant dense<0xFF800000> : vector<8xf32>
    %39 = vector.multi_reduction <maximumf>, %38, %cst_20 [1] : vector<8x8xf32> to vector<8xf32>
    %40 = vector.shape_cast %39 : vector<8xf32> to vector<8x1xf32>
    %41 = vector.broadcast %40 : vector<8x1xf32> to vector<8x8xf32>
    %42 = arith.subf %38, %41 : vector<8x8xf32>
    %43 = math.exp %42 : vector<8x8xf32>
    %cst_21 = arith.constant dense<0.000000e+00> : vector<8xf32>
    %44 = vector.multi_reduction <add>, %43, %cst_21 [1] : vector<8x8xf32> to vector<8xf32>
    %45 = vector.shape_cast %44 : vector<8xf32> to vector<8x1xf32>
    %46 = tpu.reciprocal %45 {approx = true} : vector<8x1xf32> -> vector<8x1xf32>
    %47 = vector.broadcast %46 : vector<8x1xf32> to vector<8x8xf32>
    %48 = arith.mulf %43, %47 : vector<8x8xf32>
    %49 = arith.truncf %48 : vector<8x8xf32> to vector<8x8xbf16>
    %cst_22 = arith.constant dense<0.000000e+00> : vector<8x8xf32>
    %50 = tpu.matmul %49, %37, %cst_22 {dimension_numbers = #tpu.dot_dimension_numbers<[1], [0], [0], [1], [0, 0, 1, 1], [], []>} : vector<8x8xbf16>, vector<8x8xbf16>, vector<8x8xf32> -> vector<8x8xf32>
    %51 = arith.truncf %50 : vector<8x8xf32> to vector<8x8xbf16>
    %c1 = arith.constant 1 : index
    %c0_23 = arith.constant 0 : index
    %c0_24 = arith.constant 0 : index
    %52 = vector.load %arg6[%c1, %c0_23, %c0_24] : memref<4x8x32xbf16, #tpu.memory_space<vmem>>, vector<1x8x32xbf16>
    %53 = vector.shape_cast %52 : vector<1x8x32xbf16> to vector<8x32xbf16>
    %cst_25 = arith.constant dense<0.000000e+00> : vector<8x32xf32>
    %54 = tpu.matmul %51, %53, %cst_25 {dimension_numbers = #tpu.dot_dimension_numbers<[1], [0], [0], [1], [0, 0, 1, 1], [], []>} : vector<8x8xbf16>, vector<8x32xbf16>, vector<8x32xf32> -> vector<8x32xf32>
    %55 = arith.addf %34, %54 : vector<8x32xf32>
    %56 = vector.extract_strided_slice %14 {offsets = [0, 16], sizes = [8, 8], strides = [1, 1]} : vector<16x96xbf16> to vector<8x8xbf16>
    %57 = vector.extract_strided_slice %14 {offsets = [0, 48], sizes = [8, 8], strides = [1, 1]} : vector<16x96xbf16> to vector<8x8xbf16>
    %58 = vector.extract_strided_slice %14 {offsets = [0, 80], sizes = [8, 8], strides = [1, 1]} : vector<16x96xbf16> to vector<8x8xbf16>
    %cst_26 = arith.constant dense<0.000000e+00> : vector<8x8xf32>
    %59 = tpu.matmul %56, %57, %cst_26 {dimension_numbers = #tpu.dot_dimension_numbers<[1], [1], [0], [0], [0, 0, 1, 0], [], []>} : vector<8x8xbf16>, vector<8x8xbf16>, vector<8x8xf32> -> vector<8x8xf32>
    %cst_27 = arith.constant dense<0xFF800000> : vector<8xf32>
    %60 = vector.multi_reduction <maximumf>, %59, %cst_27 [1] : vector<8x8xf32> to vector<8xf32>
    %61 = vector.shape_cast %60 : vector<8xf32> to vector<8x1xf32>
    %62 = vector.broadcast %61 : vector<8x1xf32> to vector<8x8xf32>
    %63 = arith.subf %59, %62 : vector<8x8xf32>
    %64 = math.exp %63 : vector<8x8xf32>
    %cst_28 = arith.constant dense<0.000000e+00> : vector<8xf32>
    %65 = vector.multi_reduction <add>, %64, %cst_28 [1] : vector<8x8xf32> to vector<8xf32>
    %66 = vector.shape_cast %65 : vector<8xf32> to vector<8x1xf32>
    %67 = tpu.reciprocal %66 {approx = true} : vector<8x1xf32> -> vector<8x1xf32>
    %68 = vector.broadcast %67 : vector<8x1xf32> to vector<8x8xf32>
    %69 = arith.mulf %64, %68 : vector<8x8xf32>
    %70 = arith.truncf %69 : vector<8x8xf32> to vector<8x8xbf16>
    %cst_29 = arith.constant dense<0.000000e+00> : vector<8x8xf32>
    %71 = tpu.matmul %70, %58, %cst_29 {dimension_numbers = #tpu.dot_dimension_numbers<[1], [0], [0], [1], [0, 0, 1, 1], [], []>} : vector<8x8xbf16>, vector<8x8xbf16>, vector<8x8xf32> -> vector<8x8xf32>
    %72 = arith.truncf %71 : vector<8x8xf32> to vector<8x8xbf16>
    %c2 = arith.constant 2 : index
    %c0_30 = arith.constant 0 : index
    %c0_31 = arith.constant 0 : index
    %73 = vector.load %arg6[%c2, %c0_30, %c0_31] : memref<4x8x32xbf16, #tpu.memory_space<vmem>>, vector<1x8x32xbf16>
    %74 = vector.shape_cast %73 : vector<1x8x32xbf16> to vector<8x32xbf16>
    %cst_32 = arith.constant dense<0.000000e+00> : vector<8x32xf32>
    %75 = tpu.matmul %72, %74, %cst_32 {dimension_numbers = #tpu.dot_dimension_numbers<[1], [0], [0], [1], [0, 0, 1, 1], [], []>} : vector<8x8xbf16>, vector<8x32xbf16>, vector<8x32xf32> -> vector<8x32xf32>
    %76 = arith.addf %55, %75 : vector<8x32xf32>
    %77 = vector.extract_strided_slice %14 {offsets = [0, 24], sizes = [8, 8], strides = [1, 1]} : vector<16x96xbf16> to vector<8x8xbf16>
    %78 = vector.extract_strided_slice %14 {offsets = [0, 56], sizes = [8, 8], strides = [1, 1]} : vector<16x96xbf16> to vector<8x8xbf16>
    %79 = vector.extract_strided_slice %14 {offsets = [0, 88], sizes = [8, 8], strides = [1, 1]} : vector<16x96xbf16> to vector<8x8xbf16>
    %cst_33 = arith.constant dense<0.000000e+00> : vector<8x8xf32>
    %80 = tpu.matmul %77, %78, %cst_33 {dimension_numbers = #tpu.dot_dimension_numbers<[1], [1], [0], [0], [0, 0, 1, 0], [], []>} : vector<8x8xbf16>, vector<8x8xbf16>, vector<8x8xf32> -> vector<8x8xf32>
    %cst_34 = arith.constant dense<0xFF800000> : vector<8xf32>
    %81 = vector.multi_reduction <maximumf>, %80, %cst_34 [1] : vector<8x8xf32> to vector<8xf32>
    %82 = vector.shape_cast %81 : vector<8xf32> to vector<8x1xf32>
    %83 = vector.broadcast %82 : vector<8x1xf32> to vector<8x8xf32>
    %84 = arith.subf %80, %83 : vector<8x8xf32>
    %85 = math.exp %84 : vector<8x8xf32>
    %cst_35 = arith.constant dense<0.000000e+00> : vector<8xf32>
    %86 = vector.multi_reduction <add>, %85, %cst_35 [1] : vector<8x8xf32> to vector<8xf32>
    %87 = vector.shape_cast %86 : vector<8xf32> to vector<8x1xf32>
    %88 = tpu.reciprocal %87 {approx = true} : vector<8x1xf32> -> vector<8x1xf32>
    %89 = vector.broadcast %88 : vector<8x1xf32> to vector<8x8xf32>
    %90 = arith.mulf %85, %89 : vector<8x8xf32>
    %91 = arith.truncf %90 : vector<8x8xf32> to vector<8x8xbf16>
    %cst_36 = arith.constant dense<0.000000e+00> : vector<8x8xf32>
    %92 = tpu.matmul %91, %79, %cst_36 {dimension_numbers = #tpu.dot_dimension_numbers<[1], [0], [0], [1], [0, 0, 1, 1], [], []>} : vector<8x8xbf16>, vector<8x8xbf16>, vector<8x8xf32> -> vector<8x8xf32>
    %93 = arith.truncf %92 : vector<8x8xf32> to vector<8x8xbf16>
    %c3 = arith.constant 3 : index
    %c0_37 = arith.constant 0 : index
    %c0_38 = arith.constant 0 : index
    %94 = vector.load %arg6[%c3, %c0_37, %c0_38] : memref<4x8x32xbf16, #tpu.memory_space<vmem>>, vector<1x8x32xbf16>
    %95 = vector.shape_cast %94 : vector<1x8x32xbf16> to vector<8x32xbf16>
    %cst_39 = arith.constant dense<0.000000e+00> : vector<8x32xf32>
    %96 = tpu.matmul %93, %95, %cst_39 {dimension_numbers = #tpu.dot_dimension_numbers<[1], [0], [0], [1], [0, 0, 1, 1], [], []>} : vector<8x8xbf16>, vector<8x32xbf16>, vector<8x32xf32> -> vector<8x32xf32>
    %97 = arith.addf %76, %96 : vector<8x32xf32>
    %98 = vector.extract_strided_slice %14 {offsets = [8, 0], sizes = [8, 8], strides = [1, 1]} : vector<16x96xbf16> to vector<8x8xbf16>
    %99 = vector.extract_strided_slice %14 {offsets = [8, 32], sizes = [8, 8], strides = [1, 1]} : vector<16x96xbf16> to vector<8x8xbf16>
    %100 = vector.extract_strided_slice %14 {offsets = [8, 64], sizes = [8, 8], strides = [1, 1]} : vector<16x96xbf16> to vector<8x8xbf16>
    %cst_40 = arith.constant dense<0.000000e+00> : vector<8x8xf32>
    %101 = tpu.matmul %98, %99, %cst_40 {dimension_numbers = #tpu.dot_dimension_numbers<[1], [1], [0], [0], [0, 0, 1, 0], [], []>} : vector<8x8xbf16>, vector<8x8xbf16>, vector<8x8xf32> -> vector<8x8xf32>
    %cst_41 = arith.constant dense<0xFF800000> : vector<8xf32>
    %102 = vector.multi_reduction <maximumf>, %101, %cst_41 [1] : vector<8x8xf32> to vector<8xf32>
    %103 = vector.shape_cast %102 : vector<8xf32> to vector<8x1xf32>
    %104 = vector.broadcast %103 : vector<8x1xf32> to vector<8x8xf32>
    %105 = arith.subf %101, %104 : vector<8x8xf32>
    %106 = math.exp %105 : vector<8x8xf32>
    %cst_42 = arith.constant dense<0.000000e+00> : vector<8xf32>
    %107 = vector.multi_reduction <add>, %106, %cst_42 [1] : vector<8x8xf32> to vector<8xf32>
    %108 = vector.shape_cast %107 : vector<8xf32> to vector<8x1xf32>
    %109 = tpu.reciprocal %108 {approx = true} : vector<8x1xf32> -> vector<8x1xf32>
    %110 = vector.broadcast %109 : vector<8x1xf32> to vector<8x8xf32>
    %111 = arith.mulf %106, %110 : vector<8x8xf32>
    %112 = arith.truncf %111 : vector<8x8xf32> to vector<8x8xbf16>
    %cst_43 = arith.constant dense<0.000000e+00> : vector<8x8xf32>
    %113 = tpu.matmul %112, %100, %cst_43 {dimension_numbers = #tpu.dot_dimension_numbers<[1], [0], [0], [1], [0, 0, 1, 1], [], []>} : vector<8x8xbf16>, vector<8x8xbf16>, vector<8x8xf32> -> vector<8x8xf32>
    %114 = arith.truncf %113 : vector<8x8xf32> to vector<8x8xbf16>
    %c0_44 = arith.constant 0 : index
    %c0_45 = arith.constant 0 : index
    %c0_46 = arith.constant 0 : index
    %115 = vector.load %arg6[%c0_44, %c0_45, %c0_46] : memref<4x8x32xbf16, #tpu.memory_space<vmem>>, vector<1x8x32xbf16>
    %116 = vector.shape_cast %115 : vector<1x8x32xbf16> to vector<8x32xbf16>
    %cst_47 = arith.constant dense<0.000000e+00> : vector<8x32xf32>
    %117 = tpu.matmul %114, %116, %cst_47 {dimension_numbers = #tpu.dot_dimension_numbers<[1], [0], [0], [1], [0, 0, 1, 1], [], []>} : vector<8x8xbf16>, vector<8x32xbf16>, vector<8x32xf32> -> vector<8x32xf32>
    %118 = vector.extract_strided_slice %14 {offsets = [8, 8], sizes = [8, 8], strides = [1, 1]} : vector<16x96xbf16> to vector<8x8xbf16>
    %119 = vector.extract_strided_slice %14 {offsets = [8, 40], sizes = [8, 8], strides = [1, 1]} : vector<16x96xbf16> to vector<8x8xbf16>
    %120 = vector.extract_strided_slice %14 {offsets = [8, 72], sizes = [8, 8], strides = [1, 1]} : vector<16x96xbf16> to vector<8x8xbf16>
    %cst_48 = arith.constant dense<0.000000e+00> : vector<8x8xf32>
    %121 = tpu.matmul %118, %119, %cst_48 {dimension_numbers = #tpu.dot_dimension_numbers<[1], [1], [0], [0], [0, 0, 1, 0], [], []>} : vector<8x8xbf16>, vector<8x8xbf16>, vector<8x8xf32> -> vector<8x8xf32>
    %cst_49 = arith.constant dense<0xFF800000> : vector<8xf32>
    %122 = vector.multi_reduction <maximumf>, %121, %cst_49 [1] : vector<8x8xf32> to vector<8xf32>
    %123 = vector.shape_cast %122 : vector<8xf32> to vector<8x1xf32>
    %124 = vector.broadcast %123 : vector<8x1xf32> to vector<8x8xf32>
    %125 = arith.subf %121, %124 : vector<8x8xf32>
    %126 = math.exp %125 : vector<8x8xf32>
    %cst_50 = arith.constant dense<0.000000e+00> : vector<8xf32>
    %127 = vector.multi_reduction <add>, %126, %cst_50 [1] : vector<8x8xf32> to vector<8xf32>
    %128 = vector.shape_cast %127 : vector<8xf32> to vector<8x1xf32>
    %129 = tpu.reciprocal %128 {approx = true} : vector<8x1xf32> -> vector<8x1xf32>
    %130 = vector.broadcast %129 : vector<8x1xf32> to vector<8x8xf32>
    %131 = arith.mulf %126, %130 : vector<8x8xf32>
    %132 = arith.truncf %131 : vector<8x8xf32> to vector<8x8xbf16>
    %cst_51 = arith.constant dense<0.000000e+00> : vector<8x8xf32>
    %133 = tpu.matmul %132, %120, %cst_51 {dimension_numbers = #tpu.dot_dimension_numbers<[1], [0], [0], [1], [0, 0, 1, 1], [], []>} : vector<8x8xbf16>, vector<8x8xbf16>, vector<8x8xf32> -> vector<8x8xf32>
    %134 = arith.truncf %133 : vector<8x8xf32> to vector<8x8xbf16>
    %c1_52 = arith.constant 1 : index
    %c0_53 = arith.constant 0 : index
    %c0_54 = arith.constant 0 : index
    %135 = vector.load %arg6[%c1_52, %c0_53, %c0_54] : memref<4x8x32xbf16, #tpu.memory_space<vmem>>, vector<1x8x32xbf16>
    %136 = vector.shape_cast %135 : vector<1x8x32xbf16> to vector<8x32xbf16>
    %cst_55 = arith.constant dense<0.000000e+00> : vector<8x32xf32>
    %137 = tpu.matmul %134, %136, %cst_55 {dimension_numbers = #tpu.dot_dimension_numbers<[1], [0], [0], [1], [0, 0, 1, 1], [], []>} : vector<8x8xbf16>, vector<8x32xbf16>, vector<8x32xf32> -> vector<8x32xf32>
    %138 = arith.addf %117, %137 : vector<8x32xf32>
    %139 = vector.extract_strided_slice %14 {offsets = [8, 16], sizes = [8, 8], strides = [1, 1]} : vector<16x96xbf16> to vector<8x8xbf16>
    %140 = vector.extract_strided_slice %14 {offsets = [8, 48], sizes = [8, 8], strides = [1, 1]} : vector<16x96xbf16> to vector<8x8xbf16>
    %141 = vector.extract_strided_slice %14 {offsets = [8, 80], sizes = [8, 8], strides = [1, 1]} : vector<16x96xbf16> to vector<8x8xbf16>
    %cst_56 = arith.constant dense<0.000000e+00> : vector<8x8xf32>
    %142 = tpu.matmul %139, %140, %cst_56 {dimension_numbers = #tpu.dot_dimension_numbers<[1], [1], [0], [0], [0, 0, 1, 0], [], []>} : vector<8x8xbf16>, vector<8x8xbf16>, vector<8x8xf32> -> vector<8x8xf32>
    %cst_57 = arith.constant dense<0xFF800000> : vector<8xf32>
    %143 = vector.multi_reduction <maximumf>, %142, %cst_57 [1] : vector<8x8xf32> to vector<8xf32>
    %144 = vector.shape_cast %143 : vector<8xf32> to vector<8x1xf32>
    %145 = vector.broadcast %144 : vector<8x1xf32> to vector<8x8xf32>
    %146 = arith.subf %142, %145 : vector<8x8xf32>
    %147 = math.exp %146 : vector<8x8xf32>
    %cst_58 = arith.constant dense<0.000000e+00> : vector<8xf32>
    %148 = vector.multi_reduction <add>, %147, %cst_58 [1] : vector<8x8xf32> to vector<8xf32>
    %149 = vector.shape_cast %148 : vector<8xf32> to vector<8x1xf32>
    %150 = tpu.reciprocal %149 {approx = true} : vector<8x1xf32> -> vector<8x1xf32>
    %151 = vector.broadcast %150 : vector<8x1xf32> to vector<8x8xf32>
    %152 = arith.mulf %147, %151 : vector<8x8xf32>
    %153 = arith.truncf %152 : vector<8x8xf32> to vector<8x8xbf16>
    %cst_59 = arith.constant dense<0.000000e+00> : vector<8x8xf32>
    %154 = tpu.matmul %153, %141, %cst_59 {dimension_numbers = #tpu.dot_dimension_numbers<[1], [0], [0], [1], [0, 0, 1, 1], [], []>} : vector<8x8xbf16>, vector<8x8xbf16>, vector<8x8xf32> -> vector<8x8xf32>
    %155 = arith.truncf %154 : vector<8x8xf32> to vector<8x8xbf16>
    %c2_60 = arith.constant 2 : index
    %c0_61 = arith.constant 0 : index
    %c0_62 = arith.constant 0 : index
    %156 = vector.load %arg6[%c2_60, %c0_61, %c0_62] : memref<4x8x32xbf16, #tpu.memory_space<vmem>>, vector<1x8x32xbf16>
    %157 = vector.shape_cast %156 : vector<1x8x32xbf16> to vector<8x32xbf16>
    %cst_63 = arith.constant dense<0.000000e+00> : vector<8x32xf32>
    %158 = tpu.matmul %155, %157, %cst_63 {dimension_numbers = #tpu.dot_dimension_numbers<[1], [0], [0], [1], [0, 0, 1, 1], [], []>} : vector<8x8xbf16>, vector<8x32xbf16>, vector<8x32xf32> -> vector<8x32xf32>
    %159 = arith.addf %138, %158 : vector<8x32xf32>
    %160 = vector.extract_strided_slice %14 {offsets = [8, 24], sizes = [8, 8], strides = [1, 1]} : vector<16x96xbf16> to vector<8x8xbf16>
    %161 = vector.extract_strided_slice %14 {offsets = [8, 56], sizes = [8, 8], strides = [1, 1]} : vector<16x96xbf16> to vector<8x8xbf16>
    %162 = vector.extract_strided_slice %14 {offsets = [8, 88], sizes = [8, 8], strides = [1, 1]} : vector<16x96xbf16> to vector<8x8xbf16>
    %cst_64 = arith.constant dense<0.000000e+00> : vector<8x8xf32>
    %163 = tpu.matmul %160, %161, %cst_64 {dimension_numbers = #tpu.dot_dimension_numbers<[1], [1], [0], [0], [0, 0, 1, 0], [], []>} : vector<8x8xbf16>, vector<8x8xbf16>, vector<8x8xf32> -> vector<8x8xf32>
    %cst_65 = arith.constant dense<0xFF800000> : vector<8xf32>
    %164 = vector.multi_reduction <maximumf>, %163, %cst_65 [1] : vector<8x8xf32> to vector<8xf32>
    %165 = vector.shape_cast %164 : vector<8xf32> to vector<8x1xf32>
    %166 = vector.broadcast %165 : vector<8x1xf32> to vector<8x8xf32>
    %167 = arith.subf %163, %166 : vector<8x8xf32>
    %168 = math.exp %167 : vector<8x8xf32>
    %cst_66 = arith.constant dense<0.000000e+00> : vector<8xf32>
    %169 = vector.multi_reduction <add>, %168, %cst_66 [1] : vector<8x8xf32> to vector<8xf32>
    %170 = vector.shape_cast %169 : vector<8xf32> to vector<8x1xf32>
    %171 = tpu.reciprocal %170 {approx = true} : vector<8x1xf32> -> vector<8x1xf32>
    %172 = vector.broadcast %171 : vector<8x1xf32> to vector<8x8xf32>
    %173 = arith.mulf %168, %172 : vector<8x8xf32>
    %174 = arith.truncf %173 : vector<8x8xf32> to vector<8x8xbf16>
    %cst_67 = arith.constant dense<0.000000e+00> : vector<8x8xf32>
    %175 = tpu.matmul %174, %162, %cst_67 {dimension_numbers = #tpu.dot_dimension_numbers<[1], [0], [0], [1], [0, 0, 1, 1], [], []>} : vector<8x8xbf16>, vector<8x8xbf16>, vector<8x8xf32> -> vector<8x8xf32>
    %176 = arith.truncf %175 : vector<8x8xf32> to vector<8x8xbf16>
    %c3_68 = arith.constant 3 : index
    %c0_69 = arith.constant 0 : index
    %c0_70 = arith.constant 0 : index
    %177 = vector.load %arg6[%c3_68, %c0_69, %c0_70] : memref<4x8x32xbf16, #tpu.memory_space<vmem>>, vector<1x8x32xbf16>
    %178 = vector.shape_cast %177 : vector<1x8x32xbf16> to vector<8x32xbf16>
    %cst_71 = arith.constant dense<0.000000e+00> : vector<8x32xf32>
    %179 = tpu.matmul %176, %178, %cst_71 {dimension_numbers = #tpu.dot_dimension_numbers<[1], [0], [0], [1], [0, 0, 1, 1], [], []>} : vector<8x8xbf16>, vector<8x32xbf16>, vector<8x32xf32> -> vector<8x32xf32>
    %180 = arith.addf %159, %179 : vector<8x32xf32>
    %181 = tpu.concatenate %97, %180 in 0 : vector<8x32xf32>, vector<8x32xf32> -> vector<16x32xf32>
    %182 = arith.addf %7, %181 : vector<16x32xf32>
    %c0_72 = arith.constant 0 : index
    %c0_73 = arith.constant 0 : index
    %183 = vector.load %arg7[%c0_72, %c0_73] : memref<1x32xf32, #tpu.memory_space<vmem>>, vector<1x32xf32>
    %184 = vector.broadcast %183 : vector<1x32xf32> to vector<16x32xf32>
    %185 = arith.addf %182, %184 : vector<16x32xf32>
    %cst_74 = arith.constant dense<0.000000e+00> : vector<16xf32>
    %186 = vector.multi_reduction <add>, %185, %cst_74 [1] : vector<16x32xf32> to vector<16xf32>
    %187 = vector.shape_cast %186 : vector<16xf32> to vector<16x1xf32>
    %cst_75 = arith.constant 3.200000e+01 : f32
    %188 = vector.broadcast %cst_75 : f32 to vector<16x1xf32>
    %189 = arith.divf %187, %188 : vector<16x1xf32>
    %190 = vector.broadcast %189 : vector<16x1xf32> to vector<16x32xf32>
    %191 = arith.subf %185, %190 : vector<16x32xf32>
    %192 = arith.mulf %191, %191 : vector<16x32xf32>
    %cst_76 = arith.constant dense<0.000000e+00> : vector<16xf32>
    %193 = vector.multi_reduction <add>, %192, %cst_76 [1] : vector<16x32xf32> to vector<16xf32>
    %194 = vector.shape_cast %193 : vector<16xf32> to vector<16x1xf32>
    %cst_77 = arith.constant 3.200000e+01 : f32
    %195 = vector.broadcast %cst_77 : f32 to vector<16x1xf32>
    %196 = arith.divf %194, %195 : vector<16x1xf32>
    %197 = vector.broadcast %189 : vector<16x1xf32> to vector<16x32xf32>
    %198 = arith.subf %185, %197 : vector<16x32xf32>
    %cst_78 = arith.constant 9.99999974E-6 : f32
    %199 = vector.broadcast %cst_78 : f32 to vector<16x1xf32>
    %200 = arith.addf %196, %199 : vector<16x1xf32>
    %201 = math.rsqrt %200 : vector<16x1xf32>
    %202 = vector.broadcast %201 : vector<16x1xf32> to vector<16x32xf32>
    %203 = arith.mulf %198, %202 : vector<16x32xf32>
    %c0_79 = arith.constant 0 : index
    %c0_80 = arith.constant 0 : index
    %204 = vector.load %arg8[%c0_79, %c0_80] : memref<1x32xf32, #tpu.memory_space<vmem>>, vector<1x32xf32>
    %205 = vector.broadcast %204 : vector<1x32xf32> to vector<16x32xf32>
    %206 = arith.mulf %203, %205 : vector<16x32xf32>
    %c0_81 = arith.constant 0 : index
    %c0_82 = arith.constant 0 : index
    %207 = vector.load %arg9[%c0_81, %c0_82] : memref<1x32xf32, #tpu.memory_space<vmem>>, vector<1x32xf32>
    %208 = vector.broadcast %207 : vector<1x32xf32> to vector<16x32xf32>
    %209 = arith.addf %206, %208 : vector<16x32xf32>
    %210 = arith.truncf %209 : vector<16x32xf32> to vector<16x32xbf16>
    %c0_83 = arith.constant 0 : index
    %c0_84 = arith.constant 0 : index
    %211 = vector.load %arg10[%c0_83, %c0_84] : memref<32x2048xbf16, #tpu.memory_space<vmem>>, vector<32x2048xbf16>
    %cst_85 = arith.constant dense<0.000000e+00> : vector<16x2048xf32>
    %212 = tpu.matmul %210, %211, %cst_85 {dimension_numbers = #tpu.dot_dimension_numbers<[1], [0], [0], [1], [0, 0, 1, 1], [], []>} : vector<16x32xbf16>, vector<32x2048xbf16>, vector<16x2048xf32> -> vector<16x2048xf32>
    %c0_86 = arith.constant 0 : index
    %c0_87 = arith.constant 0 : index
    %213 = vector.load %arg11[%c0_86, %c0_87] : memref<1x2048xf32, #tpu.memory_space<vmem>>, vector<1x2048xf32>
    %214 = vector.broadcast %213 : vector<1x2048xf32> to vector<16x2048xf32>
    %215 = arith.addf %212, %214 : vector<16x2048xf32>
    %cst_88 = arith.constant 0.000000e+00 : f32
    %216 = vector.broadcast %cst_88 : f32 to vector<16x2048xf32>
    %217 = arith.maximumf %215, %216 : vector<16x2048xf32>
    %218 = arith.truncf %217 : vector<16x2048xf32> to vector<16x2048xbf16>
    %c0_89 = arith.constant 0 : index
    %c0_90 = arith.constant 0 : index
    %219 = vector.load %arg12[%c0_89, %c0_90] : memref<2048x32xbf16, #tpu.memory_space<vmem>>, vector<2048x32xbf16>
    %cst_91 = arith.constant dense<0.000000e+00> : vector<16x32xf32>
    %220 = tpu.matmul %218, %219, %cst_91 {dimension_numbers = #tpu.dot_dimension_numbers<[1], [0], [0], [1], [0, 0, 1, 1], [], []>} : vector<16x2048xbf16>, vector<2048x32xbf16>, vector<16x32xf32> -> vector<16x32xf32>
    %c0_92 = arith.constant 0 : index
    %c0_93 = arith.constant 0 : index
    %221 = vector.load %arg13[%c0_92, %c0_93] : memref<1x32xf32, #tpu.memory_space<vmem>>, vector<1x32xf32>
    %222 = vector.broadcast %221 : vector<1x32xf32> to vector<16x32xf32>
    %223 = arith.addf %220, %222 : vector<16x32xf32>
    %224 = arith.addf %209, %223 : vector<16x32xf32>
    %cst_94 = arith.constant dense<0.000000e+00> : vector<16xf32>
    %225 = vector.multi_reduction <add>, %224, %cst_94 [1] : vector<16x32xf32> to vector<16xf32>
    %226 = vector.shape_cast %225 : vector<16xf32> to vector<16x1xf32>
    %cst_95 = arith.constant 3.200000e+01 : f32
    %227 = vector.broadcast %cst_95 : f32 to vector<16x1xf32>
    %228 = arith.divf %226, %227 : vector<16x1xf32>
    %229 = vector.broadcast %228 : vector<16x1xf32> to vector<16x32xf32>
    %230 = arith.subf %224, %229 : vector<16x32xf32>
    %231 = arith.mulf %230, %230 : vector<16x32xf32>
    %cst_96 = arith.constant dense<0.000000e+00> : vector<16xf32>
    %232 = vector.multi_reduction <add>, %231, %cst_96 [1] : vector<16x32xf32> to vector<16xf32>
    %233 = vector.shape_cast %232 : vector<16xf32> to vector<16x1xf32>
    %cst_97 = arith.constant 3.200000e+01 : f32
    %234 = vector.broadcast %cst_97 : f32 to vector<16x1xf32>
    %235 = arith.divf %233, %234 : vector<16x1xf32>
    %236 = vector.broadcast %228 : vector<16x1xf32> to vector<16x32xf32>
    %237 = arith.subf %224, %236 : vector<16x32xf32>
    %cst_98 = arith.constant 9.99999974E-6 : f32
    %238 = vector.broadcast %cst_98 : f32 to vector<16x1xf32>
    %239 = arith.addf %235, %238 : vector<16x1xf32>
    %240 = math.rsqrt %239 : vector<16x1xf32>
    %241 = vector.broadcast %240 : vector<16x1xf32> to vector<16x32xf32>
    %242 = arith.mulf %237, %241 : vector<16x32xf32>
    %c0_99 = arith.constant 0 : index
    %c0_100 = arith.constant 0 : index
    %243 = vector.load %arg14[%c0_99, %c0_100] : memref<1x32xf32, #tpu.memory_space<vmem>>, vector<1x32xf32>
    %244 = vector.broadcast %243 : vector<1x32xf32> to vector<16x32xf32>
    %245 = arith.mulf %242, %244 : vector<16x32xf32>
    %c0_101 = arith.constant 0 : index
    %c0_102 = arith.constant 0 : index
    %246 = vector.load %arg15[%c0_101, %c0_102] : memref<1x32xf32, #tpu.memory_space<vmem>>, vector<1x32xf32>
    %247 = vector.broadcast %246 : vector<1x32xf32> to vector<16x32xf32>
    %248 = arith.addf %245, %247 : vector<16x32xf32>
    %249 = arith.truncf %248 : vector<16x32xf32> to vector<16x32xbf16>
    %c0_103 = arith.constant 0 : index
    %c0_104 = arith.constant 0 : index
    %250 = vector.load %arg16[%c0_103, %c0_104] : memref<32x96xbf16, #tpu.memory_space<vmem>>, vector<32x96xbf16>
    %cst_105 = arith.constant dense<0.000000e+00> : vector<16x96xf32>
    %251 = tpu.matmul %249, %250, %cst_105 {dimension_numbers = #tpu.dot_dimension_numbers<[1], [0], [0], [1], [0, 0, 1, 1], [], []>} : vector<16x32xbf16>, vector<32x96xbf16>, vector<16x96xf32> -> vector<16x96xf32>
    %c0_106 = arith.constant 0 : index
    %c0_107 = arith.constant 0 : index
    %252 = vector.load %arg17[%c0_106, %c0_107] : memref<1x96xf32, #tpu.memory_space<vmem>>, vector<1x96xf32>
    %253 = vector.broadcast %252 : vector<1x96xf32> to vector<16x96xf32>
    %254 = arith.addf %251, %253 : vector<16x96xf32>
    %255 = arith.truncf %254 : vector<16x96xf32> to vector<16x96xbf16>
    %256 = vector.extract_strided_slice %255 {offsets = [0, 0], sizes = [8, 8], strides = [1, 1]} : vector<16x96xbf16> to vector<8x8xbf16>
    %257 = vector.extract_strided_slice %255 {offsets = [0, 32], sizes = [8, 8], strides = [1, 1]} : vector<16x96xbf16> to vector<8x8xbf16>
    %258 = vector.extract_strided_slice %255 {offsets = [0, 64], sizes = [8, 8], strides = [1, 1]} : vector<16x96xbf16> to vector<8x8xbf16>
    %cst_108 = arith.constant dense<0.000000e+00> : vector<8x8xf32>
    %259 = tpu.matmul %256, %257, %cst_108 {dimension_numbers = #tpu.dot_dimension_numbers<[1], [1], [0], [0], [0, 0, 1, 0], [], []>} : vector<8x8xbf16>, vector<8x8xbf16>, vector<8x8xf32> -> vector<8x8xf32>
    %cst_109 = arith.constant dense<0xFF800000> : vector<8xf32>
    %260 = vector.multi_reduction <maximumf>, %259, %cst_109 [1] : vector<8x8xf32> to vector<8xf32>
    %261 = vector.shape_cast %260 : vector<8xf32> to vector<8x1xf32>
    %262 = vector.broadcast %261 : vector<8x1xf32> to vector<8x8xf32>
    %263 = arith.subf %259, %262 : vector<8x8xf32>
    %264 = math.exp %263 : vector<8x8xf32>
    %cst_110 = arith.constant dense<0.000000e+00> : vector<8xf32>
    %265 = vector.multi_reduction <add>, %264, %cst_110 [1] : vector<8x8xf32> to vector<8xf32>
    %266 = vector.shape_cast %265 : vector<8xf32> to vector<8x1xf32>
    %267 = tpu.reciprocal %266 {approx = true} : vector<8x1xf32> -> vector<8x1xf32>
    %268 = vector.broadcast %267 : vector<8x1xf32> to vector<8x8xf32>
    %269 = arith.mulf %264, %268 : vector<8x8xf32>
    %270 = arith.truncf %269 : vector<8x8xf32> to vector<8x8xbf16>
    %cst_111 = arith.constant dense<0.000000e+00> : vector<8x8xf32>
    %271 = tpu.matmul %270, %258, %cst_111 {dimension_numbers = #tpu.dot_dimension_numbers<[1], [0], [0], [1], [0, 0, 1, 1], [], []>} : vector<8x8xbf16>, vector<8x8xbf16>, vector<8x8xf32> -> vector<8x8xf32>
    %272 = arith.truncf %271 : vector<8x8xf32> to vector<8x8xbf16>
    %c0_112 = arith.constant 0 : index
    %c0_113 = arith.constant 0 : index
    %c0_114 = arith.constant 0 : index
    %273 = vector.load %arg18[%c0_112, %c0_113, %c0_114] : memref<4x8x32xbf16, #tpu.memory_space<vmem>>, vector<1x8x32xbf16>
    %274 = vector.shape_cast %273 : vector<1x8x32xbf16> to vector<8x32xbf16>
    %cst_115 = arith.constant dense<0.000000e+00> : vector<8x32xf32>
    %275 = tpu.matmul %272, %274, %cst_115 {dimension_numbers = #tpu.dot_dimension_numbers<[1], [0], [0], [1], [0, 0, 1, 1], [], []>} : vector<8x8xbf16>, vector<8x32xbf16>, vector<8x32xf32> -> vector<8x32xf32>
    %276 = vector.extract_strided_slice %255 {offsets = [0, 8], sizes = [8, 8], strides = [1, 1]} : vector<16x96xbf16> to vector<8x8xbf16>
    %277 = vector.extract_strided_slice %255 {offsets = [0, 40], sizes = [8, 8], strides = [1, 1]} : vector<16x96xbf16> to vector<8x8xbf16>
    %278 = vector.extract_strided_slice %255 {offsets = [0, 72], sizes = [8, 8], strides = [1, 1]} : vector<16x96xbf16> to vector<8x8xbf16>
    %cst_116 = arith.constant dense<0.000000e+00> : vector<8x8xf32>
    %279 = tpu.matmul %276, %277, %cst_116 {dimension_numbers = #tpu.dot_dimension_numbers<[1], [1], [0], [0], [0, 0, 1, 0], [], []>} : vector<8x8xbf16>, vector<8x8xbf16>, vector<8x8xf32> -> vector<8x8xf32>
    %cst_117 = arith.constant dense<0xFF800000> : vector<8xf32>
    %280 = vector.multi_reduction <maximumf>, %279, %cst_117 [1] : vector<8x8xf32> to vector<8xf32>
    %281 = vector.shape_cast %280 : vector<8xf32> to vector<8x1xf32>
    %282 = vector.broadcast %281 : vector<8x1xf32> to vector<8x8xf32>
    %283 = arith.subf %279, %282 : vector<8x8xf32>
    %284 = math.exp %283 : vector<8x8xf32>
    %cst_118 = arith.constant dense<0.000000e+00> : vector<8xf32>
    %285 = vector.multi_reduction <add>, %284, %cst_118 [1] : vector<8x8xf32> to vector<8xf32>
    %286 = vector.shape_cast %285 : vector<8xf32> to vector<8x1xf32>
    %287 = tpu.reciprocal %286 {approx = true} : vector<8x1xf32> -> vector<8x1xf32>
    %288 = vector.broadcast %287 : vector<8x1xf32> to vector<8x8xf32>
    %289 = arith.mulf %284, %288 : vector<8x8xf32>
    %290 = arith.truncf %289 : vector<8x8xf32> to vector<8x8xbf16>
    %cst_119 = arith.constant dense<0.000000e+00> : vector<8x8xf32>
    %291 = tpu.matmul %290, %278, %cst_119 {dimension_numbers = #tpu.dot_dimension_numbers<[1], [0], [0], [1], [0, 0, 1, 1], [], []>} : vector<8x8xbf16>, vector<8x8xbf16>, vector<8x8xf32> -> vector<8x8xf32>
    %292 = arith.truncf %291 : vector<8x8xf32> to vector<8x8xbf16>
    %c1_120 = arith.constant 1 : index
    %c0_121 = arith.constant 0 : index
    %c0_122 = arith.constant 0 : index
    %293 = vector.load %arg18[%c1_120, %c0_121, %c0_122] : memref<4x8x32xbf16, #tpu.memory_space<vmem>>, vector<1x8x32xbf16>
    %294 = vector.shape_cast %293 : vector<1x8x32xbf16> to vector<8x32xbf16>
    %cst_123 = arith.constant dense<0.000000e+00> : vector<8x32xf32>
    %295 = tpu.matmul %292, %294, %cst_123 {dimension_numbers = #tpu.dot_dimension_numbers<[1], [0], [0], [1], [0, 0, 1, 1], [], []>} : vector<8x8xbf16>, vector<8x32xbf16>, vector<8x32xf32> -> vector<8x32xf32>
    %296 = arith.addf %275, %295 : vector<8x32xf32>
    %297 = vector.extract_strided_slice %255 {offsets = [0, 16], sizes = [8, 8], strides = [1, 1]} : vector<16x96xbf16> to vector<8x8xbf16>
    %298 = vector.extract_strided_slice %255 {offsets = [0, 48], sizes = [8, 8], strides = [1, 1]} : vector<16x96xbf16> to vector<8x8xbf16>
    %299 = vector.extract_strided_slice %255 {offsets = [0, 80], sizes = [8, 8], strides = [1, 1]} : vector<16x96xbf16> to vector<8x8xbf16>
    %cst_124 = arith.constant dense<0.000000e+00> : vector<8x8xf32>
    %300 = tpu.matmul %297, %298, %cst_124 {dimension_numbers = #tpu.dot_dimension_numbers<[1], [1], [0], [0], [0, 0, 1, 0], [], []>} : vector<8x8xbf16>, vector<8x8xbf16>, vector<8x8xf32> -> vector<8x8xf32>
    %cst_125 = arith.constant dense<0xFF800000> : vector<8xf32>
    %301 = vector.multi_reduction <maximumf>, %300, %cst_125 [1] : vector<8x8xf32> to vector<8xf32>
    %302 = vector.shape_cast %301 : vector<8xf32> to vector<8x1xf32>
    %303 = vector.broadcast %302 : vector<8x1xf32> to vector<8x8xf32>
    %304 = arith.subf %300, %303 : vector<8x8xf32>
    %305 = math.exp %304 : vector<8x8xf32>
    %cst_126 = arith.constant dense<0.000000e+00> : vector<8xf32>
    %306 = vector.multi_reduction <add>, %305, %cst_126 [1] : vector<8x8xf32> to vector<8xf32>
    %307 = vector.shape_cast %306 : vector<8xf32> to vector<8x1xf32>
    %308 = tpu.reciprocal %307 {approx = true} : vector<8x1xf32> -> vector<8x1xf32>
    %309 = vector.broadcast %308 : vector<8x1xf32> to vector<8x8xf32>
    %310 = arith.mulf %305, %309 : vector<8x8xf32>
    %311 = arith.truncf %310 : vector<8x8xf32> to vector<8x8xbf16>
    %cst_127 = arith.constant dense<0.000000e+00> : vector<8x8xf32>
    %312 = tpu.matmul %311, %299, %cst_127 {dimension_numbers = #tpu.dot_dimension_numbers<[1], [0], [0], [1], [0, 0, 1, 1], [], []>} : vector<8x8xbf16>, vector<8x8xbf16>, vector<8x8xf32> -> vector<8x8xf32>
    %313 = arith.truncf %312 : vector<8x8xf32> to vector<8x8xbf16>
    %c2_128 = arith.constant 2 : index
    %c0_129 = arith.constant 0 : index
    %c0_130 = arith.constant 0 : index
    %314 = vector.load %arg18[%c2_128, %c0_129, %c0_130] : memref<4x8x32xbf16, #tpu.memory_space<vmem>>, vector<1x8x32xbf16>
    %315 = vector.shape_cast %314 : vector<1x8x32xbf16> to vector<8x32xbf16>
    %cst_131 = arith.constant dense<0.000000e+00> : vector<8x32xf32>
    %316 = tpu.matmul %313, %315, %cst_131 {dimension_numbers = #tpu.dot_dimension_numbers<[1], [0], [0], [1], [0, 0, 1, 1], [], []>} : vector<8x8xbf16>, vector<8x32xbf16>, vector<8x32xf32> -> vector<8x32xf32>
    %317 = arith.addf %296, %316 : vector<8x32xf32>
    %318 = vector.extract_strided_slice %255 {offsets = [0, 24], sizes = [8, 8], strides = [1, 1]} : vector<16x96xbf16> to vector<8x8xbf16>
    %319 = vector.extract_strided_slice %255 {offsets = [0, 56], sizes = [8, 8], strides = [1, 1]} : vector<16x96xbf16> to vector<8x8xbf16>
    %320 = vector.extract_strided_slice %255 {offsets = [0, 88], sizes = [8, 8], strides = [1, 1]} : vector<16x96xbf16> to vector<8x8xbf16>
    %cst_132 = arith.constant dense<0.000000e+00> : vector<8x8xf32>
    %321 = tpu.matmul %318, %319, %cst_132 {dimension_numbers = #tpu.dot_dimension_numbers<[1], [1], [0], [0], [0, 0, 1, 0], [], []>} : vector<8x8xbf16>, vector<8x8xbf16>, vector<8x8xf32> -> vector<8x8xf32>
    %cst_133 = arith.constant dense<0xFF800000> : vector<8xf32>
    %322 = vector.multi_reduction <maximumf>, %321, %cst_133 [1] : vector<8x8xf32> to vector<8xf32>
    %323 = vector.shape_cast %322 : vector<8xf32> to vector<8x1xf32>
    %324 = vector.broadcast %323 : vector<8x1xf32> to vector<8x8xf32>
    %325 = arith.subf %321, %324 : vector<8x8xf32>
    %326 = math.exp %325 : vector<8x8xf32>
    %cst_134 = arith.constant dense<0.000000e+00> : vector<8xf32>
    %327 = vector.multi_reduction <add>, %326, %cst_134 [1] : vector<8x8xf32> to vector<8xf32>
    %328 = vector.shape_cast %327 : vector<8xf32> to vector<8x1xf32>
    %329 = tpu.reciprocal %328 {approx = true} : vector<8x1xf32> -> vector<8x1xf32>
    %330 = vector.broadcast %329 : vector<8x1xf32> to vector<8x8xf32>
    %331 = arith.mulf %326, %330 : vector<8x8xf32>
    %332 = arith.truncf %331 : vector<8x8xf32> to vector<8x8xbf16>
    %cst_135 = arith.constant dense<0.000000e+00> : vector<8x8xf32>
    %333 = tpu.matmul %332, %320, %cst_135 {dimension_numbers = #tpu.dot_dimension_numbers<[1], [0], [0], [1], [0, 0, 1, 1], [], []>} : vector<8x8xbf16>, vector<8x8xbf16>, vector<8x8xf32> -> vector<8x8xf32>
    %334 = arith.truncf %333 : vector<8x8xf32> to vector<8x8xbf16>
    %c3_136 = arith.constant 3 : index
    %c0_137 = arith.constant 0 : index
    %c0_138 = arith.constant 0 : index
    %335 = vector.load %arg18[%c3_136, %c0_137, %c0_138] : memref<4x8x32xbf16, #tpu.memory_space<vmem>>, vector<1x8x32xbf16>
    %336 = vector.shape_cast %335 : vector<1x8x32xbf16> to vector<8x32xbf16>
    %cst_139 = arith.constant dense<0.000000e+00> : vector<8x32xf32>
    %337 = tpu.matmul %334, %336, %cst_139 {dimension_numbers = #tpu.dot_dimension_numbers<[1], [0], [0], [1], [0, 0, 1, 1], [], []>} : vector<8x8xbf16>, vector<8x32xbf16>, vector<8x32xf32> -> vector<8x32xf32>
    %338 = arith.addf %317, %337 : vector<8x32xf32>
    %339 = vector.extract_strided_slice %255 {offsets = [8, 0], sizes = [8, 8], strides = [1, 1]} : vector<16x96xbf16> to vector<8x8xbf16>
    %340 = vector.extract_strided_slice %255 {offsets = [8, 32], sizes = [8, 8], strides = [1, 1]} : vector<16x96xbf16> to vector<8x8xbf16>
    %341 = vector.extract_strided_slice %255 {offsets = [8, 64], sizes = [8, 8], strides = [1, 1]} : vector<16x96xbf16> to vector<8x8xbf16>
    %cst_140 = arith.constant dense<0.000000e+00> : vector<8x8xf32>
    %342 = tpu.matmul %339, %340, %cst_140 {dimension_numbers = #tpu.dot_dimension_numbers<[1], [1], [0], [0], [0, 0, 1, 0], [], []>} : vector<8x8xbf16>, vector<8x8xbf16>, vector<8x8xf32> -> vector<8x8xf32>
    %cst_141 = arith.constant dense<0xFF800000> : vector<8xf32>
    %343 = vector.multi_reduction <maximumf>, %342, %cst_141 [1] : vector<8x8xf32> to vector<8xf32>
    %344 = vector.shape_cast %343 : vector<8xf32> to vector<8x1xf32>
    %345 = vector.broadcast %344 : vector<8x1xf32> to vector<8x8xf32>
    %346 = arith.subf %342, %345 : vector<8x8xf32>
    %347 = math.exp %346 : vector<8x8xf32>
    %cst_142 = arith.constant dense<0.000000e+00> : vector<8xf32>
    %348 = vector.multi_reduction <add>, %347, %cst_142 [1] : vector<8x8xf32> to vector<8xf32>
    %349 = vector.shape_cast %348 : vector<8xf32> to vector<8x1xf32>
    %350 = tpu.reciprocal %349 {approx = true} : vector<8x1xf32> -> vector<8x1xf32>
    %351 = vector.broadcast %350 : vector<8x1xf32> to vector<8x8xf32>
    %352 = arith.mulf %347, %351 : vector<8x8xf32>
    %353 = arith.truncf %352 : vector<8x8xf32> to vector<8x8xbf16>
    %cst_143 = arith.constant dense<0.000000e+00> : vector<8x8xf32>
    %354 = tpu.matmul %353, %341, %cst_143 {dimension_numbers = #tpu.dot_dimension_numbers<[1], [0], [0], [1], [0, 0, 1, 1], [], []>} : vector<8x8xbf16>, vector<8x8xbf16>, vector<8x8xf32> -> vector<8x8xf32>
    %355 = arith.truncf %354 : vector<8x8xf32> to vector<8x8xbf16>
    %c0_144 = arith.constant 0 : index
    %c0_145 = arith.constant 0 : index
    %c0_146 = arith.constant 0 : index
    %356 = vector.load %arg18[%c0_144, %c0_145, %c0_146] : memref<4x8x32xbf16, #tpu.memory_space<vmem>>, vector<1x8x32xbf16>
    %357 = vector.shape_cast %356 : vector<1x8x32xbf16> to vector<8x32xbf16>
    %cst_147 = arith.constant dense<0.000000e+00> : vector<8x32xf32>
    %358 = tpu.matmul %355, %357, %cst_147 {dimension_numbers = #tpu.dot_dimension_numbers<[1], [0], [0], [1], [0, 0, 1, 1], [], []>} : vector<8x8xbf16>, vector<8x32xbf16>, vector<8x32xf32> -> vector<8x32xf32>
    %359 = vector.extract_strided_slice %255 {offsets = [8, 8], sizes = [8, 8], strides = [1, 1]} : vector<16x96xbf16> to vector<8x8xbf16>
    %360 = vector.extract_strided_slice %255 {offsets = [8, 40], sizes = [8, 8], strides = [1, 1]} : vector<16x96xbf16> to vector<8x8xbf16>
    %361 = vector.extract_strided_slice %255 {offsets = [8, 72], sizes = [8, 8], strides = [1, 1]} : vector<16x96xbf16> to vector<8x8xbf16>
    %cst_148 = arith.constant dense<0.000000e+00> : vector<8x8xf32>
    %362 = tpu.matmul %359, %360, %cst_148 {dimension_numbers = #tpu.dot_dimension_numbers<[1], [1], [0], [0], [0, 0, 1, 0], [], []>} : vector<8x8xbf16>, vector<8x8xbf16>, vector<8x8xf32> -> vector<8x8xf32>
    %cst_149 = arith.constant dense<0xFF800000> : vector<8xf32>
    %363 = vector.multi_reduction <maximumf>, %362, %cst_149 [1] : vector<8x8xf32> to vector<8xf32>
    %364 = vector.shape_cast %363 : vector<8xf32> to vector<8x1xf32>
    %365 = vector.broadcast %364 : vector<8x1xf32> to vector<8x8xf32>
    %366 = arith.subf %362, %365 : vector<8x8xf32>
    %367 = math.exp %366 : vector<8x8xf32>
    %cst_150 = arith.constant dense<0.000000e+00> : vector<8xf32>
    %368 = vector.multi_reduction <add>, %367, %cst_150 [1] : vector<8x8xf32> to vector<8xf32>
    %369 = vector.shape_cast %368 : vector<8xf32> to vector<8x1xf32>
    %370 = tpu.reciprocal %369 {approx = true} : vector<8x1xf32> -> vector<8x1xf32>
    %371 = vector.broadcast %370 : vector<8x1xf32> to vector<8x8xf32>
    %372 = arith.mulf %367, %371 : vector<8x8xf32>
    %373 = arith.truncf %372 : vector<8x8xf32> to vector<8x8xbf16>
    %cst_151 = arith.constant dense<0.000000e+00> : vector<8x8xf32>
    %374 = tpu.matmul %373, %361, %cst_151 {dimension_numbers = #tpu.dot_dimension_numbers<[1], [0], [0], [1], [0, 0, 1, 1], [], []>} : vector<8x8xbf16>, vector<8x8xbf16>, vector<8x8xf32> -> vector<8x8xf32>
    %375 = arith.truncf %374 : vector<8x8xf32> to vector<8x8xbf16>
    %c1_152 = arith.constant 1 : index
    %c0_153 = arith.constant 0 : index
    %c0_154 = arith.constant 0 : index
    %376 = vector.load %arg18[%c1_152, %c0_153, %c0_154] : memref<4x8x32xbf16, #tpu.memory_space<vmem>>, vector<1x8x32xbf16>
    %377 = vector.shape_cast %376 : vector<1x8x32xbf16> to vector<8x32xbf16>
    %cst_155 = arith.constant dense<0.000000e+00> : vector<8x32xf32>
    %378 = tpu.matmul %375, %377, %cst_155 {dimension_numbers = #tpu.dot_dimension_numbers<[1], [0], [0], [1], [0, 0, 1, 1], [], []>} : vector<8x8xbf16>, vector<8x32xbf16>, vector<8x32xf32> -> vector<8x32xf32>
    %379 = arith.addf %358, %378 : vector<8x32xf32>
    %380 = vector.extract_strided_slice %255 {offsets = [8, 16], sizes = [8, 8], strides = [1, 1]} : vector<16x96xbf16> to vector<8x8xbf16>
    %381 = vector.extract_strided_slice %255 {offsets = [8, 48], sizes = [8, 8], strides = [1, 1]} : vector<16x96xbf16> to vector<8x8xbf16>
    %382 = vector.extract_strided_slice %255 {offsets = [8, 80], sizes = [8, 8], strides = [1, 1]} : vector<16x96xbf16> to vector<8x8xbf16>
    %cst_156 = arith.constant dense<0.000000e+00> : vector<8x8xf32>
    %383 = tpu.matmul %380, %381, %cst_156 {dimension_numbers = #tpu.dot_dimension_numbers<[1], [1], [0], [0], [0, 0, 1, 0], [], []>} : vector<8x8xbf16>, vector<8x8xbf16>, vector<8x8xf32> -> vector<8x8xf32>
    %cst_157 = arith.constant dense<0xFF800000> : vector<8xf32>
    %384 = vector.multi_reduction <maximumf>, %383, %cst_157 [1] : vector<8x8xf32> to vector<8xf32>
    %385 = vector.shape_cast %384 : vector<8xf32> to vector<8x1xf32>
    %386 = vector.broadcast %385 : vector<8x1xf32> to vector<8x8xf32>
    %387 = arith.subf %383, %386 : vector<8x8xf32>
    %388 = math.exp %387 : vector<8x8xf32>
    %cst_158 = arith.constant dense<0.000000e+00> : vector<8xf32>
    %389 = vector.multi_reduction <add>, %388, %cst_158 [1] : vector<8x8xf32> to vector<8xf32>
    %390 = vector.shape_cast %389 : vector<8xf32> to vector<8x1xf32>
    %391 = tpu.reciprocal %390 {approx = true} : vector<8x1xf32> -> vector<8x1xf32>
    %392 = vector.broadcast %391 : vector<8x1xf32> to vector<8x8xf32>
    %393 = arith.mulf %388, %392 : vector<8x8xf32>
    %394 = arith.truncf %393 : vector<8x8xf32> to vector<8x8xbf16>
    %cst_159 = arith.constant dense<0.000000e+00> : vector<8x8xf32>
    %395 = tpu.matmul %394, %382, %cst_159 {dimension_numbers = #tpu.dot_dimension_numbers<[1], [0], [0], [1], [0, 0, 1, 1], [], []>} : vector<8x8xbf16>, vector<8x8xbf16>, vector<8x8xf32> -> vector<8x8xf32>
    %396 = arith.truncf %395 : vector<8x8xf32> to vector<8x8xbf16>
    %c2_160 = arith.constant 2 : index
    %c0_161 = arith.constant 0 : index
    %c0_162 = arith.constant 0 : index
    %397 = vector.load %arg18[%c2_160, %c0_161, %c0_162] : memref<4x8x32xbf16, #tpu.memory_space<vmem>>, vector<1x8x32xbf16>
    %398 = vector.shape_cast %397 : vector<1x8x32xbf16> to vector<8x32xbf16>
    %cst_163 = arith.constant dense<0.000000e+00> : vector<8x32xf32>
    %399 = tpu.matmul %396, %398, %cst_163 {dimension_numbers = #tpu.dot_dimension_numbers<[1], [0], [0], [1], [0, 0, 1, 1], [], []>} : vector<8x8xbf16>, vector<8x32xbf16>, vector<8x32xf32> -> vector<8x32xf32>
    %400 = arith.addf %379, %399 : vector<8x32xf32>
    %401 = vector.extract_strided_slice %255 {offsets = [8, 24], sizes = [8, 8], strides = [1, 1]} : vector<16x96xbf16> to vector<8x8xbf16>
    %402 = vector.extract_strided_slice %255 {offsets = [8, 56], sizes = [8, 8], strides = [1, 1]} : vector<16x96xbf16> to vector<8x8xbf16>
    %403 = vector.extract_strided_slice %255 {offsets = [8, 88], sizes = [8, 8], strides = [1, 1]} : vector<16x96xbf16> to vector<8x8xbf16>
    %cst_164 = arith.constant dense<0.000000e+00> : vector<8x8xf32>
    %404 = tpu.matmul %401, %402, %cst_164 {dimension_numbers = #tpu.dot_dimension_numbers<[1], [1], [0], [0], [0, 0, 1, 0], [], []>} : vector<8x8xbf16>, vector<8x8xbf16>, vector<8x8xf32> -> vector<8x8xf32>
    %cst_165 = arith.constant dense<0xFF800000> : vector<8xf32>
    %405 = vector.multi_reduction <maximumf>, %404, %cst_165 [1] : vector<8x8xf32> to vector<8xf32>
    %406 = vector.shape_cast %405 : vector<8xf32> to vector<8x1xf32>
    %407 = vector.broadcast %406 : vector<8x1xf32> to vector<8x8xf32>
    %408 = arith.subf %404, %407 : vector<8x8xf32>
    %409 = math.exp %408 : vector<8x8xf32>
    %cst_166 = arith.constant dense<0.000000e+00> : vector<8xf32>
    %410 = vector.multi_reduction <add>, %409, %cst_166 [1] : vector<8x8xf32> to vector<8xf32>
    %411 = vector.shape_cast %410 : vector<8xf32> to vector<8x1xf32>
    %412 = tpu.reciprocal %411 {approx = true} : vector<8x1xf32> -> vector<8x1xf32>
    %413 = vector.broadcast %412 : vector<8x1xf32> to vector<8x8xf32>
    %414 = arith.mulf %409, %413 : vector<8x8xf32>
    %415 = arith.truncf %414 : vector<8x8xf32> to vector<8x8xbf16>
    %cst_167 = arith.constant dense<0.000000e+00> : vector<8x8xf32>
    %416 = tpu.matmul %415, %403, %cst_167 {dimension_numbers = #tpu.dot_dimension_numbers<[1], [0], [0], [1], [0, 0, 1, 1], [], []>} : vector<8x8xbf16>, vector<8x8xbf16>, vector<8x8xf32> -> vector<8x8xf32>
    %417 = arith.truncf %416 : vector<8x8xf32> to vector<8x8xbf16>
    %c3_168 = arith.constant 3 : index
    %c0_169 = arith.constant 0 : index
    %c0_170 = arith.constant 0 : index
    %418 = vector.load %arg18[%c3_168, %c0_169, %c0_170] : memref<4x8x32xbf16, #tpu.memory_space<vmem>>, vector<1x8x32xbf16>
    %419 = vector.shape_cast %418 : vector<1x8x32xbf16> to vector<8x32xbf16>
    %cst_171 = arith.constant dense<0.000000e+00> : vector<8x32xf32>
    %420 = tpu.matmul %417, %419, %cst_171 {dimension_numbers = #tpu.dot_dimension_numbers<[1], [0], [0], [1], [0, 0, 1, 1], [], []>} : vector<8x8xbf16>, vector<8x32xbf16>, vector<8x32xf32> -> vector<8x32xf32>
    %421 = arith.addf %400, %420 : vector<8x32xf32>
    %422 = tpu.concatenate %338, %421 in 0 : vector<8x32xf32>, vector<8x32xf32> -> vector<16x32xf32>
    %423 = arith.addf %248, %422 : vector<16x32xf32>
    %c0_172 = arith.constant 0 : index
    %c0_173 = arith.constant 0 : index
    %424 = vector.load %arg19[%c0_172, %c0_173] : memref<1x32xf32, #tpu.memory_space<vmem>>, vector<1x32xf32>
    %425 = vector.broadcast %424 : vector<1x32xf32> to vector<16x32xf32>
    %426 = arith.addf %423, %425 : vector<16x32xf32>
    %cst_174 = arith.constant dense<0.000000e+00> : vector<16xf32>
    %427 = vector.multi_reduction <add>, %426, %cst_174 [1] : vector<16x32xf32> to vector<16xf32>
    %428 = vector.shape_cast %427 : vector<16xf32> to vector<16x1xf32>
    %cst_175 = arith.constant 3.200000e+01 : f32
    %429 = vector.broadcast %cst_175 : f32 to vector<16x1xf32>
    %430 = arith.divf %428, %429 : vector<16x1xf32>
    %431 = vector.broadcast %430 : vector<16x1xf32> to vector<16x32xf32>
    %432 = arith.subf %426, %431 : vector<16x32xf32>
    %433 = arith.mulf %432, %432 : vector<16x32xf32>
    %cst_176 = arith.constant dense<0.000000e+00> : vector<16xf32>
    %434 = vector.multi_reduction <add>, %433, %cst_176 [1] : vector<16x32xf32> to vector<16xf32>
    %435 = vector.shape_cast %434 : vector<16xf32> to vector<16x1xf32>
    %cst_177 = arith.constant 3.200000e+01 : f32
    %436 = vector.broadcast %cst_177 : f32 to vector<16x1xf32>
    %437 = arith.divf %435, %436 : vector<16x1xf32>
    %438 = vector.broadcast %430 : vector<16x1xf32> to vector<16x32xf32>
    %439 = arith.subf %426, %438 : vector<16x32xf32>
    %cst_178 = arith.constant 9.99999974E-6 : f32
    %440 = vector.broadcast %cst_178 : f32 to vector<16x1xf32>
    %441 = arith.addf %437, %440 : vector<16x1xf32>
    %442 = math.rsqrt %441 : vector<16x1xf32>
    %443 = vector.broadcast %442 : vector<16x1xf32> to vector<16x32xf32>
    %444 = arith.mulf %439, %443 : vector<16x32xf32>
    %c0_179 = arith.constant 0 : index
    %c0_180 = arith.constant 0 : index
    %445 = vector.load %arg20[%c0_179, %c0_180] : memref<1x32xf32, #tpu.memory_space<vmem>>, vector<1x32xf32>
    %446 = vector.broadcast %445 : vector<1x32xf32> to vector<16x32xf32>
    %447 = arith.mulf %444, %446 : vector<16x32xf32>
    %c0_181 = arith.constant 0 : index
    %c0_182 = arith.constant 0 : index
    %448 = vector.load %arg21[%c0_181, %c0_182] : memref<1x32xf32, #tpu.memory_space<vmem>>, vector<1x32xf32>
    %449 = vector.broadcast %448 : vector<1x32xf32> to vector<16x32xf32>
    %450 = arith.addf %447, %449 : vector<16x32xf32>
    %451 = arith.truncf %450 : vector<16x32xf32> to vector<16x32xbf16>
    %c0_183 = arith.constant 0 : index
    %c0_184 = arith.constant 0 : index
    %452 = vector.load %arg22[%c0_183, %c0_184] : memref<32x2048xbf16, #tpu.memory_space<vmem>>, vector<32x2048xbf16>
    %cst_185 = arith.constant dense<0.000000e+00> : vector<16x2048xf32>
    %453 = tpu.matmul %451, %452, %cst_185 {dimension_numbers = #tpu.dot_dimension_numbers<[1], [0], [0], [1], [0, 0, 1, 1], [], []>} : vector<16x32xbf16>, vector<32x2048xbf16>, vector<16x2048xf32> -> vector<16x2048xf32>
    %c0_186 = arith.constant 0 : index
    %c0_187 = arith.constant 0 : index
    %454 = vector.load %arg23[%c0_186, %c0_187] : memref<1x2048xf32, #tpu.memory_space<vmem>>, vector<1x2048xf32>
    %455 = vector.broadcast %454 : vector<1x2048xf32> to vector<16x2048xf32>
    %456 = arith.addf %453, %455 : vector<16x2048xf32>
    %cst_188 = arith.constant 0.000000e+00 : f32
    %457 = vector.broadcast %cst_188 : f32 to vector<16x2048xf32>
    %458 = arith.maximumf %456, %457 : vector<16x2048xf32>
    %459 = arith.truncf %458 : vector<16x2048xf32> to vector<16x2048xbf16>
    %c0_189 = arith.constant 0 : index
    %c0_190 = arith.constant 0 : index
    %460 = vector.load %arg24[%c0_189, %c0_190] : memref<2048x32xbf16, #tpu.memory_space<vmem>>, vector<2048x32xbf16>
    %cst_191 = arith.constant dense<0.000000e+00> : vector<16x32xf32>
    %461 = tpu.matmul %459, %460, %cst_191 {dimension_numbers = #tpu.dot_dimension_numbers<[1], [0], [0], [1], [0, 0, 1, 1], [], []>} : vector<16x2048xbf16>, vector<2048x32xbf16>, vector<16x32xf32> -> vector<16x32xf32>
    %c0_192 = arith.constant 0 : index
    %c0_193 = arith.constant 0 : index
    %462 = vector.load %arg25[%c0_192, %c0_193] : memref<1x32xf32, #tpu.memory_space<vmem>>, vector<1x32xf32>
    %463 = vector.broadcast %462 : vector<1x32xf32> to vector<16x32xf32>
    %464 = arith.addf %461, %463 : vector<16x32xf32>
    %465 = arith.addf %450, %464 : vector<16x32xf32>
    %cst_194 = arith.constant dense<0.000000e+00> : vector<16xf32>
    %466 = vector.multi_reduction <add>, %465, %cst_194 [1] : vector<16x32xf32> to vector<16xf32>
    %467 = vector.shape_cast %466 : vector<16xf32> to vector<16x1xf32>
    %cst_195 = arith.constant 3.200000e+01 : f32
    %468 = vector.broadcast %cst_195 : f32 to vector<16x1xf32>
    %469 = arith.divf %467, %468 : vector<16x1xf32>
    %470 = vector.broadcast %469 : vector<16x1xf32> to vector<16x32xf32>
    %471 = arith.subf %465, %470 : vector<16x32xf32>
    %472 = arith.mulf %471, %471 : vector<16x32xf32>
    %cst_196 = arith.constant dense<0.000000e+00> : vector<16xf32>
    %473 = vector.multi_reduction <add>, %472, %cst_196 [1] : vector<16x32xf32> to vector<16xf32>
    %474 = vector.shape_cast %473 : vector<16xf32> to vector<16x1xf32>
    %cst_197 = arith.constant 3.200000e+01 : f32
    %475 = vector.broadcast %cst_197 : f32 to vector<16x1xf32>
    %476 = arith.divf %474, %475 : vector<16x1xf32>
    %477 = vector.broadcast %469 : vector<16x1xf32> to vector<16x32xf32>
    %478 = arith.subf %465, %477 : vector<16x32xf32>
    %cst_198 = arith.constant 9.99999974E-6 : f32
    %479 = vector.broadcast %cst_198 : f32 to vector<16x1xf32>
    %480 = arith.addf %476, %479 : vector<16x1xf32>
    %481 = math.rsqrt %480 : vector<16x1xf32>
    %482 = vector.broadcast %481 : vector<16x1xf32> to vector<16x32xf32>
    %483 = arith.mulf %478, %482 : vector<16x32xf32>
    %c0_199 = arith.constant 0 : index
    %c0_200 = arith.constant 0 : index
    %484 = vector.load %arg26[%c0_199, %c0_200] : memref<1x32xf32, #tpu.memory_space<vmem>>, vector<1x32xf32>
    %485 = vector.broadcast %484 : vector<1x32xf32> to vector<16x32xf32>
    %486 = arith.mulf %483, %485 : vector<16x32xf32>
    %c0_201 = arith.constant 0 : index
    %c0_202 = arith.constant 0 : index
    %487 = vector.load %arg27[%c0_201, %c0_202] : memref<1x32xf32, #tpu.memory_space<vmem>>, vector<1x32xf32>
    %488 = vector.broadcast %487 : vector<1x32xf32> to vector<16x32xf32>
    %489 = arith.addf %486, %488 : vector<16x32xf32>
    %490 = vector.extract_strided_slice %489 {offsets = [0, 0], sizes = [8, 32], strides = [1, 1]} : vector<16x32xf32> to vector<8x32xf32>
    %cst_203 = arith.constant dense<0.000000e+00> : vector<32xf32>
    %491 = vector.multi_reduction <add>, %490, %cst_203 [0] : vector<8x32xf32> to vector<32xf32>
    %492 = vector.shape_cast %491 : vector<32xf32> to vector<1x32xf32>
    %cst_204 = arith.constant 8.000000e+00 : f32
    %493 = vector.broadcast %cst_204 : f32 to vector<1x32xf32>
    %494 = arith.divf %492, %493 : vector<1x32xf32>
    %495 = vector.extract_strided_slice %489 {offsets = [8, 0], sizes = [8, 32], strides = [1, 1]} : vector<16x32xf32> to vector<8x32xf32>
    %cst_205 = arith.constant dense<0.000000e+00> : vector<32xf32>
    %496 = vector.multi_reduction <add>, %495, %cst_205 [0] : vector<8x32xf32> to vector<32xf32>
    %497 = vector.shape_cast %496 : vector<32xf32> to vector<1x32xf32>
    %cst_206 = arith.constant 8.000000e+00 : f32
    %498 = vector.broadcast %cst_206 : f32 to vector<1x32xf32>
    %499 = arith.divf %497, %498 : vector<1x32xf32>
    %500 = tpu.concatenate %494, %499 in 0 : vector<1x32xf32>, vector<1x32xf32> -> vector<2x32xf32>
    %501 = arith.truncf %500 : vector<2x32xf32> to vector<2x32xbf16>
    %c0_207 = arith.constant 0 : index
    %c0_208 = arith.constant 0 : index
    %502 = vector.load %arg28[%c0_207, %c0_208] : memref<32x32xbf16, #tpu.memory_space<vmem>>, vector<32x32xbf16>
    %cst_209 = arith.constant dense<0.000000e+00> : vector<2x32xf32>
    %503 = tpu.matmul %501, %502, %cst_209 {dimension_numbers = #tpu.dot_dimension_numbers<[1], [0], [0], [1], [0, 0, 1, 1], [], []>} : vector<2x32xbf16>, vector<32x32xbf16>, vector<2x32xf32> -> vector<2x32xf32>
    %c0_210 = arith.constant 0 : index
    %c0_211 = arith.constant 0 : index
    %504 = vector.load %arg29[%c0_210, %c0_211] : memref<1x32xf32, #tpu.memory_space<vmem>>, vector<1x32xf32>
    %505 = vector.broadcast %504 : vector<1x32xf32> to vector<2x32xf32>
    %506 = arith.addf %503, %505 : vector<2x32xf32>
    %c0_212 = arith.constant 0 : index
    %c0_213 = arith.constant 0 : index
    %c0_214 = arith.constant 0 : index
    %507 = vector.load %arg30[%c0_212, %c0_213, %c0_214] : memref<1x2x32xf32, #tpu.memory_space<vmem>>, vector<1x2x32xf32>
    %508 = vector.shape_cast %507 : vector<1x2x32xf32> to vector<2x32xf32>
    %509 = vector.shape_cast %506 : vector<2x32xf32> to vector<1x2x32xf32>
    tpu.vector_store %arg30[%c0_212, %c0_213, %c0_214], %509 {strides = array<i32>} : memref<1x2x32xf32, #tpu.memory_space<vmem>>, vector<1x2x32xf32>,
    return
  }
  func.func @transform_0(%arg0: i32) -> (i32, i32, i32) {
    %c0_i32 = arith.constant 0 : i32
    %c0_i32_0 = arith.constant 0 : i32
    %c0_i32_1 = arith.constant 0 : i32
    return %arg0, %c0_i32, %c0_i32_0 : i32, i32, i32
  }
  func.func @transform_1(%arg0: i32) -> (i32, i32) {
    %c0_i32 = arith.constant 0 : i32
    %c0_i32_0 = arith.constant 0 : i32
    %c0_i32_1 = arith.constant 0 : i32
    return %c0_i32, %c0_i32_0 : i32, i32
  }
  func.func @transform_2(%arg0: i32) -> (i32, i32) {
    %c0_i32 = arith.constant 0 : i32
    %c0_i32_0 = arith.constant 0 : i32
    %c0_i32_1 = arith.constant 0 : i32
    return %c0_i32, %c0_i32_0 : i32, i32
  }
  func.func @transform_3(%arg0: i32) -> (i32, i32) {
    %c0_i32 = arith.constant 0 : i32
    %c0_i32_0 = arith.constant 0 : i32
    %c0_i32_1 = arith.constant 0 : i32
    return %c0_i32, %c0_i32_0 : i32, i32
  }
  func.func @transform_4(%arg0: i32) -> (i32, i32) {
    %c0_i32 = arith.constant 0 : i32
    %c0_i32_0 = arith.constant 0 : i32
    %c0_i32_1 = arith.constant 0 : i32
    return %c0_i32, %c0_i32_0 : i32, i32
  }
  func.func @transform_5(%arg0: i32) -> (i32, i32, i32) {
    %c0_i32 = arith.constant 0 : i32
    %c0_i32_0 = arith.constant 0 : i32
    %c0_i32_1 = arith.constant 0 : i32
    %c0_i32_2 = arith.constant 0 : i32
    return %c0_i32, %c0_i32_0, %c0_i32_1 : i32, i32, i32
  }
  func.func @transform_6(%arg0: i32) -> (i32, i32) {
    %c0_i32 = arith.constant 0 : i32
    %c0_i32_0 = arith.constant 0 : i32
    %c0_i32_1 = arith.constant 0 : i32
    return %c0_i32, %c0_i32_0 : i32, i32
  }
  func.func @transform_7(%arg0: i32) -> (i32, i32) {
    %c0_i32 = arith.constant 0 : i32
    %c0_i32_0 = arith.constant 0 : i32
    %c0_i32_1 = arith.constant 0 : i32
    return %c0_i32, %c0_i32_0 : i32, i32
  }
  func.func @transform_8(%arg0: i32) -> (i32, i32) {
    %c0_i32 = arith.constant 0 : i32
    %c0_i32_0 = arith.constant 0 : i32
    %c0_i32_1 = arith.constant 0 : i32
    return %c0_i32, %c0_i32_0 : i32, i32
  }
  func.func @transform_9(%arg0: i32) -> (i32, i32) {
    %c0_i32 = arith.constant 0 : i32
    %c0_i32_0 = arith.constant 0 : i32
    %c0_i32_1 = arith.constant 0 : i32
    return %c0_i32, %c0_i32_0 : i32, i32
  }
  func.func @transform_10(%arg0: i32) -> (i32, i32) {
    %c0_i32 = arith.constant 0 : i32
    %c0_i32_0 = arith.constant 0 : i32
    %c0_i32_1 = arith.constant 0 : i32
    return %c0_i32, %c0_i32_0 : i32, i32
  }
  func.func @transform_11(%arg0: i32) -> (i32, i32) {
    %c0_i32 = arith.constant 0 : i32
    %c0_i32_0 = arith.constant 0 : i32
    %c0_i32_1 = arith.constant 0 : i32
    return %c0_i32, %c0_i32_0 : i32, i32
  }
  func.func @transform_12(%arg0: i32) -> (i32, i32) {
    %c0_i32 = arith.constant 0 : i32
    %c0_i32_0 = arith.constant 0 : i32
    %c0_i32_1 = arith.constant 0 : i32
    return %c0_i32, %c0_i32_0 : i32, i32
  }
  func.func @transform_13(%arg0: i32) -> (i32, i32) {
    %c0_i32 = arith.constant 0 : i32
    %c0_i32_0 = arith.constant 0 : i32
    %c0_i32_1 = arith.constant 0 : i32
    return %c0_i32, %c0_i32_0 : i32, i32
  }
  func.func @transform_14(%arg0: i32) -> (i32, i32) {
    %c0_i32 = arith.constant 0 : i32
    %c0_i32_0 = arith.constant 0 : i32
    %c0_i32_1 = arith.constant 0 : i32
    return %c0_i32, %c0_i32_0 : i32, i32
  }
  func.func @transform_15(%arg0: i32) -> (i32, i32) {
    %c0_i32 = arith.constant 0 : i32
    %c0_i32_0 = arith.constant 0 : i32
    %c0_i32_1 = arith.constant 0 : i32
    return %c0_i32, %c0_i32_0 : i32, i32
  }
  func.func @transform_16(%arg0: i32) -> (i32, i32) {
    %c0_i32 = arith.constant 0 : i32
    %c0_i32_0 = arith.constant 0 : i32
    %c0_i32_1 = arith.constant 0 : i32
    return %c0_i32, %c0_i32_0 : i32, i32
  }
  func.func @transform_17(%arg0: i32) -> (i32, i32, i32) {
    %c0_i32 = arith.constant 0 : i32
    %c0_i32_0 = arith.constant 0 : i32
    %c0_i32_1 = arith.constant 0 : i32
    %c0_i32_2 = arith.constant 0 : i32
    return %c0_i32, %c0_i32_0, %c0_i32_1 : i32, i32, i32
  }
  func.func @transform_18(%arg0: i32) -> (i32, i32) {
    %c0_i32 = arith.constant 0 : i32
    %c0_i32_0 = arith.constant 0 : i32
    %c0_i32_1 = arith.constant 0 : i32
    return %c0_i32, %c0_i32_0 : i32, i32
  }
  func.func @transform_19(%arg0: i32) -> (i32, i32) {
    %c0_i32 = arith.constant 0 : i32
    %c0_i32_0 = arith.constant 0 : i32
    %c0_i32_1 = arith.constant 0 : i32
    return %c0_i32, %c0_i32_0 : i32, i32
  }
  func.func @transform_20(%arg0: i32) -> (i32, i32) {
    %c0_i32 = arith.constant 0 : i32
    %c0_i32_0 = arith.constant 0 : i32
    %c0_i32_1 = arith.constant 0 : i32
    return %c0_i32, %c0_i32_0 : i32, i32
  }
  func.func @transform_21(%arg0: i32) -> (i32, i32) {
    %c0_i32 = arith.constant 0 : i32
    %c0_i32_0 = arith.constant 0 : i32
    %c0_i32_1 = arith.constant 0 : i32
    return %c0_i32, %c0_i32_0 : i32, i32
  }
  func.func @transform_22(%arg0: i32) -> (i32, i32) {
    %c0_i32 = arith.constant 0 : i32
    %c0_i32_0 = arith.constant 0 : i32
    %c0_i32_1 = arith.constant 0 : i32
    return %c0_i32, %c0_i32_0 : i32, i32
  }
  func.func @transform_23(%arg0: i32) -> (i32, i32) {
    %c0_i32 = arith.constant 0 : i32
    %c0_i32_0 = arith.constant 0 : i32
    %c0_i32_1 = arith.constant 0 : i32
    return %c0_i32, %c0_i32_0 : i32, i32
  }
  func.func @transform_24(%arg0: i32) -> (i32, i32) {
    %c0_i32 = arith.constant 0 : i32
    %c0_i32_0 = arith.constant 0 : i32
    %c0_i32_1 = arith.constant 0 : i32
    return %c0_i32, %c0_i32_0 : i32, i32
  }
  func.func @transform_25(%arg0: i32) -> (i32, i32) {
    %c0_i32 = arith.constant 0 : i32
    %c0_i32_0 = arith.constant 0 : i32
    %c0_i32_1 = arith.constant 0 : i32
    return %c0_i32, %c0_i32_0 : i32, i32
  }
  func.func @transform_26(%arg0: i32) -> (i32, i32) {
    %c0_i32 = arith.constant 0 : i32
    %c0_i32_0 = arith.constant 0 : i32
    %c0_i32_1 = arith.constant 0 : i32
    return %c0_i32, %c0_i32_0 : i32, i32
  }
  func.func @transform_27(%arg0: i32) -> (i32, i32) {
    %c0_i32 = arith.constant 0 : i32
    %c0_i32_0 = arith.constant 0 : i32
    %c0_i32_1 = arith.constant 0 : i32
    return %c0_i32, %c0_i32_0 : i32, i32
  }
  func.func @transform_28(%arg0: i32) -> (i32, i32) {
    %c0_i32 = arith.constant 0 : i32
    %c0_i32_0 = arith.constant 0 : i32
    %c0_i32_1 = arith.constant 0 : i32
    return %c0_i32, %c0_i32_0 : i32, i32
  }
  func.func @transform_29(%arg0: i32) -> (i32, i32, i32) {
    %c0_i32 = arith.constant 0 : i32
    %c0_i32_0 = arith.constant 0 : i32
    %c0_i32_1 = arith.constant 0 : i32
    return %arg0, %c0_i32, %c0_i32_0 : i32, i32, i32
  }
}

</mosaic_0001>

<llo_original>
// kernel: tpu_custom_call.1
$region0: #{tpu_custom_call.1}
  #allocation0 [shape = 'u32[]', space=smem, size = 0x4, offset = 0x4, fixed_abs, tag = 'smem constant byte address 0x4 - core index']
  #allocation1 [shape = 'u32[144,128]{1,0:T(1,128)}', space=vmem, size = 0x12000, scoped, tag = 'internal scratch']
  %s0 = inlined_call_operand.smem [shape: u32[30], index: -1, kind: input, shape index: {}]
  %s1 = sld [smem:[%s0]]
  %s2 = scalar_lea.smem %s0, 1
  %s3 = sld [smem:[%s2]]
  %s4 = scalar_lea.smem %s0, 2
  %s5 = sld [smem:[%s4]]
  %s6 = scalar_lea.smem %s0, 3
  %s7 = sld [smem:[%s6]]
  %s8 = scalar_lea.smem %s0, 4
  %s9 = sld [smem:[%s8]]
  %s10 = scalar_lea.smem %s0, 5
  %s11 = sld [smem:[%s10]]
  %s12 = scalar_lea.smem %s0, 6
  %s13 = sld [smem:[%s12]]
  %s14 = scalar_lea.smem %s0, 7
  %s15 = sld [smem:[%s14]]
  %s16 = scalar_lea.smem %s0, 8
  %s17 = sld [smem:[%s16]]
  %s18 = scalar_lea.smem %s0, 9
  %s19 = sld [smem:[%s18]]
  %s20 = scalar_lea.smem %s0, 10
  %s21 = sld [smem:[%s20]]
  %s22 = scalar_lea.smem %s0, 11
  %s23 = sld [smem:[%s22]]
  %s24 = scalar_lea.smem %s0, 12
  %s25 = sld [smem:[%s24]]
  %s26 = scalar_lea.smem %s0, 13
  %s27 = sld [smem:[%s26]]
  %s28 = scalar_lea.smem %s0, 14
  %s29 = sld [smem:[%s28]]
  %s30 = scalar_lea.smem %s0, 15
  %s31 = sld [smem:[%s30]]
  %s32 = scalar_lea.smem %s0, 16
  %s33 = sld [smem:[%s32]]
  %s34 = scalar_lea.smem %s0, 17
  %s35 = sld [smem:[%s34]]
  %s36 = scalar_lea.smem %s0, 18
  %s37 = sld [smem:[%s36]]
  %s38 = scalar_lea.smem %s0, 19
  %s39 = sld [smem:[%s38]]
  %s40 = scalar_lea.smem %s0, 20
  %s41 = sld [smem:[%s40]]
  %s42 = scalar_lea.smem %s0, 21
  %s43 = sld [smem:[%s42]]
  %s44 = scalar_lea.smem %s0, 22
  %s45 = sld [smem:[%s44]]
  %s46 = scalar_lea.smem %s0, 23
  %s47 = sld [smem:[%s46]]
  %s48 = scalar_lea.smem %s0, 24
  %s49 = sld [smem:[%s48]]
  %s50 = scalar_lea.smem %s0, 25
  %s51 = sld [smem:[%s50]]
  %s52 = scalar_lea.smem %s0, 26
  %s53 = sld [smem:[%s52]]
  %s54 = scalar_lea.smem %s0, 27
  %s55 = sld [smem:[%s54]]
  %s56 = scalar_lea.smem %s0, 28
  %s57 = sld [smem:[%s56]]
  %s58 = scalar_lea.smem %s0, 29
  %s59 = sld [smem:[%s58]]
  %s60 = sld [smem:[#allocation0]]
  $region126: #{tpu_custom_call.1} parent=0
    _
  %s62 = ssub.s32 1, %s60
  %s63 = scalar_select 0, %s62, %s60
  $region1: #{tpu_custom_call.1} parent=0
    #allocation2 [shape = 'u8[1024]{0}', space=vmem, size = 0x400, scoped, tag = 'output window, operand 0, single buffered']
    #allocation3 [shape = 's32[1]{0}', space=sflag, size = 0x4, scoped, tag = 'scoped memory for tpu_custom_call.1']
    %64 = vsyncpa [#allocation3], 0
    // Predicated region
    $region2: #{tpu_custom_call.1} parent=1 // pred_check
      _
    $region3: #{tpu_custom_call.1} parent=1 // pred_check_branch
      %66 = sbr.rel (0) target = $region5
    $region4: #{tpu_custom_call.1} parent=1 // pred_region
      _
    $region5: #{tpu_custom_call.1} parent=1 // pred_fallthru
      _
    // Predicated region
    $region6: #{tpu_custom_call.1} parent=1 // pred_check
      _
    $region7: #{tpu_custom_call.1} parent=1 // pred_check_branch
      %68 = sbr.rel (0) target = $region9
    $region8: #{tpu_custom_call.1} parent=1 // pred_region
      _
    $region9: #{tpu_custom_call.1} parent=1 // pred_fallthru
      _
    // Predicated region
    $region10: #{tpu_custom_call.1} parent=1 // pred_check
      _
    $region11: #{tpu_custom_call.1} parent=1 // pred_check_branch
      %70 = sbr.rel (0) target = $region13
    $region12: #{tpu_custom_call.1} parent=1 // pred_region
      _
    $region13: #{tpu_custom_call.1} parent=1 // pred_fallthru
      _
    // Predicated region
    $region14: #{tpu_custom_call.1} parent=1 // pred_check
      _
    $region15: #{tpu_custom_call.1} parent=1 // pred_check_branch
      %72 = sbr.rel (0) target = $region17
    $region16: #{tpu_custom_call.1} parent=1 // pred_region
      _
    $region17: #{tpu_custom_call.1} parent=1 // pred_fallthru
      _
    // Predicated region
    $region18: #{tpu_custom_call.1} parent=1 // pred_check
      _
    $region19: #{tpu_custom_call.1} parent=1 // pred_check_branch
      %74 = sbr.rel (0) target = $region21
    $region20: #{tpu_custom_call.1} parent=1 // pred_region
      _
    $region21: #{tpu_custom_call.1} parent=1 // pred_fallthru
      _
    // Predicated region
    $region22: #{tpu_custom_call.1} parent=1 // pred_check
      _
    $region23: #{tpu_custom_call.1} parent=1 // pred_check_branch
      %76 = sbr.rel (0) target = $region25
    $region24: #{tpu_custom_call.1} parent=1 // pred_region
      _
    $region25: #{tpu_custom_call.1} parent=1 // pred_fallthru
      _
    // Predicated region
    $region26: #{tpu_custom_call.1} parent=1 // pred_check
      _
    $region27: #{tpu_custom_call.1} parent=1 // pred_check_branch
      %78 = sbr.rel (0) target = $region29
    $region28: #{tpu_custom_call.1} parent=1 // pred_region
      _
    $region29: #{tpu_custom_call.1} parent=1 // pred_fallthru
      _
    // Predicated region
    $region30: #{tpu_custom_call.1} parent=1 // pred_check
      _
    $region31: #{tpu_custom_call.1} parent=1 // pred_check_branch
      %80 = sbr.rel (0) target = $region33
    $region32: #{tpu_custom_call.1} parent=1 // pred_region
      _
    $region33: #{tpu_custom_call.1} parent=1 // pred_fallthru
      _
    // Predicated region
    $region34: #{tpu_custom_call.1} parent=1 // pred_check
      _
    $region35: #{tpu_custom_call.1} parent=1 // pred_check_branch
      %82 = sbr.rel (0) target = $region37
    $region36: #{tpu_custom_call.1} parent=1 // pred_region
      _
    $region37: #{tpu_custom_call.1} parent=1 // pred_fallthru
      _
    // Predicated region
    $region38: #{tpu_custom_call.1} parent=1 // pred_check
      _
    $region39: #{tpu_custom_call.1} parent=1 // pred_check_branch
      %84 = sbr.rel (0) target = $region41
    $region40: #{tpu_custom_call.1} parent=1 // pred_region
      _
    $region41: #{tpu_custom_call.1} parent=1 // pred_fallthru
      _
    // Predicated region
    $region42: #{tpu_custom_call.1} parent=1 // pred_check
      _
    $region43: #{tpu_custom_call.1} parent=1 // pred_check_branch
      %86 = sbr.rel (0) target = $region45
    $region44: #{tpu_custom_call.1} parent=1 // pred_region
      _
    $region45: #{tpu_custom_call.1} parent=1 // pred_fallthru
      _
    // Predicated region
    $region46: #{tpu_custom_call.1} parent=1 // pred_check
      _
    $region47: #{tpu_custom_call.1} parent=1 // pred_check_branch
      %88 = sbr.rel (0) target = $region49
    $region48: #{tpu_custom_call.1} parent=1 // pred_region
      _
    $region49: #{tpu_custom_call.1} parent=1 // pred_fallthru
      _
    // Predicated region
    $region50: #{tpu_custom_call.1} parent=1 // pred_check
      _
    $region51: #{tpu_custom_call.1} parent=1 // pred_check_branch
      %90 = sbr.rel (0) target = $region53
    $region52: #{tpu_custom_call.1} parent=1 // pred_region
      _
    $region53: #{tpu_custom_call.1} parent=1 // pred_fallthru
      _
    // Predicated region
    $region54: #{tpu_custom_call.1} parent=1 // pred_check
      _
    $region55: #{tpu_custom_call.1} parent=1 // pred_check_branch
      %92 = sbr.rel (0) target = $region57
    $region56: #{tpu_custom_call.1} parent=1 // pred_region
      _
    $region57: #{tpu_custom_call.1} parent=1 // pred_fallthru
      _
    // Predicated region
    $region58: #{tpu_custom_call.1} parent=1 // pred_check
      _
    $region59: #{tpu_custom_call.1} parent=1 // pred_check_branch
      %94 = sbr.rel (0) target = $region61
    $region60: #{tpu_custom_call.1} parent=1 // pred_region
      _
    $region61: #{tpu_custom_call.1} parent=1 // pred_fallthru
      _
    // Predicated region
    $region62: #{tpu_custom_call.1} parent=1 // pred_check
      _
    $region63: #{tpu_custom_call.1} parent=1 // pred_check_branch
      %96 = sbr.rel (0) target = $region65
    $region64: #{tpu_custom_call.1} parent=1 // pred_region
      _
    $region65: #{tpu_custom_call.1} parent=1 // pred_fallthru
      _
    // Predicated region
    $region66: #{tpu_custom_call.1} parent=1 // pred_check
      _
    $region67: #{tpu_custom_call.1} parent=1 // pred_check_branch
      %98 = sbr.rel (0) target = $region69
    $region68: #{tpu_custom_call.1} parent=1 // pred_region
      _
    $region69: #{tpu_custom_call.1} parent=1 // pred_fallthru
      _
    // Predicated region
    $region70: #{tpu_custom_call.1} parent=1 // pred_check
      _
    $region71: #{tpu_custom_call.1} parent=1 // pred_check_branch
      %100 = sbr.rel (0) target = $region73
    $region72: #{tpu_custom_call.1} parent=1 // pred_region
      _
    $region73: #{tpu_custom_call.1} parent=1 // pred_fallthru
      _
    // Predicated region
    $region74: #{tpu_custom_call.1} parent=1 // pred_check
      _
    $region75: #{tpu_custom_call.1} parent=1 // pred_check_branch
      %102 = sbr.rel (0) target = $region77
    $region76: #{tpu_custom_call.1} parent=1 // pred_region
      _
    $region77: #{tpu_custom_call.1} parent=1 // pred_fallthru
      _
    // Predicated region
    $region78: #{tpu_custom_call.1} parent=1 // pred_check
      _
    $region79: #{tpu_custom_call.1} parent=1 // pred_check_branch
      %104 = sbr.rel (0) target = $region81
    $region80: #{tpu_custom_call.1} parent=1 // pred_region
      _
    $region81: #{tpu_custom_call.1} parent=1 // pred_fallthru
      _
    // Predicated region
    $region82: #{tpu_custom_call.1} parent=1 // pred_check
      _
    $region83: #{tpu_custom_call.1} parent=1 // pred_check_branch
      %106 = sbr.rel (0) target = $region85
    $region84: #{tpu_custom_call.1} parent=1 // pred_region
      _
    $region85: #{tpu_custom_call.1} parent=1 // pred_fallthru
      _
    // Predicated region
    $region86: #{tpu_custom_call.1} parent=1 // pred_check
      _
    $region87: #{tpu_custom_call.1} parent=1 // pred_check_branch
      %108 = sbr.rel (0) target = $region89
    $region88: #{tpu_custom_call.1} parent=1 // pred_region
      _
    $region89: #{tpu_custom_call.1} parent=1 // pred_fallthru
      _
    // Predicated region
    $region90: #{tpu_custom_call.1} parent=1 // pred_check
      _
    $region91: #{tpu_custom_call.1} parent=1 // pred_check_branch
      %110 = sbr.rel (0) target = $region93
    $region92: #{tpu_custom_call.1} parent=1 // pred_region
      _
    $region93: #{tpu_custom_call.1} parent=1 // pred_fallthru
      _
    // Predicated region
    $region94: #{tpu_custom_call.1} parent=1 // pred_check
      _
    $region95: #{tpu_custom_call.1} parent=1 // pred_check_branch
      %112 = sbr.rel (0) target = $region97
    $region96: #{tpu_custom_call.1} parent=1 // pred_region
      _
    $region97: #{tpu_custom_call.1} parent=1 // pred_fallthru
      _
    // Predicated region
    $region98: #{tpu_custom_call.1} parent=1 // pred_check
      _
    $region99: #{tpu_custom_call.1} parent=1 // pred_check_branch
      %114 = sbr.rel (0) target = $region101
    $region100: #{tpu_custom_call.1} parent=1 // pred_region
      _
    $region101: #{tpu_custom_call.1} parent=1 // pred_fallthru
      _
    // Predicated region
    $region102: #{tpu_custom_call.1} parent=1 // pred_check
      _
    $region103: #{tpu_custom_call.1} parent=1 // pred_check_branch
      %116 = sbr.rel (0) target = $region105
    $region104: #{tpu_custom_call.1} parent=1 // pred_region
      _
    $region105: #{tpu_custom_call.1} parent=1 // pred_fallthru
      _
    // Predicated region
    $region106: #{tpu_custom_call.1} parent=1 // pred_check
      _
    $region107: #{tpu_custom_call.1} parent=1 // pred_check_branch
      %118 = sbr.rel (0) target = $region109
    $region108: #{tpu_custom_call.1} parent=1 // pred_region
      _
    $region109: #{tpu_custom_call.1} parent=1 // pred_fallthru
      _
    // Predicated region
    $region110: #{tpu_custom_call.1} parent=1 // pred_check
      _
    $region111: #{tpu_custom_call.1} parent=1 // pred_check_branch
      %120 = sbr.rel (0) target = $region113
    $region112: #{tpu_custom_call.1} parent=1 // pred_region
      _
    $region113: #{tpu_custom_call.1} parent=1 // pred_fallthru
      _
    // Predicated region
    $region114: #{tpu_custom_call.1} parent=1 // pred_check
      _
    $region115: #{tpu_custom_call.1} parent=1 // pred_check_branch
      %122 = sbr.rel (0) target = $region117
    $region116: #{tpu_custom_call.1} parent=1 // pred_region
      _
    $region117: #{tpu_custom_call.1} parent=1 // pred_fallthru
      _
    %v124 = vld [vmem:[%s1] sm:$0xff]
    %v125 = vld [vmem:[%s1 + $0x8] sm:$0xff]
    %v126 = vpack.c.bf16 %v125, %v124
    %v127 = vld [vmem:[%s3] sm:$0xf]
    %v128 = vld [vmem:[%s3 + $0x4] sm:$0xf]
    %v129 = vld [vmem:[%s5] sm:$0x1]
    %v131 = vlaneseq
    %v132 = vshrl.u32 %v131, 7
    %v133 = vsub.s32 0, %v132
    %v134 = vrot.slane %v129, %v133
    %v138 = vunpack.c.l.b16 %v127
    %v139 = vunpack.c.l.b16 %v128
    %v140 = vpack.c.b16 %v139, %v138
    %vm142 = vcmask 130048
    %v144 = vsel %vm142, %v126, 0
    %146 = vmatprep.subr.bf16.mxu0 0
    %147 = vmatpush1.bf16.msra.mxu0 0
    %148 = vmatprep.subr.bf16.mxu0 0
    %149 = vmatpush1.bf16.msra.mxu0 0
    %150 = vmatprep.subr.bf16.mxu0 0
    %151 = vmatpush1.bf16.msra.mxu0 0
    %152 = vmatprep.subr.bf16.mxu0 0
    %153 = vmatpush1.bf16.msra.mxu0 0
    %154 = vmatprep.subr.bf16.mxu0 0
    %155 = vmatpush1.bf16.msra.mxu0 0
    %156 = vmatprep.subr.bf16.mxu0 0
    %157 = vmatpush1.bf16.msra.mxu0 0
    %158 = vmatprep.subr.bf16.mxu0 0
    %159 = vmatpush1.bf16.msra.mxu0 0
    %160 = vmatprep.subr.bf16.mxu0 0
    %161 = vmatpush1.bf16.msra.mxu0 %v140
    %162 = vmatprep.subr.bf16.mxu0 0
    %163 = vmatpush2.bf16.msra.mxu0 0
    %164 = vmatprep.subr.bf16.mxu0 0
    %165 = vmatpush2.bf16.msra.mxu0 0
    %166 = vmatprep.subr.bf16.mxu0 0
    %167 = vmatpush2.bf16.msra.mxu0 0
    %168 = vmatprep.subr.bf16.mxu0 0
    %169 = vmatpush2.bf16.msra.mxu0 0
    %170 = vmatprep.subr.bf16.mxu0 0
    %171 = vmatpush2.bf16.msra.mxu0 0
    %172 = vmatprep.subr.bf16.mxu0 0
    %173 = vmatpush2.bf16.msra.mxu0 0
    %174 = vmatprep.subr.bf16.mxu0 0
    %175 = vmatpush2.bf16.msra.mxu0 0
    %176 = vmatprep.subr.bf16.mxu0 0
    %177 = vmatpush2.bf16.msra.mxu0 0
    %178 = vmatprep.mubr.bf16.mxu0 0
    %179 = vmatmul.mubr.bf16.gmra.mxu0 %v144
    %v180 = vpop.f32.mrf.mxu0
    %v181 = vadd.f32 %v134, %v180
    %v182 = vpop.f32.mrf.mxu0
    %v183 = vpop.f32.mrf.mxu0
    %v184 = vadd.f32 %v134, %v183
    %v185 = vpop.f32.mrf.mxu0
    %186 = vdwg.mxu0
    %v187 = vpack.c.bf16 %v184, %v181
    %v188 = vld [vmem:[%s7] sm:$0xf]
    %v189 = vld [vmem:[%s7 + $0x4] sm:$0xf]
    %v190 = vld [vmem:[%s7 + $0x8] sm:$0xf]
    %v191 = vld [vmem:[%s7 + $0xc] sm:$0xf]
    %v192 = vld [vmem:[%s9] sm:$0x1]
    %v194 = vlaneseq
    %v195 = vshrl.u32 %v194, 7
    %v196 = vsub.s32 0, %v195
    %v197 = vrot.slane %v192, %v196
    %v203 = vunpack.c.l.b16 %v188
    %v204 = vunpack.c.l.b16 %v189
    %v205 = vunpack.c.l.b16 %v190
    %v206 = vunpack.c.l.b16 %v191
    %v207 = vpack.c.b16 %v204, %v203
    %v208 = vpack.c.b16 %v206, %v205
    %vm211 = vcmask 261120
    %v213 = vsel %vm211, %v187, 0
    %215 = vmatprep.subr.bf16.mxu0 0
    %216 = vmatpush1.bf16.msra.mxu0 0
    %217 = vmatprep.subr.bf16.mxu0 0
    %218 = vmatpush1.bf16.msra.mxu0 0
    %219 = vmatprep.subr.bf16.mxu0 0
    %220 = vmatpush1.bf16.msra.mxu0 0
    %221 = vmatprep.subr.bf16.mxu0 0
    %222 = vmatpush1.bf16.msra.mxu0 0
    %223 = vmatprep.subr.bf16.mxu0 0
    %224 = vmatpush1.bf16.msra.mxu0 0
    %225 = vmatprep.subr.bf16.mxu0 0
    %226 = vmatpush1.bf16.msra.mxu0 0
    %227 = vmatprep.subr.bf16.mxu0 0
    %228 = vmatpush1.bf16.msra.mxu0 %v208
    %229 = vmatprep.subr.bf16.mxu0 0
    %230 = vmatpush1.bf16.msra.mxu0 %v207
    %231 = vmatprep.subr.bf16.mxu0 0
    %232 = vmatpush2.bf16.msra.mxu0 0
    %233 = vmatprep.subr.bf16.mxu0 0
    %234 = vmatpush2.bf16.msra.mxu0 0
    %235 = vmatprep.subr.bf16.mxu0 0
    %236 = vmatpush2.bf16.msra.mxu0 0
    %237 = vmatprep.subr.bf16.mxu0 0
    %238 = vmatpush2.bf16.msra.mxu0 0
    %239 = vmatprep.subr.bf16.mxu0 0
    %240 = vmatpush2.bf16.msra.mxu0 0
    %241 = vmatprep.subr.bf16.mxu0 0
    %242 = vmatpush2.bf16.msra.mxu0 0
    %243 = vmatprep.subr.bf16.mxu0 0
    %244 = vmatpush2.bf16.msra.mxu0 0
    %245 = vmatprep.subr.bf16.mxu0 0
    %246 = vmatpush2.bf16.msra.mxu0 0
    %247 = vmatprep.mubr.bf16.mxu0 0
    %248 = vmatmul.mubr.bf16.gmra.mxu0 %v213
    %v249 = vpop.f32.mrf.mxu0
    %v250 = vadd.f32 %v197, %v249
    %v251 = vpop.f32.mrf.mxu0
    %v252 = vpop.f32.mrf.mxu0
    %v253 = vadd.f32 %v197, %v252
    %v254 = vpop.f32.mrf.mxu0
    %255 = vdwg.mxu0
    %v256 = vpack.c.bf16 %v253, %v250
    %258 = vrot.lane.b32.xlu0 %v256, 96
    %v259 = vpop.permute.xlu0 %258
    %vm260 = vcmask 64512
    %v262 = vsel %vm260, %v256, 0
    %v265 = vsel %vm260, %v259, 0
    %267 = vmatprep.subr.bf16.mxu0 0
    %268 = vmatpush1.bf16.xpose.msra.mxu0 0
    %269 = vmatprep.subr.bf16.mxu0 0
    %270 = vmatpush1.bf16.xpose.msra.mxu0 0
    %271 = vmatprep.subr.bf16.mxu0 0
    %272 = vmatpush1.bf16.xpose.msra.mxu0 0
    %273 = vmatprep.subr.bf16.mxu0 0
    %274 = vmatpush1.bf16.xpose.msra.mxu0 0
    %275 = vmatprep.subr.bf16.mxu0 0
    %276 = vmatpush1.bf16.xpose.msra.mxu0 0
    %277 = vmatprep.subr.bf16.mxu0 0
    %278 = vmatpush1.bf16.xpose.msra.mxu0 0
    %279 = vmatprep.subr.bf16.mxu0 0
    %280 = vmatpush1.bf16.xpose.msra.mxu0 0
    %281 = vmatprep.subr.bf16.mxu0 0
    %282 = vmatpush1.bf16.xpose.msra.mxu0 %v265
    %283 = vmatprep.subr.bf16.mxu0 0
    %284 = vmatpush2.bf16.xpose.msra.mxu0 0
    %285 = vmatprep.subr.bf16.mxu0 0
    %286 = vmatpush2.bf16.xpose.msra.mxu0 0
    %287 = vmatprep.subr.bf16.mxu0 0
    %288 = vmatpush2.bf16.xpose.msra.mxu0 0
    %289 = vmatprep.subr.bf16.mxu0 0
    %290 = vmatpush2.bf16.xpose.msra.mxu0 0
    %291 = vmatprep.subr.bf16.mxu0 0
    %292 = vmatpush2.bf16.xpose.msra.mxu0 0
    %293 = vmatprep.subr.bf16.mxu0 0
    %294 = vmatpush2.bf16.xpose.msra.mxu0 0
    %295 = vmatprep.subr.bf16.mxu0 0
    %296 = vmatpush2.bf16.xpose.msra.mxu0 0
    %297 = vmatprep.subr.bf16.mxu0 0
    %298 = vmatpush2.bf16.xpose.msra.mxu0 0
    %299 = vmatprep.mubr.bf16.mxu0 0
    %300 = vmatmul.mubr.bf16.gmra.mxu0 %v262
    %v301 = vpop.f32.mrf.mxu0
    %v302 = vadd.f32 0.0, %v301
    %v303 = vpop.f32.mrf.mxu0
    %v304 = vpop.f32.mrf.mxu0
    %v305 = vpop.f32.mrf.mxu0
    %306 = vdwg.mxu0
    %v307 = vsel %vm260, %v302, -inf
    %308 = vmax.xlane.f32.xlu0 %v307
    %v309 = vpop.xlane.xlu0 %308
    %v310 = vsub.f32 %v302, %v309
    %v311 = vmul.f32 %v310, 1.442695
    %v312 = vpow.pop %v311
    %v313 = vsel %vm260, %v312, 0.0
    %314 = vadd.xlane.f32.xlu0 %v313
    %v315 = vpop.xlane.xlu0 %314
    %v316 = vrcp.pop %v315
    %v317 = vmul.f32 %v312, %v316
    %v318 = vpack.c.bf16 %v317, %v317
    %319 = vrot.lane.b32.xlu0 %v256, 64
    %v320 = vpop.permute.xlu0 %319
    %v322 = vsel %vm260, %v318, 0
    %vm324 = vcmask 1043456
    %v326 = vsel %vm324, %v320, 0
    %328 = vmatprep.subr.bf16.mxu0 0
    %329 = vmatpush1.bf16.msra.mxu0 0
    %330 = vmatprep.subr.bf16.mxu0 0
    %331 = vmatpush1.bf16.msra.mxu0 0
    %332 = vmatprep.subr.bf16.mxu0 0
    %333 = vmatpush1.bf16.msra.mxu0 0
    %334 = vmatprep.subr.bf16.mxu0 0
    %335 = vmatpush1.bf16.msra.mxu0 0
    %336 = vmatprep.subr.bf16.mxu0 0
    %337 = vmatpush1.bf16.msra.mxu0 0
    %338 = vmatprep.subr.bf16.mxu0 0
    %339 = vmatpush1.bf16.msra.mxu0 0
    %340 = vmatprep.subr.bf16.mxu0 0
    %341 = vmatpush1.bf16.msra.mxu0 0
    %342 = vmatprep.subr.bf16.mxu0 0
    %343 = vmatpush1.bf16.msra.mxu0 %v326
    %344 = vmatprep.subr.bf16.mxu0 0
    %345 = vmatpush2.bf16.msra.mxu0 0
    %346 = vmatprep.subr.bf16.mxu0 0
    %347 = vmatpush2.bf16.msra.mxu0 0
    %348 = vmatprep.subr.bf16.mxu0 0
    %349 = vmatpush2.bf16.msra.mxu0 0
    %350 = vmatprep.subr.bf16.mxu0 0
    %351 = vmatpush2.bf16.msra.mxu0 0
    %352 = vmatprep.subr.bf16.mxu0 0
    %353 = vmatpush2.bf16.msra.mxu0 0
    %354 = vmatprep.subr.bf16.mxu0 0
    %355 = vmatpush2.bf16.msra.mxu0 0
    %356 = vmatprep.subr.bf16.mxu0 0
    %357 = vmatpush2.bf16.msra.mxu0 0
    %358 = vmatprep.subr.bf16.mxu0 0
    %359 = vmatpush2.bf16.msra.mxu0 0
    %360 = vmatprep.mubr.bf16.mxu0 0
    %361 = vmatmul.mubr.bf16.gmra.mxu0 %v322
    %v362 = vpop.f32.mrf.mxu0
    %v363 = vadd.f32 0.0, %v362
    %v364 = vpop.f32.mrf.mxu0
    %v365 = vpop.f32.mrf.mxu0
    %v366 = vpop.f32.mrf.mxu0
    %367 = vdwg.mxu0
    %v368 = vpack.c.bf16 %v363, %v363
    %v369 = vld [vmem:[%s11] sm:$0xf]
    %370 = vrot.lane.b32.xlu0 %v256, 120
    %v371 = vpop.permute.xlu0 %370
    %372 = vrot.lane.b32.xlu0 %v256, 88
    %v373 = vpop.permute.xlu0 %372
    %v375 = vsel %vm260, %v371, 0
    %v378 = vsel %vm260, %v373, 0
    %380 = vmatprep.subr.bf16.mxu0 0
    %381 = vmatpush1.bf16.xpose.msra.mxu0 0
    %382 = vmatprep.subr.bf16.mxu0 0
    %383 = vmatpush1.bf16.xpose.msra.mxu0 0
    %384 = vmatprep.subr.bf16.mxu0 0
    %385 = vmatpush1.bf16.xpose.msra.mxu0 0
    %386 = vmatprep.subr.bf16.mxu0 0
    %387 = vmatpush1.bf16.xpose.msra.mxu0 0
    %388 = vmatprep.subr.bf16.mxu0 0
    %389 = vmatpush1.bf16.xpose.msra.mxu0 0
    %390 = vmatprep.subr.bf16.mxu0 0
    %391 = vmatpush1.bf16.xpose.msra.mxu0 0
    %392 = vmatprep.subr.bf16.mxu0 0
    %393 = vmatpush1.bf16.xpose.msra.mxu0 0
    %394 = vmatprep.subr.bf16.mxu0 0
    %395 = vmatpush1.bf16.xpose.msra.mxu0 %v378
    %396 = vmatprep.subr.bf16.mxu0 0
    %397 = vmatpush2.bf16.xpose.msra.mxu0 0
    %398 = vmatprep.subr.bf16.mxu0 0
    %399 = vmatpush2.bf16.xpose.msra.mxu0 0
    %400 = vmatprep.subr.bf16.mxu0 0
    %401 = vmatpush2.bf16.xpose.msra.mxu0 0
    %402 = vmatprep.subr.bf16.mxu0 0
    %403 = vmatpush2.bf16.xpose.msra.mxu0 0
    %404 = vmatprep.subr.bf16.mxu0 0
    %405 = vmatpush2.bf16.xpose.msra.mxu0 0
    %406 = vmatprep.subr.bf16.mxu0 0
    %407 = vmatpush2.bf16.xpose.msra.mxu0 0
    %408 = vmatprep.subr.bf16.mxu0 0
    %409 = vmatpush2.bf16.xpose.msra.mxu0 0
    %410 = vmatprep.subr.bf16.mxu0 0
    %411 = vmatpush2.bf16.xpose.msra.mxu0 0
    %412 = vmatprep.mubr.bf16.mxu0 0
    %413 = vmatmul.mubr.bf16.gmra.mxu0 %v375
    %v414 = vpop.f32.mrf.mxu0
    %v415 = vadd.f32 0.0, %v414
    %v416 = vpop.f32.mrf.mxu0
    %v417 = vpop.f32.mrf.mxu0
    %v418 = vpop.f32.mrf.mxu0
    %419 = vdwg.mxu0
    %v420 = vsel %vm260, %v415, -inf
    %421 = vmax.xlane.f32.xlu0 %v420
    %v422 = vpop.xlane.xlu0 %421
    %v423 = vsub.f32 %v415, %v422
    %v424 = vmul.f32 %v423, 1.442695
    %v425 = vpow.pop %v424
    %v426 = vsel %vm260, %v425, 0.0
    %427 = vadd.xlane.f32.xlu0 %v426
    %v428 = vpop.xlane.xlu0 %427
    %v429 = vrcp.pop %v428
    %v430 = vmul.f32 %v425, %v429
    %v431 = vpack.c.bf16 %v430, %v430
    %432 = vrot.lane.b32.xlu0 %v256, 56
    %v433 = vpop.permute.xlu0 %432
    %v435 = vsel %vm260, %v431, 0
    %v438 = vsel %vm324, %v433, 0
    %440 = vmatprep.subr.bf16.mxu0 0
    %441 = vmatpush1.bf16.msra.mxu0 0
    %442 = vmatprep.subr.bf16.mxu0 0
    %443 = vmatpush1.bf16.msra.mxu0 0
    %444 = vmatprep.subr.bf16.mxu0 0
    %445 = vmatpush1.bf16.msra.mxu0 0
    %446 = vmatprep.subr.bf16.mxu0 0
    %447 = vmatpush1.bf16.msra.mxu0 0
    %448 = vmatprep.subr.bf16.mxu0 0
    %449 = vmatpush1.bf16.msra.mxu0 0
    %450 = vmatprep.subr.bf16.mxu0 0
    %451 = vmatpush1.bf16.msra.mxu0 0
    %452 = vmatprep.subr.bf16.mxu0 0
    %453 = vmatpush1.bf16.msra.mxu0 0
    %454 = vmatprep.subr.bf16.mxu0 0
    %455 = vmatpush1.bf16.msra.mxu0 %v438
    %456 = vmatprep.subr.bf16.mxu0 0
    %457 = vmatpush2.bf16.msra.mxu0 0
    %458 = vmatprep.subr.bf16.mxu0 0
    %459 = vmatpush2.bf16.msra.mxu0 0
    %460 = vmatprep.subr.bf16.mxu0 0
    %461 = vmatpush2.bf16.msra.mxu0 0
    %462 = vmatprep.subr.bf16.mxu0 0
    %463 = vmatpush2.bf16.msra.mxu0 0
    %464 = vmatprep.subr.bf16.mxu0 0
    %465 = vmatpush2.bf16.msra.mxu0 0
    %466 = vmatprep.subr.bf16.mxu0 0
    %467 = vmatpush2.bf16.msra.mxu0 0
    %468 = vmatprep.subr.bf16.mxu0 0
    %469 = vmatpush2.bf16.msra.mxu0 0
    %470 = vmatprep.subr.bf16.mxu0 0
    %471 = vmatpush2.bf16.msra.mxu0 0
    %472 = vmatprep.mubr.bf16.mxu0 0
    %473 = vmatmul.mubr.bf16.gmra.mxu0 %v435
    %v474 = vpop.f32.mrf.mxu0
    %v475 = vadd.f32 0.0, %v474
    %v476 = vpop.f32.mrf.mxu0
    %v477 = vpop.f32.mrf.mxu0
    %v478 = vpop.f32.mrf.mxu0
    %479 = vdwg.mxu0
    %v480 = vpack.c.bf16 %v475, %v475
    %s481 = scalar_lea.vmem %s11, 4
    %v482 = vld [vmem:[%s481] sm:$0xf]
    %v484 = vsel %vm260, %v480, 0
    %v487 = vsel %vm324, %v482, 0
    %489 = vmatprep.subr.bf16.mxu0 0
    %490 = vmatpush1.bf16.msra.mxu0 0
    %491 = vmatprep.subr.bf16.mxu0 0
    %492 = vmatpush1.bf16.msra.mxu0 0
    %493 = vmatprep.subr.bf16.mxu0 0
    %494 = vmatpush1.bf16.msra.mxu0 0
    %495 = vmatprep.subr.bf16.mxu0 0
    %496 = vmatpush1.bf16.msra.mxu0 0
    %497 = vmatprep.subr.bf16.mxu0 0
    %498 = vmatpush1.bf16.msra.mxu0 0
    %499 = vmatprep.subr.bf16.mxu0 0
    %500 = vmatpush1.bf16.msra.mxu0 0
    %501 = vmatprep.subr.bf16.mxu0 0
    %502 = vmatpush1.bf16.msra.mxu0 0
    %503 = vmatprep.subr.bf16.mxu0 0
    %504 = vmatpush1.bf16.msra.mxu0 %v487
    %505 = vmatprep.subr.bf16.mxu0 0
    %506 = vmatpush2.bf16.msra.mxu0 0
    %507 = vmatprep.subr.bf16.mxu0 0
    %508 = vmatpush2.bf16.msra.mxu0 0
    %509 = vmatprep.subr.bf16.mxu0 0
    %510 = vmatpush2.bf16.msra.mxu0 0
    %511 = vmatprep.subr.bf16.mxu0 0
    %512 = vmatpush2.bf16.msra.mxu0 0
    %513 = vmatprep.subr.bf16.mxu0 0
    %514 = vmatpush2.bf16.msra.mxu0 0
    %515 = vmatprep.subr.bf16.mxu0 0
    %516 = vmatpush2.bf16.msra.mxu0 0
    %517 = vmatprep.subr.bf16.mxu0 0
    %518 = vmatpush2.bf16.msra.mxu0 0
    %519 = vmatprep.subr.bf16.mxu0 0
    %520 = vmatpush2.bf16.msra.mxu0 0
    %521 = vmatprep.mubr.bf16.mxu0 0
    %522 = vmatmul.mubr.bf16.gmra.mxu0 %v484
    %v523 = vpop.f32.mrf.mxu0
    %v524 = vadd.f32 0.0, %v523
    %v525 = vpop.f32.mrf.mxu0
    %v526 = vpop.f32.mrf.mxu0
    %v527 = vpop.f32.mrf.mxu0
    %528 = vdwg.mxu0
    %v530 = vsel %vm260, %v368, 0
    %v533 = vsel %vm324, %v369, 0
    %535 = vmatprep.subr.bf16.mxu0 0
    %536 = vmatpush1.bf16.msra.mxu0 0
    %537 = vmatprep.subr.bf16.mxu0 0
    %538 = vmatpush1.bf16.msra.mxu0 0
    %539 = vmatprep.subr.bf16.mxu0 0
    %540 = vmatpush1.bf16.msra.mxu0 0
    %541 = vmatprep.subr.bf16.mxu0 0
    %542 = vmatpush1.bf16.msra.mxu0 0
    %543 = vmatprep.subr.bf16.mxu0 0
    %544 = vmatpush1.bf16.msra.mxu0 0
    %545 = vmatprep.subr.bf16.mxu0 0
    %546 = vmatpush1.bf16.msra.mxu0 0
    %547 = vmatprep.subr.bf16.mxu0 0
    %548 = vmatpush1.bf16.msra.mxu0 0
    %549 = vmatprep.subr.bf16.mxu0 0
    %550 = vmatpush1.bf16.msra.mxu0 %v533
    %551 = vmatprep.subr.bf16.mxu0 0
    %552 = vmatpush2.bf16.msra.mxu0 0
    %553 = vmatprep.subr.bf16.mxu0 0
    %554 = vmatpush2.bf16.msra.mxu0 0
    %555 = vmatprep.subr.bf16.mxu0 0
    %556 = vmatpush2.bf16.msra.mxu0 0
    %557 = vmatprep.subr.bf16.mxu0 0
    %558 = vmatpush2.bf16.msra.mxu0 0
    %559 = vmatprep.subr.bf16.mxu0 0
    %560 = vmatpush2.bf16.msra.mxu0 0
    %561 = vmatprep.subr.bf16.mxu0 0
    %562 = vmatpush2.bf16.msra.mxu0 0
    %563 = vmatprep.subr.bf16.mxu0 0
    %564 = vmatpush2.bf16.msra.mxu0 0
    %565 = vmatprep.subr.bf16.mxu0 0
    %566 = vmatpush2.bf16.msra.mxu0 0
    %567 = vmatprep.mubr.bf16.mxu0 0
    %568 = vmatmul.mubr.bf16.gmra.mxu0 %v530
    %v569 = vpop.f32.mrf.mxu0
    %v570 = vadd.f32 %v524, %v569
    %v571 = vpop.f32.mrf.mxu0
    %v572 = vpop.f32.mrf.mxu0
    %v573 = vpop.f32.mrf.mxu0
    %574 = vdwg.mxu0
    %575 = vrot.lane.b32.xlu0 %v256, 112
    %v576 = vpop.permute.xlu0 %575
    %577 = vrot.lane.b32.xlu0 %v256, 80
    %v578 = vpop.permute.xlu0 %577
    %v580 = vsel %vm260, %v576, 0
    %v583 = vsel %vm260, %v578, 0
    %585 = vmatprep.subr.bf16.mxu0 0
    %586 = vmatpush1.bf16.xpose.msra.mxu0 0
    %587 = vmatprep.subr.bf16.mxu0 0
    %588 = vmatpush1.bf16.xpose.msra.mxu0 0
    %589 = vmatprep.subr.bf16.mxu0 0
    %590 = vmatpush1.bf16.xpose.msra.mxu0 0
    %591 = vmatprep.subr.bf16.mxu0 0
    %592 = vmatpush1.bf16.xpose.msra.mxu0 0
    %593 = vmatprep.subr.bf16.mxu0 0
    %594 = vmatpush1.bf16.xpose.msra.mxu0 0
    %595 = vmatprep.subr.bf16.mxu0 0
    %596 = vmatpush1.bf16.xpose.msra.mxu0 0
    %597 = vmatprep.subr.bf16.mxu0 0
    %598 = vmatpush1.bf16.xpose.msra.mxu0 0
    %599 = vmatprep.subr.bf16.mxu0 0
    %600 = vmatpush1.bf16.xpose.msra.mxu0 %v583
    %601 = vmatprep.subr.bf16.mxu0 0
    %602 = vmatpush2.bf16.xpose.msra.mxu0 0
    %603 = vmatprep.subr.bf16.mxu0 0
    %604 = vmatpush2.bf16.xpose.msra.mxu0 0
    %605 = vmatprep.subr.bf16.mxu0 0
    %606 = vmatpush2.bf16.xpose.msra.mxu0 0
    %607 = vmatprep.subr.bf16.mxu0 0
    %608 = vmatpush2.bf16.xpose.msra.mxu0 0
    %609 = vmatprep.subr.bf16.mxu0 0
    %610 = vmatpush2.bf16.xpose.msra.mxu0 0
    %611 = vmatprep.subr.bf16.mxu0 0
    %612 = vmatpush2.bf16.xpose.msra.mxu0 0
    %613 = vmatprep.subr.bf16.mxu0 0
    %614 = vmatpush2.bf16.xpose.msra.mxu0 0
    %615 = vmatprep.subr.bf16.mxu0 0
    %616 = vmatpush2.bf16.xpose.msra.mxu0 0
    %617 = vmatprep.mubr.bf16.mxu0 0
    %618 = vmatmul.mubr.bf16.gmra.mxu0 %v580
    %v619 = vpop.f32.mrf.mxu0
    %v620 = vadd.f32 0.0, %v619
    %v621 = vpop.f32.mrf.mxu0
    %v622 = vpop.f32.mrf.mxu0
    %v623 = vpop.f32.mrf.mxu0
    %624 = vdwg.mxu0
    %v625 = vsel %vm260, %v620, -inf
    %626 = vmax.xlane.f32.xlu0 %v625
    %v627 = vpop.xlane.xlu0 %626
    %v628 = vsub.f32 %v620, %v627
    %v629 = vmul.f32 %v628, 1.442695
    %v630 = vpow.pop %v629
    %v631 = vsel %vm260, %v630, 0.0
    %632 = vadd.xlane.f32.xlu0 %v631
    %v633 = vpop.xlane.xlu0 %632
    %v634 = vrcp.pop %v633
    %v635 = vmul.f32 %v630, %v634
    %v636 = vpack.c.bf16 %v635, %v635
    %637 = vrot.lane.b32.xlu0 %v256, 48
    %v638 = vpop.permute.xlu0 %637
    %v640 = vsel %vm260, %v636, 0
    %v643 = vsel %vm324, %v638, 0
    %645 = vmatprep.subr.bf16.mxu0 0
    %646 = vmatpush1.bf16.msra.mxu0 0
    %647 = vmatprep.subr.bf16.mxu0 0
    %648 = vmatpush1.bf16.msra.mxu0 0
    %649 = vmatprep.subr.bf16.mxu0 0
    %650 = vmatpush1.bf16.msra.mxu0 0
    %651 = vmatprep.subr.bf16.mxu0 0
    %652 = vmatpush1.bf16.msra.mxu0 0
    %653 = vmatprep.subr.bf16.mxu0 0
    %654 = vmatpush1.bf16.msra.mxu0 0
    %655 = vmatprep.subr.bf16.mxu0 0
    %656 = vmatpush1.bf16.msra.mxu0 0
    %657 = vmatprep.subr.bf16.mxu0 0
    %658 = vmatpush1.bf16.msra.mxu0 0
    %659 = vmatprep.subr.bf16.mxu0 0
    %660 = vmatpush1.bf16.msra.mxu0 %v643
    %661 = vmatprep.subr.bf16.mxu0 0
    %662 = vmatpush2.bf16.msra.mxu0 0
    %663 = vmatprep.subr.bf16.mxu0 0
    %664 = vmatpush2.bf16.msra.mxu0 0
    %665 = vmatprep.subr.bf16.mxu0 0
    %666 = vmatpush2.bf16.msra.mxu0 0
    %667 = vmatprep.subr.bf16.mxu0 0
    %668 = vmatpush2.bf16.msra.mxu0 0
    %669 = vmatprep.subr.bf16.mxu0 0
    %670 = vmatpush2.bf16.msra.mxu0 0
    %671 = vmatprep.subr.bf16.mxu0 0
    %672 = vmatpush2.bf16.msra.mxu0 0
    %673 = vmatprep.subr.bf16.mxu0 0
    %674 = vmatpush2.bf16.msra.mxu0 0
    %675 = vmatprep.subr.bf16.mxu0 0
    %676 = vmatpush2.bf16.msra.mxu0 0
    %677 = vmatprep.mubr.bf16.mxu0 0
    %678 = vmatmul.mubr.bf16.gmra.mxu0 %v640
    %v679 = vpop.f32.mrf.mxu0
    %v680 = vadd.f32 0.0, %v679
    %v681 = vpop.f32.mrf.mxu0
    %v682 = vpop.f32.mrf.mxu0
    %v683 = vpop.f32.mrf.mxu0
    %684 = vdwg.mxu0
    %v685 = vpack.c.bf16 %v680, %v680
    %s686 = scalar_lea.vmem %s11, 8
    %v687 = vld [vmem:[%s686] sm:$0xf]
    %v689 = vsel %vm260, %v685, 0
    %v692 = vsel %vm324, %v687, 0
    %694 = vmatprep.subr.bf16.mxu0 0
    %695 = vmatpush1.bf16.msra.mxu0 0
    %696 = vmatprep.subr.bf16.mxu0 0
    %697 = vmatpush1.bf16.msra.mxu0 0
    %698 = vmatprep.subr.bf16.mxu0 0
    %699 = vmatpush1.bf16.msra.mxu0 0
    %700 = vmatprep.subr.bf16.mxu0 0
    %701 = vmatpush1.bf16.msra.mxu0 0
    %702 = vmatprep.subr.bf16.mxu0 0
    %703 = vmatpush1.bf16.msra.mxu0 0
    %704 = vmatprep.subr.bf16.mxu0 0
    %705 = vmatpush1.bf16.msra.mxu0 0
    %706 = vmatprep.subr.bf16.mxu0 0
    %707 = vmatpush1.bf16.msra.mxu0 0
    %708 = vmatprep.subr.bf16.mxu0 0
    %709 = vmatpush1.bf16.msra.mxu0 %v692
    %710 = vmatprep.subr.bf16.mxu0 0
    %711 = vmatpush2.bf16.msra.mxu0 0
    %712 = vmatprep.subr.bf16.mxu0 0
    %713 = vmatpush2.bf16.msra.mxu0 0
    %714 = vmatprep.subr.bf16.mxu0 0
    %715 = vmatpush2.bf16.msra.mxu0 0
    %716 = vmatprep.subr.bf16.mxu0 0
    %717 = vmatpush2.bf16.msra.mxu0 0
    %718 = vmatprep.subr.bf16.mxu0 0
    %719 = vmatpush2.bf16.msra.mxu0 0
    %720 = vmatprep.subr.bf16.mxu0 0
    %721 = vmatpush2.bf16.msra.mxu0 0
    %722 = vmatprep.subr.bf16.mxu0 0
    %723 = vmatpush2.bf16.msra.mxu0 0
    %724 = vmatprep.subr.bf16.mxu0 0
    %725 = vmatpush2.bf16.msra.mxu0 0
    %726 = vmatprep.mubr.bf16.mxu0 0
    %727 = vmatmul.mubr.bf16.gmra.mxu0 %v689
    %v728 = vpop.f32.mrf.mxu0
    %v729 = vadd.f32 0.0, %v728
    %v730 = vpop.f32.mrf.mxu0
    %v731 = vpop.f32.mrf.mxu0
    %v732 = vpop.f32.mrf.mxu0
    %733 = vdwg.mxu0
    %v734 = vadd.f32 %v570, %v729
    %735 = vrot.lane.b32.xlu0 %v256, 104
    %v736 = vpop.permute.xlu0 %735
    %737 = vrot.lane.b32.xlu0 %v256, 72
    %v738 = vpop.permute.xlu0 %737
    %v740 = vsel %vm260, %v736, 0
    %v743 = vsel %vm260, %v738, 0
    %745 = vmatprep.subr.bf16.mxu0 0
    %746 = vmatpush1.bf16.xpose.msra.mxu0 0
    %747 = vmatprep.subr.bf16.mxu0 0
    %748 = vmatpush1.bf16.xpose.msra.mxu0 0
    %749 = vmatprep.subr.bf16.mxu0 0
    %750 = vmatpush1.bf16.xpose.msra.mxu0 0
    %751 = vmatprep.subr.bf16.mxu0 0
    %752 = vmatpush1.bf16.xpose.msra.mxu0 0
    %753 = vmatprep.subr.bf16.mxu0 0
    %754 = vmatpush1.bf16.xpose.msra.mxu0 0
    %755 = vmatprep.subr.bf16.mxu0 0
    %756 = vmatpush1.bf16.xpose.msra.mxu0 0
    %757 = vmatprep.subr.bf16.mxu0 0
    %758 = vmatpush1.bf16.xpose.msra.mxu0 0
    %759 = vmatprep.subr.bf16.mxu0 0
    %760 = vmatpush1.bf16.xpose.msra.mxu0 %v743
    %761 = vmatprep.subr.bf16.mxu0 0
    %762 = vmatpush2.bf16.xpose.msra.mxu0 0
    %763 = vmatprep.subr.bf16.mxu0 0
    %764 = vmatpush2.bf16.xpose.msra.mxu0 0
    %765 = vmatprep.subr.bf16.mxu0 0
    %766 = vmatpush2.bf16.xpose.msra.mxu0 0
    %767 = vmatprep.subr.bf16.mxu0 0
    %768 = vmatpush2.bf16.xpose.msra.mxu0 0
    %769 = vmatprep.subr.bf16.mxu0 0
    %770 = vmatpush2.bf16.xpose.msra.mxu0 0
    %771 = vmatprep.subr.bf16.mxu0 0
    %772 = vmatpush2.bf16.xpose.msra.mxu0 0
    %773 = vmatprep.subr.bf16.mxu0 0
    %774 = vmatpush2.bf16.xpose.msra.mxu0 0
    %775 = vmatprep.subr.bf16.mxu0 0
    %776 = vmatpush2.bf16.xpose.msra.mxu0 0
    %777 = vmatprep.mubr.bf16.mxu0 0
    %778 = vmatmul.mubr.bf16.gmra.mxu0 %v740
    %v779 = vpop.f32.mrf.mxu0
    %v780 = vadd.f32 0.0, %v779
    %v781 = vpop.f32.mrf.mxu0
    %v782 = vpop.f32.mrf.mxu0
    %v783 = vpop.f32.mrf.mxu0
    %784 = vdwg.mxu0
    %v785 = vsel %vm260, %v780, -inf
    %786 = vmax.xlane.f32.xlu0 %v785
    %v787 = vpop.xlane.xlu0 %786
    %v788 = vsub.f32 %v780, %v787
    %v789 = vmul.f32 %v788, 1.442695
    %v790 = vpow.pop %v789
    %v791 = vsel %vm260, %v790, 0.0
    %792 = vadd.xlane.f32.xlu0 %v791
    %v793 = vpop.xlane.xlu0 %792
    %v794 = vrcp.pop %v793
    %v795 = vmul.f32 %v790, %v794
    %v796 = vpack.c.bf16 %v795, %v795
    %797 = vrot.lane.b32.xlu0 %v256, 40
    %v798 = vpop.permute.xlu0 %797
    %v800 = vsel %vm260, %v796, 0
    %v803 = vsel %vm324, %v798, 0
    %805 = vmatprep.subr.bf16.mxu0 0
    %806 = vmatpush1.bf16.msra.mxu0 0
    %807 = vmatprep.subr.bf16.mxu0 0
    %808 = vmatpush1.bf16.msra.mxu0 0
    %809 = vmatprep.subr.bf16.mxu0 0
    %810 = vmatpush1.bf16.msra.mxu0 0
    %811 = vmatprep.subr.bf16.mxu0 0
    %812 = vmatpush1.bf16.msra.mxu0 0
    %813 = vmatprep.subr.bf16.mxu0 0
    %814 = vmatpush1.bf16.msra.mxu0 0
    %815 = vmatprep.subr.bf16.mxu0 0
    %816 = vmatpush1.bf16.msra.mxu0 0
    %817 = vmatprep.subr.bf16.mxu0 0
    %818 = vmatpush1.bf16.msra.mxu0 0
    %819 = vmatprep.subr.bf16.mxu0 0
    %820 = vmatpush1.bf16.msra.mxu0 %v803
    %821 = vmatprep.subr.bf16.mxu0 0
    %822 = vmatpush2.bf16.msra.mxu0 0
    %823 = vmatprep.subr.bf16.mxu0 0
    %824 = vmatpush2.bf16.msra.mxu0 0
    %825 = vmatprep.subr.bf16.mxu0 0
    %826 = vmatpush2.bf16.msra.mxu0 0
    %827 = vmatprep.subr.bf16.mxu0 0
    %828 = vmatpush2.bf16.msra.mxu0 0
    %829 = vmatprep.subr.bf16.mxu0 0
    %830 = vmatpush2.bf16.msra.mxu0 0
    %831 = vmatprep.subr.bf16.mxu0 0
    %832 = vmatpush2.bf16.msra.mxu0 0
    %833 = vmatprep.subr.bf16.mxu0 0
    %834 = vmatpush2.bf16.msra.mxu0 0
    %835 = vmatprep.subr.bf16.mxu0 0
    %836 = vmatpush2.bf16.msra.mxu0 0
    %837 = vmatprep.mubr.bf16.mxu0 0
    %838 = vmatmul.mubr.bf16.gmra.mxu0 %v800
    %v839 = vpop.f32.mrf.mxu0
    %v840 = vadd.f32 0.0, %v839
    %v841 = vpop.f32.mrf.mxu0
    %v842 = vpop.f32.mrf.mxu0
    %v843 = vpop.f32.mrf.mxu0
    %844 = vdwg.mxu0
    %v845 = vpack.c.bf16 %v840, %v840
    %s846 = scalar_lea.vmem %s11, 12
    %v847 = vld [vmem:[%s846] sm:$0xf]
    %v849 = vsel %vm260, %v845, 0
    %v852 = vsel %vm324, %v847, 0
    %854 = vmatprep.subr.bf16.mxu0 0
    %855 = vmatpush1.bf16.msra.mxu0 0
    %856 = vmatprep.subr.bf16.mxu0 0
    %857 = vmatpush1.bf16.msra.mxu0 0
    %858 = vmatprep.subr.bf16.mxu0 0
    %859 = vmatpush1.bf16.msra.mxu0 0
    %860 = vmatprep.subr.bf16.mxu0 0
    %861 = vmatpush1.bf16.msra.mxu0 0
    %862 = vmatprep.subr.bf16.mxu0 0
    %863 = vmatpush1.bf16.msra.mxu0 0
    %864 = vmatprep.subr.bf16.mxu0 0
    %865 = vmatpush1.bf16.msra.mxu0 0
    %866 = vmatprep.subr.bf16.mxu0 0
    %867 = vmatpush1.bf16.msra.mxu0 0
    %868 = vmatprep.subr.bf16.mxu0 0
    %869 = vmatpush1.bf16.msra.mxu0 %v852
    %870 = vmatprep.subr.bf16.mxu0 0
    %871 = vmatpush2.bf16.msra.mxu0 0
    %872 = vmatprep.subr.bf16.mxu0 0
    %873 = vmatpush2.bf16.msra.mxu0 0
    %874 = vmatprep.subr.bf16.mxu0 0
    %875 = vmatpush2.bf16.msra.mxu0 0
    %876 = vmatprep.subr.bf16.mxu0 0
    %877 = vmatpush2.bf16.msra.mxu0 0
    %878 = vmatprep.subr.bf16.mxu0 0
    %879 = vmatpush2.bf16.msra.mxu0 0
    %880 = vmatprep.subr.bf16.mxu0 0
    %881 = vmatpush2.bf16.msra.mxu0 0
    %882 = vmatprep.subr.bf16.mxu0 0
    %883 = vmatpush2.bf16.msra.mxu0 0
    %884 = vmatprep.subr.bf16.mxu0 0
    %885 = vmatpush2.bf16.msra.mxu0 0
    %886 = vmatprep.mubr.bf16.mxu0 0
    %887 = vmatmul.mubr.bf16.gmra.mxu0 %v849
    %v888 = vpop.f32.mrf.mxu0
    %v889 = vadd.f32 0.0, %v888
    %v890 = vpop.f32.mrf.mxu0
    %v891 = vpop.f32.mrf.mxu0
    %v892 = vpop.f32.mrf.mxu0
    %893 = vdwg.mxu0
    %v894 = vadd.f32 %v734, %v889
    %v895 = vrot.slane %v256, 4
    %896 = vrot.lane.b32.xlu0 %v895, 96
    %v897 = vpop.permute.xlu0 %896
    %v899 = vsel %vm260, %v895, 0
    %v902 = vsel %vm260, %v897, 0
    %904 = vmatprep.subr.bf16.mxu0 0
    %905 = vmatpush1.bf16.xpose.msra.mxu0 0
    %906 = vmatprep.subr.bf16.mxu0 0
    %907 = vmatpush1.bf16.xpose.msra.mxu0 0
    %908 = vmatprep.subr.bf16.mxu0 0
    %909 = vmatpush1.bf16.xpose.msra.mxu0 0
    %910 = vmatprep.subr.bf16.mxu0 0
    %911 = vmatpush1.bf16.xpose.msra.mxu0 0
    %912 = vmatprep.subr.bf16.mxu0 0
    %913 = vmatpush1.bf16.xpose.msra.mxu0 0
    %914 = vmatprep.subr.bf16.mxu0 0
    %915 = vmatpush1.bf16.xpose.msra.mxu0 0
    %916 = vmatprep.subr.bf16.mxu0 0
    %917 = vmatpush1.bf16.xpose.msra.mxu0 0
    %918 = vmatprep.subr.bf16.mxu0 0
    %919 = vmatpush1.bf16.xpose.msra.mxu0 %v902
    %920 = vmatprep.subr.bf16.mxu0 0
    %921 = vmatpush2.bf16.xpose.msra.mxu0 0
    %922 = vmatprep.subr.bf16.mxu0 0
    %923 = vmatpush2.bf16.xpose.msra.mxu0 0
    %924 = vmatprep.subr.bf16.mxu0 0
    %925 = vmatpush2.bf16.xpose.msra.mxu0 0
    %926 = vmatprep.subr.bf16.mxu0 0
    %927 = vmatpush2.bf16.xpose.msra.mxu0 0
    %928 = vmatprep.subr.bf16.mxu0 0
    %929 = vmatpush2.bf16.xpose.msra.mxu0 0
    %930 = vmatprep.subr.bf16.mxu0 0
    %931 = vmatpush2.bf16.xpose.msra.mxu0 0
    %932 = vmatprep.subr.bf16.mxu0 0
    %933 = vmatpush2.bf16.xpose.msra.mxu0 0
    %934 = vmatprep.subr.bf16.mxu0 0
    %935 = vmatpush2.bf16.xpose.msra.mxu0 0
    %936 = vmatprep.mubr.bf16.mxu0 0
    %937 = vmatmul.mubr.bf16.gmra.mxu0 %v899
    %v938 = vpop.f32.mrf.mxu0
    %v939 = vadd.f32 0.0, %v938
    %v940 = vpop.f32.mrf.mxu0
    %v941 = vpop.f32.mrf.mxu0
    %v942 = vpop.f32.mrf.mxu0
    %943 = vdwg.mxu0
    %v944 = vsel %vm260, %v939, -inf
    %945 = vmax.xlane.f32.xlu0 %v944
    %v946 = vpop.xlane.xlu0 %945
    %v947 = vsub.f32 %v939, %v946
    %v948 = vmul.f32 %v947, 1.442695
    %v949 = vpow.pop %v948
    %v950 = vsel %vm260, %v949, 0.0
    %951 = vadd.xlane.f32.xlu0 %v950
    %v952 = vpop.xlane.xlu0 %951
    %v953 = vrcp.pop %v952
    %v954 = vmul.f32 %v949, %v953
    %v955 = vpack.c.bf16 %v954, %v954
    %956 = vrot.lane.b32.xlu0 %v895, 64
    %v957 = vpop.permute.xlu0 %956
    %v959 = vsel %vm260, %v955, 0
    %v962 = vsel %vm324, %v957, 0
    %964 = vmatprep.subr.bf16.mxu0 0
    %965 = vmatpush1.bf16.msra.mxu0 0
    %966 = vmatprep.subr.bf16.mxu0 0
    %967 = vmatpush1.bf16.msra.mxu0 0
    %968 = vmatprep.subr.bf16.mxu0 0
    %969 = vmatpush1.bf16.msra.mxu0 0
    %970 = vmatprep.subr.bf16.mxu0 0
    %971 = vmatpush1.bf16.msra.mxu0 0
    %972 = vmatprep.subr.bf16.mxu0 0
    %973 = vmatpush1.bf16.msra.mxu0 0
    %974 = vmatprep.subr.bf16.mxu0 0
    %975 = vmatpush1.bf16.msra.mxu0 0
    %976 = vmatprep.subr.bf16.mxu0 0
    %977 = vmatpush1.bf16.msra.mxu0 0
    %978 = vmatprep.subr.bf16.mxu0 0
    %979 = vmatpush1.bf16.msra.mxu0 %v962
    %980 = vmatprep.subr.bf16.mxu0 0
    %981 = vmatpush2.bf16.msra.mxu0 0
    %982 = vmatprep.subr.bf16.mxu0 0
    %983 = vmatpush2.bf16.msra.mxu0 0
    %984 = vmatprep.subr.bf16.mxu0 0
    %985 = vmatpush2.bf16.msra.mxu0 0
    %986 = vmatprep.subr.bf16.mxu0 0
    %987 = vmatpush2.bf16.msra.mxu0 0
    %988 = vmatprep.subr.bf16.mxu0 0
    %989 = vmatpush2.bf16.msra.mxu0 0
    %990 = vmatprep.subr.bf16.mxu0 0
    %991 = vmatpush2.bf16.msra.mxu0 0
    %992 = vmatprep.subr.bf16.mxu0 0
    %993 = vmatpush2.bf16.msra.mxu0 0
    %994 = vmatprep.subr.bf16.mxu0 0
    %995 = vmatpush2.bf16.msra.mxu0 0
    %996 = vmatprep.mubr.bf16.mxu0 0
    %997 = vmatmul.mubr.bf16.gmra.mxu0 %v959
    %v998 = vpop.f32.mrf.mxu0
    %v999 = vadd.f32 0.0, %v998
    %v1000 = vpop.f32.mrf.mxu0
    %v1001 = vpop.f32.mrf.mxu0
    %v1002 = vpop.f32.mrf.mxu0
    %1003 = vdwg.mxu0
    %v1004 = vpack.c.bf16 %v999, %v999
    %1005 = vrot.lane.b32.xlu0 %v895, 120
    %v1006 = vpop.permute.xlu0 %1005
    %1007 = vrot.lane.b32.xlu0 %v895, 88
    %v1008 = vpop.permute.xlu0 %1007
    %v1010 = vsel %vm260, %v1006, 0
    %v1013 = vsel %vm260, %v1008, 0
    %1015 = vmatprep.subr.bf16.mxu0 0
    %1016 = vmatpush1.bf16.xpose.msra.mxu0 0
    %1017 = vmatprep.subr.bf16.mxu0 0
    %1018 = vmatpush1.bf16.xpose.msra.mxu0 0
    %1019 = vmatprep.subr.bf16.mxu0 0
    %1020 = vmatpush1.bf16.xpose.msra.mxu0 0
    %1021 = vmatprep.subr.bf16.mxu0 0
    %1022 = vmatpush1.bf16.xpose.msra.mxu0 0
    %1023 = vmatprep.subr.bf16.mxu0 0
    %1024 = vmatpush1.bf16.xpose.msra.mxu0 0
    %1025 = vmatprep.subr.bf16.mxu0 0
    %1026 = vmatpush1.bf16.xpose.msra.mxu0 0
    %1027 = vmatprep.subr.bf16.mxu0 0
    %1028 = vmatpush1.bf16.xpose.msra.mxu0 0
    %1029 = vmatprep.subr.bf16.mxu0 0
    %1030 = vmatpush1.bf16.xpose.msra.mxu0 %v1013
    %1031 = vmatprep.subr.bf16.mxu0 0
    %1032 = vmatpush2.bf16.xpose.msra.mxu0 0
    %1033 = vmatprep.subr.bf16.mxu0 0
    %1034 = vmatpush2.bf16.xpose.msra.mxu0 0
    %1035 = vmatprep.subr.bf16.mxu0 0
    %1036 = vmatpush2.bf16.xpose.msra.mxu0 0
    %1037 = vmatprep.subr.bf16.mxu0 0
    %1038 = vmatpush2.bf16.xpose.msra.mxu0 0
    %1039 = vmatprep.subr.bf16.mxu0 0
    %1040 = vmatpush2.bf16.xpose.msra.mxu0 0
    %1041 = vmatprep.subr.bf16.mxu0 0
    %1042 = vmatpush2.bf16.xpose.msra.mxu0 0
    %1043 = vmatprep.subr.bf16.mxu0 0
    %1044 = vmatpush2.bf16.xpose.msra.mxu0 0
    %1045 = vmatprep.subr.bf16.mxu0 0
    %1046 = vmatpush2.bf16.xpose.msra.mxu0 0
    %1047 = vmatprep.mubr.bf16.mxu0 0
    %1048 = vmatmul.mubr.bf16.gmra.mxu0 %v1010
    %v1049 = vpop.f32.mrf.mxu0
    %v1050 = vadd.f32 0.0, %v1049
    %v1051 = vpop.f32.mrf.mxu0
    %v1052 = vpop.f32.mrf.mxu0
    %v1053 = vpop.f32.mrf.mxu0
    %1054 = vdwg.mxu0
    %v1055 = vsel %vm260, %v1050, -inf
    %1056 = vmax.xlane.f32.xlu0 %v1055
    %v1057 = vpop.xlane.xlu0 %1056
    %v1058 = vsub.f32 %v1050, %v1057
    %v1059 = vmul.f32 %v1058, 1.442695
    %v1060 = vpow.pop %v1059
    %v1061 = vsel %vm260, %v1060, 0.0
    %1062 = vadd.xlane.f32.xlu0 %v1061
    %v1063 = vpop.xlane.xlu0 %1062
    %v1064 = vrcp.pop %v1063
    %v1065 = vmul.f32 %v1060, %v1064
    %v1066 = vpack.c.bf16 %v1065, %v1065
    %1067 = vrot.lane.b32.xlu0 %v895, 56
    %v1068 = vpop.permute.xlu0 %1067
    %v1070 = vsel %vm260, %v1066, 0
    %v1073 = vsel %vm324, %v1068, 0
    %1075 = vmatprep.subr.bf16.mxu0 0
    %1076 = vmatpush1.bf16.msra.mxu0 0
    %1077 = vmatprep.subr.bf16.mxu0 0
    %1078 = vmatpush1.bf16.msra.mxu0 0
    %1079 = vmatprep.subr.bf16.mxu0 0
    %1080 = vmatpush1.bf16.msra.mxu0 0
    %1081 = vmatprep.subr.bf16.mxu0 0
    %1082 = vmatpush1.bf16.msra.mxu0 0
    %1083 = vmatprep.subr.bf16.mxu0 0
    %1084 = vmatpush1.bf16.msra.mxu0 0
    %1085 = vmatprep.subr.bf16.mxu0 0
    %1086 = vmatpush1.bf16.msra.mxu0 0
    %1087 = vmatprep.subr.bf16.mxu0 0
    %1088 = vmatpush1.bf16.msra.mxu0 0
    %1089 = vmatprep.subr.bf16.mxu0 0
    %1090 = vmatpush1.bf16.msra.mxu0 %v1073
    %1091 = vmatprep.subr.bf16.mxu0 0
    %1092 = vmatpush2.bf16.msra.mxu0 0
    %1093 = vmatprep.subr.bf16.mxu0 0
    %1094 = vmatpush2.bf16.msra.mxu0 0
    %1095 = vmatprep.subr.bf16.mxu0 0
    %1096 = vmatpush2.bf16.msra.mxu0 0
    %1097 = vmatprep.subr.bf16.mxu0 0
    %1098 = vmatpush2.bf16.msra.mxu0 0
    %1099 = vmatprep.subr.bf16.mxu0 0
    %1100 = vmatpush2.bf16.msra.mxu0 0
    %1101 = vmatprep.subr.bf16.mxu0 0
    %1102 = vmatpush2.bf16.msra.mxu0 0
    %1103 = vmatprep.subr.bf16.mxu0 0
    %1104 = vmatpush2.bf16.msra.mxu0 0
    %1105 = vmatprep.subr.bf16.mxu0 0
    %1106 = vmatpush2.bf16.msra.mxu0 0
    %1107 = vmatprep.mubr.bf16.mxu0 0
    %1108 = vmatmul.mubr.bf16.gmra.mxu0 %v1070
    %v1109 = vpop.f32.mrf.mxu0
    %v1110 = vadd.f32 0.0, %v1109
    %v1111 = vpop.f32.mrf.mxu0
    %v1112 = vpop.f32.mrf.mxu0
    %v1113 = vpop.f32.mrf.mxu0
    %1114 = vdwg.mxu0
    %v1115 = vpack.c.bf16 %v1110, %v1110
    %v1117 = vsel %vm260, %v1115, 0
    %1119 = vmatprep.subr.bf16.mxu0 0
    %1120 = vmatpush1.bf16.msra.mxu0 0
    %1121 = vmatprep.subr.bf16.mxu0 0
    %1122 = vmatpush1.bf16.msra.mxu0 0
    %1123 = vmatprep.subr.bf16.mxu0 0
    %1124 = vmatpush1.bf16.msra.mxu0 0
    %1125 = vmatprep.subr.bf16.mxu0 0
    %1126 = vmatpush1.bf16.msra.mxu0 0
    %1127 = vmatprep.subr.bf16.mxu0 0
    %1128 = vmatpush1.bf16.msra.mxu0 0
    %1129 = vmatprep.subr.bf16.mxu0 0
    %1130 = vmatpush1.bf16.msra.mxu0 0
    %1131 = vmatprep.subr.bf16.mxu0 0
    %1132 = vmatpush1.bf16.msra.mxu0 0
    %1133 = vmatprep.subr.bf16.mxu0 0
    %1134 = vmatpush1.bf16.msra.mxu0 %v487
    %1135 = vmatprep.subr.bf16.mxu0 0
    %1136 = vmatpush2.bf16.msra.mxu0 0
    %1137 = vmatprep.subr.bf16.mxu0 0
    %1138 = vmatpush2.bf16.msra.mxu0 0
    %1139 = vmatprep.subr.bf16.mxu0 0
    %1140 = vmatpush2.bf16.msra.mxu0 0
    %1141 = vmatprep.subr.bf16.mxu0 0
    %1142 = vmatpush2.bf16.msra.mxu0 0
    %1143 = vmatprep.subr.bf16.mxu0 0
    %1144 = vmatpush2.bf16.msra.mxu0 0
    %1145 = vmatprep.subr.bf16.mxu0 0
    %1146 = vmatpush2.bf16.msra.mxu0 0
    %1147 = vmatprep.subr.bf16.mxu0 0
    %1148 = vmatpush2.bf16.msra.mxu0 0
    %1149 = vmatprep.subr.bf16.mxu0 0
    %1150 = vmatpush2.bf16.msra.mxu0 0
    %1151 = vmatprep.mubr.bf16.mxu0 0
    %1152 = vmatmul.mubr.bf16.gmra.mxu0 %v1117
    %v1153 = vpop.f32.mrf.mxu0
    %v1154 = vadd.f32 0.0, %v1153
    %v1155 = vpop.f32.mrf.mxu0
    %v1156 = vpop.f32.mrf.mxu0
    %v1157 = vpop.f32.mrf.mxu0
    %1158 = vdwg.mxu0
    %v1160 = vsel %vm260, %v1004, 0
    %1162 = vmatprep.subr.bf16.mxu0 0
    %1163 = vmatpush1.bf16.msra.mxu0 0
    %1164 = vmatprep.subr.bf16.mxu0 0
    %1165 = vmatpush1.bf16.msra.mxu0 0
    %1166 = vmatprep.subr.bf16.mxu0 0
    %1167 = vmatpush1.bf16.msra.mxu0 0
    %1168 = vmatprep.subr.bf16.mxu0 0
    %1169 = vmatpush1.bf16.msra.mxu0 0
    %1170 = vmatprep.subr.bf16.mxu0 0
    %1171 = vmatpush1.bf16.msra.mxu0 0
    %1172 = vmatprep.subr.bf16.mxu0 0
    %1173 = vmatpush1.bf16.msra.mxu0 0
    %1174 = vmatprep.subr.bf16.mxu0 0
    %1175 = vmatpush1.bf16.msra.mxu0 0
    %1176 = vmatprep.subr.bf16.mxu0 0
    %1177 = vmatpush1.bf16.msra.mxu0 %v533
    %1178 = vmatprep.subr.bf16.mxu0 0
    %1179 = vmatpush2.bf16.msra.mxu0 0
    %1180 = vmatprep.subr.bf16.mxu0 0
    %1181 = vmatpush2.bf16.msra.mxu0 0
    %1182 = vmatprep.subr.bf16.mxu0 0
    %1183 = vmatpush2.bf16.msra.mxu0 0
    %1184 = vmatprep.subr.bf16.mxu0 0
    %1185 = vmatpush2.bf16.msra.mxu0 0
    %1186 = vmatprep.subr.bf16.mxu0 0
    %1187 = vmatpush2.bf16.msra.mxu0 0
    %1188 = vmatprep.subr.bf16.mxu0 0
    %1189 = vmatpush2.bf16.msra.mxu0 0
    %1190 = vmatprep.subr.bf16.mxu0 0
    %1191 = vmatpush2.bf16.msra.mxu0 0
    %1192 = vmatprep.subr.bf16.mxu0 0
    %1193 = vmatpush2.bf16.msra.mxu0 0
    %1194 = vmatprep.mubr.bf16.mxu0 0
    %1195 = vmatmul.mubr.bf16.gmra.mxu0 %v1160
    %v1196 = vpop.f32.mrf.mxu0
    %v1197 = vadd.f32 %v1154, %v1196
    %v1198 = vpop.f32.mrf.mxu0
    %v1199 = vpop.f32.mrf.mxu0
    %v1200 = vpop.f32.mrf.mxu0
    %1201 = vdwg.mxu0
    %1202 = vrot.lane.b32.xlu0 %v895, 112
    %v1203 = vpop.permute.xlu0 %1202
    %1204 = vrot.lane.b32.xlu0 %v895, 80
    %v1205 = vpop.permute.xlu0 %1204
    %v1207 = vsel %vm260, %v1203, 0
    %v1210 = vsel %vm260, %v1205, 0
    %1212 = vmatprep.subr.bf16.mxu0 0
    %1213 = vmatpush1.bf16.xpose.msra.mxu0 0
    %1214 = vmatprep.subr.bf16.mxu0 0
    %1215 = vmatpush1.bf16.xpose.msra.mxu0 0
    %1216 = vmatprep.subr.bf16.mxu0 0
    %1217 = vmatpush1.bf16.xpose.msra.mxu0 0
    %1218 = vmatprep.subr.bf16.mxu0 0
    %1219 = vmatpush1.bf16.xpose.msra.mxu0 0
    %1220 = vmatprep.subr.bf16.mxu0 0
    %1221 = vmatpush1.bf16.xpose.msra.mxu0 0
    %1222 = vmatprep.subr.bf16.mxu0 0
    %1223 = vmatpush1.bf16.xpose.msra.mxu0 0
    %1224 = vmatprep.subr.bf16.mxu0 0
    %1225 = vmatpush1.bf16.xpose.msra.mxu0 0
    %1226 = vmatprep.subr.bf16.mxu0 0
    %1227 = vmatpush1.bf16.xpose.msra.mxu0 %v1210
    %1228 = vmatprep.subr.bf16.mxu0 0
    %1229 = vmatpush2.bf16.xpose.msra.mxu0 0
    %1230 = vmatprep.subr.bf16.mxu0 0
    %1231 = vmatpush2.bf16.xpose.msra.mxu0 0
    %1232 = vmatprep.subr.bf16.mxu0 0
    %1233 = vmatpush2.bf16.xpose.msra.mxu0 0
    %1234 = vmatprep.subr.bf16.mxu0 0
    %1235 = vmatpush2.bf16.xpose.msra.mxu0 0
    %1236 = vmatprep.subr.bf16.mxu0 0
    %1237 = vmatpush2.bf16.xpose.msra.mxu0 0
    %1238 = vmatprep.subr.bf16.mxu0 0
    %1239 = vmatpush2.bf16.xpose.msra.mxu0 0
    %1240 = vmatprep.subr.bf16.mxu0 0
    %1241 = vmatpush2.bf16.xpose.msra.mxu0 0
    %1242 = vmatprep.subr.bf16.mxu0 0
    %1243 = vmatpush2.bf16.xpose.msra.mxu0 0
    %1244 = vmatprep.mubr.bf16.mxu0 0
    %1245 = vmatmul.mubr.bf16.gmra.mxu0 %v1207
    %v1246 = vpop.f32.mrf.mxu0
    %v1247 = vadd.f32 0.0, %v1246
    %v1248 = vpop.f32.mrf.mxu0
    %v1249 = vpop.f32.mrf.mxu0
    %v1250 = vpop.f32.mrf.mxu0
    %1251 = vdwg.mxu0
    %v1252 = vsel %vm260, %v1247, -inf
    %1253 = vmax.xlane.f32.xlu0 %v1252
    %v1254 = vpop.xlane.xlu0 %1253
    %v1255 = vsub.f32 %v1247, %v1254
    %v1256 = vmul.f32 %v1255, 1.442695
    %v1257 = vpow.pop %v1256
    %v1258 = vsel %vm260, %v1257, 0.0
    %1259 = vadd.xlane.f32.xlu0 %v1258
    %v1260 = vpop.xlane.xlu0 %1259
    %v1261 = vrcp.pop %v1260
    %v1262 = vmul.f32 %v1257, %v1261
    %v1263 = vpack.c.bf16 %v1262, %v1262
    %1264 = vrot.lane.b32.xlu0 %v895, 48
    %v1265 = vpop.permute.xlu0 %1264
    %v1267 = vsel %vm260, %v1263, 0
    %v1270 = vsel %vm324, %v1265, 0
    %1272 = vmatprep.subr.bf16.mxu0 0
    %1273 = vmatpush1.bf16.msra.mxu0 0
    %1274 = vmatprep.subr.bf16.mxu0 0
    %1275 = vmatpush1.bf16.msra.mxu0 0
    %1276 = vmatprep.subr.bf16.mxu0 0
    %1277 = vmatpush1.bf16.msra.mxu0 0
    %1278 = vmatprep.subr.bf16.mxu0 0
    %1279 = vmatpush1.bf16.msra.mxu0 0
    %1280 = vmatprep.subr.bf16.mxu0 0
    %1281 = vmatpush1.bf16.msra.mxu0 0
    %1282 = vmatprep.subr.bf16.mxu0 0
    %1283 = vmatpush1.bf16.msra.mxu0 0
    %1284 = vmatprep.subr.bf16.mxu0 0
    %1285 = vmatpush1.bf16.msra.mxu0 0
    %1286 = vmatprep.subr.bf16.mxu0 0
    %1287 = vmatpush1.bf16.msra.mxu0 %v1270
    %1288 = vmatprep.subr.bf16.mxu0 0
    %1289 = vmatpush2.bf16.msra.mxu0 0
    %1290 = vmatprep.subr.bf16.mxu0 0
    %1291 = vmatpush2.bf16.msra.mxu0 0
    %1292 = vmatprep.subr.bf16.mxu0 0
    %1293 = vmatpush2.bf16.msra.mxu0 0
    %1294 = vmatprep.subr.bf16.mxu0 0
    %1295 = vmatpush2.bf16.msra.mxu0 0
    %1296 = vmatprep.subr.bf16.mxu0 0
    %1297 = vmatpush2.bf16.msra.mxu0 0
    %1298 = vmatprep.subr.bf16.mxu0 0
    %1299 = vmatpush2.bf16.msra.mxu0 0
    %1300 = vmatprep.subr.bf16.mxu0 0
    %1301 = vmatpush2.bf16.msra.mxu0 0
    %1302 = vmatprep.subr.bf16.mxu0 0
    %1303 = vmatpush2.bf16.msra.mxu0 0
    %1304 = vmatprep.mubr.bf16.mxu0 0
    %1305 = vmatmul.mubr.bf16.gmra.mxu0 %v1267
    %v1306 = vpop.f32.mrf.mxu0
    %v1307 = vadd.f32 0.0, %v1306
    %v1308 = vpop.f32.mrf.mxu0
    %v1309 = vpop.f32.mrf.mxu0
    %v1310 = vpop.f32.mrf.mxu0
    %1311 = vdwg.mxu0
    %v1312 = vpack.c.bf16 %v1307, %v1307
    %v1314 = vsel %vm260, %v1312, 0
    %1316 = vmatprep.subr.bf16.mxu0 0
    %1317 = vmatpush1.bf16.msra.mxu0 0
    %1318 = vmatprep.subr.bf16.mxu0 0
    %1319 = vmatpush1.bf16.msra.mxu0 0
    %1320 = vmatprep.subr.bf16.mxu0 0
    %1321 = vmatpush1.bf16.msra.mxu0 0
    %1322 = vmatprep.subr.bf16.mxu0 0
    %1323 = vmatpush1.bf16.msra.mxu0 0
    %1324 = vmatprep.subr.bf16.mxu0 0
    %1325 = vmatpush1.bf16.msra.mxu0 0
    %1326 = vmatprep.subr.bf16.mxu0 0
    %1327 = vmatpush1.bf16.msra.mxu0 0
    %1328 = vmatprep.subr.bf16.mxu0 0
    %1329 = vmatpush1.bf16.msra.mxu0 0
    %1330 = vmatprep.subr.bf16.mxu0 0
    %1331 = vmatpush1.bf16.msra.mxu0 %v692
    %1332 = vmatprep.subr.bf16.mxu0 0
    %1333 = vmatpush2.bf16.msra.mxu0 0
    %1334 = vmatprep.subr.bf16.mxu0 0
    %1335 = vmatpush2.bf16.msra.mxu0 0
    %1336 = vmatprep.subr.bf16.mxu0 0
    %1337 = vmatpush2.bf16.msra.mxu0 0
    %1338 = vmatprep.subr.bf16.mxu0 0
    %1339 = vmatpush2.bf16.msra.mxu0 0
    %1340 = vmatprep.subr.bf16.mxu0 0
    %1341 = vmatpush2.bf16.msra.mxu0 0
    %1342 = vmatprep.subr.bf16.mxu0 0
    %1343 = vmatpush2.bf16.msra.mxu0 0
    %1344 = vmatprep.subr.bf16.mxu0 0
    %1345 = vmatpush2.bf16.msra.mxu0 0
    %1346 = vmatprep.subr.bf16.mxu0 0
    %1347 = vmatpush2.bf16.msra.mxu0 0
    %1348 = vmatprep.mubr.bf16.mxu0 0
    %1349 = vmatmul.mubr.bf16.gmra.mxu0 %v1314
    %v1350 = vpop.f32.mrf.mxu0
    %v1351 = vadd.f32 0.0, %v1350
    %v1352 = vpop.f32.mrf.mxu0
    %v1353 = vpop.f32.mrf.mxu0
    %v1354 = vpop.f32.mrf.mxu0
    %1355 = vdwg.mxu0
    %v1356 = vadd.f32 %v1197, %v1351
    %1357 = vrot.lane.b32.xlu0 %v895, 104
    %v1358 = vpop.permute.xlu0 %1357
    %1359 = vrot.lane.b32.xlu0 %v895, 72
    %v1360 = vpop.permute.xlu0 %1359
    %v1362 = vsel %vm260, %v1358, 0
    %v1365 = vsel %vm260, %v1360, 0
    %1367 = vmatprep.subr.bf16.mxu0 0
    %1368 = vmatpush1.bf16.xpose.msra.mxu0 0
    %1369 = vmatprep.subr.bf16.mxu0 0
    %1370 = vmatpush1.bf16.xpose.msra.mxu0 0
    %1371 = vmatprep.subr.bf16.mxu0 0
    %1372 = vmatpush1.bf16.xpose.msra.mxu0 0
    %1373 = vmatprep.subr.bf16.mxu0 0
    %1374 = vmatpush1.bf16.xpose.msra.mxu0 0
    %1375 = vmatprep.subr.bf16.mxu0 0
    %1376 = vmatpush1.bf16.xpose.msra.mxu0 0
    %1377 = vmatprep.subr.bf16.mxu0 0
    %1378 = vmatpush1.bf16.xpose.msra.mxu0 0
    %1379 = vmatprep.subr.bf16.mxu0 0
    %1380 = vmatpush1.bf16.xpose.msra.mxu0 0
    %1381 = vmatprep.subr.bf16.mxu0 0
    %1382 = vmatpush1.bf16.xpose.msra.mxu0 %v1365
    %1383 = vmatprep.subr.bf16.mxu0 0
    %1384 = vmatpush2.bf16.xpose.msra.mxu0 0
    %1385 = vmatprep.subr.bf16.mxu0 0
    %1386 = vmatpush2.bf16.xpose.msra.mxu0 0
    %1387 = vmatprep.subr.bf16.mxu0 0
    %1388 = vmatpush2.bf16.xpose.msra.mxu0 0
    %1389 = vmatprep.subr.bf16.mxu0 0
    %1390 = vmatpush2.bf16.xpose.msra.mxu0 0
    %1391 = vmatprep.subr.bf16.mxu0 0
    %1392 = vmatpush2.bf16.xpose.msra.mxu0 0
    %1393 = vmatprep.subr.bf16.mxu0 0
    %1394 = vmatpush2.bf16.xpose.msra.mxu0 0
    %1395 = vmatprep.subr.bf16.mxu0 0
    %1396 = vmatpush2.bf16.xpose.msra.mxu0 0
    %1397 = vmatprep.subr.bf16.mxu0 0
    %1398 = vmatpush2.bf16.xpose.msra.mxu0 0
    %1399 = vmatprep.mubr.bf16.mxu0 0
    %1400 = vmatmul.mubr.bf16.gmra.mxu0 %v1362
    %v1401 = vpop.f32.mrf.mxu0
    %v1402 = vadd.f32 0.0, %v1401
    %v1403 = vpop.f32.mrf.mxu0
    %v1404 = vpop.f32.mrf.mxu0
    %v1405 = vpop.f32.mrf.mxu0
    %1406 = vdwg.mxu0
    %v1407 = vsel %vm260, %v1402, -inf
    %1408 = vmax.xlane.f32.xlu0 %v1407
    %v1409 = vpop.xlane.xlu0 %1408
    %v1410 = vsub.f32 %v1402, %v1409
    %v1411 = vmul.f32 %v1410, 1.442695
    %v1412 = vpow.pop %v1411
    %v1413 = vsel %vm260, %v1412, 0.0
    %1414 = vadd.xlane.f32.xlu0 %v1413
    %v1415 = vpop.xlane.xlu0 %1414
    %v1416 = vrcp.pop %v1415
    %v1417 = vmul.f32 %v1412, %v1416
    %v1418 = vpack.c.bf16 %v1417, %v1417
    %1419 = vrot.lane.b32.xlu0 %v895, 40
    %v1420 = vpop.permute.xlu0 %1419
    %v1422 = vsel %vm260, %v1418, 0
    %v1425 = vsel %vm324, %v1420, 0
    %1427 = vmatprep.subr.bf16.mxu0 0
    %1428 = vmatpush1.bf16.msra.mxu0 0
    %1429 = vmatprep.subr.bf16.mxu0 0
    %1430 = vmatpush1.bf16.msra.mxu0 0
    %1431 = vmatprep.subr.bf16.mxu0 0
    %1432 = vmatpush1.bf16.msra.mxu0 0
    %1433 = vmatprep.subr.bf16.mxu0 0
    %1434 = vmatpush1.bf16.msra.mxu0 0
    %1435 = vmatprep.subr.bf16.mxu0 0
    %1436 = vmatpush1.bf16.msra.mxu0 0
    %1437 = vmatprep.subr.bf16.mxu0 0
    %1438 = vmatpush1.bf16.msra.mxu0 0
    %1439 = vmatprep.subr.bf16.mxu0 0
    %1440 = vmatpush1.bf16.msra.mxu0 0
    %1441 = vmatprep.subr.bf16.mxu0 0
    %1442 = vmatpush1.bf16.msra.mxu0 %v1425
    %1443 = vmatprep.subr.bf16.mxu0 0
    %1444 = vmatpush2.bf16.msra.mxu0 0
    %1445 = vmatprep.subr.bf16.mxu0 0
    %1446 = vmatpush2.bf16.msra.mxu0 0
    %1447 = vmatprep.subr.bf16.mxu0 0
    %1448 = vmatpush2.bf16.msra.mxu0 0
    %1449 = vmatprep.subr.bf16.mxu0 0
    %1450 = vmatpush2.bf16.msra.mxu0 0
    %1451 = vmatprep.subr.bf16.mxu0 0
    %1452 = vmatpush2.bf16.msra.mxu0 0
    %1453 = vmatprep.subr.bf16.mxu0 0
    %1454 = vmatpush2.bf16.msra.mxu0 0
    %1455 = vmatprep.subr.bf16.mxu0 0
    %1456 = vmatpush2.bf16.msra.mxu0 0
    %1457 = vmatprep.subr.bf16.mxu0 0
    %1458 = vmatpush2.bf16.msra.mxu0 0
    %1459 = vmatprep.mubr.bf16.mxu0 0
    %1460 = vmatmul.mubr.bf16.gmra.mxu0 %v1422
    %v1461 = vpop.f32.mrf.mxu0
    %v1462 = vadd.f32 0.0, %v1461
    %v1463 = vpop.f32.mrf.mxu0
    %v1464 = vpop.f32.mrf.mxu0
    %v1465 = vpop.f32.mrf.mxu0
    %1466 = vdwg.mxu0
    %v1467 = vpack.c.bf16 %v1462, %v1462
    %v1469 = vsel %vm260, %v1467, 0
    %1471 = vmatprep.subr.bf16.mxu0 0
    %1472 = vmatpush1.bf16.msra.mxu0 0
    %1473 = vmatprep.subr.bf16.mxu0 0
    %1474 = vmatpush1.bf16.msra.mxu0 0
    %1475 = vmatprep.subr.bf16.mxu0 0
    %1476 = vmatpush1.bf16.msra.mxu0 0
    %1477 = vmatprep.subr.bf16.mxu0 0
    %1478 = vmatpush1.bf16.msra.mxu0 0
    %1479 = vmatprep.subr.bf16.mxu0 0
    %1480 = vmatpush1.bf16.msra.mxu0 0
    %1481 = vmatprep.subr.bf16.mxu0 0
    %1482 = vmatpush1.bf16.msra.mxu0 0
    %1483 = vmatprep.subr.bf16.mxu0 0
    %1484 = vmatpush1.bf16.msra.mxu0 0
    %1485 = vmatprep.subr.bf16.mxu0 0
    %1486 = vmatpush1.bf16.msra.mxu0 %v852
    %1487 = vmatprep.subr.bf16.mxu0 0
    %1488 = vmatpush2.bf16.msra.mxu0 0
    %1489 = vmatprep.subr.bf16.mxu0 0
    %1490 = vmatpush2.bf16.msra.mxu0 0
    %1491 = vmatprep.subr.bf16.mxu0 0
    %1492 = vmatpush2.bf16.msra.mxu0 0
    %1493 = vmatprep.subr.bf16.mxu0 0
    %1494 = vmatpush2.bf16.msra.mxu0 0
    %1495 = vmatprep.subr.bf16.mxu0 0
    %1496 = vmatpush2.bf16.msra.mxu0 0
    %1497 = vmatprep.subr.bf16.mxu0 0
    %1498 = vmatpush2.bf16.msra.mxu0 0
    %1499 = vmatprep.subr.bf16.mxu0 0
    %1500 = vmatpush2.bf16.msra.mxu0 0
    %1501 = vmatprep.subr.bf16.mxu0 0
    %1502 = vmatpush2.bf16.msra.mxu0 0
    %1503 = vmatprep.mubr.bf16.mxu0 0
    %1504 = vmatmul.mubr.bf16.gmra.mxu0 %v1469
    %v1505 = vpop.f32.mrf.mxu0
    %v1506 = vadd.f32 0.0, %v1505
    %v1507 = vpop.f32.mrf.mxu0
    %v1508 = vpop.f32.mrf.mxu0
    %v1509 = vpop.f32.mrf.mxu0
    %1510 = vdwg.mxu0
    %v1511 = vadd.f32 %v1356, %v1506
    %v1512 = vadd.f32 %v181, %v894
    %v1513 = vadd.f32 %v184, %v1511
    %v1514 = vld [vmem:[%s13] sm:$0x1]
    %v1516 = vlaneseq
    %v1517 = vshrl.u32 %v1516, 7
    %v1518 = vsub.s32 0, %v1517
    %v1519 = vrot.slane %v1514, %v1518
    %v1521 = vadd.f32 %v1512, %v1519
    %v1522 = vadd.f32 %v1513, %v1519
    %v1523 = vsel %vm211, %v1521, 0.0
    %1524 = vadd.xlane.f32.xlu0 %v1523
    %v1525 = vpop.xlane.xlu0 %1524
    %v1526 = vsel %vm211, %v1522, 0.0
    %1527 = vadd.xlane.f32.xlu0 %v1526
    %v1528 = vpop.xlane.xlu0 %1527
    %v1529 = vrcp.pop 32.0
    %v1530 = vmul.f32 %v1525, %v1529
    %v1531 = vmul.f32 %v1528, %v1529
    %v1532 = vsub.f32 %v1521, %v1530
    %v1533 = vsub.f32 %v1522, %v1531
    %v1534 = vmul.f32 %v1532, %v1532
    %v1535 = vmul.f32 %v1533, %v1533
    %v1536 = vsel %vm211, %v1534, 0.0
    %1537 = vadd.xlane.f32.xlu0 %v1536
    %v1538 = vpop.xlane.xlu0 %1537
    %v1539 = vsel %vm211, %v1535, 0.0
    %1540 = vadd.xlane.f32.xlu0 %v1539
    %v1541 = vpop.xlane.xlu0 %1540
    %v1542 = vmul.f32 %v1538, %v1529
    %v1543 = vmul.f32 %v1541, %v1529
    %v1544 = vadd.f32 %v1542, 1e-05
    %v1545 = vadd.f32 %v1543, 1e-05
    %v1546 = vrsqrt.pop %v1544
    %v1547 = vrsqrt.pop %v1545
    %v1548 = vmul.f32 %v1532, %v1546
    %v1549 = vmul.f32 %v1533, %v1547
    %v1550 = vld [vmem:[%s15] sm:$0x1]
    %v1552 = vlaneseq
    %v1553 = vshrl.u32 %v1552, 7
    %v1554 = vsub.s32 0, %v1553
    %v1555 = vrot.slane %v1550, %v1554
    %v1557 = vmul.f32 %v1548, %v1555
    %v1558 = vmul.f32 %v1549, %v1555
    %v1559 = vld [vmem:[%s17] sm:$0x1]
    %v1561 = vlaneseq
    %v1562 = vshrl.u32 %v1561, 7
    %v1563 = vsub.s32 0, %v1562
    %v1564 = vrot.slane %v1559, %v1563
    %v1566 = vadd.f32 %v1557, %v1564
    %v1567 = vadd.f32 %v1558, %v1564
    %v1568 = vpack.c.bf16 %v1567, %v1566
    %v1569 = vld [vmem:[%s19] sm:$0xff]
    %v1570 = vld [vmem:[%s19 + $0x8] sm:$0xff]
    %v1571 = vld [vmem:[%s19 + $0x10] sm:$0xff]
    %v1572 = vld [vmem:[%s19 + $0x18] sm:$0xff]
    %v1573 = vld [vmem:[%s19 + $0x20] sm:$0xff]
    %v1574 = vld [vmem:[%s19 + $0x28] sm:$0xff]
    %v1575 = vld [vmem:[%s19 + $0x30] sm:$0xff]
    %v1576 = vld [vmem:[%s19 + $0x38] sm:$0xff]
    %v1577 = vld [vmem:[%s19 + $0x40] sm:$0xff]
    %v1578 = vld [vmem:[%s19 + $0x48] sm:$0xff]
    %v1579 = vld [vmem:[%s19 + $0x50] sm:$0xff]
    %v1580 = vld [vmem:[%s19 + $0x58] sm:$0xff]
    %v1581 = vld [vmem:[%s19 + $0x60] sm:$0xff]
    %v1582 = vld [vmem:[%s19 + $0x68] sm:$0xff]
    %v1583 = vld [vmem:[%s19 + $0x70] sm:$0xff]
    %v1584 = vld [vmem:[%s19 + $0x78] sm:$0xff]
    %v1585 = vld [vmem:[%s19 + $0x80] sm:$0xff]
    %v1586 = vld [vmem:[%s19 + $0x88] sm:$0xff]
    %v1587 = vld [vmem:[%s19 + $0x90] sm:$0xff]
    %v1588 = vld [vmem:[%s19 + $0x98] sm:$0xff]
    %v1589 = vld [vmem:[%s19 + $0xa0] sm:$0xff]
    %v1590 = vld [vmem:[%s19 + $0xa8] sm:$0xff]
    %v1591 = vld [vmem:[%s19 + $0xb0] sm:$0xff]
    %v1592 = vld [vmem:[%s19 + $0xb8] sm:$0xff]
    %v1593 = vld [vmem:[%s19 + $0xc0] sm:$0xff]
    %v1594 = vld [vmem:[%s19 + $0xc8] sm:$0xff]
    %v1595 = vld [vmem:[%s19 + $0xd0] sm:$0xff]
    %v1596 = vld [vmem:[%s19 + $0xd8] sm:$0xff]
    %v1597 = vld [vmem:[%s19 + $0xe0] sm:$0xff]
    %v1598 = vld [vmem:[%s19 + $0xe8] sm:$0xff]
    %v1599 = vld [vmem:[%s19 + $0xf0] sm:$0xff]
    %v1600 = vld [vmem:[%s19 + $0xf8] sm:$0xff]
    %v1601 = vld [vmem:[%s21] sm:$0xff]
    %v1602 = vld [vmem:[%s21 + $0x8] sm:$0xff]
    %v1605 = vlaneseq
    %v1606 = vshrl.u32 %v1605, 7
    %v1607 = vsub.s32 0, %v1606
    %v1608 = vrot.slane %v1601, %v1607
    %v1609 = vlaneseq
    %v1610 = vshrl.u32 %v1609, 7
    %v1611 = vsub.s32 1, %v1610
    %v1612 = vrot.slane %v1601, %v1611
    %v1613 = vlaneseq
    %v1614 = vshrl.u32 %v1613, 7
    %v1615 = vsub.s32 2, %v1614
    %v1616 = vrot.slane %v1601, %v1615
    %v1617 = vlaneseq
    %v1618 = vshrl.u32 %v1617, 7
    %v1619 = vsub.s32 3, %v1618
    %v1620 = vrot.slane %v1601, %v1619
    %v1621 = vlaneseq
    %v1622 = vshrl.u32 %v1621, 7
    %v1623 = vsub.s32 4, %v1622
    %v1624 = vrot.slane %v1601, %v1623
    %v1625 = vlaneseq
    %v1626 = vshrl.u32 %v1625, 7
    %v1627 = vsub.s32 5, %v1626
    %v1628 = vrot.slane %v1601, %v1627
    %v1629 = vlaneseq
    %v1630 = vshrl.u32 %v1629, 7
    %v1631 = vsub.s32 6, %v1630
    %v1632 = vrot.slane %v1601, %v1631
    %v1633 = vlaneseq
    %v1634 = vshrl.u32 %v1633, 7
    %v1635 = vsub.s32 7, %v1634
    %v1636 = vrot.slane %v1601, %v1635
    %v1637 = vlaneseq
    %v1638 = vshrl.u32 %v1637, 7
    %v1639 = vsub.s32 0, %v1638
    %v1640 = vrot.slane %v1602, %v1639
    %v1641 = vlaneseq
    %v1642 = vshrl.u32 %v1641, 7
    %v1643 = vsub.s32 1, %v1642
    %v1644 = vrot.slane %v1602, %v1643
    %v1645 = vlaneseq
    %v1646 = vshrl.u32 %v1645, 7
    %v1647 = vsub.s32 2, %v1646
    %v1648 = vrot.slane %v1602, %v1647
    %v1649 = vlaneseq
    %v1650 = vshrl.u32 %v1649, 7
    %v1651 = vsub.s32 3, %v1650
    %v1652 = vrot.slane %v1602, %v1651
    %v1653 = vlaneseq
    %v1654 = vshrl.u32 %v1653, 7
    %v1655 = vsub.s32 4, %v1654
    %v1656 = vrot.slane %v1602, %v1655
    %v1657 = vlaneseq
    %v1658 = vshrl.u32 %v1657, 7
    %v1659 = vsub.s32 5, %v1658
    %v1660 = vrot.slane %v1602, %v1659
    %v1661 = vlaneseq
    %v1662 = vshrl.u32 %v1661, 7
    %v1663 = vsub.s32 6, %v1662
    %v1664 = vrot.slane %v1602, %v1663
    %v1665 = vlaneseq
    %v1666 = vshrl.u32 %v1665, 7
    %v1667 = vsub.s32 7, %v1666
    %v1668 = vrot.slane %v1602, %v1667
    %v1717 = vunpack.c.l.b16 %v1569
    %v1718 = vunpack.c.h.b16 %v1569
    %v1719 = vunpack.c.l.b16 %v1570
    %v1720 = vunpack.c.h.b16 %v1570
    %v1721 = vunpack.c.l.b16 %v1571
    %v1722 = vunpack.c.h.b16 %v1571
    %v1723 = vunpack.c.l.b16 %v1572
    %v1724 = vunpack.c.h.b16 %v1572
    %v1725 = vunpack.c.l.b16 %v1573
    %v1726 = vunpack.c.h.b16 %v1573
    %v1727 = vunpack.c.l.b16 %v1574
    %v1728 = vunpack.c.h.b16 %v1574
    %v1729 = vunpack.c.l.b16 %v1575
    %v1730 = vunpack.c.h.b16 %v1575
    %v1731 = vunpack.c.l.b16 %v1576
    %v1732 = vunpack.c.h.b16 %v1576
    %v1733 = vunpack.c.l.b16 %v1577
    %v1734 = vunpack.c.h.b16 %v1577
    %v1735 = vunpack.c.l.b16 %v1578
    %v1736 = vunpack.c.h.b16 %v1578
    %v1737 = vunpack.c.l.b16 %v1579
    %v1738 = vunpack.c.h.b16 %v1579
    %v1739 = vunpack.c.l.b16 %v1580
    %v1740 = vunpack.c.h.b16 %v1580
    %v1741 = vunpack.c.l.b16 %v1581
    %v1742 = vunpack.c.h.b16 %v1581
    %v1743 = vunpack.c.l.b16 %v1582
    %v1744 = vunpack.c.h.b16 %v1582
    %v1745 = vunpack.c.l.b16 %v1583
    %v1746 = vunpack.c.h.b16 %v1583
    %v1747 = vunpack.c.l.b16 %v1584
    %v1748 = vunpack.c.h.b16 %v1584
    %v1749 = vunpack.c.l.b16 %v1585
    %v1750 = vunpack.c.h.b16 %v1585
    %v1751 = vunpack.c.l.b16 %v1586
    %v1752 = vunpack.c.h.b16 %v1586
    %v1753 = vunpack.c.l.b16 %v1587
    %v1754 = vunpack.c.h.b16 %v1587
    %v1755 = vunpack.c.l.b16 %v1588
    %v1756 = vunpack.c.h.b16 %v1588
    %v1757 = vunpack.c.l.b16 %v1589
    %v1758 = vunpack.c.h.b16 %v1589
    %v1759 = vunpack.c.l.b16 %v1590
    %v1760 = vunpack.c.h.b16 %v1590
    %v1761 = vunpack.c.l.b16 %v1591
    %v1762 = vunpack.c.h.b16 %v1591
    %v1763 = vunpack.c.l.b16 %v1592
    %v1764 = vunpack.c.h.b16 %v1592
    %v1765 = vunpack.c.l.b16 %v1593
    %v1766 = vunpack.c.h.b16 %v1593
    %v1767 = vunpack.c.l.b16 %v1594
    %v1768 = vunpack.c.h.b16 %v1594
    %v1769 = vunpack.c.l.b16 %v1595
    %v1770 = vunpack.c.h.b16 %v1595
    %v1771 = vunpack.c.l.b16 %v1596
    %v1772 = vunpack.c.h.b16 %v1596
    %v1773 = vunpack.c.l.b16 %v1597
    %v1774 = vunpack.c.h.b16 %v1597
    %v1775 = vunpack.c.l.b16 %v1598
    %v1776 = vunpack.c.h.b16 %v1598
    %v1777 = vunpack.c.l.b16 %v1599
    %v1778 = vunpack.c.h.b16 %v1599
    %v1779 = vunpack.c.l.b16 %v1600
    %v1780 = vunpack.c.h.b16 %v1600
    %v1781 = vpack.c.b16 %v1733, %v1717
    %v1782 = vpack.c.b16 %v1734, %v1718
    %v1783 = vpack.c.b16 %v1735, %v1719
    %v1784 = vpack.c.b16 %v1736, %v1720
    %v1785 = vpack.c.b16 %v1737, %v1721
    %v1786 = vpack.c.b16 %v1738, %v1722
    %v1787 = vpack.c.b16 %v1739, %v1723
    %v1788 = vpack.c.b16 %v1740, %v1724
    %v1789 = vpack.c.b16 %v1741, %v1725
    %v1790 = vpack.c.b16 %v1742, %v1726
    %v1791 = vpack.c.b16 %v1743, %v1727
    %v1792 = vpack.c.b16 %v1744, %v1728
    %v1793 = vpack.c.b16 %v1745, %v1729
    %v1794 = vpack.c.b16 %v1746, %v1730
    %v1795 = vpack.c.b16 %v1747, %v1731
    %v1796 = vpack.c.b16 %v1748, %v1732
    %v1797 = vpack.c.b16 %v1765, %v1749
    %v1798 = vpack.c.b16 %v1766, %v1750
    %v1799 = vpack.c.b16 %v1767, %v1751
    %v1800 = vpack.c.b16 %v1768, %v1752
    %v1801 = vpack.c.b16 %v1769, %v1753
    %v1802 = vpack.c.b16 %v1770, %v1754
    %v1803 = vpack.c.b16 %v1771, %v1755
    %v1804 = vpack.c.b16 %v1772, %v1756
    %v1805 = vpack.c.b16 %v1773, %v1757
    %v1806 = vpack.c.b16 %v1774, %v1758
    %v1807 = vpack.c.b16 %v1775, %v1759
    %v1808 = vpack.c.b16 %v1776, %v1760
    %v1809 = vpack.c.b16 %v1777, %v1761
    %v1810 = vpack.c.b16 %v1778, %v1762
    %v1811 = vpack.c.b16 %v1779, %v1763
    %v1812 = vpack.c.b16 %v1780, %v1764
    %v1846 = vsel %vm211, %v1568, 0
    %1848 = vmatprep.subr.bf16.mxu0 0
    %1849 = vmatpush1.bf16.msra.mxu0 0
    %1850 = vmatprep.subr.bf16.mxu0 0
    %1851 = vmatpush1.bf16.msra.mxu0 0
    %1852 = vmatprep.subr.bf16.mxu0 0
    %1853 = vmatpush1.bf16.msra.mxu0 0
    %1854 = vmatprep.subr.bf16.mxu0 0
    %1855 = vmatpush1.bf16.msra.mxu0 0
    %1856 = vmatprep.subr.bf16.mxu0 0
    %1857 = vmatpush1.bf16.msra.mxu0 0
    %1858 = vmatprep.subr.bf16.mxu0 0
    %1859 = vmatpush1.bf16.msra.mxu0 0
    %1860 = vmatprep.subr.bf16.mxu0 %v1798
    %1861 = vmatpush1.bf16.msra.mxu0 %v1797
    %1862 = vmatprep.subr.bf16.mxu0 %v1782
    %1863 = vmatpush1.bf16.msra.mxu0 %v1781
    %1864 = vmatprep.subr.bf16.mxu0 0
    %1865 = vmatpush2.bf16.msra.mxu0 0
    %1866 = vmatprep.subr.bf16.mxu0 0
    %1867 = vmatpush2.bf16.msra.mxu0 0
    %1868 = vmatprep.subr.bf16.mxu0 0
    %1869 = vmatpush2.bf16.msra.mxu0 0
    %1870 = vmatprep.subr.bf16.mxu0 0
    %1871 = vmatpush2.bf16.msra.mxu0 0
    %1872 = vmatprep.subr.bf16.mxu0 0
    %1873 = vmatpush2.bf16.msra.mxu0 0
    %1874 = vmatprep.subr.bf16.mxu0 0
    %1875 = vmatpush2.bf16.msra.mxu0 0
    %1876 = vmatprep.subr.bf16.mxu0 0
    %1877 = vmatpush2.bf16.msra.mxu0 0
    %1878 = vmatprep.subr.bf16.mxu0 0
    %1879 = vmatpush2.bf16.msra.mxu0 0
    %1880 = vmatprep.mubr.bf16.mxu0 0
    %1881 = vmatmul.mubr.bf16.gmra.mxu0 %v1846
    %v1882 = vpop.f32.mrf.mxu0
    %v1883 = vadd.f32 %v1608, %v1882
    %v1884 = vpop.f32.mrf.mxu0
    %v1885 = vadd.f32 %v1612, %v1884
    %v1886 = vpop.f32.mrf.mxu0
    %v1887 = vadd.f32 %v1608, %v1886
    %v1888 = vpop.f32.mrf.mxu0
    %v1889 = vadd.f32 %v1612, %v1888
    %1890 = vdwg.mxu0
    %1891 = vmatprep.subr.bf16.mxu0 0
    %1892 = vmatpush1.bf16.msra.mxu0 0
    %1893 = vmatprep.subr.bf16.mxu0 0
    %1894 = vmatpush1.bf16.msra.mxu0 0
    %1895 = vmatprep.subr.bf16.mxu0 0
    %1896 = vmatpush1.bf16.msra.mxu0 0
    %1897 = vmatprep.subr.bf16.mxu0 0
    %1898 = vmatpush1.bf16.msra.mxu0 0
    %1899 = vmatprep.subr.bf16.mxu0 0
    %1900 = vmatpush1.bf16.msra.mxu0 0
    %1901 = vmatprep.subr.bf16.mxu0 0
    %1902 = vmatpush1.bf16.msra.mxu0 0
    %1903 = vmatprep.subr.bf16.mxu0 %v1800
    %1904 = vmatpush1.bf16.msra.mxu0 %v1799
    %1905 = vmatprep.subr.bf16.mxu0 %v1784
    %1906 = vmatpush1.bf16.msra.mxu0 %v1783
    %1907 = vmatprep.subr.bf16.mxu0 0
    %1908 = vmatpush2.bf16.msra.mxu0 0
    %1909 = vmatprep.subr.bf16.mxu0 0
    %1910 = vmatpush2.bf16.msra.mxu0 0
    %1911 = vmatprep.subr.bf16.mxu0 0
    %1912 = vmatpush2.bf16.msra.mxu0 0
    %1913 = vmatprep.subr.bf16.mxu0 0
    %1914 = vmatpush2.bf16.msra.mxu0 0
    %1915 = vmatprep.subr.bf16.mxu0 0
    %1916 = vmatpush2.bf16.msra.mxu0 0
    %1917 = vmatprep.subr.bf16.mxu0 0
    %1918 = vmatpush2.bf16.msra.mxu0 0
    %1919 = vmatprep.subr.bf16.mxu0 0
    %1920 = vmatpush2.bf16.msra.mxu0 0
    %1921 = vmatprep.subr.bf16.mxu0 0
    %1922 = vmatpush2.bf16.msra.mxu0 0
    %1923 = vmatprep.mubr.bf16.mxu0 0
    %1924 = vmatmul.mubr.bf16.gmra.mxu0 %v1846
    %v1925 = vpop.f32.mrf.mxu0
    %v1926 = vadd.f32 %v1616, %v1925
    %v1927 = vpop.f32.mrf.mxu0
    %v1928 = vadd.f32 %v1620, %v1927
    %v1929 = vpop.f32.mrf.mxu0
    %v1930 = vadd.f32 %v1616, %v1929
    %v1931 = vpop.f32.mrf.mxu0
    %v1932 = vadd.f32 %v1620, %v1931
    %1933 = vdwg.mxu0
    %1934 = vmatprep.subr.bf16.mxu0 0
    %1935 = vmatpush1.bf16.msra.mxu0 0
    %1936 = vmatprep.subr.bf16.mxu0 0
    %1937 = vmatpush1.bf16.msra.mxu0 0
    %1938 = vmatprep.subr.bf16.mxu0 0
    %1939 = vmatpush1.bf16.msra.mxu0 0
    %1940 = vmatprep.subr.bf16.mxu0 0
    %1941 = vmatpush1.bf16.msra.mxu0 0
    %1942 = vmatprep.subr.bf16.mxu0 0
    %1943 = vmatpush1.bf16.msra.mxu0 0
    %1944 = vmatprep.subr.bf16.mxu0 0
    %1945 = vmatpush1.bf16.msra.mxu0 0
    %1946 = vmatprep.subr.bf16.mxu0 %v1802
    %1947 = vmatpush1.bf16.msra.mxu0 %v1801
    %1948 = vmatprep.subr.bf16.mxu0 %v1786
    %1949 = vmatpush1.bf16.msra.mxu0 %v1785
    %1950 = vmatprep.subr.bf16.mxu0 0
    %1951 = vmatpush2.bf16.msra.mxu0 0
    %1952 = vmatprep.subr.bf16.mxu0 0
    %1953 = vmatpush2.bf16.msra.mxu0 0
    %1954 = vmatprep.subr.bf16.mxu0 0
    %1955 = vmatpush2.bf16.msra.mxu0 0
    %1956 = vmatprep.subr.bf16.mxu0 0
    %1957 = vmatpush2.bf16.msra.mxu0 0
    %1958 = vmatprep.subr.bf16.mxu0 0
    %1959 = vmatpush2.bf16.msra.mxu0 0
    %1960 = vmatprep.subr.bf16.mxu0 0
    %1961 = vmatpush2.bf16.msra.mxu0 0
    %1962 = vmatprep.subr.bf16.mxu0 0
    %1963 = vmatpush2.bf16.msra.mxu0 0
    %1964 = vmatprep.subr.bf16.mxu0 0
    %1965 = vmatpush2.bf16.msra.mxu0 0
    %1966 = vmatprep.mubr.bf16.mxu0 0
    %1967 = vmatmul.mubr.bf16.gmra.mxu0 %v1846
    %v1968 = vpop.f32.mrf.mxu0
    %v1969 = vadd.f32 %v1624, %v1968
    %v1970 = vpop.f32.mrf.mxu0
    %v1971 = vadd.f32 %v1628, %v1970
    %v1972 = vpop.f32.mrf.mxu0
    %v1973 = vadd.f32 %v1624, %v1972
    %v1974 = vpop.f32.mrf.mxu0
    %v1975 = vadd.f32 %v1628, %v1974
    %1976 = vdwg.mxu0
    %1977 = vmatprep.subr.bf16.mxu0 0
    %1978 = vmatpush1.bf16.msra.mxu0 0
    %1979 = vmatprep.subr.bf16.mxu0 0
    %1980 = vmatpush1.bf16.msra.mxu0 0
    %1981 = vmatprep.subr.bf16.mxu0 0
    %1982 = vmatpush1.bf16.msra.mxu0 0
    %1983 = vmatprep.subr.bf16.mxu0 0
    %1984 = vmatpush1.bf16.msra.mxu0 0
    %1985 = vmatprep.subr.bf16.mxu0 0
    %1986 = vmatpush1.bf16.msra.mxu0 0
    %1987 = vmatprep.subr.bf16.mxu0 0
    %1988 = vmatpush1.bf16.msra.mxu0 0
    %1989 = vmatprep.subr.bf16.mxu0 %v1804
    %1990 = vmatpush1.bf16.msra.mxu0 %v1803
    %1991 = vmatprep.subr.bf16.mxu0 %v1788
    %1992 = vmatpush1.bf16.msra.mxu0 %v1787
    %1993 = vmatprep.subr.bf16.mxu0 0
    %1994 = vmatpush2.bf16.msra.mxu0 0
    %1995 = vmatprep.subr.bf16.mxu0 0
    %1996 = vmatpush2.bf16.msra.mxu0 0
    %1997 = vmatprep.subr.bf16.mxu0 0
    %1998 = vmatpush2.bf16.msra.mxu0 0
    %1999 = vmatprep.subr.bf16.mxu0 0
    %2000 = vmatpush2.bf16.msra.mxu0 0
    %2001 = vmatprep.subr.bf16.mxu0 0
    %2002 = vmatpush2.bf16.msra.mxu0 0
    %2003 = vmatprep.subr.bf16.mxu0 0
    %2004 = vmatpush2.bf16.msra.mxu0 0
    %2005 = vmatprep.subr.bf16.mxu0 0
    %2006 = vmatpush2.bf16.msra.mxu0 0
    %2007 = vmatprep.subr.bf16.mxu0 0
    %2008 = vmatpush2.bf16.msra.mxu0 0
    %2009 = vmatprep.mubr.bf16.mxu0 0
    %2010 = vmatmul.mubr.bf16.gmra.mxu0 %v1846
    %v2011 = vpop.f32.mrf.mxu0
    %v2012 = vadd.f32 %v1632, %v2011
    %v2013 = vpop.f32.mrf.mxu0
    %v2014 = vadd.f32 %v1636, %v2013
    %v2015 = vpop.f32.mrf.mxu0
    %v2016 = vadd.f32 %v1632, %v2015
    %v2017 = vpop.f32.mrf.mxu0
    %v2018 = vadd.f32 %v1636, %v2017
    %2019 = vdwg.mxu0
    %2020 = vmatprep.subr.bf16.mxu0 0
    %2021 = vmatpush1.bf16.msra.mxu0 0
    %2022 = vmatprep.subr.bf16.mxu0 0
    %2023 = vmatpush1.bf16.msra.mxu0 0
    %2024 = vmatprep.subr.bf16.mxu0 0
    %2025 = vmatpush1.bf16.msra.mxu0 0
    %2026 = vmatprep.subr.bf16.mxu0 0
    %2027 = vmatpush1.bf16.msra.mxu0 0
    %2028 = vmatprep.subr.bf16.mxu0 0
    %2029 = vmatpush1.bf16.msra.mxu0 0
    %2030 = vmatprep.subr.bf16.mxu0 0
    %2031 = vmatpush1.bf16.msra.mxu0 0
    %2032 = vmatprep.subr.bf16.mxu0 %v1806
    %2033 = vmatpush1.bf16.msra.mxu0 %v1805
    %2034 = vmatprep.subr.bf16.mxu0 %v1790
    %2035 = vmatpush1.bf16.msra.mxu0 %v1789
    %2036 = vmatprep.subr.bf16.mxu0 0
    %2037 = vmatpush2.bf16.msra.mxu0 0
    %2038 = vmatprep.subr.bf16.mxu0 0
    %2039 = vmatpush2.bf16.msra.mxu0 0
    %2040 = vmatprep.subr.bf16.mxu0 0
    %2041 = vmatpush2.bf16.msra.mxu0 0
    %2042 = vmatprep.subr.bf16.mxu0 0
    %2043 = vmatpush2.bf16.msra.mxu0 0
    %2044 = vmatprep.subr.bf16.mxu0 0
    %2045 = vmatpush2.bf16.msra.mxu0 0
    %2046 = vmatprep.subr.bf16.mxu0 0
    %2047 = vmatpush2.bf16.msra.mxu0 0
    %2048 = vmatprep.subr.bf16.mxu0 0
    %2049 = vmatpush2.bf16.msra.mxu0 0
    %2050 = vmatprep.subr.bf16.mxu0 0
    %2051 = vmatpush2.bf16.msra.mxu0 0
    %2052 = vmatprep.mubr.bf16.mxu0 0
    %2053 = vmatmul.mubr.bf16.gmra.mxu0 %v1846
    %v2054 = vpop.f32.mrf.mxu0
    %v2055 = vadd.f32 %v1640, %v2054
    %v2056 = vpop.f32.mrf.mxu0
    %v2057 = vadd.f32 %v1644, %v2056
    %v2058 = vpop.f32.mrf.mxu0
    %v2059 = vadd.f32 %v1640, %v2058
    %v2060 = vpop.f32.mrf.mxu0
    %v2061 = vadd.f32 %v1644, %v2060
    %2062 = vdwg.mxu0
    %2063 = vmatprep.subr.bf16.mxu0 0
    %2064 = vmatpush1.bf16.msra.mxu0 0
    %2065 = vmatprep.subr.bf16.mxu0 0
    %2066 = vmatpush1.bf16.msra.mxu0 0
    %2067 = vmatprep.subr.bf16.mxu0 0
    %2068 = vmatpush1.bf16.msra.mxu0 0
    %2069 = vmatprep.subr.bf16.mxu0 0
    %2070 = vmatpush1.bf16.msra.mxu0 0
    %2071 = vmatprep.subr.bf16.mxu0 0
    %2072 = vmatpush1.bf16.msra.mxu0 0
    %2073 = vmatprep.subr.bf16.mxu0 0
    %2074 = vmatpush1.bf16.msra.mxu0 0
    %2075 = vmatprep.subr.bf16.mxu0 %v1808
    %2076 = vmatpush1.bf16.msra.mxu0 %v1807
    %2077 = vmatprep.subr.bf16.mxu0 %v1792
    %2078 = vmatpush1.bf16.msra.mxu0 %v1791
    %2079 = vmatprep.subr.bf16.mxu0 0
    %2080 = vmatpush2.bf16.msra.mxu0 0
    %2081 = vmatprep.subr.bf16.mxu0 0
    %2082 = vmatpush2.bf16.msra.mxu0 0
    %2083 = vmatprep.subr.bf16.mxu0 0
    %2084 = vmatpush2.bf16.msra.mxu0 0
    %2085 = vmatprep.subr.bf16.mxu0 0
    %2086 = vmatpush2.bf16.msra.mxu0 0
    %2087 = vmatprep.subr.bf16.mxu0 0
    %2088 = vmatpush2.bf16.msra.mxu0 0
    %2089 = vmatprep.subr.bf16.mxu0 0
    %2090 = vmatpush2.bf16.msra.mxu0 0
    %2091 = vmatprep.subr.bf16.mxu0 0
    %2092 = vmatpush2.bf16.msra.mxu0 0
    %2093 = vmatprep.subr.bf16.mxu0 0
    %2094 = vmatpush2.bf16.msra.mxu0 0
    %2095 = vmatprep.mubr.bf16.mxu0 0
    %2096 = vmatmul.mubr.bf16.gmra.mxu0 %v1846
    %v2097 = vpop.f32.mrf.mxu0
    %v2098 = vadd.f32 %v1648, %v2097
    %v2099 = vpop.f32.mrf.mxu0
    %v2100 = vadd.f32 %v1652, %v2099
    %v2101 = vpop.f32.mrf.mxu0
    %v2102 = vadd.f32 %v1648, %v2101
    %v2103 = vpop.f32.mrf.mxu0
    %v2104 = vadd.f32 %v1652, %v2103
    %2105 = vdwg.mxu0
    %2106 = vmatprep.subr.bf16.mxu0 0
    %2107 = vmatpush1.bf16.msra.mxu0 0
    %2108 = vmatprep.subr.bf16.mxu0 0
    %2109 = vmatpush1.bf16.msra.mxu0 0
    %2110 = vmatprep.subr.bf16.mxu0 0
    %2111 = vmatpush1.bf16.msra.mxu0 0
    %2112 = vmatprep.subr.bf16.mxu0 0
    %2113 = vmatpush1.bf16.msra.mxu0 0
    %2114 = vmatprep.subr.bf16.mxu0 0
    %2115 = vmatpush1.bf16.msra.mxu0 0
    %2116 = vmatprep.subr.bf16.mxu0 0
    %2117 = vmatpush1.bf16.msra.mxu0 0
    %2118 = vmatprep.subr.bf16.mxu0 %v1810
    %2119 = vmatpush1.bf16.msra.mxu0 %v1809
    %2120 = vmatprep.subr.bf16.mxu0 %v1794
    %2121 = vmatpush1.bf16.msra.mxu0 %v1793
    %2122 = vmatprep.subr.bf16.mxu0 0
    %2123 = vmatpush2.bf16.msra.mxu0 0
    %2124 = vmatprep.subr.bf16.mxu0 0
    %2125 = vmatpush2.bf16.msra.mxu0 0
    %2126 = vmatprep.subr.bf16.mxu0 0
    %2127 = vmatpush2.bf16.msra.mxu0 0
    %2128 = vmatprep.subr.bf16.mxu0 0
    %2129 = vmatpush2.bf16.msra.mxu0 0
    %2130 = vmatprep.subr.bf16.mxu0 0
    %2131 = vmatpush2.bf16.msra.mxu0 0
    %2132 = vmatprep.subr.bf16.mxu0 0
    %2133 = vmatpush2.bf16.msra.mxu0 0
    %2134 = vmatprep.subr.bf16.mxu0 0
    %2135 = vmatpush2.bf16.msra.mxu0 0
    %2136 = vmatprep.subr.bf16.mxu0 0
    %2137 = vmatpush2.bf16.msra.mxu0 0
    %2138 = vmatprep.mubr.bf16.mxu0 0
    %2139 = vmatmul.mubr.bf16.gmra.mxu0 %v1846
    %v2140 = vpop.f32.mrf.mxu0
    %v2141 = vadd.f32 %v1656, %v2140
    %v2142 = vpop.f32.mrf.mxu0
    %v2143 = vadd.f32 %v1660, %v2142
    %v2144 = vpop.f32.mrf.mxu0
    %v2145 = vadd.f32 %v1656, %v2144
    %v2146 = vpop.f32.mrf.mxu0
    %v2147 = vadd.f32 %v1660, %v2146
    %2148 = vdwg.mxu0
    %2149 = vmatprep.subr.bf16.mxu0 0
    %2150 = vmatpush1.bf16.msra.mxu0 0
    %2151 = vmatprep.subr.bf16.mxu0 0
    %2152 = vmatpush1.bf16.msra.mxu0 0
    %2153 = vmatprep.subr.bf16.mxu0 0
    %2154 = vmatpush1.bf16.msra.mxu0 0
    %2155 = vmatprep.subr.bf16.mxu0 0
    %2156 = vmatpush1.bf16.msra.mxu0 0
    %2157 = vmatprep.subr.bf16.mxu0 0
    %2158 = vmatpush1.bf16.msra.mxu0 0
    %2159 = vmatprep.subr.bf16.mxu0 0
    %2160 = vmatpush1.bf16.msra.mxu0 0
    %2161 = vmatprep.subr.bf16.mxu0 %v1812
    %2162 = vmatpush1.bf16.msra.mxu0 %v1811
    %2163 = vmatprep.subr.bf16.mxu0 %v1796
    %2164 = vmatpush1.bf16.msra.mxu0 %v1795
    %2165 = vmatprep.subr.bf16.mxu0 0
    %2166 = vmatpush2.bf16.msra.mxu0 0
    %2167 = vmatprep.subr.bf16.mxu0 0
    %2168 = vmatpush2.bf16.msra.mxu0 0
    %2169 = vmatprep.subr.bf16.mxu0 0
    %2170 = vmatpush2.bf16.msra.mxu0 0
    %2171 = vmatprep.subr.bf16.mxu0 0
    %2172 = vmatpush2.bf16.msra.mxu0 0
    %2173 = vmatprep.subr.bf16.mxu0 0
    %2174 = vmatpush2.bf16.msra.mxu0 0
    %2175 = vmatprep.subr.bf16.mxu0 0
    %2176 = vmatpush2.bf16.msra.mxu0 0
    %2177 = vmatprep.subr.bf16.mxu0 0
    %2178 = vmatpush2.bf16.msra.mxu0 0
    %2179 = vmatprep.subr.bf16.mxu0 0
    %2180 = vmatpush2.bf16.msra.mxu0 0
    %2181 = vmatprep.mubr.bf16.mxu0 0
    %2182 = vmatmul.mubr.bf16.gmra.mxu0 %v1846
    %v2183 = vpop.f32.mrf.mxu0
    %v2184 = vadd.f32 %v1664, %v2183
    %v2185 = vpop.f32.mrf.mxu0
    %v2186 = vadd.f32 %v1668, %v2185
    %v2187 = vpop.f32.mrf.mxu0
    %v2188 = vadd.f32 %v1664, %v2187
    %v2189 = vpop.f32.mrf.mxu0
    %v2190 = vadd.f32 %v1668, %v2189
    %2191 = vdwg.mxu0
    %v2192 = vmax.f32 %v1883, 0.0
    %v2193 = vmax.f32 %v1885, 0.0
    %v2194 = vmax.f32 %v1926, 0.0
    %v2195 = vmax.f32 %v1928, 0.0
    %v2196 = vmax.f32 %v1969, 0.0
    %v2197 = vmax.f32 %v1971, 0.0
    %v2198 = vmax.f32 %v2012, 0.0
    %v2199 = vmax.f32 %v2014, 0.0
    %v2200 = vmax.f32 %v2055, 0.0
    %v2201 = vmax.f32 %v2057, 0.0
    %v2202 = vmax.f32 %v2098, 0.0
    %v2203 = vmax.f32 %v2100, 0.0
    %v2204 = vmax.f32 %v2141, 0.0
    %v2205 = vmax.f32 %v2143, 0.0
    %v2206 = vmax.f32 %v2184, 0.0
    %v2207 = vmax.f32 %v2186, 0.0
    %v2208 = vmax.f32 %v1887, 0.0
    %v2209 = vmax.f32 %v1889, 0.0
    %v2210 = vmax.f32 %v1930, 0.0
    %v2211 = vmax.f32 %v1932, 0.0
    %v2212 = vmax.f32 %v1973, 0.0
    %v2213 = vmax.f32 %v1975, 0.0
    %v2214 = vmax.f32 %v2016, 0.0
    %v2215 = vmax.f32 %v2018, 0.0
    %v2216 = vmax.f32 %v2059, 0.0
    %v2217 = vmax.f32 %v2061, 0.0
    %v2218 = vmax.f32 %v2102, 0.0
    %v2219 = vmax.f32 %v2104, 0.0
    %v2220 = vmax.f32 %v2145, 0.0
    %v2221 = vmax.f32 %v2147, 0.0
    %v2222 = vmax.f32 %v2188, 0.0
    %v2223 = vmax.f32 %v2190, 0.0
    %v2224 = vpack.c.bf16 %v2208, %v2192
    %v2225 = vpack.c.bf16 %v2209, %v2193
    %v2226 = vpack.c.bf16 %v2210, %v2194
    %v2227 = vpack.c.bf16 %v2211, %v2195
    %v2228 = vpack.c.bf16 %v2212, %v2196
    %v2229 = vpack.c.bf16 %v2213, %v2197
    %v2230 = vpack.c.bf16 %v2214, %v2198
    %v2231 = vpack.c.bf16 %v2215, %v2199
    %v2232 = vpack.c.bf16 %v2216, %v2200
    %v2233 = vpack.c.bf16 %v2217, %v2201
    %v2234 = vpack.c.bf16 %v2218, %v2202
    %v2235 = vpack.c.bf16 %v2219, %v2203
    %v2236 = vpack.c.bf16 %v2220, %v2204
    %v2237 = vpack.c.bf16 %v2221, %v2205
    %v2238 = vpack.c.bf16 %v2222, %v2206
    %v2239 = vpack.c.bf16 %v2223, %v2207
    %v2240 = vld [vmem:[%s23] sm:$0xf]
    %v2241 = vld [vmem:[%s23 + $0x4] sm:$0xf]
    %v2242 = vld [vmem:[%s23 + $0x8] sm:$0xf]
    %v2243 = vld [vmem:[%s23 + $0xc] sm:$0xf]
    %v2244 = vld [vmem:[%s23 + $0x10] sm:$0xf]
    %v2245 = vld [vmem:[%s23 + $0x14] sm:$0xf]
    %v2246 = vld [vmem:[%s23 + $0x18] sm:$0xf]
    %v2247 = vld [vmem:[%s23 + $0x1c] sm:$0xf]
    %v2248 = vld [vmem:[%s23 + $0x20] sm:$0xf]
    %v2249 = vld [vmem:[%s23 + $0x24] sm:$0xf]
    %v2250 = vld [vmem:[%s23 + $0x28] sm:$0xf]
    %v2251 = vld [vmem:[%s23 + $0x2c] sm:$0xf]
    %v2252 = vld [vmem:[%s23 + $0x30] sm:$0xf]
    %v2253 = vld [vmem:[%s23 + $0x34] sm:$0xf]
    %v2254 = vld [vmem:[%s23 + $0x38] sm:$0xf]
    %v2255 = vld [vmem:[%s23 + $0x3c] sm:$0xf]
    %v2256 = vld [vmem:[%s23 + $0x40] sm:$0xf]
    %v2257 = vld [vmem:[%s23 + $0x44] sm:$0xf]
    %v2258 = vld [vmem:[%s23 + $0x48] sm:$0xf]
    %v2259 = vld [vmem:[%s23 + $0x4c] sm:$0xf]
    %v2260 = vld [vmem:[%s23 + $0x50] sm:$0xf]
    %v2261 = vld [vmem:[%s23 + $0x54] sm:$0xf]
    %v2262 = vld [vmem:[%s23 + $0x58] sm:$0xf]
    %v2263 = vld [vmem:[%s23 + $0x5c] sm:$0xf]
    %v2264 = vld [vmem:[%s23 + $0x60] sm:$0xf]
    %v2265 = vld [vmem:[%s23 + $0x64] sm:$0xf]
    %v2266 = vld [vmem:[%s23 + $0x68] sm:$0xf]
    %v2267 = vld [vmem:[%s23 + $0x6c] sm:$0xf]
    %v2268 = vld [vmem:[%s23 + $0x70] sm:$0xf]
    %v2269 = vld [vmem:[%s23 + $0x74] sm:$0xf]
    %v2270 = vld [vmem:[%s23 + $0x78] sm:$0xf]
    %v2271 = vld [vmem:[%s23 + $0x7c] sm:$0xf]
    %v2272 = vld [vmem:[%s23 + $0x80] sm:$0xf]
    %v2273 = vld [vmem:[%s23 + $0x84] sm:$0xf]
    %v2274 = vld [vmem:[%s23 + $0x88] sm:$0xf]
    %v2275 = vld [vmem:[%s23 + $0x8c] sm:$0xf]
    %v2276 = vld [vmem:[%s23 + $0x90] sm:$0xf]
    %v2277 = vld [vmem:[%s23 + $0x94] sm:$0xf]
    %v2278 = vld [vmem:[%s23 + $0x98] sm:$0xf]
    %v2279 = vld [vmem:[%s23 + $0x9c] sm:$0xf]
    %v2280 = vld [vmem:[%s23 + $0xa0] sm:$0xf]
    %v2281 = vld [vmem:[%s23 + $0xa4] sm:$0xf]
    %v2282 = vld [vmem:[%s23 + $0xa8] sm:$0xf]
    %v2283 = vld [vmem:[%s23 + $0xac] sm:$0xf]
    %v2284 = vld [vmem:[%s23 + $0xb0] sm:$0xf]
    %v2285 = vld [vmem:[%s23 + $0xb4] sm:$0xf]
    %v2286 = vld [vmem:[%s23 + $0xb8] sm:$0xf]
    %v2287 = vld [vmem:[%s23 + $0xbc] sm:$0xf]
    %v2288 = vld [vmem:[%s23 + $0xc0] sm:$0xf]
    %v2289 = vld [vmem:[%s23 + $0xc4] sm:$0xf]
    %v2290 = vld [vmem:[%s23 + $0xc8] sm:$0xf]
    %v2291 = vld [vmem:[%s23 + $0xcc] sm:$0xf]
    %v2292 = vld [vmem:[%s23 + $0xd0] sm:$0xf]
    %v2293 = vld [vmem:[%s23 + $0xd4] sm:$0xf]
    %v2294 = vld [vmem:[%s23 + $0xd8] sm:$0xf]
    %v2295 = vld [vmem:[%s23 + $0xdc] sm:$0xf]
    %v2296 = vld [vmem:[%s23 + $0xe0] sm:$0xf]
    %v2297 = vld [vmem:[%s23 + $0xe4] sm:$0xf]
    %v2298 = vld [vmem:[%s23 + $0xe8] sm:$0xf]
    %v2299 = vld [vmem:[%s23 + $0xec] sm:$0xf]
    %v2300 = vld [vmem:[%s23 + $0xf0] sm:$0xf]
    %v2301 = vld [vmem:[%s23 + $0xf4] sm:$0xf]
    %v2302 = vld [vmem:[%s23 + $0xf8] sm:$0xf]
    %v2303 = vld [vmem:[%s23 + $0xfc] sm:$0xf]
    %v2304 = vld [vmem:[%s23 + $0x100] sm:$0xf]
    %v2305 = vld [vmem:[%s23 + $0x104] sm:$0xf]
    %v2306 = vld [vmem:[%s23 + $0x108] sm:$0xf]
    %v2307 = vld [vmem:[%s23 + $0x10c] sm:$0xf]
    %v2308 = vld [vmem:[%s23 + $0x110] sm:$0xf]
    %v2309 = vld [vmem:[%s23 + $0x114] sm:$0xf]
    %v2310 = vld [vmem:[%s23 + $0x118] sm:$0xf]
    %v2311 = vld [vmem:[%s23 + $0x11c] sm:$0xf]
    %v2312 = vld [vmem:[%s23 + $0x120] sm:$0xf]
    %v2313 = vld [vmem:[%s23 + $0x124] sm:$0xf]
    %v2314 = vld [vmem:[%s23 + $0x128] sm:$0xf]
    %v2315 = vld [vmem:[%s23 + $0x12c] sm:$0xf]
    %v2316 = vld [vmem:[%s23 + $0x130] sm:$0xf]
    %v2317 = vld [vmem:[%s23 + $0x134] sm:$0xf]
    %v2318 = vld [vmem:[%s23 + $0x138] sm:$0xf]
    %v2319 = vld [vmem:[%s23 + $0x13c] sm:$0xf]
    %v2320 = vld [vmem:[%s23 + $0x140] sm:$0xf]
    %v2321 = vld [vmem:[%s23 + $0x144] sm:$0xf]
    %v2322 = vld [vmem:[%s23 + $0x148] sm:$0xf]
    %v2323 = vld [vmem:[%s23 + $0x14c] sm:$0xf]
    %v2324 = vld [vmem:[%s23 + $0x150] sm:$0xf]
    %v2325 = vld [vmem:[%s23 + $0x154] sm:$0xf]
    %v2326 = vld [vmem:[%s23 + $0x158] sm:$0xf]
    %v2327 = vld [vmem:[%s23 + $0x15c] sm:$0xf]
    %v2328 = vld [vmem:[%s23 + $0x160] sm:$0xf]
    %v2329 = vld [vmem:[%s23 + $0x164] sm:$0xf]
    %v2330 = vld [vmem:[%s23 + $0x168] sm:$0xf]
    %v2331 = vld [vmem:[%s23 + $0x16c] sm:$0xf]
    %v2332 = vld [vmem:[%s23 + $0x170] sm:$0xf]
    %v2333 = vld [vmem:[%s23 + $0x174] sm:$0xf]
    %v2334 = vld [vmem:[%s23 + $0x178] sm:$0xf]
    %v2335 = vld [vmem:[%s23 + $0x17c] sm:$0xf]
    %v2336 = vld [vmem:[%s23 + $0x180] sm:$0xf]
    %v2337 = vld [vmem:[%s23 + $0x184] sm:$0xf]
    %v2338 = vld [vmem:[%s23 + $0x188] sm:$0xf]
    %v2339 = vld [vmem:[%s23 + $0x18c] sm:$0xf]
    %v2340 = vld [vmem:[%s23 + $0x190] sm:$0xf]
    %v2341 = vld [vmem:[%s23 + $0x194] sm:$0xf]
    %v2342 = vld [vmem:[%s23 + $0x198] sm:$0xf]
    %v2343 = vld [vmem:[%s23 + $0x19c] sm:$0xf]
    %v2344 = vld [vmem:[%s23 + $0x1a0] sm:$0xf]
    %v2345 = vld [vmem:[%s23 + $0x1a4] sm:$0xf]
    %v2346 = vld [vmem:[%s23 + $0x1a8] sm:$0xf]
    %v2347 = vld [vmem:[%s23 + $0x1ac] sm:$0xf]
    %v2348 = vld [vmem:[%s23 + $0x1b0] sm:$0xf]
    %v2349 = vld [vmem:[%s23 + $0x1b4] sm:$0xf]
    %v2350 = vld [vmem:[%s23 + $0x1b8] sm:$0xf]
    %v2351 = vld [vmem:[%s23 + $0x1bc] sm:$0xf]
    %v2352 = vld [vmem:[%s23 + $0x1c0] sm:$0xf]
    %v2353 = vld [vmem:[%s23 + $0x1c4] sm:$0xf]
    %v2354 = vld [vmem:[%s23 + $0x1c8] sm:$0xf]
    %v2355 = vld [vmem:[%s23 + $0x1cc] sm:$0xf]
    %v2356 = vld [vmem:[%s23 + $0x1d0] sm:$0xf]
    %v2357 = vld [vmem:[%s23 + $0x1d4] sm:$0xf]
    %v2358 = vld [vmem:[%s23 + $0x1d8] sm:$0xf]
    %v2359 = vld [vmem:[%s23 + $0x1dc] sm:$0xf]
    %v2360 = vld [vmem:[%s23 + $0x1e0] sm:$0xf]
    %v2361 = vld [vmem:[%s23 + $0x1e4] sm:$0xf]
    %v2362 = vld [vmem:[%s23 + $0x1e8] sm:$0xf]
    %v2363 = vld [vmem:[%s23 + $0x1ec] sm:$0xf]
    %v2364 = vld [vmem:[%s23 + $0x1f0] sm:$0xf]
    %v2365 = vld [vmem:[%s23 + $0x1f4] sm:$0xf]
    %v2366 = vld [vmem:[%s23 + $0x1f8] sm:$0xf]
    %v2367 = vld [vmem:[%s23 + $0x1fc] sm:$0xf]
    %v2368 = vld [vmem:[%s23 + $0x200] sm:$0xf]
    %v2369 = vld [vmem:[%s23 + $0x204] sm:$0xf]
    %v2370 = vld [vmem:[%s23 + $0x208] sm:$0xf]
    %v2371 = vld [vmem:[%s23 + $0x20c] sm:$0xf]
    %v2372 = vld [vmem:[%s23 + $0x210] sm:$0xf]
    %v2373 = vld [vmem:[%s23 + $0x214] sm:$0xf]
    %v2374 = vld [vmem:[%s23 + $0x218] sm:$0xf]
    %v2375 = vld [vmem:[%s23 + $0x21c] sm:$0xf]
    %v2376 = vld [vmem:[%s23 + $0x220] sm:$0xf]
    %v2377 = vld [vmem:[%s23 + $0x224] sm:$0xf]
    %v2378 = vld [vmem:[%s23 + $0x228] sm:$0xf]
    %v2379 = vld [vmem:[%s23 + $0x22c] sm:$0xf]
    %v2380 = vld [vmem:[%s23 + $0x230] sm:$0xf]
    %v2381 = vld [vmem:[%s23 + $0x234] sm:$0xf]
    %v2382 = vld [vmem:[%s23 + $0x238] sm:$0xf]
    %v2383 = vld [vmem:[%s23 + $0x23c] sm:$0xf]
    %v2384 = vld [vmem:[%s23 + $0x240] sm:$0xf]
    %v2385 = vld [vmem:[%s23 + $0x244] sm:$0xf]
    %v2386 = vld [vmem:[%s23 + $0x248] sm:$0xf]
    %v2387 = vld [vmem:[%s23 + $0x24c] sm:$0xf]
    %v2388 = vld [vmem:[%s23 + $0x250] sm:$0xf]
    %v2389 = vld [vmem:[%s23 + $0x254] sm:$0xf]
    %v2390 = vld [vmem:[%s23 + $0x258] sm:$0xf]
    %v2391 = vld [vmem:[%s23 + $0x25c] sm:$0xf]
    %v2392 = vld [vmem:[%s23 + $0x260] sm:$0xf]
    %v2393 = vld [vmem:[%s23 + $0x264] sm:$0xf]
    %v2394 = vld [vmem:[%s23 + $0x268] sm:$0xf]
    %v2395 = vld [vmem:[%s23 + $0x26c] sm:$0xf]
    %v2396 = vld [vmem:[%s23 + $0x270] sm:$0xf]
    %v2397 = vld [vmem:[%s23 + $0x274] sm:$0xf]
    %v2398 = vld [vmem:[%s23 + $0x278] sm:$0xf]
    %v2399 = vld [vmem:[%s23 + $0x27c] sm:$0xf]
    %v2400 = vld [vmem:[%s23 + $0x280] sm:$0xf]
    %v2401 = vld [vmem:[%s23 + $0x284] sm:$0xf]
    %v2402 = vld [vmem:[%s23 + $0x288] sm:$0xf]
    %v2403 = vld [vmem:[%s23 + $0x28c] sm:$0xf]
    %v2404 = vld [vmem:[%s23 + $0x290] sm:$0xf]
    %v2405 = vld [vmem:[%s23 + $0x294] sm:$0xf]
    %v2406 = vld [vmem:[%s23 + $0x298] sm:$0xf]
    %v2407 = vld [vmem:[%s23 + $0x29c] sm:$0xf]
    %v2408 = vld [vmem:[%s23 + $0x2a0] sm:$0xf]
    %v2409 = vld [vmem:[%s23 + $0x2a4] sm:$0xf]
    %v2410 = vld [vmem:[%s23 + $0x2a8] sm:$0xf]
    %v2411 = vld [vmem:[%s23 + $0x2ac] sm:$0xf]
    %v2412 = vld [vmem:[%s23 + $0x2b0] sm:$0xf]
    %v2413 = vld [vmem:[%s23 + $0x2b4] sm:$0xf]
    %v2414 = vld [vmem:[%s23 + $0x2b8] sm:$0xf]
    %v2415 = vld [vmem:[%s23 + $0x2bc] sm:$0xf]
    %v2416 = vld [vmem:[%s23 + $0x2c0] sm:$0xf]
    %v2417 = vld [vmem:[%s23 + $0x2c4] sm:$0xf]
    %v2418 = vld [vmem:[%s23 + $0x2c8] sm:$0xf]
    %v2419 = vld [vmem:[%s23 + $0x2cc] sm:$0xf]
    %v2420 = vld [vmem:[%s23 + $0x2d0] sm:$0xf]
    %v2421 = vld [vmem:[%s23 + $0x2d4] sm:$0xf]
    %v2422 = vld [vmem:[%s23 + $0x2d8] sm:$0xf]
    %v2423 = vld [vmem:[%s23 + $0x2dc] sm:$0xf]
    %v2424 = vld [vmem:[%s23 + $0x2e0] sm:$0xf]
    %v2425 = vld [vmem:[%s23 + $0x2e4] sm:$0xf]
    %v2426 = vld [vmem:[%s23 + $0x2e8] sm:$0xf]
    %v2427 = vld [vmem:[%s23 + $0x2ec] sm:$0xf]
    %v2428 = vld [vmem:[%s23 + $0x2f0] sm:$0xf]
    %v2429 = vld [vmem:[%s23 + $0x2f4] sm:$0xf]
    %v2430 = vld [vmem:[%s23 + $0x2f8] sm:$0xf]
    %v2431 = vld [vmem:[%s23 + $0x2fc] sm:$0xf]
    %v2432 = vld [vmem:[%s23 + $0x300] sm:$0xf]
    %v2433 = vld [vmem:[%s23 + $0x304] sm:$0xf]
    %v2434 = vld [vmem:[%s23 + $0x308] sm:$0xf]
    %v2435 = vld [vmem:[%s23 + $0x30c] sm:$0xf]
    %v2436 = vld [vmem:[%s23 + $0x310] sm:$0xf]
    %v2437 = vld [vmem:[%s23 + $0x314] sm:$0xf]
    %v2438 = vld [vmem:[%s23 + $0x318] sm:$0xf]
    %v2439 = vld [vmem:[%s23 + $0x31c] sm:$0xf]
    %v2440 = vld [vmem:[%s23 + $0x320] sm:$0xf]
    %v2441 = vld [vmem:[%s23 + $0x324] sm:$0xf]
    %v2442 = vld [vmem:[%s23 + $0x328] sm:$0xf]
    %v2443 = vld [vmem:[%s23 + $0x32c] sm:$0xf]
    %v2444 = vld [vmem:[%s23 + $0x330] sm:$0xf]
    %v2445 = vld [vmem:[%s23 + $0x334] sm:$0xf]
    %v2446 = vld [vmem:[%s23 + $0x338] sm:$0xf]
    %v2447 = vld [vmem:[%s23 + $0x33c] sm:$0xf]
    %v2448 = vld [vmem:[%s23 + $0x340] sm:$0xf]
    %v2449 = vld [vmem:[%s23 + $0x344] sm:$0xf]
    %v2450 = vld [vmem:[%s23 + $0x348] sm:$0xf]
    %v2451 = vld [vmem:[%s23 + $0x34c] sm:$0xf]
    %v2452 = vld [vmem:[%s23 + $0x350] sm:$0xf]
    %v2453 = vld [vmem:[%s23 + $0x354] sm:$0xf]
    %v2454 = vld [vmem:[%s23 + $0x358] sm:$0xf]
    %v2455 = vld [vmem:[%s23 + $0x35c] sm:$0xf]
    %v2456 = vld [vmem:[%s23 + $0x360] sm:$0xf]
    %v2457 = vld [vmem:[%s23 + $0x364] sm:$0xf]
    %v2458 = vld [vmem:[%s23 + $0x368] sm:$0xf]
    %v2459 = vld [vmem:[%s23 + $0x36c] sm:$0xf]
    %v2460 = vld [vmem:[%s23 + $0x370] sm:$0xf]
    %v2461 = vld [vmem:[%s23 + $0x374] sm:$0xf]
    %v2462 = vld [vmem:[%s23 + $0x378] sm:$0xf]
    %v2463 = vld [vmem:[%s23 + $0x37c] sm:$0xf]
    %v2464 = vld [vmem:[%s23 + $0x380] sm:$0xf]
    %v2465 = vld [vmem:[%s23 + $0x384] sm:$0xf]
    %v2466 = vld [vmem:[%s23 + $0x388] sm:$0xf]
    %v2467 = vld [vmem:[%s23 + $0x38c] sm:$0xf]
    %v2468 = vld [vmem:[%s23 + $0x390] sm:$0xf]
    %v2469 = vld [vmem:[%s23 + $0x394] sm:$0xf]
    %v2470 = vld [vmem:[%s23 + $0x398] sm:$0xf]
    %v2471 = vld [vmem:[%s23 + $0x39c] sm:$0xf]
    %v2472 = vld [vmem:[%s23 + $0x3a0] sm:$0xf]
    %v2473 = vld [vmem:[%s23 + $0x3a4] sm:$0xf]
    %v2474 = vld [vmem:[%s23 + $0x3a8] sm:$0xf]
    %v2475 = vld [vmem:[%s23 + $0x3ac] sm:$0xf]
    %v2476 = vld [vmem:[%s23 + $0x3b0] sm:$0xf]
    %v2477 = vld [vmem:[%s23 + $0x3b4] sm:$0xf]
    %v2478 = vld [vmem:[%s23 + $0x3b8] sm:$0xf]
    %v2479 = vld [vmem:[%s23 + $0x3bc] sm:$0xf]
    %v2480 = vld [vmem:[%s23 + $0x3c0] sm:$0xf]
    %v2481 = vld [vmem:[%s23 + $0x3c4] sm:$0xf]
    %v2482 = vld [vmem:[%s23 + $0x3c8] sm:$0xf]
    %v2483 = vld [vmem:[%s23 + $0x3cc] sm:$0xf]
    %v2484 = vld [vmem:[%s23 + $0x3d0] sm:$0xf]
    %v2485 = vld [vmem:[%s23 + $0x3d4] sm:$0xf]
    %v2486 = vld [vmem:[%s23 + $0x3d8] sm:$0xf]
    %v2487 = vld [vmem:[%s23 + $0x3dc] sm:$0xf]
    %v2488 = vld [vmem:[%s23 + $0x3e0] sm:$0xf]
    %v2489 = vld [vmem:[%s23 + $0x3e4] sm:$0xf]
    %v2490 = vld [vmem:[%s23 + $0x3e8] sm:$0xf]
    %v2491 = vld [vmem:[%s23 + $0x3ec] sm:$0xf]
    %v2492 = vld [vmem:[%s23 + $0x3f0] sm:$0xf]
    %v2493 = vld [vmem:[%s23 + $0x3f4] sm:$0xf]
    %v2494 = vld [vmem:[%s23 + $0x3f8] sm:$0xf]
    %v2495 = vld [vmem:[%s23 + $0x3fc] sm:$0xf]
    %v2496 = vld [vmem:[%s25] sm:$0x1]
    %v2498 = vlaneseq
    %v2499 = vshrl.u32 %v2498, 7
    %v2500 = vsub.s32 0, %v2499
    %v2501 = vrot.slane %v2496, %v2500
    %v2759 = vunpack.c.l.b16 %v2240
    %v2760 = vunpack.c.l.b16 %v2241
    %v2761 = vunpack.c.l.b16 %v2242
    %v2762 = vunpack.c.l.b16 %v2243
    %v2763 = vunpack.c.l.b16 %v2244
    %v2764 = vunpack.c.l.b16 %v2245
    %v2765 = vunpack.c.l.b16 %v2246
    %v2766 = vunpack.c.l.b16 %v2247
    %v2767 = vunpack.c.l.b16 %v2248
    %v2768 = vunpack.c.l.b16 %v2249
    %v2769 = vunpack.c.l.b16 %v2250
    %v2770 = vunpack.c.l.b16 %v2251
    %v2771 = vunpack.c.l.b16 %v2252
    %v2772 = vunpack.c.l.b16 %v2253
    %v2773 = vunpack.c.l.b16 %v2254
    %v2774 = vunpack.c.l.b16 %v2255
    %v2775 = vunpack.c.l.b16 %v2256
    %v2776 = vunpack.c.l.b16 %v2257
    %v2777 = vunpack.c.l.b16 %v2258
    %v2778 = vunpack.c.l.b16 %v2259
    %v2779 = vunpack.c.l.b16 %v2260
    %v2780 = vunpack.c.l.b16 %v2261
    %v2781 = vunpack.c.l.b16 %v2262
    %v2782 = vunpack.c.l.b16 %v2263
    %v2783 = vunpack.c.l.b16 %v2264
    %v2784 = vunpack.c.l.b16 %v2265
    %v2785 = vunpack.c.l.b16 %v2266
    %v2786 = vunpack.c.l.b16 %v2267
    %v2787 = vunpack.c.l.b16 %v2268
    %v2788 = vunpack.c.l.b16 %v2269
    %v2789 = vunpack.c.l.b16 %v2270
    %v2790 = vunpack.c.l.b16 %v2271
    %v2791 = vunpack.c.l.b16 %v2272
    %v2792 = vunpack.c.l.b16 %v2273
    %v2793 = vunpack.c.l.b16 %v2274
    %v2794 = vunpack.c.l.b16 %v2275
    %v2795 = vunpack.c.l.b16 %v2276
    %v2796 = vunpack.c.l.b16 %v2277
    %v2797 = vunpack.c.l.b16 %v2278
    %v2798 = vunpack.c.l.b16 %v2279
    %v2799 = vunpack.c.l.b16 %v2280
    %v2800 = vunpack.c.l.b16 %v2281
    %v2801 = vunpack.c.l.b16 %v2282
    %v2802 = vunpack.c.l.b16 %v2283
    %v2803 = vunpack.c.l.b16 %v2284
    %v2804 = vunpack.c.l.b16 %v2285
    %v2805 = vunpack.c.l.b16 %v2286
    %v2806 = vunpack.c.l.b16 %v2287
    %v2807 = vunpack.c.l.b16 %v2288
    %v2808 = vunpack.c.l.b16 %v2289
    %v2809 = vunpack.c.l.b16 %v2290
    %v2810 = vunpack.c.l.b16 %v2291
    %v2811 = vunpack.c.l.b16 %v2292
    %v2812 = vunpack.c.l.b16 %v2293
    %v2813 = vunpack.c.l.b16 %v2294
    %v2814 = vunpack.c.l.b16 %v2295
    %v2815 = vunpack.c.l.b16 %v2296
    %v2816 = vunpack.c.l.b16 %v2297
    %v2817 = vunpack.c.l.b16 %v2298
    %v2818 = vunpack.c.l.b16 %v2299
    %v2819 = vunpack.c.l.b16 %v2300
    %v2820 = vunpack.c.l.b16 %v2301
    %v2821 = vunpack.c.l.b16 %v2302
    %v2822 = vunpack.c.l.b16 %v2303
    %v2823 = vunpack.c.l.b16 %v2304
    %v2824 = vunpack.c.l.b16 %v2305
    %v2825 = vunpack.c.l.b16 %v2306
    %v2826 = vunpack.c.l.b16 %v2307
    %v2827 = vunpack.c.l.b16 %v2308
    %v2828 = vunpack.c.l.b16 %v2309
    %v2829 = vunpack.c.l.b16 %v2310
    %v2830 = vunpack.c.l.b16 %v2311
    %v2831 = vunpack.c.l.b16 %v2312
    %v2832 = vunpack.c.l.b16 %v2313
    %v2833 = vunpack.c.l.b16 %v2314
    %v2834 = vunpack.c.l.b16 %v2315
    %v2835 = vunpack.c.l.b16 %v2316
    %v2836 = vunpack.c.l.b16 %v2317
    %v2837 = vunpack.c.l.b16 %v2318
    %v2838 = vunpack.c.l.b16 %v2319
    %v2839 = vunpack.c.l.b16 %v2320
    %v2840 = vunpack.c.l.b16 %v2321
    %v2841 = vunpack.c.l.b16 %v2322
    %v2842 = vunpack.c.l.b16 %v2323
    %v2843 = vunpack.c.l.b16 %v2324
    %v2844 = vunpack.c.l.b16 %v2325
    %v2845 = vunpack.c.l.b16 %v2326
    %v2846 = vunpack.c.l.b16 %v2327
    %v2847 = vunpack.c.l.b16 %v2328
    %v2848 = vunpack.c.l.b16 %v2329
    %v2849 = vunpack.c.l.b16 %v2330
    %v2850 = vunpack.c.l.b16 %v2331
    %v2851 = vunpack.c.l.b16 %v2332
    %v2852 = vunpack.c.l.b16 %v2333
    %v2853 = vunpack.c.l.b16 %v2334
    %v2854 = vunpack.c.l.b16 %v2335
    %v2855 = vunpack.c.l.b16 %v2336
    %v2856 = vunpack.c.l.b16 %v2337
    %v2857 = vunpack.c.l.b16 %v2338
    %v2858 = vunpack.c.l.b16 %v2339
    %v2859 = vunpack.c.l.b16 %v2340
    %v2860 = vunpack.c.l.b16 %v2341
    %v2861 = vunpack.c.l.b16 %v2342
    %v2862 = vunpack.c.l.b16 %v2343
    %v2863 = vunpack.c.l.b16 %v2344
    %v2864 = vunpack.c.l.b16 %v2345
    %v2865 = vunpack.c.l.b16 %v2346
    %v2866 = vunpack.c.l.b16 %v2347
    %v2867 = vunpack.c.l.b16 %v2348
    %v2868 = vunpack.c.l.b16 %v2349
    %v2869 = vunpack.c.l.b16 %v2350
    %v2870 = vunpack.c.l.b16 %v2351
    %v2871 = vunpack.c.l.b16 %v2352
    %v2872 = vunpack.c.l.b16 %v2353
    %v2873 = vunpack.c.l.b16 %v2354
    %v2874 = vunpack.c.l.b16 %v2355
    %v2875 = vunpack.c.l.b16 %v2356
    %v2876 = vunpack.c.l.b16 %v2357
    %v2877 = vunpack.c.l.b16 %v2358
    %v2878 = vunpack.c.l.b16 %v2359
    %v2879 = vunpack.c.l.b16 %v2360
    %v2880 = vunpack.c.l.b16 %v2361
    %v2881 = vunpack.c.l.b16 %v2362
    %v2882 = vunpack.c.l.b16 %v2363
    %v2883 = vunpack.c.l.b16 %v2364
    %v2884 = vunpack.c.l.b16 %v2365
    %v2885 = vunpack.c.l.b16 %v2366
    %v2886 = vunpack.c.l.b16 %v2367
    %v2887 = vunpack.c.l.b16 %v2368
    %v2888 = vunpack.c.l.b16 %v2369
    %v2889 = vunpack.c.l.b16 %v2370
    %v2890 = vunpack.c.l.b16 %v2371
    %v2891 = vunpack.c.l.b16 %v2372
    %v2892 = vunpack.c.l.b16 %v2373
    %v2893 = vunpack.c.l.b16 %v2374
    %v2894 = vunpack.c.l.b16 %v2375
    %v2895 = vunpack.c.l.b16 %v2376
    %v2896 = vunpack.c.l.b16 %v2377
    %v2897 = vunpack.c.l.b16 %v2378
    %v2898 = vunpack.c.l.b16 %v2379
    %v2899 = vunpack.c.l.b16 %v2380
    %v2900 = vunpack.c.l.b16 %v2381
    %v2901 = vunpack.c.l.b16 %v2382
    %v2902 = vunpack.c.l.b16 %v2383
    %v2903 = vunpack.c.l.b16 %v2384
    %v2904 = vunpack.c.l.b16 %v2385
    %v2905 = vunpack.c.l.b16 %v2386
    %v2906 = vunpack.c.l.b16 %v2387
    %v2907 = vunpack.c.l.b16 %v2388
    %v2908 = vunpack.c.l.b16 %v2389
    %v2909 = vunpack.c.l.b16 %v2390
    %v2910 = vunpack.c.l.b16 %v2391
    %v2911 = vunpack.c.l.b16 %v2392
    %v2912 = vunpack.c.l.b16 %v2393
    %v2913 = vunpack.c.l.b16 %v2394
    %v2914 = vunpack.c.l.b16 %v2395
    %v2915 = vunpack.c.l.b16 %v2396
    %v2916 = vunpack.c.l.b16 %v2397
    %v2917 = vunpack.c.l.b16 %v2398
    %v2918 = vunpack.c.l.b16 %v2399
    %v2919 = vunpack.c.l.b16 %v2400
    %v2920 = vunpack.c.l.b16 %v2401
    %v2921 = vunpack.c.l.b16 %v2402
    %v2922 = vunpack.c.l.b16 %v2403
    %v2923 = vunpack.c.l.b16 %v2404
    %v2924 = vunpack.c.l.b16 %v2405
    %v2925 = vunpack.c.l.b16 %v2406
    %v2926 = vunpack.c.l.b16 %v2407
    %v2927 = vunpack.c.l.b16 %v2408
    %v2928 = vunpack.c.l.b16 %v2409
    %v2929 = vunpack.c.l.b16 %v2410
    %v2930 = vunpack.c.l.b16 %v2411
    %v2931 = vunpack.c.l.b16 %v2412
    %v2932 = vunpack.c.l.b16 %v2413
    %v2933 = vunpack.c.l.b16 %v2414
    %v2934 = vunpack.c.l.b16 %v2415
    %v2935 = vunpack.c.l.b16 %v2416
    %v2936 = vunpack.c.l.b16 %v2417
    %v2937 = vunpack.c.l.b16 %v2418
    %v2938 = vunpack.c.l.b16 %v2419
    %v2939 = vunpack.c.l.b16 %v2420
    %v2940 = vunpack.c.l.b16 %v2421
    %v2941 = vunpack.c.l.b16 %v2422
    %v2942 = vunpack.c.l.b16 %v2423
    %v2943 = vunpack.c.l.b16 %v2424
    %v2944 = vunpack.c.l.b16 %v2425
    %v2945 = vunpack.c.l.b16 %v2426
    %v2946 = vunpack.c.l.b16 %v2427
    %v2947 = vunpack.c.l.b16 %v2428
    %v2948 = vunpack.c.l.b16 %v2429
    %v2949 = vunpack.c.l.b16 %v2430
    %v2950 = vunpack.c.l.b16 %v2431
    %v2951 = vunpack.c.l.b16 %v2432
    %v2952 = vunpack.c.l.b16 %v2433
    %v2953 = vunpack.c.l.b16 %v2434
    %v2954 = vunpack.c.l.b16 %v2435
    %v2955 = vunpack.c.l.b16 %v2436
    %v2956 = vunpack.c.l.b16 %v2437
    %v2957 = vunpack.c.l.b16 %v2438
    %v2958 = vunpack.c.l.b16 %v2439
    %v2959 = vunpack.c.l.b16 %v2440
    %v2960 = vunpack.c.l.b16 %v2441
    %v2961 = vunpack.c.l.b16 %v2442
    %v2962 = vunpack.c.l.b16 %v2443
    %v2963 = vunpack.c.l.b16 %v2444
    %v2964 = vunpack.c.l.b16 %v2445
    %v2965 = vunpack.c.l.b16 %v2446
    %v2966 = vunpack.c.l.b16 %v2447
    %v2967 = vunpack.c.l.b16 %v2448
    %v2968 = vunpack.c.l.b16 %v2449
    %v2969 = vunpack.c.l.b16 %v2450
    %v2970 = vunpack.c.l.b16 %v2451
    %v2971 = vunpack.c.l.b16 %v2452
    %v2972 = vunpack.c.l.b16 %v2453
    %v2973 = vunpack.c.l.b16 %v2454
    %v2974 = vunpack.c.l.b16 %v2455
    %v2975 = vunpack.c.l.b16 %v2456
    %v2976 = vunpack.c.l.b16 %v2457
    %v2977 = vunpack.c.l.b16 %v2458
    %v2978 = vunpack.c.l.b16 %v2459
    %v2979 = vunpack.c.l.b16 %v2460
    %v2980 = vunpack.c.l.b16 %v2461
    %v2981 = vunpack.c.l.b16 %v2462
    %v2982 = vunpack.c.l.b16 %v2463
    %v2983 = vunpack.c.l.b16 %v2464
    %v2984 = vunpack.c.l.b16 %v2465
    %v2985 = vunpack.c.l.b16 %v2466
    %v2986 = vunpack.c.l.b16 %v2467
    %v2987 = vunpack.c.l.b16 %v2468
    %v2988 = vunpack.c.l.b16 %v2469
    %v2989 = vunpack.c.l.b16 %v2470
    %v2990 = vunpack.c.l.b16 %v2471
    %v2991 = vunpack.c.l.b16 %v2472
    %v2992 = vunpack.c.l.b16 %v2473
    %v2993 = vunpack.c.l.b16 %v2474
    %v2994 = vunpack.c.l.b16 %v2475
    %v2995 = vunpack.c.l.b16 %v2476
    %v2996 = vunpack.c.l.b16 %v2477
    %v2997 = vunpack.c.l.b16 %v2478
    %v2998 = vunpack.c.l.b16 %v2479
    %v2999 = vunpack.c.l.b16 %v2480
    %v3000 = vunpack.c.l.b16 %v2481
    %v3001 = vunpack.c.l.b16 %v2482
    %v3002 = vunpack.c.l.b16 %v2483
    %v3003 = vunpack.c.l.b16 %v2484
    %v3004 = vunpack.c.l.b16 %v2485
    %v3005 = vunpack.c.l.b16 %v2486
    %v3006 = vunpack.c.l.b16 %v2487
    %v3007 = vunpack.c.l.b16 %v2488
    %v3008 = vunpack.c.l.b16 %v2489
    %v3009 = vunpack.c.l.b16 %v2490
    %v3010 = vunpack.c.l.b16 %v2491
    %v3011 = vunpack.c.l.b16 %v2492
    %v3012 = vunpack.c.l.b16 %v2493
    %v3013 = vunpack.c.l.b16 %v2494
    %v3014 = vunpack.c.l.b16 %v2495
    %v3015 = vpack.c.b16 %v2760, %v2759
    %v3016 = vpack.c.b16 %v2762, %v2761
    %v3017 = vpack.c.b16 %v2764, %v2763
    %v3018 = vpack.c.b16 %v2766, %v2765
    %v3019 = vpack.c.b16 %v2768, %v2767
    %v3020 = vpack.c.b16 %v2770, %v2769
    %v3021 = vpack.c.b16 %v2772, %v2771
    %v3022 = vpack.c.b16 %v2774, %v2773
    %v3023 = vpack.c.b16 %v2776, %v2775
    %v3024 = vpack.c.b16 %v2778, %v2777
    %v3025 = vpack.c.b16 %v2780, %v2779
    %v3026 = vpack.c.b16 %v2782, %v2781
    %v3027 = vpack.c.b16 %v2784, %v2783
    %v3028 = vpack.c.b16 %v2786, %v2785
    %v3029 = vpack.c.b16 %v2788, %v2787
    %v3030 = vpack.c.b16 %v2790, %v2789
    %v3031 = vpack.c.b16 %v2792, %v2791
    %v3032 = vpack.c.b16 %v2794, %v2793
    %v3033 = vpack.c.b16 %v2796, %v2795
    %v3034 = vpack.c.b16 %v2798, %v2797
    %v3035 = vpack.c.b16 %v2800, %v2799
    %v3036 = vpack.c.b16 %v2802, %v2801
    %v3037 = vpack.c.b16 %v2804, %v2803
    %v3038 = vpack.c.b16 %v2806, %v2805
    %v3039 = vpack.c.b16 %v2808, %v2807
    %v3040 = vpack.c.b16 %v2810, %v2809
    %v3041 = vpack.c.b16 %v2812, %v2811
    %v3042 = vpack.c.b16 %v2814, %v2813
    %v3043 = vpack.c.b16 %v2816, %v2815
    %v3044 = vpack.c.b16 %v2818, %v2817
    %v3045 = vpack.c.b16 %v2820, %v2819
    %v3046 = vpack.c.b16 %v2822, %v2821
    %v3047 = vpack.c.b16 %v2824, %v2823
    %v3048 = vpack.c.b16 %v2826, %v2825
    %v3049 = vpack.c.b16 %v2828, %v2827
    %v3050 = vpack.c.b16 %v2830, %v2829
    %v3051 = vpack.c.b16 %v2832, %v2831
    %v3052 = vpack.c.b16 %v2834, %v2833
    %v3053 = vpack.c.b16 %v2836, %v2835
    %v3054 = vpack.c.b16 %v2838, %v2837
    %v3055 = vpack.c.b16 %v2840, %v2839
    %v3056 = vpack.c.b16 %v2842, %v2841
    %v3057 = vpack.c.b16 %v2844, %v2843
    %v3058 = vpack.c.b16 %v2846, %v2845
    %v3059 = vpack.c.b16 %v2848, %v2847
    %v3060 = vpack.c.b16 %v2850, %v2849
    %v3061 = vpack.c.b16 %v2852, %v2851
    %v3062 = vpack.c.b16 %v2854, %v2853
    %v3063 = vpack.c.b16 %v2856, %v2855
    %v3064 = vpack.c.b16 %v2858, %v2857
    %v3065 = vpack.c.b16 %v2860, %v2859
    %v3066 = vpack.c.b16 %v2862, %v2861
    %v3067 = vpack.c.b16 %v2864, %v2863
    %v3068 = vpack.c.b16 %v2866, %v2865
    %v3069 = vpack.c.b16 %v2868, %v2867
    %v3070 = vpack.c.b16 %v2870, %v2869
    %v3071 = vpack.c.b16 %v2872, %v2871
    %v3072 = vpack.c.b16 %v2874, %v2873
    %v3073 = vpack.c.b16 %v2876, %v2875
    %v3074 = vpack.c.b16 %v2878, %v2877
    %v3075 = vpack.c.b16 %v2880, %v2879
    %v3076 = vpack.c.b16 %v2882, %v2881
    %v3077 = vpack.c.b16 %v2884, %v2883
    %v3078 = vpack.c.b16 %v2886, %v2885
    %v3079 = vpack.c.b16 %v2888, %v2887
    %v3080 = vpack.c.b16 %v2890, %v2889
    %v3081 = vpack.c.b16 %v2892, %v2891
    %v3082 = vpack.c.b16 %v2894, %v2893
    %v3083 = vpack.c.b16 %v2896, %v2895
    %v3084 = vpack.c.b16 %v2898, %v2897
    %v3085 = vpack.c.b16 %v2900, %v2899
    %v3086 = vpack.c.b16 %v2902, %v2901
    %v3087 = vpack.c.b16 %v2904, %v2903
    %v3088 = vpack.c.b16 %v2906, %v2905
    %v3089 = vpack.c.b16 %v2908, %v2907
    %v3090 = vpack.c.b16 %v2910, %v2909
    %v3091 = vpack.c.b16 %v2912, %v2911
    %v3092 = vpack.c.b16 %v2914, %v2913
    %v3093 = vpack.c.b16 %v2916, %v2915
    %v3094 = vpack.c.b16 %v2918, %v2917
    %v3095 = vpack.c.b16 %v2920, %v2919
    %v3096 = vpack.c.b16 %v2922, %v2921
    %v3097 = vpack.c.b16 %v2924, %v2923
    %v3098 = vpack.c.b16 %v2926, %v2925
    %v3099 = vpack.c.b16 %v2928, %v2927
    %v3100 = vpack.c.b16 %v2930, %v2929
    %v3101 = vpack.c.b16 %v2932, %v2931
    %v3102 = vpack.c.b16 %v2934, %v2933
    %v3103 = vpack.c.b16 %v2936, %v2935
    %v3104 = vpack.c.b16 %v2938, %v2937
    %v3105 = vpack.c.b16 %v2940, %v2939
    %v3106 = vpack.c.b16 %v2942, %v2941
    %v3107 = vpack.c.b16 %v2944, %v2943
    %v3108 = vpack.c.b16 %v2946, %v2945
    %v3109 = vpack.c.b16 %v2948, %v2947
    %v3110 = vpack.c.b16 %v2950, %v2949
    %v3111 = vpack.c.b16 %v2952, %v2951
    %v3112 = vpack.c.b16 %v2954, %v2953
    %v3113 = vpack.c.b16 %v2956, %v2955
    %v3114 = vpack.c.b16 %v2958, %v2957
    %v3115 = vpack.c.b16 %v2960, %v2959
    %v3116 = vpack.c.b16 %v2962, %v2961
    %v3117 = vpack.c.b16 %v2964, %v2963
    %v3118 = vpack.c.b16 %v2966, %v2965
    %v3119 = vpack.c.b16 %v2968, %v2967
    %v3120 = vpack.c.b16 %v2970, %v2969
    %v3121 = vpack.c.b16 %v2972, %v2971
    %v3122 = vpack.c.b16 %v2974, %v2973
    %v3123 = vpack.c.b16 %v2976, %v2975
    %v3124 = vpack.c.b16 %v2978, %v2977
    %v3125 = vpack.c.b16 %v2980, %v2979
    %v3126 = vpack.c.b16 %v2982, %v2981
    %v3127 = vpack.c.b16 %v2984, %v2983
    %v3128 = vpack.c.b16 %v2986, %v2985
    %v3129 = vpack.c.b16 %v2988, %v2987
    %v3130 = vpack.c.b16 %v2990, %v2989
    %v3131 = vpack.c.b16 %v2992, %v2991
    %v3132 = vpack.c.b16 %v2994, %v2993
    %v3133 = vpack.c.b16 %v2996, %v2995
    %v3134 = vpack.c.b16 %v2998, %v2997
    %v3135 = vpack.c.b16 %v3000, %v2999
    %v3136 = vpack.c.b16 %v3002, %v3001
    %v3137 = vpack.c.b16 %v3004, %v3003
    %v3138 = vpack.c.b16 %v3006, %v3005
    %v3139 = vpack.c.b16 %v3008, %v3007
    %v3140 = vpack.c.b16 %v3010, %v3009
    %v3141 = vpack.c.b16 %v3012, %v3011
    %v3142 = vpack.c.b16 %v3014, %v3013
    %3271 = vmatprep.subr.bf16.mxu0 0
    %3272 = vmatpush1.bf16.msra.mxu0 %v3022
    %3273 = vmatprep.subr.bf16.mxu0 0
    %3274 = vmatpush1.bf16.msra.mxu0 %v3021
    %3275 = vmatprep.subr.bf16.mxu0 0
    %3276 = vmatpush1.bf16.msra.mxu0 %v3020
    %3277 = vmatprep.subr.bf16.mxu0 0
    %3278 = vmatpush1.bf16.msra.mxu0 %v3019
    %3279 = vmatprep.subr.bf16.mxu0 0
    %3280 = vmatpush1.bf16.msra.mxu0 %v3018
    %3281 = vmatprep.subr.bf16.mxu0 0
    %3282 = vmatpush1.bf16.msra.mxu0 %v3017
    %3283 = vmatprep.subr.bf16.mxu0 0
    %3284 = vmatpush1.bf16.msra.mxu0 %v3016
    %3285 = vmatprep.subr.bf16.mxu0 0
    %3286 = vmatpush1.bf16.msra.mxu0 %v3015
    %3287 = vmatprep.subr.bf16.mxu0 0
    %3288 = vmatpush2.bf16.msra.mxu0 %v3030
    %3289 = vmatprep.subr.bf16.mxu0 0
    %3290 = vmatpush2.bf16.msra.mxu0 %v3029
    %3291 = vmatprep.subr.bf16.mxu0 0
    %3292 = vmatpush2.bf16.msra.mxu0 %v3028
    %3293 = vmatprep.subr.bf16.mxu0 0
    %3294 = vmatpush2.bf16.msra.mxu0 %v3027
    %3295 = vmatprep.subr.bf16.mxu0 0
    %3296 = vmatpush2.bf16.msra.mxu0 %v3026
    %3297 = vmatprep.subr.bf16.mxu0 0
    %3298 = vmatpush2.bf16.msra.mxu0 %v3025
    %3299 = vmatprep.subr.bf16.mxu0 0
    %3300 = vmatpush2.bf16.msra.mxu0 %v3024
    %3301 = vmatprep.subr.bf16.mxu0 0
    %3302 = vmatpush2.bf16.msra.mxu0 %v3023
    %3303 = vmatprep.mubr.bf16.mxu0 %v2225
    %3304 = vmatmul.mubr.bf16.gmra.mxu0 %v2224
    %v3305 = vpop.f32.mrf.mxu0
    %v3306 = vadd.f32 %v2501, %v3305
    %v3307 = vpop.f32.mrf.mxu0
    %v3308 = vpop.f32.mrf.mxu0
    %v3309 = vadd.f32 %v2501, %v3308
    %v3310 = vpop.f32.mrf.mxu0
    %3311 = vdwg.mxu0
    %3312 = vmatprep.subr.bf16.mxu0 0
    %3313 = vmatpush1.bf16.msra.mxu0 %v3038
    %3314 = vmatprep.subr.bf16.mxu0 0
    %3315 = vmatpush1.bf16.msra.mxu0 %v3037
    %3316 = vmatprep.subr.bf16.mxu0 0
    %3317 = vmatpush1.bf16.msra.mxu0 %v3036
    %3318 = vmatprep.subr.bf16.mxu0 0
    %3319 = vmatpush1.bf16.msra.mxu0 %v3035
    %3320 = vmatprep.subr.bf16.mxu0 0
    %3321 = vmatpush1.bf16.msra.mxu0 %v3034
    %3322 = vmatprep.subr.bf16.mxu0 0
    %3323 = vmatpush1.bf16.msra.mxu0 %v3033
    %3324 = vmatprep.subr.bf16.mxu0 0
    %3325 = vmatpush1.bf16.msra.mxu0 %v3032
    %3326 = vmatprep.subr.bf16.mxu0 0
    %3327 = vmatpush1.bf16.msra.mxu0 %v3031
    %3328 = vmatprep.subr.bf16.mxu0 0
    %3329 = vmatpush2.bf16.msra.mxu0 %v3046
    %3330 = vmatprep.subr.bf16.mxu0 0
    %3331 = vmatpush2.bf16.msra.mxu0 %v3045
    %3332 = vmatprep.subr.bf16.mxu0 0
    %3333 = vmatpush2.bf16.msra.mxu0 %v3044
    %3334 = vmatprep.subr.bf16.mxu0 0
    %3335 = vmatpush2.bf16.msra.mxu0 %v3043
    %3336 = vmatprep.subr.bf16.mxu0 0
    %3337 = vmatpush2.bf16.msra.mxu0 %v3042
    %3338 = vmatprep.subr.bf16.mxu0 0
    %3339 = vmatpush2.bf16.msra.mxu0 %v3041
    %3340 = vmatprep.subr.bf16.mxu0 0
    %3341 = vmatpush2.bf16.msra.mxu0 %v3040
    %3342 = vmatprep.subr.bf16.mxu0 0
    %3343 = vmatpush2.bf16.msra.mxu0 %v3039
    %3344 = vmatprep.mubr.bf16.mxu0 %v2227
    %3345 = vmatmul.mubr.bf16.gmra.mxu0 %v2226
    %v3346 = vpop.f32.mrf.mxu0
    %v3347 = vadd.f32 %v3306, %v3346
    %v3348 = vpop.f32.mrf.mxu0
    %v3349 = vpop.f32.mrf.mxu0
    %v3350 = vadd.f32 %v3309, %v3349
    %v3351 = vpop.f32.mrf.mxu0
    %3352 = vdwg.mxu0
    %3353 = vmatprep.subr.bf16.mxu0 0
    %3354 = vmatpush1.bf16.msra.mxu0 %v3054
    %3355 = vmatprep.subr.bf16.mxu0 0
    %3356 = vmatpush1.bf16.msra.mxu0 %v3053
    %3357 = vmatprep.subr.bf16.mxu0 0
    %3358 = vmatpush1.bf16.msra.mxu0 %v3052
    %3359 = vmatprep.subr.bf16.mxu0 0
    %3360 = vmatpush1.bf16.msra.mxu0 %v3051
    %3361 = vmatprep.subr.bf16.mxu0 0
    %3362 = vmatpush1.bf16.msra.mxu0 %v3050
    %3363 = vmatprep.subr.bf16.mxu0 0
    %3364 = vmatpush1.bf16.msra.mxu0 %v3049
    %3365 = vmatprep.subr.bf16.mxu0 0
    %3366 = vmatpush1.bf16.msra.mxu0 %v3048
    %3367 = vmatprep.subr.bf16.mxu0 0
    %3368 = vmatpush1.bf16.msra.mxu0 %v3047
    %3369 = vmatprep.subr.bf16.mxu0 0
    %3370 = vmatpush2.bf16.msra.mxu0 %v3062
    %3371 = vmatprep.subr.bf16.mxu0 0
    %3372 = vmatpush2.bf16.msra.mxu0 %v3061
    %3373 = vmatprep.subr.bf16.mxu0 0
    %3374 = vmatpush2.bf16.msra.mxu0 %v3060
    %3375 = vmatprep.subr.bf16.mxu0 0
    %3376 = vmatpush2.bf16.msra.mxu0 %v3059
    %3377 = vmatprep.subr.bf16.mxu0 0
    %3378 = vmatpush2.bf16.msra.mxu0 %v3058
    %3379 = vmatprep.subr.bf16.mxu0 0
    %3380 = vmatpush2.bf16.msra.mxu0 %v3057
    %3381 = vmatprep.subr.bf16.mxu0 0
    %3382 = vmatpush2.bf16.msra.mxu0 %v3056
    %3383 = vmatprep.subr.bf16.mxu0 0
    %3384 = vmatpush2.bf16.msra.mxu0 %v3055
    %3385 = vmatprep.mubr.bf16.mxu0 %v2229
    %3386 = vmatmul.mubr.bf16.gmra.mxu0 %v2228
    %v3387 = vpop.f32.mrf.mxu0
    %v3388 = vadd.f32 %v3347, %v3387
    %v3389 = vpop.f32.mrf.mxu0
    %v3390 = vpop.f32.mrf.mxu0
    %v3391 = vadd.f32 %v3350, %v3390
    %v3392 = vpop.f32.mrf.mxu0
    %3393 = vdwg.mxu0
    %3394 = vmatprep.subr.bf16.mxu0 0
    %3395 = vmatpush1.bf16.msra.mxu0 %v3070
    %3396 = vmatprep.subr.bf16.mxu0 0
    %3397 = vmatpush1.bf16.msra.mxu0 %v3069
    %3398 = vmatprep.subr.bf16.mxu0 0
    %3399 = vmatpush1.bf16.msra.mxu0 %v3068
    %3400 = vmatprep.subr.bf16.mxu0 0
    %3401 = vmatpush1.bf16.msra.mxu0 %v3067
    %3402 = vmatprep.subr.bf16.mxu0 0
    %3403 = vmatpush1.bf16.msra.mxu0 %v3066
    %3404 = vmatprep.subr.bf16.mxu0 0
    %3405 = vmatpush1.bf16.msra.mxu0 %v3065
    %3406 = vmatprep.subr.bf16.mxu0 0
    %3407 = vmatpush1.bf16.msra.mxu0 %v3064
    %3408 = vmatprep.subr.bf16.mxu0 0
    %3409 = vmatpush1.bf16.msra.mxu0 %v3063
    %3410 = vmatprep.subr.bf16.mxu0 0
    %3411 = vmatpush2.bf16.msra.mxu0 %v3078
    %3412 = vmatprep.subr.bf16.mxu0 0
    %3413 = vmatpush2.bf16.msra.mxu0 %v3077
    %3414 = vmatprep.subr.bf16.mxu0 0
    %3415 = vmatpush2.bf16.msra.mxu0 %v3076
    %3416 = vmatprep.subr.bf16.mxu0 0
    %3417 = vmatpush2.bf16.msra.mxu0 %v3075
    %3418 = vmatprep.subr.bf16.mxu0 0
    %3419 = vmatpush2.bf16.msra.mxu0 %v3074
    %3420 = vmatprep.subr.bf16.mxu0 0
    %3421 = vmatpush2.bf16.msra.mxu0 %v3073
    %3422 = vmatprep.subr.bf16.mxu0 0
    %3423 = vmatpush2.bf16.msra.mxu0 %v3072
    %3424 = vmatprep.subr.bf16.mxu0 0
    %3425 = vmatpush2.bf16.msra.mxu0 %v3071
    %3426 = vmatprep.mubr.bf16.mxu0 %v2231
    %3427 = vmatmul.mubr.bf16.gmra.mxu0 %v2230
    %v3428 = vpop.f32.mrf.mxu0
    %v3429 = vadd.f32 %v3388, %v3428
    %v3430 = vpop.f32.mrf.mxu0
    %v3431 = vpop.f32.mrf.mxu0
    %v3432 = vadd.f32 %v3391, %v3431
    %v3433 = vpop.f32.mrf.mxu0
    %3434 = vdwg.mxu0
    %3435 = vmatprep.subr.bf16.mxu0 0
    %3436 = vmatpush1.bf16.msra.mxu0 %v3086
    %3437 = vmatprep.subr.bf16.mxu0 0
    %3438 = vmatpush1.bf16.msra.mxu0 %v3085
    %3439 = vmatprep.subr.bf16.mxu0 0
    %3440 = vmatpush1.bf16.msra.mxu0 %v3084
    %3441 = vmatprep.subr.bf16.mxu0 0
    %3442 = vmatpush1.bf16.msra.mxu0 %v3083
    %3443 = vmatprep.subr.bf16.mxu0 0
    %3444 = vmatpush1.bf16.msra.mxu0 %v3082
    %3445 = vmatprep.subr.bf16.mxu0 0
    %3446 = vmatpush1.bf16.msra.mxu0 %v3081
    %3447 = vmatprep.subr.bf16.mxu0 0
    %3448 = vmatpush1.bf16.msra.mxu0 %v3080
    %3449 = vmatprep.subr.bf16.mxu0 0
    %3450 = vmatpush1.bf16.msra.mxu0 %v3079
    %3451 = vmatprep.subr.bf16.mxu0 0
    %3452 = vmatpush2.bf16.msra.mxu0 %v3094
    %3453 = vmatprep.subr.bf16.mxu0 0
    %3454 = vmatpush2.bf16.msra.mxu0 %v3093
    %3455 = vmatprep.subr.bf16.mxu0 0
    %3456 = vmatpush2.bf16.msra.mxu0 %v3092
    %3457 = vmatprep.subr.bf16.mxu0 0
    %3458 = vmatpush2.bf16.msra.mxu0 %v3091
    %3459 = vmatprep.subr.bf16.mxu0 0
    %3460 = vmatpush2.bf16.msra.mxu0 %v3090
    %3461 = vmatprep.subr.bf16.mxu0 0
    %3462 = vmatpush2.bf16.msra.mxu0 %v3089
    %3463 = vmatprep.subr.bf16.mxu0 0
    %3464 = vmatpush2.bf16.msra.mxu0 %v3088
    %3465 = vmatprep.subr.bf16.mxu0 0
    %3466 = vmatpush2.bf16.msra.mxu0 %v3087
    %3467 = vmatprep.mubr.bf16.mxu0 %v2233
    %3468 = vmatmul.mubr.bf16.gmra.mxu0 %v2232
    %v3469 = vpop.f32.mrf.mxu0
    %v3470 = vadd.f32 %v3429, %v3469
    %v3471 = vpop.f32.mrf.mxu0
    %v3472 = vpop.f32.mrf.mxu0
    %v3473 = vadd.f32 %v3432, %v3472
    %v3474 = vpop.f32.mrf.mxu0
    %3475 = vdwg.mxu0
    %3476 = vmatprep.subr.bf16.mxu0 0
    %3477 = vmatpush1.bf16.msra.mxu0 %v3102
    %3478 = vmatprep.subr.bf16.mxu0 0
    %3479 = vmatpush1.bf16.msra.mxu0 %v3101
    %3480 = vmatprep.subr.bf16.mxu0 0
    %3481 = vmatpush1.bf16.msra.mxu0 %v3100
    %3482 = vmatprep.subr.bf16.mxu0 0
    %3483 = vmatpush1.bf16.msra.mxu0 %v3099
    %3484 = vmatprep.subr.bf16.mxu0 0
    %3485 = vmatpush1.bf16.msra.mxu0 %v3098
    %3486 = vmatprep.subr.bf16.mxu0 0
    %3487 = vmatpush1.bf16.msra.mxu0 %v3097
    %3488 = vmatprep.subr.bf16.mxu0 0
    %3489 = vmatpush1.bf16.msra.mxu0 %v3096
    %3490 = vmatprep.subr.bf16.mxu0 0
    %3491 = vmatpush1.bf16.msra.mxu0 %v3095
    %3492 = vmatprep.subr.bf16.mxu0 0
    %3493 = vmatpush2.bf16.msra.mxu0 %v3110
    %3494 = vmatprep.subr.bf16.mxu0 0
    %3495 = vmatpush2.bf16.msra.mxu0 %v3109
    %3496 = vmatprep.subr.bf16.mxu0 0
    %3497 = vmatpush2.bf16.msra.mxu0 %v3108
    %3498 = vmatprep.subr.bf16.mxu0 0
    %3499 = vmatpush2.bf16.msra.mxu0 %v3107
    %3500 = vmatprep.subr.bf16.mxu0 0
    %3501 = vmatpush2.bf16.msra.mxu0 %v3106
    %3502 = vmatprep.subr.bf16.mxu0 0
    %3503 = vmatpush2.bf16.msra.mxu0 %v3105
    %3504 = vmatprep.subr.bf16.mxu0 0
    %3505 = vmatpush2.bf16.msra.mxu0 %v3104
    %3506 = vmatprep.subr.bf16.mxu0 0
    %3507 = vmatpush2.bf16.msra.mxu0 %v3103
    %3508 = vmatprep.mubr.bf16.mxu0 %v2235
    %3509 = vmatmul.mubr.bf16.gmra.mxu0 %v2234
    %v3510 = vpop.f32.mrf.mxu0
    %v3511 = vadd.f32 %v3470, %v3510
    %v3512 = vpop.f32.mrf.mxu0
    %v3513 = vpop.f32.mrf.mxu0
    %v3514 = vadd.f32 %v3473, %v3513
    %v3515 = vpop.f32.mrf.mxu0
    %3516 = vdwg.mxu0
    %3517 = vmatprep.subr.bf16.mxu0 0
    %3518 = vmatpush1.bf16.msra.mxu0 %v3118
    %3519 = vmatprep.subr.bf16.mxu0 0
    %3520 = vmatpush1.bf16.msra.mxu0 %v3117
    %3521 = vmatprep.subr.bf16.mxu0 0
    %3522 = vmatpush1.bf16.msra.mxu0 %v3116
    %3523 = vmatprep.subr.bf16.mxu0 0
    %3524 = vmatpush1.bf16.msra.mxu0 %v3115
    %3525 = vmatprep.subr.bf16.mxu0 0
    %3526 = vmatpush1.bf16.msra.mxu0 %v3114
    %3527 = vmatprep.subr.bf16.mxu0 0
    %3528 = vmatpush1.bf16.msra.mxu0 %v3113
    %3529 = vmatprep.subr.bf16.mxu0 0
    %3530 = vmatpush1.bf16.msra.mxu0 %v3112
    %3531 = vmatprep.subr.bf16.mxu0 0
    %3532 = vmatpush1.bf16.msra.mxu0 %v3111
    %3533 = vmatprep.subr.bf16.mxu0 0
    %3534 = vmatpush2.bf16.msra.mxu0 %v3126
    %3535 = vmatprep.subr.bf16.mxu0 0
    %3536 = vmatpush2.bf16.msra.mxu0 %v3125
    %3537 = vmatprep.subr.bf16.mxu0 0
    %3538 = vmatpush2.bf16.msra.mxu0 %v3124
    %3539 = vmatprep.subr.bf16.mxu0 0
    %3540 = vmatpush2.bf16.msra.mxu0 %v3123
    %3541 = vmatprep.subr.bf16.mxu0 0
    %3542 = vmatpush2.bf16.msra.mxu0 %v3122
    %3543 = vmatprep.subr.bf16.mxu0 0
    %3544 = vmatpush2.bf16.msra.mxu0 %v3121
    %3545 = vmatprep.subr.bf16.mxu0 0
    %3546 = vmatpush2.bf16.msra.mxu0 %v3120
    %3547 = vmatprep.subr.bf16.mxu0 0
    %3548 = vmatpush2.bf16.msra.mxu0 %v3119
    %3549 = vmatprep.mubr.bf16.mxu0 %v2237
    %3550 = vmatmul.mubr.bf16.gmra.mxu0 %v2236
    %v3551 = vpop.f32.mrf.mxu0
    %v3552 = vadd.f32 %v3511, %v3551
    %v3553 = vpop.f32.mrf.mxu0
    %v3554 = vpop.f32.mrf.mxu0
    %v3555 = vadd.f32 %v3514, %v3554
    %v3556 = vpop.f32.mrf.mxu0
    %3557 = vdwg.mxu0
    %3558 = vmatprep.subr.bf16.mxu0 0
    %3559 = vmatpush1.bf16.msra.mxu0 %v3134
    %3560 = vmatprep.subr.bf16.mxu0 0
    %3561 = vmatpush1.bf16.msra.mxu0 %v3133
    %3562 = vmatprep.subr.bf16.mxu0 0
    %3563 = vmatpush1.bf16.msra.mxu0 %v3132
    %3564 = vmatprep.subr.bf16.mxu0 0
    %3565 = vmatpush1.bf16.msra.mxu0 %v3131
    %3566 = vmatprep.subr.bf16.mxu0 0
    %3567 = vmatpush1.bf16.msra.mxu0 %v3130
    %3568 = vmatprep.subr.bf16.mxu0 0
    %3569 = vmatpush1.bf16.msra.mxu0 %v3129
    %3570 = vmatprep.subr.bf16.mxu0 0
    %3571 = vmatpush1.bf16.msra.mxu0 %v3128
    %3572 = vmatprep.subr.bf16.mxu0 0
    %3573 = vmatpush1.bf16.msra.mxu0 %v3127
    %3574 = vmatprep.subr.bf16.mxu0 0
    %3575 = vmatpush2.bf16.msra.mxu0 %v3142
    %3576 = vmatprep.subr.bf16.mxu0 0
    %3577 = vmatpush2.bf16.msra.mxu0 %v3141
    %3578 = vmatprep.subr.bf16.mxu0 0
    %3579 = vmatpush2.bf16.msra.mxu0 %v3140
    %3580 = vmatprep.subr.bf16.mxu0 0
    %3581 = vmatpush2.bf16.msra.mxu0 %v3139
    %3582 = vmatprep.subr.bf16.mxu0 0
    %3583 = vmatpush2.bf16.msra.mxu0 %v3138
    %3584 = vmatprep.subr.bf16.mxu0 0
    %3585 = vmatpush2.bf16.msra.mxu0 %v3137
    %3586 = vmatprep.subr.bf16.mxu0 0
    %3587 = vmatpush2.bf16.msra.mxu0 %v3136
    %3588 = vmatprep.subr.bf16.mxu0 0
    %3589 = vmatpush2.bf16.msra.mxu0 %v3135
    %3590 = vmatprep.mubr.bf16.mxu0 %v2239
    %3591 = vmatmul.mubr.bf16.gmra.mxu0 %v2238
    %v3592 = vpop.f32.mrf.mxu0
    %v3593 = vadd.f32 %v3552, %v3592
    %v3594 = vpop.f32.mrf.mxu0
    %v3595 = vpop.f32.mrf.mxu0
    %v3596 = vadd.f32 %v3555, %v3595
    %v3597 = vpop.f32.mrf.mxu0
    %3598 = vdwg.mxu0
    %v3599 = vadd.f32 %v1566, %v3593
    %v3600 = vadd.f32 %v1567, %v3596
    %v3601 = vsel %vm211, %v3599, 0.0
    %3602 = vadd.xlane.f32.xlu0 %v3601
    %v3603 = vpop.xlane.xlu0 %3602
    %v3604 = vsel %vm211, %v3600, 0.0
    %3605 = vadd.xlane.f32.xlu0 %v3604
    %v3606 = vpop.xlane.xlu0 %3605
    %v3607 = vmul.f32 %v3603, %v1529
    %v3608 = vmul.f32 %v3606, %v1529
    %v3609 = vsub.f32 %v3599, %v3607
    %v3610 = vsub.f32 %v3600, %v3608
    %v3611 = vmul.f32 %v3609, %v3609
    %v3612 = vmul.f32 %v3610, %v3610
    %v3613 = vsel %vm211, %v3611, 0.0
    %3614 = vadd.xlane.f32.xlu0 %v3613
    %v3615 = vpop.xlane.xlu0 %3614
    %v3616 = vsel %vm211, %v3612, 0.0
    %3617 = vadd.xlane.f32.xlu0 %v3616
    %v3618 = vpop.xlane.xlu0 %3617
    %v3619 = vmul.f32 %v3615, %v1529
    %v3620 = vmul.f32 %v3618, %v1529
    %v3621 = vadd.f32 %v3619, 1e-05
    %v3622 = vadd.f32 %v3620, 1e-05
    %v3623 = vrsqrt.pop %v3621
    %v3624 = vrsqrt.pop %v3622
    %v3625 = vmul.f32 %v3609, %v3623
    %v3626 = vmul.f32 %v3610, %v3624
    %v3627 = vld [vmem:[%s27] sm:$0x1]
    %v3629 = vlaneseq
    %v3630 = vshrl.u32 %v3629, 7
    %v3631 = vsub.s32 0, %v3630
    %v3632 = vrot.slane %v3627, %v3631
    %v3634 = vmul.f32 %v3625, %v3632
    %v3635 = vmul.f32 %v3626, %v3632
    %v3636 = vld [vmem:[%s29] sm:$0x1]
    %v3638 = vlaneseq
    %v3639 = vshrl.u32 %v3638, 7
    %v3640 = vsub.s32 0, %v3639
    %v3641 = vrot.slane %v3636, %v3640
    %v3643 = vadd.f32 %v3634, %v3641
    %v3644 = vadd.f32 %v3635, %v3641
    %v3645 = vpack.c.bf16 %v3644, %v3643
    %v3646 = vld [vmem:[%s31] sm:$0xf]
    %v3647 = vld [vmem:[%s31 + $0x4] sm:$0xf]
    %v3648 = vld [vmem:[%s31 + $0x8] sm:$0xf]
    %v3649 = vld [vmem:[%s31 + $0xc] sm:$0xf]
    %v3650 = vld [vmem:[%s33] sm:$0x1]
    %v3652 = vlaneseq
    %v3653 = vshrl.u32 %v3652, 7
    %v3654 = vsub.s32 0, %v3653
    %v3655 = vrot.slane %v3650, %v3654
    %v3661 = vunpack.c.l.b16 %v3646
    %v3662 = vunpack.c.l.b16 %v3647
    %v3663 = vunpack.c.l.b16 %v3648
    %v3664 = vunpack.c.l.b16 %v3649
    %v3665 = vpack.c.b16 %v3662, %v3661
    %v3666 = vpack.c.b16 %v3664, %v3663
    %v3670 = vsel %vm211, %v3645, 0
    %3672 = vmatprep.subr.bf16.mxu0 0
    %3673 = vmatpush1.bf16.msra.mxu0 0
    %3674 = vmatprep.subr.bf16.mxu0 0
    %3675 = vmatpush1.bf16.msra.mxu0 0
    %3676 = vmatprep.subr.bf16.mxu0 0
    %3677 = vmatpush1.bf16.msra.mxu0 0
    %3678 = vmatprep.subr.bf16.mxu0 0
    %3679 = vmatpush1.bf16.msra.mxu0 0
    %3680 = vmatprep.subr.bf16.mxu0 0
    %3681 = vmatpush1.bf16.msra.mxu0 0
    %3682 = vmatprep.subr.bf16.mxu0 0
    %3683 = vmatpush1.bf16.msra.mxu0 0
    %3684 = vmatprep.subr.bf16.mxu0 0
    %3685 = vmatpush1.bf16.msra.mxu0 %v3666
    %3686 = vmatprep.subr.bf16.mxu0 0
    %3687 = vmatpush1.bf16.msra.mxu0 %v3665
    %3688 = vmatprep.subr.bf16.mxu0 0
    %3689 = vmatpush2.bf16.msra.mxu0 0
    %3690 = vmatprep.subr.bf16.mxu0 0
    %3691 = vmatpush2.bf16.msra.mxu0 0
    %3692 = vmatprep.subr.bf16.mxu0 0
    %3693 = vmatpush2.bf16.msra.mxu0 0
    %3694 = vmatprep.subr.bf16.mxu0 0
    %3695 = vmatpush2.bf16.msra.mxu0 0
    %3696 = vmatprep.subr.bf16.mxu0 0
    %3697 = vmatpush2.bf16.msra.mxu0 0
    %3698 = vmatprep.subr.bf16.mxu0 0
    %3699 = vmatpush2.bf16.msra.mxu0 0
    %3700 = vmatprep.subr.bf16.mxu0 0
    %3701 = vmatpush2.bf16.msra.mxu0 0
    %3702 = vmatprep.subr.bf16.mxu0 0
    %3703 = vmatpush2.bf16.msra.mxu0 0
    %3704 = vmatprep.mubr.bf16.mxu0 0
    %3705 = vmatmul.mubr.bf16.gmra.mxu0 %v3670
    %v3706 = vpop.f32.mrf.mxu0
    %v3707 = vadd.f32 %v3655, %v3706
    %v3708 = vpop.f32.mrf.mxu0
    %v3709 = vpop.f32.mrf.mxu0
    %v3710 = vadd.f32 %v3655, %v3709
    %v3711 = vpop.f32.mrf.mxu0
    %3712 = vdwg.mxu0
    %v3713 = vpack.c.bf16 %v3710, %v3707
    %3715 = vrot.lane.b32.xlu0 %v3713, 96
    %v3716 = vpop.permute.xlu0 %3715
    %v3718 = vsel %vm260, %v3713, 0
    %v3721 = vsel %vm260, %v3716, 0
    %3723 = vmatprep.subr.bf16.mxu0 0
    %3724 = vmatpush1.bf16.xpose.msra.mxu0 0
    %3725 = vmatprep.subr.bf16.mxu0 0
    %3726 = vmatpush1.bf16.xpose.msra.mxu0 0
    %3727 = vmatprep.subr.bf16.mxu0 0
    %3728 = vmatpush1.bf16.xpose.msra.mxu0 0
    %3729 = vmatprep.subr.bf16.mxu0 0
    %3730 = vmatpush1.bf16.xpose.msra.mxu0 0
    %3731 = vmatprep.subr.bf16.mxu0 0
    %3732 = vmatpush1.bf16.xpose.msra.mxu0 0
    %3733 = vmatprep.subr.bf16.mxu0 0
    %3734 = vmatpush1.bf16.xpose.msra.mxu0 0
    %3735 = vmatprep.subr.bf16.mxu0 0
    %3736 = vmatpush1.bf16.xpose.msra.mxu0 0
    %3737 = vmatprep.subr.bf16.mxu0 0
    %3738 = vmatpush1.bf16.xpose.msra.mxu0 %v3721
    %3739 = vmatprep.subr.bf16.mxu0 0
    %3740 = vmatpush2.bf16.xpose.msra.mxu0 0
    %3741 = vmatprep.subr.bf16.mxu0 0
    %3742 = vmatpush2.bf16.xpose.msra.mxu0 0
    %3743 = vmatprep.subr.bf16.mxu0 0
    %3744 = vmatpush2.bf16.xpose.msra.mxu0 0
    %3745 = vmatprep.subr.bf16.mxu0 0
    %3746 = vmatpush2.bf16.xpose.msra.mxu0 0
    %3747 = vmatprep.subr.bf16.mxu0 0
    %3748 = vmatpush2.bf16.xpose.msra.mxu0 0
    %3749 = vmatprep.subr.bf16.mxu0 0
    %3750 = vmatpush2.bf16.xpose.msra.mxu0 0
    %3751 = vmatprep.subr.bf16.mxu0 0
    %3752 = vmatpush2.bf16.xpose.msra.mxu0 0
    %3753 = vmatprep.subr.bf16.mxu0 0
    %3754 = vmatpush2.bf16.xpose.msra.mxu0 0
    %3755 = vmatprep.mubr.bf16.mxu0 0
    %3756 = vmatmul.mubr.bf16.gmra.mxu0 %v3718
    %v3757 = vpop.f32.mrf.mxu0
    %v3758 = vadd.f32 0.0, %v3757
    %v3759 = vpop.f32.mrf.mxu0
    %v3760 = vpop.f32.mrf.mxu0
    %v3761 = vpop.f32.mrf.mxu0
    %3762 = vdwg.mxu0
    %v3763 = vsel %vm260, %v3758, -inf
    %3764 = vmax.xlane.f32.xlu0 %v3763
    %v3765 = vpop.xlane.xlu0 %3764
    %v3766 = vsub.f32 %v3758, %v3765
    %v3767 = vmul.f32 %v3766, 1.442695
    %v3768 = vpow.pop %v3767
    %v3769 = vsel %vm260, %v3768, 0.0
    %3770 = vadd.xlane.f32.xlu0 %v3769
    %v3771 = vpop.xlane.xlu0 %3770
    %v3772 = vrcp.pop %v3771
    %v3773 = vmul.f32 %v3768, %v3772
    %v3774 = vpack.c.bf16 %v3773, %v3773
    %3775 = vrot.lane.b32.xlu0 %v3713, 64
    %v3776 = vpop.permute.xlu0 %3775
    %v3778 = vsel %vm260, %v3774, 0
    %v3781 = vsel %vm324, %v3776, 0
    %3783 = vmatprep.subr.bf16.mxu0 0
    %3784 = vmatpush1.bf16.msra.mxu0 0
    %3785 = vmatprep.subr.bf16.mxu0 0
    %3786 = vmatpush1.bf16.msra.mxu0 0
    %3787 = vmatprep.subr.bf16.mxu0 0
    %3788 = vmatpush1.bf16.msra.mxu0 0
    %3789 = vmatprep.subr.bf16.mxu0 0
    %3790 = vmatpush1.bf16.msra.mxu0 0
    %3791 = vmatprep.subr.bf16.mxu0 0
    %3792 = vmatpush1.bf16.msra.mxu0 0
    %3793 = vmatprep.subr.bf16.mxu0 0
    %3794 = vmatpush1.bf16.msra.mxu0 0
    %3795 = vmatprep.subr.bf16.mxu0 0
    %3796 = vmatpush1.bf16.msra.mxu0 0
    %3797 = vmatprep.subr.bf16.mxu0 0
    %3798 = vmatpush1.bf16.msra.mxu0 %v3781
    %3799 = vmatprep.subr.bf16.mxu0 0
    %3800 = vmatpush2.bf16.msra.mxu0 0
    %3801 = vmatprep.subr.bf16.mxu0 0
    %3802 = vmatpush2.bf16.msra.mxu0 0
    %3803 = vmatprep.subr.bf16.mxu0 0
    %3804 = vmatpush2.bf16.msra.mxu0 0
    %3805 = vmatprep.subr.bf16.mxu0 0
    %3806 = vmatpush2.bf16.msra.mxu0 0
    %3807 = vmatprep.subr.bf16.mxu0 0
    %3808 = vmatpush2.bf16.msra.mxu0 0
    %3809 = vmatprep.subr.bf16.mxu0 0
    %3810 = vmatpush2.bf16.msra.mxu0 0
    %3811 = vmatprep.subr.bf16.mxu0 0
    %3812 = vmatpush2.bf16.msra.mxu0 0
    %3813 = vmatprep.subr.bf16.mxu0 0
    %3814 = vmatpush2.bf16.msra.mxu0 0
    %3815 = vmatprep.mubr.bf16.mxu0 0
    %3816 = vmatmul.mubr.bf16.gmra.mxu0 %v3778
    %v3817 = vpop.f32.mrf.mxu0
    %v3818 = vadd.f32 0.0, %v3817
    %v3819 = vpop.f32.mrf.mxu0
    %v3820 = vpop.f32.mrf.mxu0
    %v3821 = vpop.f32.mrf.mxu0
    %3822 = vdwg.mxu0
    %v3823 = vpack.c.bf16 %v3818, %v3818
    %v3824 = vld [vmem:[%s35] sm:$0xf]
    %3825 = vrot.lane.b32.xlu0 %v3713, 120
    %v3826 = vpop.permute.xlu0 %3825
    %3827 = vrot.lane.b32.xlu0 %v3713, 88
    %v3828 = vpop.permute.xlu0 %3827
    %v3830 = vsel %vm260, %v3826, 0
    %v3833 = vsel %vm260, %v3828, 0
    %3835 = vmatprep.subr.bf16.mxu0 0
    %3836 = vmatpush1.bf16.xpose.msra.mxu0 0
    %3837 = vmatprep.subr.bf16.mxu0 0
    %3838 = vmatpush1.bf16.xpose.msra.mxu0 0
    %3839 = vmatprep.subr.bf16.mxu0 0
    %3840 = vmatpush1.bf16.xpose.msra.mxu0 0
    %3841 = vmatprep.subr.bf16.mxu0 0
    %3842 = vmatpush1.bf16.xpose.msra.mxu0 0
    %3843 = vmatprep.subr.bf16.mxu0 0
    %3844 = vmatpush1.bf16.xpose.msra.mxu0 0
    %3845 = vmatprep.subr.bf16.mxu0 0
    %3846 = vmatpush1.bf16.xpose.msra.mxu0 0
    %3847 = vmatprep.subr.bf16.mxu0 0
    %3848 = vmatpush1.bf16.xpose.msra.mxu0 0
    %3849 = vmatprep.subr.bf16.mxu0 0
    %3850 = vmatpush1.bf16.xpose.msra.mxu0 %v3833
    %3851 = vmatprep.subr.bf16.mxu0 0
    %3852 = vmatpush2.bf16.xpose.msra.mxu0 0
    %3853 = vmatprep.subr.bf16.mxu0 0
    %3854 = vmatpush2.bf16.xpose.msra.mxu0 0
    %3855 = vmatprep.subr.bf16.mxu0 0
    %3856 = vmatpush2.bf16.xpose.msra.mxu0 0
    %3857 = vmatprep.subr.bf16.mxu0 0
    %3858 = vmatpush2.bf16.xpose.msra.mxu0 0
    %3859 = vmatprep.subr.bf16.mxu0 0
    %3860 = vmatpush2.bf16.xpose.msra.mxu0 0
    %3861 = vmatprep.subr.bf16.mxu0 0
    %3862 = vmatpush2.bf16.xpose.msra.mxu0 0
    %3863 = vmatprep.subr.bf16.mxu0 0
    %3864 = vmatpush2.bf16.xpose.msra.mxu0 0
    %3865 = vmatprep.subr.bf16.mxu0 0
    %3866 = vmatpush2.bf16.xpose.msra.mxu0 0
    %3867 = vmatprep.mubr.bf16.mxu0 0
    %3868 = vmatmul.mubr.bf16.gmra.mxu0 %v3830
    %v3869 = vpop.f32.mrf.mxu0
    %v3870 = vadd.f32 0.0, %v3869
    %v3871 = vpop.f32.mrf.mxu0
    %v3872 = vpop.f32.mrf.mxu0
    %v3873 = vpop.f32.mrf.mxu0
    %3874 = vdwg.mxu0
    %v3875 = vsel %vm260, %v3870, -inf
    %3876 = vmax.xlane.f32.xlu0 %v3875
    %v3877 = vpop.xlane.xlu0 %3876
    %v3878 = vsub.f32 %v3870, %v3877
    %v3879 = vmul.f32 %v3878, 1.442695
    %v3880 = vpow.pop %v3879
    %v3881 = vsel %vm260, %v3880, 0.0
    %3882 = vadd.xlane.f32.xlu0 %v3881
    %v3883 = vpop.xlane.xlu0 %3882
    %v3884 = vrcp.pop %v3883
    %v3885 = vmul.f32 %v3880, %v3884
    %v3886 = vpack.c.bf16 %v3885, %v3885
    %3887 = vrot.lane.b32.xlu0 %v3713, 56
    %v3888 = vpop.permute.xlu0 %3887
    %v3890 = vsel %vm260, %v3886, 0
    %v3893 = vsel %vm324, %v3888, 0
    %3895 = vmatprep.subr.bf16.mxu0 0
    %3896 = vmatpush1.bf16.msra.mxu0 0
    %3897 = vmatprep.subr.bf16.mxu0 0
    %3898 = vmatpush1.bf16.msra.mxu0 0
    %3899 = vmatprep.subr.bf16.mxu0 0
    %3900 = vmatpush1.bf16.msra.mxu0 0
    %3901 = vmatprep.subr.bf16.mxu0 0
    %3902 = vmatpush1.bf16.msra.mxu0 0
    %3903 = vmatprep.subr.bf16.mxu0 0
    %3904 = vmatpush1.bf16.msra.mxu0 0
    %3905 = vmatprep.subr.bf16.mxu0 0
    %3906 = vmatpush1.bf16.msra.mxu0 0
    %3907 = vmatprep.subr.bf16.mxu0 0
    %3908 = vmatpush1.bf16.msra.mxu0 0
    %3909 = vmatprep.subr.bf16.mxu0 0
    %3910 = vmatpush1.bf16.msra.mxu0 %v3893
    %3911 = vmatprep.subr.bf16.mxu0 0
    %3912 = vmatpush2.bf16.msra.mxu0 0
    %3913 = vmatprep.subr.bf16.mxu0 0
    %3914 = vmatpush2.bf16.msra.mxu0 0
    %3915 = vmatprep.subr.bf16.mxu0 0
    %3916 = vmatpush2.bf16.msra.mxu0 0
    %3917 = vmatprep.subr.bf16.mxu0 0
    %3918 = vmatpush2.bf16.msra.mxu0 0
    %3919 = vmatprep.subr.bf16.mxu0 0
    %3920 = vmatpush2.bf16.msra.mxu0 0
    %3921 = vmatprep.subr.bf16.mxu0 0
    %3922 = vmatpush2.bf16.msra.mxu0 0
    %3923 = vmatprep.subr.bf16.mxu0 0
    %3924 = vmatpush2.bf16.msra.mxu0 0
    %3925 = vmatprep.subr.bf16.mxu0 0
    %3926 = vmatpush2.bf16.msra.mxu0 0
    %3927 = vmatprep.mubr.bf16.mxu0 0
    %3928 = vmatmul.mubr.bf16.gmra.mxu0 %v3890
    %v3929 = vpop.f32.mrf.mxu0
    %v3930 = vadd.f32 0.0, %v3929
    %v3931 = vpop.f32.mrf.mxu0
    %v3932 = vpop.f32.mrf.mxu0
    %v3933 = vpop.f32.mrf.mxu0
    %3934 = vdwg.mxu0
    %v3935 = vpack.c.bf16 %v3930, %v3930
    %s3936 = scalar_lea.vmem %s35, 4
    %v3937 = vld [vmem:[%s3936] sm:$0xf]
    %v3939 = vsel %vm260, %v3935, 0
    %v3942 = vsel %vm324, %v3937, 0
    %3944 = vmatprep.subr.bf16.mxu0 0
    %3945 = vmatpush1.bf16.msra.mxu0 0
    %3946 = vmatprep.subr.bf16.mxu0 0
    %3947 = vmatpush1.bf16.msra.mxu0 0
    %3948 = vmatprep.subr.bf16.mxu0 0
    %3949 = vmatpush1.bf16.msra.mxu0 0
    %3950 = vmatprep.subr.bf16.mxu0 0
    %3951 = vmatpush1.bf16.msra.mxu0 0
    %3952 = vmatprep.subr.bf16.mxu0 0
    %3953 = vmatpush1.bf16.msra.mxu0 0
    %3954 = vmatprep.subr.bf16.mxu0 0
    %3955 = vmatpush1.bf16.msra.mxu0 0
    %3956 = vmatprep.subr.bf16.mxu0 0
    %3957 = vmatpush1.bf16.msra.mxu0 0
    %3958 = vmatprep.subr.bf16.mxu0 0
    %3959 = vmatpush1.bf16.msra.mxu0 %v3942
    %3960 = vmatprep.subr.bf16.mxu0 0
    %3961 = vmatpush2.bf16.msra.mxu0 0
    %3962 = vmatprep.subr.bf16.mxu0 0
    %3963 = vmatpush2.bf16.msra.mxu0 0
    %3964 = vmatprep.subr.bf16.mxu0 0
    %3965 = vmatpush2.bf16.msra.mxu0 0
    %3966 = vmatprep.subr.bf16.mxu0 0
    %3967 = vmatpush2.bf16.msra.mxu0 0
    %3968 = vmatprep.subr.bf16.mxu0 0
    %3969 = vmatpush2.bf16.msra.mxu0 0
    %3970 = vmatprep.subr.bf16.mxu0 0
    %3971 = vmatpush2.bf16.msra.mxu0 0
    %3972 = vmatprep.subr.bf16.mxu0 0
    %3973 = vmatpush2.bf16.msra.mxu0 0
    %3974 = vmatprep.subr.bf16.mxu0 0
    %3975 = vmatpush2.bf16.msra.mxu0 0
    %3976 = vmatprep.mubr.bf16.mxu0 0
    %3977 = vmatmul.mubr.bf16.gmra.mxu0 %v3939
    %v3978 = vpop.f32.mrf.mxu0
    %v3979 = vadd.f32 0.0, %v3978
    %v3980 = vpop.f32.mrf.mxu0
    %v3981 = vpop.f32.mrf.mxu0
    %v3982 = vpop.f32.mrf.mxu0
    %3983 = vdwg.mxu0
    %v3985 = vsel %vm260, %v3823, 0
    %v3988 = vsel %vm324, %v3824, 0
    %3990 = vmatprep.subr.bf16.mxu0 0
    %3991 = vmatpush1.bf16.msra.mxu0 0
    %3992 = vmatprep.subr.bf16.mxu0 0
    %3993 = vmatpush1.bf16.msra.mxu0 0
    %3994 = vmatprep.subr.bf16.mxu0 0
    %3995 = vmatpush1.bf16.msra.mxu0 0
    %3996 = vmatprep.subr.bf16.mxu0 0
    %3997 = vmatpush1.bf16.msra.mxu0 0
    %3998 = vmatprep.subr.bf16.mxu0 0
    %3999 = vmatpush1.bf16.msra.mxu0 0
    %4000 = vmatprep.subr.bf16.mxu0 0
    %4001 = vmatpush1.bf16.msra.mxu0 0
    %4002 = vmatprep.subr.bf16.mxu0 0
    %4003 = vmatpush1.bf16.msra.mxu0 0
    %4004 = vmatprep.subr.bf16.mxu0 0
    %4005 = vmatpush1.bf16.msra.mxu0 %v3988
    %4006 = vmatprep.subr.bf16.mxu0 0
    %4007 = vmatpush2.bf16.msra.mxu0 0
    %4008 = vmatprep.subr.bf16.mxu0 0
    %4009 = vmatpush2.bf16.msra.mxu0 0
    %4010 = vmatprep.subr.bf16.mxu0 0
    %4011 = vmatpush2.bf16.msra.mxu0 0
    %4012 = vmatprep.subr.bf16.mxu0 0
    %4013 = vmatpush2.bf16.msra.mxu0 0
    %4014 = vmatprep.subr.bf16.mxu0 0
    %4015 = vmatpush2.bf16.msra.mxu0 0
    %4016 = vmatprep.subr.bf16.mxu0 0
    %4017 = vmatpush2.bf16.msra.mxu0 0
    %4018 = vmatprep.subr.bf16.mxu0 0
    %4019 = vmatpush2.bf16.msra.mxu0 0
    %4020 = vmatprep.subr.bf16.mxu0 0
    %4021 = vmatpush2.bf16.msra.mxu0 0
    %4022 = vmatprep.mubr.bf16.mxu0 0
    %4023 = vmatmul.mubr.bf16.gmra.mxu0 %v3985
    %v4024 = vpop.f32.mrf.mxu0
    %v4025 = vadd.f32 %v3979, %v4024
    %v4026 = vpop.f32.mrf.mxu0
    %v4027 = vpop.f32.mrf.mxu0
    %v4028 = vpop.f32.mrf.mxu0
    %4029 = vdwg.mxu0
    %4030 = vrot.lane.b32.xlu0 %v3713, 112
    %v4031 = vpop.permute.xlu0 %4030
    %4032 = vrot.lane.b32.xlu0 %v3713, 80
    %v4033 = vpop.permute.xlu0 %4032
    %v4035 = vsel %vm260, %v4031, 0
    %v4038 = vsel %vm260, %v4033, 0
    %4040 = vmatprep.subr.bf16.mxu0 0
    %4041 = vmatpush1.bf16.xpose.msra.mxu0 0
    %4042 = vmatprep.subr.bf16.mxu0 0
    %4043 = vmatpush1.bf16.xpose.msra.mxu0 0
    %4044 = vmatprep.subr.bf16.mxu0 0
    %4045 = vmatpush1.bf16.xpose.msra.mxu0 0
    %4046 = vmatprep.subr.bf16.mxu0 0
    %4047 = vmatpush1.bf16.xpose.msra.mxu0 0
    %4048 = vmatprep.subr.bf16.mxu0 0
    %4049 = vmatpush1.bf16.xpose.msra.mxu0 0
    %4050 = vmatprep.subr.bf16.mxu0 0
    %4051 = vmatpush1.bf16.xpose.msra.mxu0 0
    %4052 = vmatprep.subr.bf16.mxu0 0
    %4053 = vmatpush1.bf16.xpose.msra.mxu0 0
    %4054 = vmatprep.subr.bf16.mxu0 0
    %4055 = vmatpush1.bf16.xpose.msra.mxu0 %v4038
    %4056 = vmatprep.subr.bf16.mxu0 0
    %4057 = vmatpush2.bf16.xpose.msra.mxu0 0
    %4058 = vmatprep.subr.bf16.mxu0 0
    %4059 = vmatpush2.bf16.xpose.msra.mxu0 0
    %4060 = vmatprep.subr.bf16.mxu0 0
    %4061 = vmatpush2.bf16.xpose.msra.mxu0 0
    %4062 = vmatprep.subr.bf16.mxu0 0
    %4063 = vmatpush2.bf16.xpose.msra.mxu0 0
    %4064 = vmatprep.subr.bf16.mxu0 0
    %4065 = vmatpush2.bf16.xpose.msra.mxu0 0
    %4066 = vmatprep.subr.bf16.mxu0 0
    %4067 = vmatpush2.bf16.xpose.msra.mxu0 0
    %4068 = vmatprep.subr.bf16.mxu0 0
    %4069 = vmatpush2.bf16.xpose.msra.mxu0 0
    %4070 = vmatprep.subr.bf16.mxu0 0
    %4071 = vmatpush2.bf16.xpose.msra.mxu0 0
    %4072 = vmatprep.mubr.bf16.mxu0 0
    %4073 = vmatmul.mubr.bf16.gmra.mxu0 %v4035
    %v4074 = vpop.f32.mrf.mxu0
    %v4075 = vadd.f32 0.0, %v4074
    %v4076 = vpop.f32.mrf.mxu0
    %v4077 = vpop.f32.mrf.mxu0
    %v4078 = vpop.f32.mrf.mxu0
    %4079 = vdwg.mxu0
    %v4080 = vsel %vm260, %v4075, -inf
    %4081 = vmax.xlane.f32.xlu0 %v4080
    %v4082 = vpop.xlane.xlu0 %4081
    %v4083 = vsub.f32 %v4075, %v4082
    %v4084 = vmul.f32 %v4083, 1.442695
    %v4085 = vpow.pop %v4084
    %v4086 = vsel %vm260, %v4085, 0.0
    %4087 = vadd.xlane.f32.xlu0 %v4086
    %v4088 = vpop.xlane.xlu0 %4087
    %v4089 = vrcp.pop %v4088
    %v4090 = vmul.f32 %v4085, %v4089
    %v4091 = vpack.c.bf16 %v4090, %v4090
    %4092 = vrot.lane.b32.xlu0 %v3713, 48
    %v4093 = vpop.permute.xlu0 %4092
    %v4095 = vsel %vm260, %v4091, 0
    %v4098 = vsel %vm324, %v4093, 0
    %4100 = vmatprep.subr.bf16.mxu0 0
    %4101 = vmatpush1.bf16.msra.mxu0 0
    %4102 = vmatprep.subr.bf16.mxu0 0
    %4103 = vmatpush1.bf16.msra.mxu0 0
    %4104 = vmatprep.subr.bf16.mxu0 0
    %4105 = vmatpush1.bf16.msra.mxu0 0
    %4106 = vmatprep.subr.bf16.mxu0 0
    %4107 = vmatpush1.bf16.msra.mxu0 0
    %4108 = vmatprep.subr.bf16.mxu0 0
    %4109 = vmatpush1.bf16.msra.mxu0 0
    %4110 = vmatprep.subr.bf16.mxu0 0
    %4111 = vmatpush1.bf16.msra.mxu0 0
    %4112 = vmatprep.subr.bf16.mxu0 0
    %4113 = vmatpush1.bf16.msra.mxu0 0
    %4114 = vmatprep.subr.bf16.mxu0 0
    %4115 = vmatpush1.bf16.msra.mxu0 %v4098
    %4116 = vmatprep.subr.bf16.mxu0 0
    %4117 = vmatpush2.bf16.msra.mxu0 0
    %4118 = vmatprep.subr.bf16.mxu0 0
    %4119 = vmatpush2.bf16.msra.mxu0 0
    %4120 = vmatprep.subr.bf16.mxu0 0
    %4121 = vmatpush2.bf16.msra.mxu0 0
    %4122 = vmatprep.subr.bf16.mxu0 0
    %4123 = vmatpush2.bf16.msra.mxu0 0
    %4124 = vmatprep.subr.bf16.mxu0 0
    %4125 = vmatpush2.bf16.msra.mxu0 0
    %4126 = vmatprep.subr.bf16.mxu0 0
    %4127 = vmatpush2.bf16.msra.mxu0 0
    %4128 = vmatprep.subr.bf16.mxu0 0
    %4129 = vmatpush2.bf16.msra.mxu0 0
    %4130 = vmatprep.subr.bf16.mxu0 0
    %4131 = vmatpush2.bf16.msra.mxu0 0
    %4132 = vmatprep.mubr.bf16.mxu0 0
    %4133 = vmatmul.mubr.bf16.gmra.mxu0 %v4095
    %v4134 = vpop.f32.mrf.mxu0
    %v4135 = vadd.f32 0.0, %v4134
    %v4136 = vpop.f32.mrf.mxu0
    %v4137 = vpop.f32.mrf.mxu0
    %v4138 = vpop.f32.mrf.mxu0
    %4139 = vdwg.mxu0
    %v4140 = vpack.c.bf16 %v4135, %v4135
    %s4141 = scalar_lea.vmem %s35, 8
    %v4142 = vld [vmem:[%s4141] sm:$0xf]
    %v4144 = vsel %vm260, %v4140, 0
    %v4147 = vsel %vm324, %v4142, 0
    %4149 = vmatprep.subr.bf16.mxu0 0
    %4150 = vmatpush1.bf16.msra.mxu0 0
    %4151 = vmatprep.subr.bf16.mxu0 0
    %4152 = vmatpush1.bf16.msra.mxu0 0
    %4153 = vmatprep.subr.bf16.mxu0 0
    %4154 = vmatpush1.bf16.msra.mxu0 0
    %4155 = vmatprep.subr.bf16.mxu0 0
    %4156 = vmatpush1.bf16.msra.mxu0 0
    %4157 = vmatprep.subr.bf16.mxu0 0
    %4158 = vmatpush1.bf16.msra.mxu0 0
    %4159 = vmatprep.subr.bf16.mxu0 0
    %4160 = vmatpush1.bf16.msra.mxu0 0
    %4161 = vmatprep.subr.bf16.mxu0 0
    %4162 = vmatpush1.bf16.msra.mxu0 0
    %4163 = vmatprep.subr.bf16.mxu0 0
    %4164 = vmatpush1.bf16.msra.mxu0 %v4147
    %4165 = vmatprep.subr.bf16.mxu0 0
    %4166 = vmatpush2.bf16.msra.mxu0 0
    %4167 = vmatprep.subr.bf16.mxu0 0
    %4168 = vmatpush2.bf16.msra.mxu0 0
    %4169 = vmatprep.subr.bf16.mxu0 0
    %4170 = vmatpush2.bf16.msra.mxu0 0
    %4171 = vmatprep.subr.bf16.mxu0 0
    %4172 = vmatpush2.bf16.msra.mxu0 0
    %4173 = vmatprep.subr.bf16.mxu0 0
    %4174 = vmatpush2.bf16.msra.mxu0 0
    %4175 = vmatprep.subr.bf16.mxu0 0
    %4176 = vmatpush2.bf16.msra.mxu0 0
    %4177 = vmatprep.subr.bf16.mxu0 0
    %4178 = vmatpush2.bf16.msra.mxu0 0
    %4179 = vmatprep.subr.bf16.mxu0 0
    %4180 = vmatpush2.bf16.msra.mxu0 0
    %4181 = vmatprep.mubr.bf16.mxu0 0
    %4182 = vmatmul.mubr.bf16.gmra.mxu0 %v4144
    %v4183 = vpop.f32.mrf.mxu0
    %v4184 = vadd.f32 0.0, %v4183
    %v4185 = vpop.f32.mrf.mxu0
    %v4186 = vpop.f32.mrf.mxu0
    %v4187 = vpop.f32.mrf.mxu0
    %4188 = vdwg.mxu0
    %v4189 = vadd.f32 %v4025, %v4184
    %4190 = vrot.lane.b32.xlu0 %v3713, 104
    %v4191 = vpop.permute.xlu0 %4190
    %4192 = vrot.lane.b32.xlu0 %v3713, 72
    %v4193 = vpop.permute.xlu0 %4192
    %v4195 = vsel %vm260, %v4191, 0
    %v4198 = vsel %vm260, %v4193, 0
    %4200 = vmatprep.subr.bf16.mxu0 0
    %4201 = vmatpush1.bf16.xpose.msra.mxu0 0
    %4202 = vmatprep.subr.bf16.mxu0 0
    %4203 = vmatpush1.bf16.xpose.msra.mxu0 0
    %4204 = vmatprep.subr.bf16.mxu0 0
    %4205 = vmatpush1.bf16.xpose.msra.mxu0 0
    %4206 = vmatprep.subr.bf16.mxu0 0
    %4207 = vmatpush1.bf16.xpose.msra.mxu0 0
    %4208 = vmatprep.subr.bf16.mxu0 0
    %4209 = vmatpush1.bf16.xpose.msra.mxu0 0
    %4210 = vmatprep.subr.bf16.mxu0 0
    %4211 = vmatpush1.bf16.xpose.msra.mxu0 0
    %4212 = vmatprep.subr.bf16.mxu0 0
    %4213 = vmatpush1.bf16.xpose.msra.mxu0 0
    %4214 = vmatprep.subr.bf16.mxu0 0
    %4215 = vmatpush1.bf16.xpose.msra.mxu0 %v4198
    %4216 = vmatprep.subr.bf16.mxu0 0
    %4217 = vmatpush2.bf16.xpose.msra.mxu0 0
    %4218 = vmatprep.subr.bf16.mxu0 0
    %4219 = vmatpush2.bf16.xpose.msra.mxu0 0
    %4220 = vmatprep.subr.bf16.mxu0 0
    %4221 = vmatpush2.bf16.xpose.msra.mxu0 0
    %4222 = vmatprep.subr.bf16.mxu0 0
    %4223 = vmatpush2.bf16.xpose.msra.mxu0 0
    %4224 = vmatprep.subr.bf16.mxu0 0
    %4225 = vmatpush2.bf16.xpose.msra.mxu0 0
    %4226 = vmatprep.subr.bf16.mxu0 0
    %4227 = vmatpush2.bf16.xpose.msra.mxu0 0
    %4228 = vmatprep.subr.bf16.mxu0 0
    %4229 = vmatpush2.bf16.xpose.msra.mxu0 0
    %4230 = vmatprep.subr.bf16.mxu0 0
    %4231 = vmatpush2.bf16.xpose.msra.mxu0 0
    %4232 = vmatprep.mubr.bf16.mxu0 0
    %4233 = vmatmul.mubr.bf16.gmra.mxu0 %v4195
    %v4234 = vpop.f32.mrf.mxu0
    %v4235 = vadd.f32 0.0, %v4234
    %v4236 = vpop.f32.mrf.mxu0
    %v4237 = vpop.f32.mrf.mxu0
    %v4238 = vpop.f32.mrf.mxu0
    %4239 = vdwg.mxu0
    %v4240 = vsel %vm260, %v4235, -inf
    %4241 = vmax.xlane.f32.xlu0 %v4240
    %v4242 = vpop.xlane.xlu0 %4241
    %v4243 = vsub.f32 %v4235, %v4242
    %v4244 = vmul.f32 %v4243, 1.442695
    %v4245 = vpow.pop %v4244
    %v4246 = vsel %vm260, %v4245, 0.0
    %4247 = vadd.xlane.f32.xlu0 %v4246
    %v4248 = vpop.xlane.xlu0 %4247
    %v4249 = vrcp.pop %v4248
    %v4250 = vmul.f32 %v4245, %v4249
    %v4251 = vpack.c.bf16 %v4250, %v4250
    %4252 = vrot.lane.b32.xlu0 %v3713, 40
    %v4253 = vpop.permute.xlu0 %4252
    %v4255 = vsel %vm260, %v4251, 0
    %v4258 = vsel %vm324, %v4253, 0
    %4260 = vmatprep.subr.bf16.mxu0 0
    %4261 = vmatpush1.bf16.msra.mxu0 0
    %4262 = vmatprep.subr.bf16.mxu0 0
    %4263 = vmatpush1.bf16.msra.mxu0 0
    %4264 = vmatprep.subr.bf16.mxu0 0
    %4265 = vmatpush1.bf16.msra.mxu0 0
    %4266 = vmatprep.subr.bf16.mxu0 0
    %4267 = vmatpush1.bf16.msra.mxu0 0
    %4268 = vmatprep.subr.bf16.mxu0 0
    %4269 = vmatpush1.bf16.msra.mxu0 0
    %4270 = vmatprep.subr.bf16.mxu0 0
    %4271 = vmatpush1.bf16.msra.mxu0 0
    %4272 = vmatprep.subr.bf16.mxu0 0
    %4273 = vmatpush1.bf16.msra.mxu0 0
    %4274 = vmatprep.subr.bf16.mxu0 0
    %4275 = vmatpush1.bf16.msra.mxu0 %v4258
    %4276 = vmatprep.subr.bf16.mxu0 0
    %4277 = vmatpush2.bf16.msra.mxu0 0
    %4278 = vmatprep.subr.bf16.mxu0 0
    %4279 = vmatpush2.bf16.msra.mxu0 0
    %4280 = vmatprep.subr.bf16.mxu0 0
    %4281 = vmatpush2.bf16.msra.mxu0 0
    %4282 = vmatprep.subr.bf16.mxu0 0
    %4283 = vmatpush2.bf16.msra.mxu0 0
    %4284 = vmatprep.subr.bf16.mxu0 0
    %4285 = vmatpush2.bf16.msra.mxu0 0
    %4286 = vmatprep.subr.bf16.mxu0 0
    %4287 = vmatpush2.bf16.msra.mxu0 0
    %4288 = vmatprep.subr.bf16.mxu0 0
    %4289 = vmatpush2.bf16.msra.mxu0 0
    %4290 = vmatprep.subr.bf16.mxu0 0
    %4291 = vmatpush2.bf16.msra.mxu0 0
    %4292 = vmatprep.mubr.bf16.mxu0 0
    %4293 = vmatmul.mubr.bf16.gmra.mxu0 %v4255
    %v4294 = vpop.f32.mrf.mxu0
    %v4295 = vadd.f32 0.0, %v4294
    %v4296 = vpop.f32.mrf.mxu0
    %v4297 = vpop.f32.mrf.mxu0
    %v4298 = vpop.f32.mrf.mxu0
    %4299 = vdwg.mxu0
    %v4300 = vpack.c.bf16 %v4295, %v4295
    %s4301 = scalar_lea.vmem %s35, 12
    %v4302 = vld [vmem:[%s4301] sm:$0xf]
    %v4304 = vsel %vm260, %v4300, 0
    %v4307 = vsel %vm324, %v4302, 0
    %4309 = vmatprep.subr.bf16.mxu0 0
    %4310 = vmatpush1.bf16.msra.mxu0 0
    %4311 = vmatprep.subr.bf16.mxu0 0
    %4312 = vmatpush1.bf16.msra.mxu0 0
    %4313 = vmatprep.subr.bf16.mxu0 0
    %4314 = vmatpush1.bf16.msra.mxu0 0
    %4315 = vmatprep.subr.bf16.mxu0 0
    %4316 = vmatpush1.bf16.msra.mxu0 0
    %4317 = vmatprep.subr.bf16.mxu0 0
    %4318 = vmatpush1.bf16.msra.mxu0 0
    %4319 = vmatprep.subr.bf16.mxu0 0
    %4320 = vmatpush1.bf16.msra.mxu0 0
    %4321 = vmatprep.subr.bf16.mxu0 0
    %4322 = vmatpush1.bf16.msra.mxu0 0
    %4323 = vmatprep.subr.bf16.mxu0 0
    %4324 = vmatpush1.bf16.msra.mxu0 %v4307
    %4325 = vmatprep.subr.bf16.mxu0 0
    %4326 = vmatpush2.bf16.msra.mxu0 0
    %4327 = vmatprep.subr.bf16.mxu0 0
    %4328 = vmatpush2.bf16.msra.mxu0 0
    %4329 = vmatprep.subr.bf16.mxu0 0
    %4330 = vmatpush2.bf16.msra.mxu0 0
    %4331 = vmatprep.subr.bf16.mxu0 0
    %4332 = vmatpush2.bf16.msra.mxu0 0
    %4333 = vmatprep.subr.bf16.mxu0 0
    %4334 = vmatpush2.bf16.msra.mxu0 0
    %4335 = vmatprep.subr.bf16.mxu0 0
    %4336 = vmatpush2.bf16.msra.mxu0 0
    %4337 = vmatprep.subr.bf16.mxu0 0
    %4338 = vmatpush2.bf16.msra.mxu0 0
    %4339 = vmatprep.subr.bf16.mxu0 0
    %4340 = vmatpush2.bf16.msra.mxu0 0
    %4341 = vmatprep.mubr.bf16.mxu0 0
    %4342 = vmatmul.mubr.bf16.gmra.mxu0 %v4304
    %v4343 = vpop.f32.mrf.mxu0
    %v4344 = vadd.f32 0.0, %v4343
    %v4345 = vpop.f32.mrf.mxu0
    %v4346 = vpop.f32.mrf.mxu0
    %v4347 = vpop.f32.mrf.mxu0
    %4348 = vdwg.mxu0
    %v4349 = vadd.f32 %v4189, %v4344
    %v4350 = vrot.slane %v3713, 4
    %4351 = vrot.lane.b32.xlu0 %v4350, 96
    %v4352 = vpop.permute.xlu0 %4351
    %v4354 = vsel %vm260, %v4350, 0
    %v4357 = vsel %vm260, %v4352, 0
    %4359 = vmatprep.subr.bf16.mxu0 0
    %4360 = vmatpush1.bf16.xpose.msra.mxu0 0
    %4361 = vmatprep.subr.bf16.mxu0 0
    %4362 = vmatpush1.bf16.xpose.msra.mxu0 0
    %4363 = vmatprep.subr.bf16.mxu0 0
    %4364 = vmatpush1.bf16.xpose.msra.mxu0 0
    %4365 = vmatprep.subr.bf16.mxu0 0
    %4366 = vmatpush1.bf16.xpose.msra.mxu0 0
    %4367 = vmatprep.subr.bf16.mxu0 0
    %4368 = vmatpush1.bf16.xpose.msra.mxu0 0
    %4369 = vmatprep.subr.bf16.mxu0 0
    %4370 = vmatpush1.bf16.xpose.msra.mxu0 0
    %4371 = vmatprep.subr.bf16.mxu0 0
    %4372 = vmatpush1.bf16.xpose.msra.mxu0 0
    %4373 = vmatprep.subr.bf16.mxu0 0
    %4374 = vmatpush1.bf16.xpose.msra.mxu0 %v4357
    %4375 = vmatprep.subr.bf16.mxu0 0
    %4376 = vmatpush2.bf16.xpose.msra.mxu0 0
    %4377 = vmatprep.subr.bf16.mxu0 0
    %4378 = vmatpush2.bf16.xpose.msra.mxu0 0
    %4379 = vmatprep.subr.bf16.mxu0 0
    %4380 = vmatpush2.bf16.xpose.msra.mxu0 0
    %4381 = vmatprep.subr.bf16.mxu0 0
    %4382 = vmatpush2.bf16.xpose.msra.mxu0 0
    %4383 = vmatprep.subr.bf16.mxu0 0
    %4384 = vmatpush2.bf16.xpose.msra.mxu0 0
    %4385 = vmatprep.subr.bf16.mxu0 0
    %4386 = vmatpush2.bf16.xpose.msra.mxu0 0
    %4387 = vmatprep.subr.bf16.mxu0 0
    %4388 = vmatpush2.bf16.xpose.msra.mxu0 0
    %4389 = vmatprep.subr.bf16.mxu0 0
    %4390 = vmatpush2.bf16.xpose.msra.mxu0 0
    %4391 = vmatprep.mubr.bf16.mxu0 0
    %4392 = vmatmul.mubr.bf16.gmra.mxu0 %v4354
    %v4393 = vpop.f32.mrf.mxu0
    %v4394 = vadd.f32 0.0, %v4393
    %v4395 = vpop.f32.mrf.mxu0
    %v4396 = vpop.f32.mrf.mxu0
    %v4397 = vpop.f32.mrf.mxu0
    %4398 = vdwg.mxu0
    %v4399 = vsel %vm260, %v4394, -inf
    %4400 = vmax.xlane.f32.xlu0 %v4399
    %v4401 = vpop.xlane.xlu0 %4400
    %v4402 = vsub.f32 %v4394, %v4401
    %v4403 = vmul.f32 %v4402, 1.442695
    %v4404 = vpow.pop %v4403
    %v4405 = vsel %vm260, %v4404, 0.0
    %4406 = vadd.xlane.f32.xlu0 %v4405
    %v4407 = vpop.xlane.xlu0 %4406
    %v4408 = vrcp.pop %v4407
    %v4409 = vmul.f32 %v4404, %v4408
    %v4410 = vpack.c.bf16 %v4409, %v4409
    %4411 = vrot.lane.b32.xlu0 %v4350, 64
    %v4412 = vpop.permute.xlu0 %4411
    %v4414 = vsel %vm260, %v4410, 0
    %v4417 = vsel %vm324, %v4412, 0
    %4419 = vmatprep.subr.bf16.mxu0 0
    %4420 = vmatpush1.bf16.msra.mxu0 0
    %4421 = vmatprep.subr.bf16.mxu0 0
    %4422 = vmatpush1.bf16.msra.mxu0 0
    %4423 = vmatprep.subr.bf16.mxu0 0
    %4424 = vmatpush1.bf16.msra.mxu0 0
    %4425 = vmatprep.subr.bf16.mxu0 0
    %4426 = vmatpush1.bf16.msra.mxu0 0
    %4427 = vmatprep.subr.bf16.mxu0 0
    %4428 = vmatpush1.bf16.msra.mxu0 0
    %4429 = vmatprep.subr.bf16.mxu0 0
    %4430 = vmatpush1.bf16.msra.mxu0 0
    %4431 = vmatprep.subr.bf16.mxu0 0
    %4432 = vmatpush1.bf16.msra.mxu0 0
    %4433 = vmatprep.subr.bf16.mxu0 0
    %4434 = vmatpush1.bf16.msra.mxu0 %v4417
    %4435 = vmatprep.subr.bf16.mxu0 0
    %4436 = vmatpush2.bf16.msra.mxu0 0
    %4437 = vmatprep.subr.bf16.mxu0 0
    %4438 = vmatpush2.bf16.msra.mxu0 0
    %4439 = vmatprep.subr.bf16.mxu0 0
    %4440 = vmatpush2.bf16.msra.mxu0 0
    %4441 = vmatprep.subr.bf16.mxu0 0
    %4442 = vmatpush2.bf16.msra.mxu0 0
    %4443 = vmatprep.subr.bf16.mxu0 0
    %4444 = vmatpush2.bf16.msra.mxu0 0
    %4445 = vmatprep.subr.bf16.mxu0 0
    %4446 = vmatpush2.bf16.msra.mxu0 0
    %4447 = vmatprep.subr.bf16.mxu0 0
    %4448 = vmatpush2.bf16.msra.mxu0 0
    %4449 = vmatprep.subr.bf16.mxu0 0
    %4450 = vmatpush2.bf16.msra.mxu0 0
    %4451 = vmatprep.mubr.bf16.mxu0 0
    %4452 = vmatmul.mubr.bf16.gmra.mxu0 %v4414
    %v4453 = vpop.f32.mrf.mxu0
    %v4454 = vadd.f32 0.0, %v4453
    %v4455 = vpop.f32.mrf.mxu0
    %v4456 = vpop.f32.mrf.mxu0
    %v4457 = vpop.f32.mrf.mxu0
    %4458 = vdwg.mxu0
    %v4459 = vpack.c.bf16 %v4454, %v4454
    %4460 = vrot.lane.b32.xlu0 %v4350, 120
    %v4461 = vpop.permute.xlu0 %4460
    %4462 = vrot.lane.b32.xlu0 %v4350, 88
    %v4463 = vpop.permute.xlu0 %4462
    %v4465 = vsel %vm260, %v4461, 0
    %v4468 = vsel %vm260, %v4463, 0
    %4470 = vmatprep.subr.bf16.mxu0 0
    %4471 = vmatpush1.bf16.xpose.msra.mxu0 0
    %4472 = vmatprep.subr.bf16.mxu0 0
    %4473 = vmatpush1.bf16.xpose.msra.mxu0 0
    %4474 = vmatprep.subr.bf16.mxu0 0
    %4475 = vmatpush1.bf16.xpose.msra.mxu0 0
    %4476 = vmatprep.subr.bf16.mxu0 0
    %4477 = vmatpush1.bf16.xpose.msra.mxu0 0
    %4478 = vmatprep.subr.bf16.mxu0 0
    %4479 = vmatpush1.bf16.xpose.msra.mxu0 0
    %4480 = vmatprep.subr.bf16.mxu0 0
    %4481 = vmatpush1.bf16.xpose.msra.mxu0 0
    %4482 = vmatprep.subr.bf16.mxu0 0
    %4483 = vmatpush1.bf16.xpose.msra.mxu0 0
    %4484 = vmatprep.subr.bf16.mxu0 0
    %4485 = vmatpush1.bf16.xpose.msra.mxu0 %v4468
    %4486 = vmatprep.subr.bf16.mxu0 0
    %4487 = vmatpush2.bf16.xpose.msra.mxu0 0
    %4488 = vmatprep.subr.bf16.mxu0 0
    %4489 = vmatpush2.bf16.xpose.msra.mxu0 0
    %4490 = vmatprep.subr.bf16.mxu0 0
    %4491 = vmatpush2.bf16.xpose.msra.mxu0 0
    %4492 = vmatprep.subr.bf16.mxu0 0
    %4493 = vmatpush2.bf16.xpose.msra.mxu0 0
    %4494 = vmatprep.subr.bf16.mxu0 0
    %4495 = vmatpush2.bf16.xpose.msra.mxu0 0
    %4496 = vmatprep.subr.bf16.mxu0 0
    %4497 = vmatpush2.bf16.xpose.msra.mxu0 0
    %4498 = vmatprep.subr.bf16.mxu0 0
    %4499 = vmatpush2.bf16.xpose.msra.mxu0 0
    %4500 = vmatprep.subr.bf16.mxu0 0
    %4501 = vmatpush2.bf16.xpose.msra.mxu0 0
    %4502 = vmatprep.mubr.bf16.mxu0 0
    %4503 = vmatmul.mubr.bf16.gmra.mxu0 %v4465
    %v4504 = vpop.f32.mrf.mxu0
    %v4505 = vadd.f32 0.0, %v4504
    %v4506 = vpop.f32.mrf.mxu0
    %v4507 = vpop.f32.mrf.mxu0
    %v4508 = vpop.f32.mrf.mxu0
    %4509 = vdwg.mxu0
    %v4510 = vsel %vm260, %v4505, -inf
    %4511 = vmax.xlane.f32.xlu0 %v4510
    %v4512 = vpop.xlane.xlu0 %4511
    %v4513 = vsub.f32 %v4505, %v4512
    %v4514 = vmul.f32 %v4513, 1.442695
    %v4515 = vpow.pop %v4514
    %v4516 = vsel %vm260, %v4515, 0.0
    %4517 = vadd.xlane.f32.xlu0 %v4516
    %v4518 = vpop.xlane.xlu0 %4517
    %v4519 = vrcp.pop %v4518
    %v4520 = vmul.f32 %v4515, %v4519
    %v4521 = vpack.c.bf16 %v4520, %v4520
    %4522 = vrot.lane.b32.xlu0 %v4350, 56
    %v4523 = vpop.permute.xlu0 %4522
    %v4525 = vsel %vm260, %v4521, 0
    %v4528 = vsel %vm324, %v4523, 0
    %4530 = vmatprep.subr.bf16.mxu0 0
    %4531 = vmatpush1.bf16.msra.mxu0 0
    %4532 = vmatprep.subr.bf16.mxu0 0
    %4533 = vmatpush1.bf16.msra.mxu0 0
    %4534 = vmatprep.subr.bf16.mxu0 0
    %4535 = vmatpush1.bf16.msra.mxu0 0
    %4536 = vmatprep.subr.bf16.mxu0 0
    %4537 = vmatpush1.bf16.msra.mxu0 0
    %4538 = vmatprep.subr.bf16.mxu0 0
    %4539 = vmatpush1.bf16.msra.mxu0 0
    %4540 = vmatprep.subr.bf16.mxu0 0
    %4541 = vmatpush1.bf16.msra.mxu0 0
    %4542 = vmatprep.subr.bf16.mxu0 0
    %4543 = vmatpush1.bf16.msra.mxu0 0
    %4544 = vmatprep.subr.bf16.mxu0 0
    %4545 = vmatpush1.bf16.msra.mxu0 %v4528
    %4546 = vmatprep.subr.bf16.mxu0 0
    %4547 = vmatpush2.bf16.msra.mxu0 0
    %4548 = vmatprep.subr.bf16.mxu0 0
    %4549 = vmatpush2.bf16.msra.mxu0 0
    %4550 = vmatprep.subr.bf16.mxu0 0
    %4551 = vmatpush2.bf16.msra.mxu0 0
    %4552 = vmatprep.subr.bf16.mxu0 0
    %4553 = vmatpush2.bf16.msra.mxu0 0
    %4554 = vmatprep.subr.bf16.mxu0 0
    %4555 = vmatpush2.bf16.msra.mxu0 0
    %4556 = vmatprep.subr.bf16.mxu0 0
    %4557 = vmatpush2.bf16.msra.mxu0 0
    %4558 = vmatprep.subr.bf16.mxu0 0
    %4559 = vmatpush2.bf16.msra.mxu0 0
    %4560 = vmatprep.subr.bf16.mxu0 0
    %4561 = vmatpush2.bf16.msra.mxu0 0
    %4562 = vmatprep.mubr.bf16.mxu0 0
    %4563 = vmatmul.mubr.bf16.gmra.mxu0 %v4525
    %v4564 = vpop.f32.mrf.mxu0
    %v4565 = vadd.f32 0.0, %v4564
    %v4566 = vpop.f32.mrf.mxu0
    %v4567 = vpop.f32.mrf.mxu0
    %v4568 = vpop.f32.mrf.mxu0
    %4569 = vdwg.mxu0
    %v4570 = vpack.c.bf16 %v4565, %v4565
    %v4572 = vsel %vm260, %v4570, 0
    %4574 = vmatprep.subr.bf16.mxu0 0
    %4575 = vmatpush1.bf16.msra.mxu0 0
    %4576 = vmatprep.subr.bf16.mxu0 0
    %4577 = vmatpush1.bf16.msra.mxu0 0
    %4578 = vmatprep.subr.bf16.mxu0 0
    %4579 = vmatpush1.bf16.msra.mxu0 0
    %4580 = vmatprep.subr.bf16.mxu0 0
    %4581 = vmatpush1.bf16.msra.mxu0 0
    %4582 = vmatprep.subr.bf16.mxu0 0
    %4583 = vmatpush1.bf16.msra.mxu0 0
    %4584 = vmatprep.subr.bf16.mxu0 0
    %4585 = vmatpush1.bf16.msra.mxu0 0
    %4586 = vmatprep.subr.bf16.mxu0 0
    %4587 = vmatpush1.bf16.msra.mxu0 0
    %4588 = vmatprep.subr.bf16.mxu0 0
    %4589 = vmatpush1.bf16.msra.mxu0 %v3942
    %4590 = vmatprep.subr.bf16.mxu0 0
    %4591 = vmatpush2.bf16.msra.mxu0 0
    %4592 = vmatprep.subr.bf16.mxu0 0
    %4593 = vmatpush2.bf16.msra.mxu0 0
    %4594 = vmatprep.subr.bf16.mxu0 0
    %4595 = vmatpush2.bf16.msra.mxu0 0
    %4596 = vmatprep.subr.bf16.mxu0 0
    %4597 = vmatpush2.bf16.msra.mxu0 0
    %4598 = vmatprep.subr.bf16.mxu0 0
    %4599 = vmatpush2.bf16.msra.mxu0 0
    %4600 = vmatprep.subr.bf16.mxu0 0
    %4601 = vmatpush2.bf16.msra.mxu0 0
    %4602 = vmatprep.subr.bf16.mxu0 0
    %4603 = vmatpush2.bf16.msra.mxu0 0
    %4604 = vmatprep.subr.bf16.mxu0 0
    %4605 = vmatpush2.bf16.msra.mxu0 0
    %4606 = vmatprep.mubr.bf16.mxu0 0
    %4607 = vmatmul.mubr.bf16.gmra.mxu0 %v4572
    %v4608 = vpop.f32.mrf.mxu0
    %v4609 = vadd.f32 0.0, %v4608
    %v4610 = vpop.f32.mrf.mxu0
    %v4611 = vpop.f32.mrf.mxu0
    %v4612 = vpop.f32.mrf.mxu0
    %4613 = vdwg.mxu0
    %v4615 = vsel %vm260, %v4459, 0
    %4617 = vmatprep.subr.bf16.mxu0 0
    %4618 = vmatpush1.bf16.msra.mxu0 0
    %4619 = vmatprep.subr.bf16.mxu0 0
    %4620 = vmatpush1.bf16.msra.mxu0 0
    %4621 = vmatprep.subr.bf16.mxu0 0
    %4622 = vmatpush1.bf16.msra.mxu0 0
    %4623 = vmatprep.subr.bf16.mxu0 0
    %4624 = vmatpush1.bf16.msra.mxu0 0
    %4625 = vmatprep.subr.bf16.mxu0 0
    %4626 = vmatpush1.bf16.msra.mxu0 0
    %4627 = vmatprep.subr.bf16.mxu0 0
    %4628 = vmatpush1.bf16.msra.mxu0 0
    %4629 = vmatprep.subr.bf16.mxu0 0
    %4630 = vmatpush1.bf16.msra.mxu0 0
    %4631 = vmatprep.subr.bf16.mxu0 0
    %4632 = vmatpush1.bf16.msra.mxu0 %v3988
    %4633 = vmatprep.subr.bf16.mxu0 0
    %4634 = vmatpush2.bf16.msra.mxu0 0
    %4635 = vmatprep.subr.bf16.mxu0 0
    %4636 = vmatpush2.bf16.msra.mxu0 0
    %4637 = vmatprep.subr.bf16.mxu0 0
    %4638 = vmatpush2.bf16.msra.mxu0 0
    %4639 = vmatprep.subr.bf16.mxu0 0
    %4640 = vmatpush2.bf16.msra.mxu0 0
    %4641 = vmatprep.subr.bf16.mxu0 0
    %4642 = vmatpush2.bf16.msra.mxu0 0
    %4643 = vmatprep.subr.bf16.mxu0 0
    %4644 = vmatpush2.bf16.msra.mxu0 0
    %4645 = vmatprep.subr.bf16.mxu0 0
    %4646 = vmatpush2.bf16.msra.mxu0 0
    %4647 = vmatprep.subr.bf16.mxu0 0
    %4648 = vmatpush2.bf16.msra.mxu0 0
    %4649 = vmatprep.mubr.bf16.mxu0 0
    %4650 = vmatmul.mubr.bf16.gmra.mxu0 %v4615
    %v4651 = vpop.f32.mrf.mxu0
    %v4652 = vadd.f32 %v4609, %v4651
    %v4653 = vpop.f32.mrf.mxu0
    %v4654 = vpop.f32.mrf.mxu0
    %v4655 = vpop.f32.mrf.mxu0
    %4656 = vdwg.mxu0
    %4657 = vrot.lane.b32.xlu0 %v4350, 112
    %v4658 = vpop.permute.xlu0 %4657
    %4659 = vrot.lane.b32.xlu0 %v4350, 80
    %v4660 = vpop.permute.xlu0 %4659
    %v4662 = vsel %vm260, %v4658, 0
    %v4665 = vsel %vm260, %v4660, 0
    %4667 = vmatprep.subr.bf16.mxu0 0
    %4668 = vmatpush1.bf16.xpose.msra.mxu0 0
    %4669 = vmatprep.subr.bf16.mxu0 0
    %4670 = vmatpush1.bf16.xpose.msra.mxu0 0
    %4671 = vmatprep.subr.bf16.mxu0 0
    %4672 = vmatpush1.bf16.xpose.msra.mxu0 0
    %4673 = vmatprep.subr.bf16.mxu0 0
    %4674 = vmatpush1.bf16.xpose.msra.mxu0 0
    %4675 = vmatprep.subr.bf16.mxu0 0
    %4676 = vmatpush1.bf16.xpose.msra.mxu0 0
    %4677 = vmatprep.subr.bf16.mxu0 0
    %4678 = vmatpush1.bf16.xpose.msra.mxu0 0
    %4679 = vmatprep.subr.bf16.mxu0 0
    %4680 = vmatpush1.bf16.xpose.msra.mxu0 0
    %4681 = vmatprep.subr.bf16.mxu0 0
    %4682 = vmatpush1.bf16.xpose.msra.mxu0 %v4665
    %4683 = vmatprep.subr.bf16.mxu0 0
    %4684 = vmatpush2.bf16.xpose.msra.mxu0 0
    %4685 = vmatprep.subr.bf16.mxu0 0
    %4686 = vmatpush2.bf16.xpose.msra.mxu0 0
    %4687 = vmatprep.subr.bf16.mxu0 0
    %4688 = vmatpush2.bf16.xpose.msra.mxu0 0
    %4689 = vmatprep.subr.bf16.mxu0 0
    %4690 = vmatpush2.bf16.xpose.msra.mxu0 0
    %4691 = vmatprep.subr.bf16.mxu0 0
    %4692 = vmatpush2.bf16.xpose.msra.mxu0 0
    %4693 = vmatprep.subr.bf16.mxu0 0
    %4694 = vmatpush2.bf16.xpose.msra.mxu0 0
    %4695 = vmatprep.subr.bf16.mxu0 0
    %4696 = vmatpush2.bf16.xpose.msra.mxu0 0
    %4697 = vmatprep.subr.bf16.mxu0 0
    %4698 = vmatpush2.bf16.xpose.msra.mxu0 0
    %4699 = vmatprep.mubr.bf16.mxu0 0
    %4700 = vmatmul.mubr.bf16.gmra.mxu0 %v4662
    %v4701 = vpop.f32.mrf.mxu0
    %v4702 = vadd.f32 0.0, %v4701
    %v4703 = vpop.f32.mrf.mxu0
    %v4704 = vpop.f32.mrf.mxu0
    %v4705 = vpop.f32.mrf.mxu0
    %4706 = vdwg.mxu0
    %v4707 = vsel %vm260, %v4702, -inf
    %4708 = vmax.xlane.f32.xlu0 %v4707
    %v4709 = vpop.xlane.xlu0 %4708
    %v4710 = vsub.f32 %v4702, %v4709
    %v4711 = vmul.f32 %v4710, 1.442695
    %v4712 = vpow.pop %v4711
    %v4713 = vsel %vm260, %v4712, 0.0
    %4714 = vadd.xlane.f32.xlu0 %v4713
    %v4715 = vpop.xlane.xlu0 %4714
    %v4716 = vrcp.pop %v4715
    %v4717 = vmul.f32 %v4712, %v4716
    %v4718 = vpack.c.bf16 %v4717, %v4717
    %4719 = vrot.lane.b32.xlu0 %v4350, 48
    %v4720 = vpop.permute.xlu0 %4719
    %v4722 = vsel %vm260, %v4718, 0
    %v4725 = vsel %vm324, %v4720, 0
    %4727 = vmatprep.subr.bf16.mxu0 0
    %4728 = vmatpush1.bf16.msra.mxu0 0
    %4729 = vmatprep.subr.bf16.mxu0 0
    %4730 = vmatpush1.bf16.msra.mxu0 0
    %4731 = vmatprep.subr.bf16.mxu0 0
    %4732 = vmatpush1.bf16.msra.mxu0 0
    %4733 = vmatprep.subr.bf16.mxu0 0
    %4734 = vmatpush1.bf16.msra.mxu0 0
    %4735 = vmatprep.subr.bf16.mxu0 0
    %4736 = vmatpush1.bf16.msra.mxu0 0
    %4737 = vmatprep.subr.bf16.mxu0 0
    %4738 = vmatpush1.bf16.msra.mxu0 0
    %4739 = vmatprep.subr.bf16.mxu0 0
    %4740 = vmatpush1.bf16.msra.mxu0 0
    %4741 = vmatprep.subr.bf16.mxu0 0
    %4742 = vmatpush1.bf16.msra.mxu0 %v4725
    %4743 = vmatprep.subr.bf16.mxu0 0
    %4744 = vmatpush2.bf16.msra.mxu0 0
    %4745 = vmatprep.subr.bf16.mxu0 0
    %4746 = vmatpush2.bf16.msra.mxu0 0
    %4747 = vmatprep.subr.bf16.mxu0 0
    %4748 = vmatpush2.bf16.msra.mxu0 0
    %4749 = vmatprep.subr.bf16.mxu0 0
    %4750 = vmatpush2.bf16.msra.mxu0 0
    %4751 = vmatprep.subr.bf16.mxu0 0
    %4752 = vmatpush2.bf16.msra.mxu0 0
    %4753 = vmatprep.subr.bf16.mxu0 0
    %4754 = vmatpush2.bf16.msra.mxu0 0
    %4755 = vmatprep.subr.bf16.mxu0 0
    %4756 = vmatpush2.bf16.msra.mxu0 0
    %4757 = vmatprep.subr.bf16.mxu0 0
    %4758 = vmatpush2.bf16.msra.mxu0 0
    %4759 = vmatprep.mubr.bf16.mxu0 0
    %4760 = vmatmul.mubr.bf16.gmra.mxu0 %v4722
    %v4761 = vpop.f32.mrf.mxu0
    %v4762 = vadd.f32 0.0, %v4761
    %v4763 = vpop.f32.mrf.mxu0
    %v4764 = vpop.f32.mrf.mxu0
    %v4765 = vpop.f32.mrf.mxu0
    %4766 = vdwg.mxu0
    %v4767 = vpack.c.bf16 %v4762, %v4762
    %v4769 = vsel %vm260, %v4767, 0
    %4771 = vmatprep.subr.bf16.mxu0 0
    %4772 = vmatpush1.bf16.msra.mxu0 0
    %4773 = vmatprep.subr.bf16.mxu0 0
    %4774 = vmatpush1.bf16.msra.mxu0 0
    %4775 = vmatprep.subr.bf16.mxu0 0
    %4776 = vmatpush1.bf16.msra.mxu0 0
    %4777 = vmatprep.subr.bf16.mxu0 0
    %4778 = vmatpush1.bf16.msra.mxu0 0
    %4779 = vmatprep.subr.bf16.mxu0 0
    %4780 = vmatpush1.bf16.msra.mxu0 0
    %4781 = vmatprep.subr.bf16.mxu0 0
    %4782 = vmatpush1.bf16.msra.mxu0 0
    %4783 = vmatprep.subr.bf16.mxu0 0
    %4784 = vmatpush1.bf16.msra.mxu0 0
    %4785 = vmatprep.subr.bf16.mxu0 0
    %4786 = vmatpush1.bf16.msra.mxu0 %v4147
    %4787 = vmatprep.subr.bf16.mxu0 0
    %4788 = vmatpush2.bf16.msra.mxu0 0
    %4789 = vmatprep.subr.bf16.mxu0 0
    %4790 = vmatpush2.bf16.msra.mxu0 0
    %4791 = vmatprep.subr.bf16.mxu0 0
    %4792 = vmatpush2.bf16.msra.mxu0 0
    %4793 = vmatprep.subr.bf16.mxu0 0
    %4794 = vmatpush2.bf16.msra.mxu0 0
    %4795 = vmatprep.subr.bf16.mxu0 0
    %4796 = vmatpush2.bf16.msra.mxu0 0
    %4797 = vmatprep.subr.bf16.mxu0 0
    %4798 = vmatpush2.bf16.msra.mxu0 0
    %4799 = vmatprep.subr.bf16.mxu0 0
    %4800 = vmatpush2.bf16.msra.mxu0 0
    %4801 = vmatprep.subr.bf16.mxu0 0
    %4802 = vmatpush2.bf16.msra.mxu0 0
    %4803 = vmatprep.mubr.bf16.mxu0 0
    %4804 = vmatmul.mubr.bf16.gmra.mxu0 %v4769
    %v4805 = vpop.f32.mrf.mxu0
    %v4806 = vadd.f32 0.0, %v4805
    %v4807 = vpop.f32.mrf.mxu0
    %v4808 = vpop.f32.mrf.mxu0
    %v4809 = vpop.f32.mrf.mxu0
    %4810 = vdwg.mxu0
    %v4811 = vadd.f32 %v4652, %v4806
    %4812 = vrot.lane.b32.xlu0 %v4350, 104
    %v4813 = vpop.permute.xlu0 %4812
    %4814 = vrot.lane.b32.xlu0 %v4350, 72
    %v4815 = vpop.permute.xlu0 %4814
    %v4817 = vsel %vm260, %v4813, 0
    %v4820 = vsel %vm260, %v4815, 0
    %4822 = vmatprep.subr.bf16.mxu0 0
    %4823 = vmatpush1.bf16.xpose.msra.mxu0 0
    %4824 = vmatprep.subr.bf16.mxu0 0
    %4825 = vmatpush1.bf16.xpose.msra.mxu0 0
    %4826 = vmatprep.subr.bf16.mxu0 0
    %4827 = vmatpush1.bf16.xpose.msra.mxu0 0
    %4828 = vmatprep.subr.bf16.mxu0 0
    %4829 = vmatpush1.bf16.xpose.msra.mxu0 0
    %4830 = vmatprep.subr.bf16.mxu0 0
    %4831 = vmatpush1.bf16.xpose.msra.mxu0 0
    %4832 = vmatprep.subr.bf16.mxu0 0
    %4833 = vmatpush1.bf16.xpose.msra.mxu0 0
    %4834 = vmatprep.subr.bf16.mxu0 0
    %4835 = vmatpush1.bf16.xpose.msra.mxu0 0
    %4836 = vmatprep.subr.bf16.mxu0 0
    %4837 = vmatpush1.bf16.xpose.msra.mxu0 %v4820
    %4838 = vmatprep.subr.bf16.mxu0 0
    %4839 = vmatpush2.bf16.xpose.msra.mxu0 0
    %4840 = vmatprep.subr.bf16.mxu0 0
    %4841 = vmatpush2.bf16.xpose.msra.mxu0 0
    %4842 = vmatprep.subr.bf16.mxu0 0
    %4843 = vmatpush2.bf16.xpose.msra.mxu0 0
    %4844 = vmatprep.subr.bf16.mxu0 0
    %4845 = vmatpush2.bf16.xpose.msra.mxu0 0
    %4846 = vmatprep.subr.bf16.mxu0 0
    %4847 = vmatpush2.bf16.xpose.msra.mxu0 0
    %4848 = vmatprep.subr.bf16.mxu0 0
    %4849 = vmatpush2.bf16.xpose.msra.mxu0 0
    %4850 = vmatprep.subr.bf16.mxu0 0
    %4851 = vmatpush2.bf16.xpose.msra.mxu0 0
    %4852 = vmatprep.subr.bf16.mxu0 0
    %4853 = vmatpush2.bf16.xpose.msra.mxu0 0
    %4854 = vmatprep.mubr.bf16.mxu0 0
    %4855 = vmatmul.mubr.bf16.gmra.mxu0 %v4817
    %v4856 = vpop.f32.mrf.mxu0
    %v4857 = vadd.f32 0.0, %v4856
    %v4858 = vpop.f32.mrf.mxu0
    %v4859 = vpop.f32.mrf.mxu0
    %v4860 = vpop.f32.mrf.mxu0
    %4861 = vdwg.mxu0
    %v4862 = vsel %vm260, %v4857, -inf
    %4863 = vmax.xlane.f32.xlu0 %v4862
    %v4864 = vpop.xlane.xlu0 %4863
    %v4865 = vsub.f32 %v4857, %v4864
    %v4866 = vmul.f32 %v4865, 1.442695
    %v4867 = vpow.pop %v4866
    %v4868 = vsel %vm260, %v4867, 0.0
    %4869 = vadd.xlane.f32.xlu0 %v4868
    %v4870 = vpop.xlane.xlu0 %4869
    %v4871 = vrcp.pop %v4870
    %v4872 = vmul.f32 %v4867, %v4871
    %v4873 = vpack.c.bf16 %v4872, %v4872
    %4874 = vrot.lane.b32.xlu0 %v4350, 40
    %v4875 = vpop.permute.xlu0 %4874
    %v4877 = vsel %vm260, %v4873, 0
    %v4880 = vsel %vm324, %v4875, 0
    %4882 = vmatprep.subr.bf16.mxu0 0
    %4883 = vmatpush1.bf16.msra.mxu0 0
    %4884 = vmatprep.subr.bf16.mxu0 0
    %4885 = vmatpush1.bf16.msra.mxu0 0
    %4886 = vmatprep.subr.bf16.mxu0 0
    %4887 = vmatpush1.bf16.msra.mxu0 0
    %4888 = vmatprep.subr.bf16.mxu0 0
    %4889 = vmatpush1.bf16.msra.mxu0 0
    %4890 = vmatprep.subr.bf16.mxu0 0
    %4891 = vmatpush1.bf16.msra.mxu0 0
    %4892 = vmatprep.subr.bf16.mxu0 0
    %4893 = vmatpush1.bf16.msra.mxu0 0
    %4894 = vmatprep.subr.bf16.mxu0 0
    %4895 = vmatpush1.bf16.msra.mxu0 0
    %4896 = vmatprep.subr.bf16.mxu0 0
    %4897 = vmatpush1.bf16.msra.mxu0 %v4880
    %4898 = vmatprep.subr.bf16.mxu0 0
    %4899 = vmatpush2.bf16.msra.mxu0 0
    %4900 = vmatprep.subr.bf16.mxu0 0
    %4901 = vmatpush2.bf16.msra.mxu0 0
    %4902 = vmatprep.subr.bf16.mxu0 0
    %4903 = vmatpush2.bf16.msra.mxu0 0
    %4904 = vmatprep.subr.bf16.mxu0 0
    %4905 = vmatpush2.bf16.msra.mxu0 0
    %4906 = vmatprep.subr.bf16.mxu0 0
    %4907 = vmatpush2.bf16.msra.mxu0 0
    %4908 = vmatprep.subr.bf16.mxu0 0
    %4909 = vmatpush2.bf16.msra.mxu0 0
    %4910 = vmatprep.subr.bf16.mxu0 0
    %4911 = vmatpush2.bf16.msra.mxu0 0
    %4912 = vmatprep.subr.bf16.mxu0 0
    %4913 = vmatpush2.bf16.msra.mxu0 0
    %4914 = vmatprep.mubr.bf16.mxu0 0
    %4915 = vmatmul.mubr.bf16.gmra.mxu0 %v4877
    %v4916 = vpop.f32.mrf.mxu0
    %v4917 = vadd.f32 0.0, %v4916
    %v4918 = vpop.f32.mrf.mxu0
    %v4919 = vpop.f32.mrf.mxu0
    %v4920 = vpop.f32.mrf.mxu0
    %4921 = vdwg.mxu0
    %v4922 = vpack.c.bf16 %v4917, %v4917
    %v4924 = vsel %vm260, %v4922, 0
    %4926 = vmatprep.subr.bf16.mxu0 0
    %4927 = vmatpush1.bf16.msra.mxu0 0
    %4928 = vmatprep.subr.bf16.mxu0 0
    %4929 = vmatpush1.bf16.msra.mxu0 0
    %4930 = vmatprep.subr.bf16.mxu0 0
    %4931 = vmatpush1.bf16.msra.mxu0 0
    %4932 = vmatprep.subr.bf16.mxu0 0
    %4933 = vmatpush1.bf16.msra.mxu0 0
    %4934 = vmatprep.subr.bf16.mxu0 0
    %4935 = vmatpush1.bf16.msra.mxu0 0
    %4936 = vmatprep.subr.bf16.mxu0 0
    %4937 = vmatpush1.bf16.msra.mxu0 0
    %4938 = vmatprep.subr.bf16.mxu0 0
    %4939 = vmatpush1.bf16.msra.mxu0 0
    %4940 = vmatprep.subr.bf16.mxu0 0
    %4941 = vmatpush1.bf16.msra.mxu0 %v4307
    %4942 = vmatprep.subr.bf16.mxu0 0
    %4943 = vmatpush2.bf16.msra.mxu0 0
    %4944 = vmatprep.subr.bf16.mxu0 0
    %4945 = vmatpush2.bf16.msra.mxu0 0
    %4946 = vmatprep.subr.bf16.mxu0 0
    %4947 = vmatpush2.bf16.msra.mxu0 0
    %4948 = vmatprep.subr.bf16.mxu0 0
    %4949 = vmatpush2.bf16.msra.mxu0 0
    %4950 = vmatprep.subr.bf16.mxu0 0
    %4951 = vmatpush2.bf16.msra.mxu0 0
    %4952 = vmatprep.subr.bf16.mxu0 0
    %4953 = vmatpush2.bf16.msra.mxu0 0
    %4954 = vmatprep.subr.bf16.mxu0 0
    %4955 = vmatpush2.bf16.msra.mxu0 0
    %4956 = vmatprep.subr.bf16.mxu0 0
    %4957 = vmatpush2.bf16.msra.mxu0 0
    %4958 = vmatprep.mubr.bf16.mxu0 0
    %4959 = vmatmul.mubr.bf16.gmra.mxu0 %v4924
    %v4960 = vpop.f32.mrf.mxu0
    %v4961 = vadd.f32 0.0, %v4960
    %v4962 = vpop.f32.mrf.mxu0
    %v4963 = vpop.f32.mrf.mxu0
    %v4964 = vpop.f32.mrf.mxu0
    %4965 = vdwg.mxu0
    %v4966 = vadd.f32 %v4811, %v4961
    %v4967 = vadd.f32 %v3643, %v4349
    %v4968 = vadd.f32 %v3644, %v4966
    %v4969 = vld [vmem:[%s37] sm:$0x1]
    %v4971 = vlaneseq
    %v4972 = vshrl.u32 %v4971, 7
    %v4973 = vsub.s32 0, %v4972
    %v4974 = vrot.slane %v4969, %v4973
    %v4976 = vadd.f32 %v4967, %v4974
    %v4977 = vadd.f32 %v4968, %v4974
    %v4978 = vsel %vm211, %v4976, 0.0
    %4979 = vadd.xlane.f32.xlu0 %v4978
    %v4980 = vpop.xlane.xlu0 %4979
    %v4981 = vsel %vm211, %v4977, 0.0
    %4982 = vadd.xlane.f32.xlu0 %v4981
    %v4983 = vpop.xlane.xlu0 %4982
    %v4984 = vmul.f32 %v4980, %v1529
    %v4985 = vmul.f32 %v4983, %v1529
    %v4986 = vsub.f32 %v4976, %v4984
    %v4987 = vsub.f32 %v4977, %v4985
    %v4988 = vmul.f32 %v4986, %v4986
    %v4989 = vmul.f32 %v4987, %v4987
    %v4990 = vsel %vm211, %v4988, 0.0
    %4991 = vadd.xlane.f32.xlu0 %v4990
    %v4992 = vpop.xlane.xlu0 %4991
    %v4993 = vsel %vm211, %v4989, 0.0
    %4994 = vadd.xlane.f32.xlu0 %v4993
    %v4995 = vpop.xlane.xlu0 %4994
    %v4996 = vmul.f32 %v4992, %v1529
    %v4997 = vmul.f32 %v4995, %v1529
    %v4998 = vadd.f32 %v4996, 1e-05
    %v4999 = vadd.f32 %v4997, 1e-05
    %v5000 = vrsqrt.pop %v4998
    %v5001 = vrsqrt.pop %v4999
    %v5002 = vmul.f32 %v4986, %v5000
    %v5003 = vmul.f32 %v4987, %v5001
    %v5004 = vld [vmem:[%s39] sm:$0x1]
    %v5006 = vlaneseq
    %v5007 = vshrl.u32 %v5006, 7
    %v5008 = vsub.s32 0, %v5007
    %v5009 = vrot.slane %v5004, %v5008
    %v5011 = vmul.f32 %v5002, %v5009
    %v5012 = vmul.f32 %v5003, %v5009
    %v5013 = vld [vmem:[%s41] sm:$0x1]
    %v5015 = vlaneseq
    %v5016 = vshrl.u32 %v5015, 7
    %v5017 = vsub.s32 0, %v5016
    %v5018 = vrot.slane %v5013, %v5017
    %v5020 = vadd.f32 %v5011, %v5018
    %v5021 = vadd.f32 %v5012, %v5018
    %v5022 = vpack.c.bf16 %v5021, %v5020
    %v5023 = vld [vmem:[%s43] sm:$0xff]
    %v5024 = vld [vmem:[%s43 + $0x8] sm:$0xff]
    %v5025 = vld [vmem:[%s43 + $0x10] sm:$0xff]
    %v5026 = vld [vmem:[%s43 + $0x18] sm:$0xff]
    %v5027 = vld [vmem:[%s43 + $0x20] sm:$0xff]
    %v5028 = vld [vmem:[%s43 + $0x28] sm:$0xff]
    %v5029 = vld [vmem:[%s43 + $0x30] sm:$0xff]
    %v5030 = vld [vmem:[%s43 + $0x38] sm:$0xff]
    %v5031 = vld [vmem:[%s43 + $0x40] sm:$0xff]
    %v5032 = vld [vmem:[%s43 + $0x48] sm:$0xff]
    %v5033 = vld [vmem:[%s43 + $0x50] sm:$0xff]
    %v5034 = vld [vmem:[%s43 + $0x58] sm:$0xff]
    %v5035 = vld [vmem:[%s43 + $0x60] sm:$0xff]
    %v5036 = vld [vmem:[%s43 + $0x68] sm:$0xff]
    %v5037 = vld [vmem:[%s43 + $0x70] sm:$0xff]
    %v5038 = vld [vmem:[%s43 + $0x78] sm:$0xff]
    %v5039 = vld [vmem:[%s43 + $0x80] sm:$0xff]
    %v5040 = vld [vmem:[%s43 + $0x88] sm:$0xff]
    %v5041 = vld [vmem:[%s43 + $0x90] sm:$0xff]
    %v5042 = vld [vmem:[%s43 + $0x98] sm:$0xff]
    %v5043 = vld [vmem:[%s43 + $0xa0] sm:$0xff]
    %v5044 = vld [vmem:[%s43 + $0xa8] sm:$0xff]
    %v5045 = vld [vmem:[%s43 + $0xb0] sm:$0xff]
    %v5046 = vld [vmem:[%s43 + $0xb8] sm:$0xff]
    %v5047 = vld [vmem:[%s43 + $0xc0] sm:$0xff]
    %v5048 = vld [vmem:[%s43 + $0xc8] sm:$0xff]
    %v5049 = vld [vmem:[%s43 + $0xd0] sm:$0xff]
    %v5050 = vld [vmem:[%s43 + $0xd8] sm:$0xff]
    %v5051 = vld [vmem:[%s43 + $0xe0] sm:$0xff]
    %v5052 = vld [vmem:[%s43 + $0xe8] sm:$0xff]
    %v5053 = vld [vmem:[%s43 + $0xf0] sm:$0xff]
    %v5054 = vld [vmem:[%s43 + $0xf8] sm:$0xff]
    %v5055 = vld [vmem:[%s45] sm:$0xff]
    %v5056 = vld [vmem:[%s45 + $0x8] sm:$0xff]
    %v5059 = vlaneseq
    %v5060 = vshrl.u32 %v5059, 7
    %v5061 = vsub.s32 0, %v5060
    %v5062 = vrot.slane %v5055, %v5061
    %v5063 = vlaneseq
    %v5064 = vshrl.u32 %v5063, 7
    %v5065 = vsub.s32 1, %v5064
    %v5066 = vrot.slane %v5055, %v5065
    %v5067 = vlaneseq
    %v5068 = vshrl.u32 %v5067, 7
    %v5069 = vsub.s32 2, %v5068
    %v5070 = vrot.slane %v5055, %v5069
    %v5071 = vlaneseq
    %v5072 = vshrl.u32 %v5071, 7
    %v5073 = vsub.s32 3, %v5072
    %v5074 = vrot.slane %v5055, %v5073
    %v5075 = vlaneseq
    %v5076 = vshrl.u32 %v5075, 7
    %v5077 = vsub.s32 4, %v5076
    %v5078 = vrot.slane %v5055, %v5077
    %v5079 = vlaneseq
    %v5080 = vshrl.u32 %v5079, 7
    %v5081 = vsub.s32 5, %v5080
    %v5082 = vrot.slane %v5055, %v5081
    %v5083 = vlaneseq
    %v5084 = vshrl.u32 %v5083, 7
    %v5085 = vsub.s32 6, %v5084
    %v5086 = vrot.slane %v5055, %v5085
    %v5087 = vlaneseq
    %v5088 = vshrl.u32 %v5087, 7
    %v5089 = vsub.s32 7, %v5088
    %v5090 = vrot.slane %v5055, %v5089
    %v5091 = vlaneseq
    %v5092 = vshrl.u32 %v5091, 7
    %v5093 = vsub.s32 0, %v5092
    %v5094 = vrot.slane %v5056, %v5093
    %v5095 = vlaneseq
    %v5096 = vshrl.u32 %v5095, 7
    %v5097 = vsub.s32 1, %v5096
    %v5098 = vrot.slane %v5056, %v5097
    %v5099 = vlaneseq
    %v5100 = vshrl.u32 %v5099, 7
    %v5101 = vsub.s32 2, %v5100
    %v5102 = vrot.slane %v5056, %v5101
    %v5103 = vlaneseq
    %v5104 = vshrl.u32 %v5103, 7
    %v5105 = vsub.s32 3, %v5104
    %v5106 = vrot.slane %v5056, %v5105
    %v5107 = vlaneseq
    %v5108 = vshrl.u32 %v5107, 7
    %v5109 = vsub.s32 4, %v5108
    %v5110 = vrot.slane %v5056, %v5109
    %v5111 = vlaneseq
    %v5112 = vshrl.u32 %v5111, 7
    %v5113 = vsub.s32 5, %v5112
    %v5114 = vrot.slane %v5056, %v5113
    %v5115 = vlaneseq
    %v5116 = vshrl.u32 %v5115, 7
    %v5117 = vsub.s32 6, %v5116
    %v5118 = vrot.slane %v5056, %v5117
    %v5119 = vlaneseq
    %v5120 = vshrl.u32 %v5119, 7
    %v5121 = vsub.s32 7, %v5120
    %v5122 = vrot.slane %v5056, %v5121
    %v5171 = vunpack.c.l.b16 %v5023
    %v5172 = vunpack.c.h.b16 %v5023
    %v5173 = vunpack.c.l.b16 %v5024
    %v5174 = vunpack.c.h.b16 %v5024
    %v5175 = vunpack.c.l.b16 %v5025
    %v5176 = vunpack.c.h.b16 %v5025
    %v5177 = vunpack.c.l.b16 %v5026
    %v5178 = vunpack.c.h.b16 %v5026
    %v5179 = vunpack.c.l.b16 %v5027
    %v5180 = vunpack.c.h.b16 %v5027
    %v5181 = vunpack.c.l.b16 %v5028
    %v5182 = vunpack.c.h.b16 %v5028
    %v5183 = vunpack.c.l.b16 %v5029
    %v5184 = vunpack.c.h.b16 %v5029
    %v5185 = vunpack.c.l.b16 %v5030
    %v5186 = vunpack.c.h.b16 %v5030
    %v5187 = vunpack.c.l.b16 %v5031
    %v5188 = vunpack.c.h.b16 %v5031
    %v5189 = vunpack.c.l.b16 %v5032
    %v5190 = vunpack.c.h.b16 %v5032
    %v5191 = vunpack.c.l.b16 %v5033
    %v5192 = vunpack.c.h.b16 %v5033
    %v5193 = vunpack.c.l.b16 %v5034
    %v5194 = vunpack.c.h.b16 %v5034
    %v5195 = vunpack.c.l.b16 %v5035
    %v5196 = vunpack.c.h.b16 %v5035
    %v5197 = vunpack.c.l.b16 %v5036
    %v5198 = vunpack.c.h.b16 %v5036
    %v5199 = vunpack.c.l.b16 %v5037
    %v5200 = vunpack.c.h.b16 %v5037
    %v5201 = vunpack.c.l.b16 %v5038
    %v5202 = vunpack.c.h.b16 %v5038
    %v5203 = vunpack.c.l.b16 %v5039
    %v5204 = vunpack.c.h.b16 %v5039
    %v5205 = vunpack.c.l.b16 %v5040
    %v5206 = vunpack.c.h.b16 %v5040
    %v5207 = vunpack.c.l.b16 %v5041
    %v5208 = vunpack.c.h.b16 %v5041
    %v5209 = vunpack.c.l.b16 %v5042
    %v5210 = vunpack.c.h.b16 %v5042
    %v5211 = vunpack.c.l.b16 %v5043
    %v5212 = vunpack.c.h.b16 %v5043
    %v5213 = vunpack.c.l.b16 %v5044
    %v5214 = vunpack.c.h.b16 %v5044
    %v5215 = vunpack.c.l.b16 %v5045
    %v5216 = vunpack.c.h.b16 %v5045
    %v5217 = vunpack.c.l.b16 %v5046
    %v5218 = vunpack.c.h.b16 %v5046
    %v5219 = vunpack.c.l.b16 %v5047
    %v5220 = vunpack.c.h.b16 %v5047
    %v5221 = vunpack.c.l.b16 %v5048
    %v5222 = vunpack.c.h.b16 %v5048
    %v5223 = vunpack.c.l.b16 %v5049
    %v5224 = vunpack.c.h.b16 %v5049
    %v5225 = vunpack.c.l.b16 %v5050
    %v5226 = vunpack.c.h.b16 %v5050
    %v5227 = vunpack.c.l.b16 %v5051
    %v5228 = vunpack.c.h.b16 %v5051
    %v5229 = vunpack.c.l.b16 %v5052
    %v5230 = vunpack.c.h.b16 %v5052
    %v5231 = vunpack.c.l.b16 %v5053
    %v5232 = vunpack.c.h.b16 %v5053
    %v5233 = vunpack.c.l.b16 %v5054
    %v5234 = vunpack.c.h.b16 %v5054
    %v5235 = vpack.c.b16 %v5187, %v5171
    %v5236 = vpack.c.b16 %v5188, %v5172
    %v5237 = vpack.c.b16 %v5189, %v5173
    %v5238 = vpack.c.b16 %v5190, %v5174
    %v5239 = vpack.c.b16 %v5191, %v5175
    %v5240 = vpack.c.b16 %v5192, %v5176
    %v5241 = vpack.c.b16 %v5193, %v5177
    %v5242 = vpack.c.b16 %v5194, %v5178
    %v5243 = vpack.c.b16 %v5195, %v5179
    %v5244 = vpack.c.b16 %v5196, %v5180
    %v5245 = vpack.c.b16 %v5197, %v5181
    %v5246 = vpack.c.b16 %v5198, %v5182
    %v5247 = vpack.c.b16 %v5199, %v5183
    %v5248 = vpack.c.b16 %v5200, %v5184
    %v5249 = vpack.c.b16 %v5201, %v5185
    %v5250 = vpack.c.b16 %v5202, %v5186
    %v5251 = vpack.c.b16 %v5219, %v5203
    %v5252 = vpack.c.b16 %v5220, %v5204
    %v5253 = vpack.c.b16 %v5221, %v5205
    %v5254 = vpack.c.b16 %v5222, %v5206
    %v5255 = vpack.c.b16 %v5223, %v5207
    %v5256 = vpack.c.b16 %v5224, %v5208
    %v5257 = vpack.c.b16 %v5225, %v5209
    %v5258 = vpack.c.b16 %v5226, %v5210
    %v5259 = vpack.c.b16 %v5227, %v5211
    %v5260 = vpack.c.b16 %v5228, %v5212
    %v5261 = vpack.c.b16 %v5229, %v5213
    %v5262 = vpack.c.b16 %v5230, %v5214
    %v5263 = vpack.c.b16 %v5231, %v5215
    %v5264 = vpack.c.b16 %v5232, %v5216
    %v5265 = vpack.c.b16 %v5233, %v5217
    %v5266 = vpack.c.b16 %v5234, %v5218
    %v5300 = vsel %vm211, %v5022, 0
    %5302 = vmatprep.subr.bf16.mxu0 0
    %5303 = vmatpush1.bf16.msra.mxu0 0
    %5304 = vmatprep.subr.bf16.mxu0 0
    %5305 = vmatpush1.bf16.msra.mxu0 0
    %5306 = vmatprep.subr.bf16.mxu0 0
    %5307 = vmatpush1.bf16.msra.mxu0 0
    %5308 = vmatprep.subr.bf16.mxu0 0
    %5309 = vmatpush1.bf16.msra.mxu0 0
    %5310 = vmatprep.subr.bf16.mxu0 0
    %5311 = vmatpush1.bf16.msra.mxu0 0
    %5312 = vmatprep.subr.bf16.mxu0 0
    %5313 = vmatpush1.bf16.msra.mxu0 0
    %5314 = vmatprep.subr.bf16.mxu0 %v5252
    %5315 = vmatpush1.bf16.msra.mxu0 %v5251
    %5316 = vmatprep.subr.bf16.mxu0 %v5236
    %5317 = vmatpush1.bf16.msra.mxu0 %v5235
    %5318 = vmatprep.subr.bf16.mxu0 0
    %5319 = vmatpush2.bf16.msra.mxu0 0
    %5320 = vmatprep.subr.bf16.mxu0 0
    %5321 = vmatpush2.bf16.msra.mxu0 0
    %5322 = vmatprep.subr.bf16.mxu0 0
    %5323 = vmatpush2.bf16.msra.mxu0 0
    %5324 = vmatprep.subr.bf16.mxu0 0
    %5325 = vmatpush2.bf16.msra.mxu0 0
    %5326 = vmatprep.subr.bf16.mxu0 0
    %5327 = vmatpush2.bf16.msra.mxu0 0
    %5328 = vmatprep.subr.bf16.mxu0 0
    %5329 = vmatpush2.bf16.msra.mxu0 0
    %5330 = vmatprep.subr.bf16.mxu0 0
    %5331 = vmatpush2.bf16.msra.mxu0 0
    %5332 = vmatprep.subr.bf16.mxu0 0
    %5333 = vmatpush2.bf16.msra.mxu0 0
    %5334 = vmatprep.mubr.bf16.mxu0 0
    %5335 = vmatmul.mubr.bf16.gmra.mxu0 %v5300
    %v5336 = vpop.f32.mrf.mxu0
    %v5337 = vadd.f32 %v5062, %v5336
    %v5338 = vpop.f32.mrf.mxu0
    %v5339 = vadd.f32 %v5066, %v5338
    %v5340 = vpop.f32.mrf.mxu0
    %v5341 = vadd.f32 %v5062, %v5340
    %v5342 = vpop.f32.mrf.mxu0
    %v5343 = vadd.f32 %v5066, %v5342
    %5344 = vdwg.mxu0
    %5345 = vmatprep.subr.bf16.mxu0 0
    %5346 = vmatpush1.bf16.msra.mxu0 0
    %5347 = vmatprep.subr.bf16.mxu0 0
    %5348 = vmatpush1.bf16.msra.mxu0 0
    %5349 = vmatprep.subr.bf16.mxu0 0
    %5350 = vmatpush1.bf16.msra.mxu0 0
    %5351 = vmatprep.subr.bf16.mxu0 0
    %5352 = vmatpush1.bf16.msra.mxu0 0
    %5353 = vmatprep.subr.bf16.mxu0 0
    %5354 = vmatpush1.bf16.msra.mxu0 0
    %5355 = vmatprep.subr.bf16.mxu0 0
    %5356 = vmatpush1.bf16.msra.mxu0 0
    %5357 = vmatprep.subr.bf16.mxu0 %v5254
    %5358 = vmatpush1.bf16.msra.mxu0 %v5253
    %5359 = vmatprep.subr.bf16.mxu0 %v5238
    %5360 = vmatpush1.bf16.msra.mxu0 %v5237
    %5361 = vmatprep.subr.bf16.mxu0 0
    %5362 = vmatpush2.bf16.msra.mxu0 0
    %5363 = vmatprep.subr.bf16.mxu0 0
    %5364 = vmatpush2.bf16.msra.mxu0 0
    %5365 = vmatprep.subr.bf16.mxu0 0
    %5366 = vmatpush2.bf16.msra.mxu0 0
    %5367 = vmatprep.subr.bf16.mxu0 0
    %5368 = vmatpush2.bf16.msra.mxu0 0
    %5369 = vmatprep.subr.bf16.mxu0 0
    %5370 = vmatpush2.bf16.msra.mxu0 0
    %5371 = vmatprep.subr.bf16.mxu0 0
    %5372 = vmatpush2.bf16.msra.mxu0 0
    %5373 = vmatprep.subr.bf16.mxu0 0
    %5374 = vmatpush2.bf16.msra.mxu0 0
    %5375 = vmatprep.subr.bf16.mxu0 0
    %5376 = vmatpush2.bf16.msra.mxu0 0
    %5377 = vmatprep.mubr.bf16.mxu0 0
    %5378 = vmatmul.mubr.bf16.gmra.mxu0 %v5300
    %v5379 = vpop.f32.mrf.mxu0
    %v5380 = vadd.f32 %v5070, %v5379
    %v5381 = vpop.f32.mrf.mxu0
    %v5382 = vadd.f32 %v5074, %v5381
    %v5383 = vpop.f32.mrf.mxu0
    %v5384 = vadd.f32 %v5070, %v5383
    %v5385 = vpop.f32.mrf.mxu0
    %v5386 = vadd.f32 %v5074, %v5385
    %5387 = vdwg.mxu0
    %5388 = vmatprep.subr.bf16.mxu0 0
    %5389 = vmatpush1.bf16.msra.mxu0 0
    %5390 = vmatprep.subr.bf16.mxu0 0
    %5391 = vmatpush1.bf16.msra.mxu0 0
    %5392 = vmatprep.subr.bf16.mxu0 0
    %5393 = vmatpush1.bf16.msra.mxu0 0
    %5394 = vmatprep.subr.bf16.mxu0 0
    %5395 = vmatpush1.bf16.msra.mxu0 0
    %5396 = vmatprep.subr.bf16.mxu0 0
    %5397 = vmatpush1.bf16.msra.mxu0 0
    %5398 = vmatprep.subr.bf16.mxu0 0
    %5399 = vmatpush1.bf16.msra.mxu0 0
    %5400 = vmatprep.subr.bf16.mxu0 %v5256
    %5401 = vmatpush1.bf16.msra.mxu0 %v5255
    %5402 = vmatprep.subr.bf16.mxu0 %v5240
    %5403 = vmatpush1.bf16.msra.mxu0 %v5239
    %5404 = vmatprep.subr.bf16.mxu0 0
    %5405 = vmatpush2.bf16.msra.mxu0 0
    %5406 = vmatprep.subr.bf16.mxu0 0
    %5407 = vmatpush2.bf16.msra.mxu0 0
    %5408 = vmatprep.subr.bf16.mxu0 0
    %5409 = vmatpush2.bf16.msra.mxu0 0
    %5410 = vmatprep.subr.bf16.mxu0 0
    %5411 = vmatpush2.bf16.msra.mxu0 0
    %5412 = vmatprep.subr.bf16.mxu0 0
    %5413 = vmatpush2.bf16.msra.mxu0 0
    %5414 = vmatprep.subr.bf16.mxu0 0
    %5415 = vmatpush2.bf16.msra.mxu0 0
    %5416 = vmatprep.subr.bf16.mxu0 0
    %5417 = vmatpush2.bf16.msra.mxu0 0
    %5418 = vmatprep.subr.bf16.mxu0 0
    %5419 = vmatpush2.bf16.msra.mxu0 0
    %5420 = vmatprep.mubr.bf16.mxu0 0
    %5421 = vmatmul.mubr.bf16.gmra.mxu0 %v5300
    %v5422 = vpop.f32.mrf.mxu0
    %v5423 = vadd.f32 %v5078, %v5422
    %v5424 = vpop.f32.mrf.mxu0
    %v5425 = vadd.f32 %v5082, %v5424
    %v5426 = vpop.f32.mrf.mxu0
    %v5427 = vadd.f32 %v5078, %v5426
    %v5428 = vpop.f32.mrf.mxu0
    %v5429 = vadd.f32 %v5082, %v5428
    %5430 = vdwg.mxu0
    %5431 = vmatprep.subr.bf16.mxu0 0
    %5432 = vmatpush1.bf16.msra.mxu0 0
    %5433 = vmatprep.subr.bf16.mxu0 0
    %5434 = vmatpush1.bf16.msra.mxu0 0
    %5435 = vmatprep.subr.bf16.mxu0 0
    %5436 = vmatpush1.bf16.msra.mxu0 0
    %5437 = vmatprep.subr.bf16.mxu0 0
    %5438 = vmatpush1.bf16.msra.mxu0 0
    %5439 = vmatprep.subr.bf16.mxu0 0
    %5440 = vmatpush1.bf16.msra.mxu0 0
    %5441 = vmatprep.subr.bf16.mxu0 0
    %5442 = vmatpush1.bf16.msra.mxu0 0
    %5443 = vmatprep.subr.bf16.mxu0 %v5258
    %5444 = vmatpush1.bf16.msra.mxu0 %v5257
    %5445 = vmatprep.subr.bf16.mxu0 %v5242
    %5446 = vmatpush1.bf16.msra.mxu0 %v5241
    %5447 = vmatprep.subr.bf16.mxu0 0
    %5448 = vmatpush2.bf16.msra.mxu0 0
    %5449 = vmatprep.subr.bf16.mxu0 0
    %5450 = vmatpush2.bf16.msra.mxu0 0
    %5451 = vmatprep.subr.bf16.mxu0 0
    %5452 = vmatpush2.bf16.msra.mxu0 0
    %5453 = vmatprep.subr.bf16.mxu0 0
    %5454 = vmatpush2.bf16.msra.mxu0 0
    %5455 = vmatprep.subr.bf16.mxu0 0
    %5456 = vmatpush2.bf16.msra.mxu0 0
    %5457 = vmatprep.subr.bf16.mxu0 0
    %5458 = vmatpush2.bf16.msra.mxu0 0
    %5459 = vmatprep.subr.bf16.mxu0 0
    %5460 = vmatpush2.bf16.msra.mxu0 0
    %5461 = vmatprep.subr.bf16.mxu0 0
    %5462 = vmatpush2.bf16.msra.mxu0 0
    %5463 = vmatprep.mubr.bf16.mxu0 0
    %5464 = vmatmul.mubr.bf16.gmra.mxu0 %v5300
    %v5465 = vpop.f32.mrf.mxu0
    %v5466 = vadd.f32 %v5086, %v5465
    %v5467 = vpop.f32.mrf.mxu0
    %v5468 = vadd.f32 %v5090, %v5467
    %v5469 = vpop.f32.mrf.mxu0
    %v5470 = vadd.f32 %v5086, %v5469
    %v5471 = vpop.f32.mrf.mxu0
    %v5472 = vadd.f32 %v5090, %v5471
    %5473 = vdwg.mxu0
    %5474 = vmatprep.subr.bf16.mxu0 0
    %5475 = vmatpush1.bf16.msra.mxu0 0
    %5476 = vmatprep.subr.bf16.mxu0 0
    %5477 = vmatpush1.bf16.msra.mxu0 0
    %5478 = vmatprep.subr.bf16.mxu0 0
    %5479 = vmatpush1.bf16.msra.mxu0 0
    %5480 = vmatprep.subr.bf16.mxu0 0
    %5481 = vmatpush1.bf16.msra.mxu0 0
    %5482 = vmatprep.subr.bf16.mxu0 0
    %5483 = vmatpush1.bf16.msra.mxu0 0
    %5484 = vmatprep.subr.bf16.mxu0 0
    %5485 = vmatpush1.bf16.msra.mxu0 0
    %5486 = vmatprep.subr.bf16.mxu0 %v5260
    %5487 = vmatpush1.bf16.msra.mxu0 %v5259
    %5488 = vmatprep.subr.bf16.mxu0 %v5244
    %5489 = vmatpush1.bf16.msra.mxu0 %v5243
    %5490 = vmatprep.subr.bf16.mxu0 0
    %5491 = vmatpush2.bf16.msra.mxu0 0
    %5492 = vmatprep.subr.bf16.mxu0 0
    %5493 = vmatpush2.bf16.msra.mxu0 0
    %5494 = vmatprep.subr.bf16.mxu0 0
    %5495 = vmatpush2.bf16.msra.mxu0 0
    %5496 = vmatprep.subr.bf16.mxu0 0
    %5497 = vmatpush2.bf16.msra.mxu0 0
    %5498 = vmatprep.subr.bf16.mxu0 0
    %5499 = vmatpush2.bf16.msra.mxu0 0
    %5500 = vmatprep.subr.bf16.mxu0 0
    %5501 = vmatpush2.bf16.msra.mxu0 0
    %5502 = vmatprep.subr.bf16.mxu0 0
    %5503 = vmatpush2.bf16.msra.mxu0 0
    %5504 = vmatprep.subr.bf16.mxu0 0
    %5505 = vmatpush2.bf16.msra.mxu0 0
    %5506 = vmatprep.mubr.bf16.mxu0 0
    %5507 = vmatmul.mubr.bf16.gmra.mxu0 %v5300
    %v5508 = vpop.f32.mrf.mxu0
    %v5509 = vadd.f32 %v5094, %v5508
    %v5510 = vpop.f32.mrf.mxu0
    %v5511 = vadd.f32 %v5098, %v5510
    %v5512 = vpop.f32.mrf.mxu0
    %v5513 = vadd.f32 %v5094, %v5512
    %v5514 = vpop.f32.mrf.mxu0
    %v5515 = vadd.f32 %v5098, %v5514
    %5516 = vdwg.mxu0
    %5517 = vmatprep.subr.bf16.mxu0 0
    %5518 = vmatpush1.bf16.msra.mxu0 0
    %5519 = vmatprep.subr.bf16.mxu0 0
    %5520 = vmatpush1.bf16.msra.mxu0 0
    %5521 = vmatprep.subr.bf16.mxu0 0
    %5522 = vmatpush1.bf16.msra.mxu0 0
    %5523 = vmatprep.subr.bf16.mxu0 0
    %5524 = vmatpush1.bf16.msra.mxu0 0
    %5525 = vmatprep.subr.bf16.mxu0 0
    %5526 = vmatpush1.bf16.msra.mxu0 0
    %5527 = vmatprep.subr.bf16.mxu0 0
    %5528 = vmatpush1.bf16.msra.mxu0 0
    %5529 = vmatprep.subr.bf16.mxu0 %v5262
    %5530 = vmatpush1.bf16.msra.mxu0 %v5261
    %5531 = vmatprep.subr.bf16.mxu0 %v5246
    %5532 = vmatpush1.bf16.msra.mxu0 %v5245
    %5533 = vmatprep.subr.bf16.mxu0 0
    %5534 = vmatpush2.bf16.msra.mxu0 0
    %5535 = vmatprep.subr.bf16.mxu0 0
    %5536 = vmatpush2.bf16.msra.mxu0 0
    %5537 = vmatprep.subr.bf16.mxu0 0
    %5538 = vmatpush2.bf16.msra.mxu0 0
    %5539 = vmatprep.subr.bf16.mxu0 0
    %5540 = vmatpush2.bf16.msra.mxu0 0
    %5541 = vmatprep.subr.bf16.mxu0 0
    %5542 = vmatpush2.bf16.msra.mxu0 0
    %5543 = vmatprep.subr.bf16.mxu0 0
    %5544 = vmatpush2.bf16.msra.mxu0 0
    %5545 = vmatprep.subr.bf16.mxu0 0
    %5546 = vmatpush2.bf16.msra.mxu0 0
    %5547 = vmatprep.subr.bf16.mxu0 0
    %5548 = vmatpush2.bf16.msra.mxu0 0
    %5549 = vmatprep.mubr.bf16.mxu0 0
    %5550 = vmatmul.mubr.bf16.gmra.mxu0 %v5300
    %v5551 = vpop.f32.mrf.mxu0
    %v5552 = vadd.f32 %v5102, %v5551
    %v5553 = vpop.f32.mrf.mxu0
    %v5554 = vadd.f32 %v5106, %v5553
    %v5555 = vpop.f32.mrf.mxu0
    %v5556 = vadd.f32 %v5102, %v5555
    %v5557 = vpop.f32.mrf.mxu0
    %v5558 = vadd.f32 %v5106, %v5557
    %5559 = vdwg.mxu0
    %5560 = vmatprep.subr.bf16.mxu0 0
    %5561 = vmatpush1.bf16.msra.mxu0 0
    %5562 = vmatprep.subr.bf16.mxu0 0
    %5563 = vmatpush1.bf16.msra.mxu0 0
    %5564 = vmatprep.subr.bf16.mxu0 0
    %5565 = vmatpush1.bf16.msra.mxu0 0
    %5566 = vmatprep.subr.bf16.mxu0 0
    %5567 = vmatpush1.bf16.msra.mxu0 0
    %5568 = vmatprep.subr.bf16.mxu0 0
    %5569 = vmatpush1.bf16.msra.mxu0 0
    %5570 = vmatprep.subr.bf16.mxu0 0
    %5571 = vmatpush1.bf16.msra.mxu0 0
    %5572 = vmatprep.subr.bf16.mxu0 %v5264
    %5573 = vmatpush1.bf16.msra.mxu0 %v5263
    %5574 = vmatprep.subr.bf16.mxu0 %v5248
    %5575 = vmatpush1.bf16.msra.mxu0 %v5247
    %5576 = vmatprep.subr.bf16.mxu0 0
    %5577 = vmatpush2.bf16.msra.mxu0 0
    %5578 = vmatprep.subr.bf16.mxu0 0
    %5579 = vmatpush2.bf16.msra.mxu0 0
    %5580 = vmatprep.subr.bf16.mxu0 0
    %5581 = vmatpush2.bf16.msra.mxu0 0
    %5582 = vmatprep.subr.bf16.mxu0 0
    %5583 = vmatpush2.bf16.msra.mxu0 0
    %5584 = vmatprep.subr.bf16.mxu0 0
    %5585 = vmatpush2.bf16.msra.mxu0 0
    %5586 = vmatprep.subr.bf16.mxu0 0
    %5587 = vmatpush2.bf16.msra.mxu0 0
    %5588 = vmatprep.subr.bf16.mxu0 0
    %5589 = vmatpush2.bf16.msra.mxu0 0
    %5590 = vmatprep.subr.bf16.mxu0 0
    %5591 = vmatpush2.bf16.msra.mxu0 0
    %5592 = vmatprep.mubr.bf16.mxu0 0
    %5593 = vmatmul.mubr.bf16.gmra.mxu0 %v5300
    %v5594 = vpop.f32.mrf.mxu0
    %v5595 = vadd.f32 %v5110, %v5594
    %v5596 = vpop.f32.mrf.mxu0
    %v5597 = vadd.f32 %v5114, %v5596
    %v5598 = vpop.f32.mrf.mxu0
    %v5599 = vadd.f32 %v5110, %v5598
    %v5600 = vpop.f32.mrf.mxu0
    %v5601 = vadd.f32 %v5114, %v5600
    %5602 = vdwg.mxu0
    %5603 = vmatprep.subr.bf16.mxu0 0
    %5604 = vmatpush1.bf16.msra.mxu0 0
    %5605 = vmatprep.subr.bf16.mxu0 0
    %5606 = vmatpush1.bf16.msra.mxu0 0
    %5607 = vmatprep.subr.bf16.mxu0 0
    %5608 = vmatpush1.bf16.msra.mxu0 0
    %5609 = vmatprep.subr.bf16.mxu0 0
    %5610 = vmatpush1.bf16.msra.mxu0 0
    %5611 = vmatprep.subr.bf16.mxu0 0
    %5612 = vmatpush1.bf16.msra.mxu0 0
    %5613 = vmatprep.subr.bf16.mxu0 0
    %5614 = vmatpush1.bf16.msra.mxu0 0
    %5615 = vmatprep.subr.bf16.mxu0 %v5266
    %5616 = vmatpush1.bf16.msra.mxu0 %v5265
    %5617 = vmatprep.subr.bf16.mxu0 %v5250
    %5618 = vmatpush1.bf16.msra.mxu0 %v5249
    %5619 = vmatprep.subr.bf16.mxu0 0
    %5620 = vmatpush2.bf16.msra.mxu0 0
    %5621 = vmatprep.subr.bf16.mxu0 0
    %5622 = vmatpush2.bf16.msra.mxu0 0
    %5623 = vmatprep.subr.bf16.mxu0 0
    %5624 = vmatpush2.bf16.msra.mxu0 0
    %5625 = vmatprep.subr.bf16.mxu0 0
    %5626 = vmatpush2.bf16.msra.mxu0 0
    %5627 = vmatprep.subr.bf16.mxu0 0
    %5628 = vmatpush2.bf16.msra.mxu0 0
    %5629 = vmatprep.subr.bf16.mxu0 0
    %5630 = vmatpush2.bf16.msra.mxu0 0
    %5631 = vmatprep.subr.bf16.mxu0 0
    %5632 = vmatpush2.bf16.msra.mxu0 0
    %5633 = vmatprep.subr.bf16.mxu0 0
    %5634 = vmatpush2.bf16.msra.mxu0 0
    %5635 = vmatprep.mubr.bf16.mxu0 0
    %5636 = vmatmul.mubr.bf16.gmra.mxu0 %v5300
    %v5637 = vpop.f32.mrf.mxu0
    %v5638 = vadd.f32 %v5118, %v5637
    %v5639 = vpop.f32.mrf.mxu0
    %v5640 = vadd.f32 %v5122, %v5639
    %v5641 = vpop.f32.mrf.mxu0
    %v5642 = vadd.f32 %v5118, %v5641
    %v5643 = vpop.f32.mrf.mxu0
    %v5644 = vadd.f32 %v5122, %v5643
    %5645 = vdwg.mxu0
    %v5646 = vmax.f32 %v5337, 0.0
    %v5647 = vmax.f32 %v5339, 0.0
    %v5648 = vmax.f32 %v5380, 0.0
    %v5649 = vmax.f32 %v5382, 0.0
    %v5650 = vmax.f32 %v5423, 0.0
    %v5651 = vmax.f32 %v5425, 0.0
    %v5652 = vmax.f32 %v5466, 0.0
    %v5653 = vmax.f32 %v5468, 0.0
    %v5654 = vmax.f32 %v5509, 0.0
    %v5655 = vmax.f32 %v5511, 0.0
    %v5656 = vmax.f32 %v5552, 0.0
    %v5657 = vmax.f32 %v5554, 0.0
    %v5658 = vmax.f32 %v5595, 0.0
    %v5659 = vmax.f32 %v5597, 0.0
    %v5660 = vmax.f32 %v5638, 0.0
    %v5661 = vmax.f32 %v5640, 0.0
    %v5662 = vmax.f32 %v5341, 0.0
    %v5663 = vmax.f32 %v5343, 0.0
    %v5664 = vmax.f32 %v5384, 0.0
    %v5665 = vmax.f32 %v5386, 0.0
    %v5666 = vmax.f32 %v5427, 0.0
    %v5667 = vmax.f32 %v5429, 0.0
    %v5668 = vmax.f32 %v5470, 0.0
    %v5669 = vmax.f32 %v5472, 0.0
    %v5670 = vmax.f32 %v5513, 0.0
    %v5671 = vmax.f32 %v5515, 0.0
    %v5672 = vmax.f32 %v5556, 0.0
    %v5673 = vmax.f32 %v5558, 0.0
    %v5674 = vmax.f32 %v5599, 0.0
    %v5675 = vmax.f32 %v5601, 0.0
    %v5676 = vmax.f32 %v5642, 0.0
    %v5677 = vmax.f32 %v5644, 0.0
    %v5678 = vpack.c.bf16 %v5662, %v5646
    %v5679 = vpack.c.bf16 %v5663, %v5647
    %v5680 = vpack.c.bf16 %v5664, %v5648
    %v5681 = vpack.c.bf16 %v5665, %v5649
    %v5682 = vpack.c.bf16 %v5666, %v5650
    %v5683 = vpack.c.bf16 %v5667, %v5651
    %v5684 = vpack.c.bf16 %v5668, %v5652
    %v5685 = vpack.c.bf16 %v5669, %v5653
    %v5686 = vpack.c.bf16 %v5670, %v5654
    %v5687 = vpack.c.bf16 %v5671, %v5655
    %v5688 = vpack.c.bf16 %v5672, %v5656
    %v5689 = vpack.c.bf16 %v5673, %v5657
    %v5690 = vpack.c.bf16 %v5674, %v5658
    %v5691 = vpack.c.bf16 %v5675, %v5659
    %v5692 = vpack.c.bf16 %v5676, %v5660
    %v5693 = vpack.c.bf16 %v5677, %v5661
    %v5694 = vld [vmem:[%s47] sm:$0xf]
    %v5695 = vld [vmem:[%s47 + $0x4] sm:$0xf]
    %v5696 = vld [vmem:[%s47 + $0x8] sm:$0xf]
    %v5697 = vld [vmem:[%s47 + $0xc] sm:$0xf]
    %v5698 = vld [vmem:[%s47 + $0x10] sm:$0xf]
    %v5699 = vld [vmem:[%s47 + $0x14] sm:$0xf]
    %v5700 = vld [vmem:[%s47 + $0x18] sm:$0xf]
    %v5701 = vld [vmem:[%s47 + $0x1c] sm:$0xf]
    %v5702 = vld [vmem:[%s47 + $0x20] sm:$0xf]
    %v5703 = vld [vmem:[%s47 + $0x24] sm:$0xf]
    %v5704 = vld [vmem:[%s47 + $0x28] sm:$0xf]
    %v5705 = vld [vmem:[%s47 + $0x2c] sm:$0xf]
    %v5706 = vld [vmem:[%s47 + $0x30] sm:$0xf]
    %v5707 = vld [vmem:[%s47 + $0x34] sm:$0xf]
    %v5708 = vld [vmem:[%s47 + $0x38] sm:$0xf]
    %v5709 = vld [vmem:[%s47 + $0x3c] sm:$0xf]
    %v5710 = vld [vmem:[%s47 + $0x40] sm:$0xf]
    %v5711 = vld [vmem:[%s47 + $0x44] sm:$0xf]
    %v5712 = vld [vmem:[%s47 + $0x48] sm:$0xf]
    %v5713 = vld [vmem:[%s47 + $0x4c] sm:$0xf]
    %v5714 = vld [vmem:[%s47 + $0x50] sm:$0xf]
    %v5715 = vld [vmem:[%s47 + $0x54] sm:$0xf]
    %v5716 = vld [vmem:[%s47 + $0x58] sm:$0xf]
    %v5717 = vld [vmem:[%s47 + $0x5c] sm:$0xf]
    %v5718 = vld [vmem:[%s47 + $0x60] sm:$0xf]
    %v5719 = vld [vmem:[%s47 + $0x64] sm:$0xf]
    %v5720 = vld [vmem:[%s47 + $0x68] sm:$0xf]
    %v5721 = vld [vmem:[%s47 + $0x6c] sm:$0xf]
    %v5722 = vld [vmem:[%s47 + $0x70] sm:$0xf]
    %v5723 = vld [vmem:[%s47 + $0x74] sm:$0xf]
    %v5724 = vld [vmem:[%s47 + $0x78] sm:$0xf]
    %v5725 = vld [vmem:[%s47 + $0x7c] sm:$0xf]
    %v5726 = vld [vmem:[%s47 + $0x80] sm:$0xf]
    %v5727 = vld [vmem:[%s47 + $0x84] sm:$0xf]
    %v5728 = vld [vmem:[%s47 + $0x88] sm:$0xf]
    %v5729 = vld [vmem:[%s47 + $0x8c] sm:$0xf]
    %v5730 = vld [vmem:[%s47 + $0x90] sm:$0xf]
    %v5731 = vld [vmem:[%s47 + $0x94] sm:$0xf]
    %v5732 = vld [vmem:[%s47 + $0x98] sm:$0xf]
    %v5733 = vld [vmem:[%s47 + $0x9c] sm:$0xf]
    %v5734 = vld [vmem:[%s47 + $0xa0] sm:$0xf]
    %v5735 = vld [vmem:[%s47 + $0xa4] sm:$0xf]
    %v5736 = vld [vmem:[%s47 + $0xa8] sm:$0xf]
    %v5737 = vld [vmem:[%s47 + $0xac] sm:$0xf]
    %v5738 = vld [vmem:[%s47 + $0xb0] sm:$0xf]
    %v5739 = vld [vmem:[%s47 + $0xb4] sm:$0xf]
    %v5740 = vld [vmem:[%s47 + $0xb8] sm:$0xf]
    %v5741 = vld [vmem:[%s47 + $0xbc] sm:$0xf]
    %v5742 = vld [vmem:[%s47 + $0xc0] sm:$0xf]
    %v5743 = vld [vmem:[%s47 + $0xc4] sm:$0xf]
    %v5744 = vld [vmem:[%s47 + $0xc8] sm:$0xf]
    %v5745 = vld [vmem:[%s47 + $0xcc] sm:$0xf]
    %v5746 = vld [vmem:[%s47 + $0xd0] sm:$0xf]
    %v5747 = vld [vmem:[%s47 + $0xd4] sm:$0xf]
    %v5748 = vld [vmem:[%s47 + $0xd8] sm:$0xf]
    %v5749 = vld [vmem:[%s47 + $0xdc] sm:$0xf]
    %v5750 = vld [vmem:[%s47 + $0xe0] sm:$0xf]
    %v5751 = vld [vmem:[%s47 + $0xe4] sm:$0xf]
    %v5752 = vld [vmem:[%s47 + $0xe8] sm:$0xf]
    %v5753 = vld [vmem:[%s47 + $0xec] sm:$0xf]
    %v5754 = vld [vmem:[%s47 + $0xf0] sm:$0xf]
    %v5755 = vld [vmem:[%s47 + $0xf4] sm:$0xf]
    %v5756 = vld [vmem:[%s47 + $0xf8] sm:$0xf]
    %v5757 = vld [vmem:[%s47 + $0xfc] sm:$0xf]
    %v5758 = vld [vmem:[%s47 + $0x100] sm:$0xf]
    %v5759 = vld [vmem:[%s47 + $0x104] sm:$0xf]
    %v5760 = vld [vmem:[%s47 + $0x108] sm:$0xf]
    %v5761 = vld [vmem:[%s47 + $0x10c] sm:$0xf]
    %v5762 = vld [vmem:[%s47 + $0x110] sm:$0xf]
    %v5763 = vld [vmem:[%s47 + $0x114] sm:$0xf]
    %v5764 = vld [vmem:[%s47 + $0x118] sm:$0xf]
    %v5765 = vld [vmem:[%s47 + $0x11c] sm:$0xf]
    %v5766 = vld [vmem:[%s47 + $0x120] sm:$0xf]
    %v5767 = vld [vmem:[%s47 + $0x124] sm:$0xf]
    %v5768 = vld [vmem:[%s47 + $0x128] sm:$0xf]
    %v5769 = vld [vmem:[%s47 + $0x12c] sm:$0xf]
    %v5770 = vld [vmem:[%s47 + $0x130] sm:$0xf]
    %v5771 = vld [vmem:[%s47 + $0x134] sm:$0xf]
    %v5772 = vld [vmem:[%s47 + $0x138] sm:$0xf]
    %v5773 = vld [vmem:[%s47 + $0x13c] sm:$0xf]
    %v5774 = vld [vmem:[%s47 + $0x140] sm:$0xf]
    %v5775 = vld [vmem:[%s47 + $0x144] sm:$0xf]
    %v5776 = vld [vmem:[%s47 + $0x148] sm:$0xf]
    %v5777 = vld [vmem:[%s47 + $0x14c] sm:$0xf]
    %v5778 = vld [vmem:[%s47 + $0x150] sm:$0xf]
    %v5779 = vld [vmem:[%s47 + $0x154] sm:$0xf]
    %v5780 = vld [vmem:[%s47 + $0x158] sm:$0xf]
    %v5781 = vld [vmem:[%s47 + $0x15c] sm:$0xf]
    %v5782 = vld [vmem:[%s47 + $0x160] sm:$0xf]
    %v5783 = vld [vmem:[%s47 + $0x164] sm:$0xf]
    %v5784 = vld [vmem:[%s47 + $0x168] sm:$0xf]
    %v5785 = vld [vmem:[%s47 + $0x16c] sm:$0xf]
    %v5786 = vld [vmem:[%s47 + $0x170] sm:$0xf]
    %v5787 = vld [vmem:[%s47 + $0x174] sm:$0xf]
    %v5788 = vld [vmem:[%s47 + $0x178] sm:$0xf]
    %v5789 = vld [vmem:[%s47 + $0x17c] sm:$0xf]
    %v5790 = vld [vmem:[%s47 + $0x180] sm:$0xf]
    %v5791 = vld [vmem:[%s47 + $0x184] sm:$0xf]
    %v5792 = vld [vmem:[%s47 + $0x188] sm:$0xf]
    %v5793 = vld [vmem:[%s47 + $0x18c] sm:$0xf]
    %v5794 = vld [vmem:[%s47 + $0x190] sm:$0xf]
    %v5795 = vld [vmem:[%s47 + $0x194] sm:$0xf]
    %v5796 = vld [vmem:[%s47 + $0x198] sm:$0xf]
    %v5797 = vld [vmem:[%s47 + $0x19c] sm:$0xf]
    %v5798 = vld [vmem:[%s47 + $0x1a0] sm:$0xf]
    %v5799 = vld [vmem:[%s47 + $0x1a4] sm:$0xf]
    %v5800 = vld [vmem:[%s47 + $0x1a8] sm:$0xf]
    %v5801 = vld [vmem:[%s47 + $0x1ac] sm:$0xf]
    %v5802 = vld [vmem:[%s47 + $0x1b0] sm:$0xf]
    %v5803 = vld [vmem:[%s47 + $0x1b4] sm:$0xf]
    %v5804 = vld [vmem:[%s47 + $0x1b8] sm:$0xf]
    %v5805 = vld [vmem:[%s47 + $0x1bc] sm:$0xf]
    %v5806 = vld [vmem:[%s47 + $0x1c0] sm:$0xf]
    %v5807 = vld [vmem:[%s47 + $0x1c4] sm:$0xf]
    %v5808 = vld [vmem:[%s47 + $0x1c8] sm:$0xf]
    %v5809 = vld [vmem:[%s47 + $0x1cc] sm:$0xf]
    %v5810 = vld [vmem:[%s47 + $0x1d0] sm:$0xf]
    %v5811 = vld [vmem:[%s47 + $0x1d4] sm:$0xf]
    %v5812 = vld [vmem:[%s47 + $0x1d8] sm:$0xf]
    %v5813 = vld [vmem:[%s47 + $0x1dc] sm:$0xf]
    %v5814 = vld [vmem:[%s47 + $0x1e0] sm:$0xf]
    %v5815 = vld [vmem:[%s47 + $0x1e4] sm:$0xf]
    %v5816 = vld [vmem:[%s47 + $0x1e8] sm:$0xf]
    %v5817 = vld [vmem:[%s47 + $0x1ec] sm:$0xf]
    %v5818 = vld [vmem:[%s47 + $0x1f0] sm:$0xf]
    %v5819 = vld [vmem:[%s47 + $0x1f4] sm:$0xf]
    %v5820 = vld [vmem:[%s47 + $0x1f8] sm:$0xf]
    %v5821 = vld [vmem:[%s47 + $0x1fc] sm:$0xf]
    %v5822 = vld [vmem:[%s47 + $0x200] sm:$0xf]
    %v5823 = vld [vmem:[%s47 + $0x204] sm:$0xf]
    %v5824 = vld [vmem:[%s47 + $0x208] sm:$0xf]
    %v5825 = vld [vmem:[%s47 + $0x20c] sm:$0xf]
    %v5826 = vld [vmem:[%s47 + $0x210] sm:$0xf]
    %v5827 = vld [vmem:[%s47 + $0x214] sm:$0xf]
    %v5828 = vld [vmem:[%s47 + $0x218] sm:$0xf]
    %v5829 = vld [vmem:[%s47 + $0x21c] sm:$0xf]
    %v5830 = vld [vmem:[%s47 + $0x220] sm:$0xf]
    %v5831 = vld [vmem:[%s47 + $0x224] sm:$0xf]
    %v5832 = vld [vmem:[%s47 + $0x228] sm:$0xf]
    %v5833 = vld [vmem:[%s47 + $0x22c] sm:$0xf]
    %v5834 = vld [vmem:[%s47 + $0x230] sm:$0xf]
    %v5835 = vld [vmem:[%s47 + $0x234] sm:$0xf]
    %v5836 = vld [vmem:[%s47 + $0x238] sm:$0xf]
    %v5837 = vld [vmem:[%s47 + $0x23c] sm:$0xf]
    %v5838 = vld [vmem:[%s47 + $0x240] sm:$0xf]
    %v5839 = vld [vmem:[%s47 + $0x244] sm:$0xf]
    %v5840 = vld [vmem:[%s47 + $0x248] sm:$0xf]
    %v5841 = vld [vmem:[%s47 + $0x24c] sm:$0xf]
    %v5842 = vld [vmem:[%s47 + $0x250] sm:$0xf]
    %v5843 = vld [vmem:[%s47 + $0x254] sm:$0xf]
    %v5844 = vld [vmem:[%s47 + $0x258] sm:$0xf]
    %v5845 = vld [vmem:[%s47 + $0x25c] sm:$0xf]
    %v5846 = vld [vmem:[%s47 + $0x260] sm:$0xf]
    %v5847 = vld [vmem:[%s47 + $0x264] sm:$0xf]
    %v5848 = vld [vmem:[%s47 + $0x268] sm:$0xf]
    %v5849 = vld [vmem:[%s47 + $0x26c] sm:$0xf]
    %v5850 = vld [vmem:[%s47 + $0x270] sm:$0xf]
    %v5851 = vld [vmem:[%s47 + $0x274] sm:$0xf]
    %v5852 = vld [vmem:[%s47 + $0x278] sm:$0xf]
    %v5853 = vld [vmem:[%s47 + $0x27c] sm:$0xf]
    %v5854 = vld [vmem:[%s47 + $0x280] sm:$0xf]
    %v5855 = vld [vmem:[%s47 + $0x284] sm:$0xf]
    %v5856 = vld [vmem:[%s47 + $0x288] sm:$0xf]
    %v5857 = vld [vmem:[%s47 + $0x28c] sm:$0xf]
    %v5858 = vld [vmem:[%s47 + $0x290] sm:$0xf]
    %v5859 = vld [vmem:[%s47 + $0x294] sm:$0xf]
    %v5860 = vld [vmem:[%s47 + $0x298] sm:$0xf]
    %v5861 = vld [vmem:[%s47 + $0x29c] sm:$0xf]
    %v5862 = vld [vmem:[%s47 + $0x2a0] sm:$0xf]
    %v5863 = vld [vmem:[%s47 + $0x2a4] sm:$0xf]
    %v5864 = vld [vmem:[%s47 + $0x2a8] sm:$0xf]
    %v5865 = vld [vmem:[%s47 + $0x2ac] sm:$0xf]
    %v5866 = vld [vmem:[%s47 + $0x2b0] sm:$0xf]
    %v5867 = vld [vmem:[%s47 + $0x2b4] sm:$0xf]
    %v5868 = vld [vmem:[%s47 + $0x2b8] sm:$0xf]
    %v5869 = vld [vmem:[%s47 + $0x2bc] sm:$0xf]
    %v5870 = vld [vmem:[%s47 + $0x2c0] sm:$0xf]
    %v5871 = vld [vmem:[%s47 + $0x2c4] sm:$0xf]
    %v5872 = vld [vmem:[%s47 + $0x2c8] sm:$0xf]
    %v5873 = vld [vmem:[%s47 + $0x2cc] sm:$0xf]
    %v5874 = vld [vmem:[%s47 + $0x2d0] sm:$0xf]
    %v5875 = vld [vmem:[%s47 + $0x2d4] sm:$0xf]
    %v5876 = vld [vmem:[%s47 + $0x2d8] sm:$0xf]
    %v5877 = vld [vmem:[%s47 + $0x2dc] sm:$0xf]
    %v5878 = vld [vmem:[%s47 + $0x2e0] sm:$0xf]
    %v5879 = vld [vmem:[%s47 + $0x2e4] sm:$0xf]
    %v5880 = vld [vmem:[%s47 + $0x2e8] sm:$0xf]
    %v5881 = vld [vmem:[%s47 + $0x2ec] sm:$0xf]
    %v5882 = vld [vmem:[%s47 + $0x2f0] sm:$0xf]
    %v5883 = vld [vmem:[%s47 + $0x2f4] sm:$0xf]
    %v5884 = vld [vmem:[%s47 + $0x2f8] sm:$0xf]
    %v5885 = vld [vmem:[%s47 + $0x2fc] sm:$0xf]
    %v5886 = vld [vmem:[%s47 + $0x300] sm:$0xf]
    %v5887 = vld [vmem:[%s47 + $0x304] sm:$0xf]
    %v5888 = vld [vmem:[%s47 + $0x308] sm:$0xf]
    %v5889 = vld [vmem:[%s47 + $0x30c] sm:$0xf]
    %v5890 = vld [vmem:[%s47 + $0x310] sm:$0xf]
    %v5891 = vld [vmem:[%s47 + $0x314] sm:$0xf]
    %v5892 = vld [vmem:[%s47 + $0x318] sm:$0xf]
    %v5893 = vld [vmem:[%s47 + $0x31c] sm:$0xf]
    %v5894 = vld [vmem:[%s47 + $0x320] sm:$0xf]
    %v5895 = vld [vmem:[%s47 + $0x324] sm:$0xf]
    %v5896 = vld [vmem:[%s47 + $0x328] sm:$0xf]
    %v5897 = vld [vmem:[%s47 + $0x32c] sm:$0xf]
    %v5898 = vld [vmem:[%s47 + $0x330] sm:$0xf]
    %v5899 = vld [vmem:[%s47 + $0x334] sm:$0xf]
    %v5900 = vld [vmem:[%s47 + $0x338] sm:$0xf]
    %v5901 = vld [vmem:[%s47 + $0x33c] sm:$0xf]
    %v5902 = vld [vmem:[%s47 + $0x340] sm:$0xf]
    %v5903 = vld [vmem:[%s47 + $0x344] sm:$0xf]
    %v5904 = vld [vmem:[%s47 + $0x348] sm:$0xf]
    %v5905 = vld [vmem:[%s47 + $0x34c] sm:$0xf]
    %v5906 = vld [vmem:[%s47 + $0x350] sm:$0xf]
    %v5907 = vld [vmem:[%s47 + $0x354] sm:$0xf]
    %v5908 = vld [vmem:[%s47 + $0x358] sm:$0xf]
    %v5909 = vld [vmem:[%s47 + $0x35c] sm:$0xf]
    %v5910 = vld [vmem:[%s47 + $0x360] sm:$0xf]
    %v5911 = vld [vmem:[%s47 + $0x364] sm:$0xf]
    %v5912 = vld [vmem:[%s47 + $0x368] sm:$0xf]
    %v5913 = vld [vmem:[%s47 + $0x36c] sm:$0xf]
    %v5914 = vld [vmem:[%s47 + $0x370] sm:$0xf]
    %v5915 = vld [vmem:[%s47 + $0x374] sm:$0xf]
    %v5916 = vld [vmem:[%s47 + $0x378] sm:$0xf]
    %v5917 = vld [vmem:[%s47 + $0x37c] sm:$0xf]
    %v5918 = vld [vmem:[%s47 + $0x380] sm:$0xf]
    %v5919 = vld [vmem:[%s47 + $0x384] sm:$0xf]
    %v5920 = vld [vmem:[%s47 + $0x388] sm:$0xf]
    %v5921 = vld [vmem:[%s47 + $0x38c] sm:$0xf]
    %v5922 = vld [vmem:[%s47 + $0x390] sm:$0xf]
    %v5923 = vld [vmem:[%s47 + $0x394] sm:$0xf]
    %v5924 = vld [vmem:[%s47 + $0x398] sm:$0xf]
    %v5925 = vld [vmem:[%s47 + $0x39c] sm:$0xf]
    %v5926 = vld [vmem:[%s47 + $0x3a0] sm:$0xf]
    %v5927 = vld [vmem:[%s47 + $0x3a4] sm:$0xf]
    %v5928 = vld [vmem:[%s47 + $0x3a8] sm:$0xf]
    %v5929 = vld [vmem:[%s47 + $0x3ac] sm:$0xf]
    %v5930 = vld [vmem:[%s47 + $0x3b0] sm:$0xf]
    %v5931 = vld [vmem:[%s47 + $0x3b4] sm:$0xf]
    %v5932 = vld [vmem:[%s47 + $0x3b8] sm:$0xf]
    %v5933 = vld [vmem:[%s47 + $0x3bc] sm:$0xf]
    %v5934 = vld [vmem:[%s47 + $0x3c0] sm:$0xf]
    %v5935 = vld [vmem:[%s47 + $0x3c4] sm:$0xf]
    %v5936 = vld [vmem:[%s47 + $0x3c8] sm:$0xf]
    %v5937 = vld [vmem:[%s47 + $0x3cc] sm:$0xf]
    %v5938 = vld [vmem:[%s47 + $0x3d0] sm:$0xf]
    %v5939 = vld [vmem:[%s47 + $0x3d4] sm:$0xf]
    %v5940 = vld [vmem:[%s47 + $0x3d8] sm:$0xf]
    %v5941 = vld [vmem:[%s47 + $0x3dc] sm:$0xf]
    %v5942 = vld [vmem:[%s47 + $0x3e0] sm:$0xf]
    %v5943 = vld [vmem:[%s47 + $0x3e4] sm:$0xf]
    %v5944 = vld [vmem:[%s47 + $0x3e8] sm:$0xf]
    %v5945 = vld [vmem:[%s47 + $0x3ec] sm:$0xf]
    %v5946 = vld [vmem:[%s47 + $0x3f0] sm:$0xf]
    %v5947 = vld [vmem:[%s47 + $0x3f4] sm:$0xf]
    %v5948 = vld [vmem:[%s47 + $0x3f8] sm:$0xf]
    %v5949 = vld [vmem:[%s47 + $0x3fc] sm:$0xf]
    %v5950 = vld [vmem:[%s49] sm:$0x1]
    %v5952 = vlaneseq
    %v5953 = vshrl.u32 %v5952, 7
    %v5954 = vsub.s32 0, %v5953
    %v5955 = vrot.slane %v5950, %v5954
    %v6213 = vunpack.c.l.b16 %v5694
    %v6214 = vunpack.c.l.b16 %v5695
    %v6215 = vunpack.c.l.b16 %v5696
    %v6216 = vunpack.c.l.b16 %v5697
    %v6217 = vunpack.c.l.b16 %v5698
    %v6218 = vunpack.c.l.b16 %v5699
    %v6219 = vunpack.c.l.b16 %v5700
    %v6220 = vunpack.c.l.b16 %v5701
    %v6221 = vunpack.c.l.b16 %v5702
    %v6222 = vunpack.c.l.b16 %v5703
    %v6223 = vunpack.c.l.b16 %v5704
    %v6224 = vunpack.c.l.b16 %v5705
    %v6225 = vunpack.c.l.b16 %v5706
    %v6226 = vunpack.c.l.b16 %v5707
    %v6227 = vunpack.c.l.b16 %v5708
    %v6228 = vunpack.c.l.b16 %v5709
    %v6229 = vunpack.c.l.b16 %v5710
    %v6230 = vunpack.c.l.b16 %v5711
    %v6231 = vunpack.c.l.b16 %v5712
    %v6232 = vunpack.c.l.b16 %v5713
    %v6233 = vunpack.c.l.b16 %v5714
    %v6234 = vunpack.c.l.b16 %v5715
    %v6235 = vunpack.c.l.b16 %v5716
    %v6236 = vunpack.c.l.b16 %v5717
    %v6237 = vunpack.c.l.b16 %v5718
    %v6238 = vunpack.c.l.b16 %v5719
    %v6239 = vunpack.c.l.b16 %v5720
    %v6240 = vunpack.c.l.b16 %v5721
    %v6241 = vunpack.c.l.b16 %v5722
    %v6242 = vunpack.c.l.b16 %v5723
    %v6243 = vunpack.c.l.b16 %v5724
    %v6244 = vunpack.c.l.b16 %v5725
    %v6245 = vunpack.c.l.b16 %v5726
    %v6246 = vunpack.c.l.b16 %v5727
    %v6247 = vunpack.c.l.b16 %v5728
    %v6248 = vunpack.c.l.b16 %v5729
    %v6249 = vunpack.c.l.b16 %v5730
    %v6250 = vunpack.c.l.b16 %v5731
    %v6251 = vunpack.c.l.b16 %v5732
    %v6252 = vunpack.c.l.b16 %v5733
    %v6253 = vunpack.c.l.b16 %v5734
    %v6254 = vunpack.c.l.b16 %v5735
    %v6255 = vunpack.c.l.b16 %v5736
    %v6256 = vunpack.c.l.b16 %v5737
    %v6257 = vunpack.c.l.b16 %v5738
    %v6258 = vunpack.c.l.b16 %v5739
    %v6259 = vunpack.c.l.b16 %v5740
    %v6260 = vunpack.c.l.b16 %v5741
    %v6261 = vunpack.c.l.b16 %v5742
    %v6262 = vunpack.c.l.b16 %v5743
    %v6263 = vunpack.c.l.b16 %v5744
    %v6264 = vunpack.c.l.b16 %v5745
    %v6265 = vunpack.c.l.b16 %v5746
    %v6266 = vunpack.c.l.b16 %v5747
    %v6267 = vunpack.c.l.b16 %v5748
    %v6268 = vunpack.c.l.b16 %v5749
    %v6269 = vunpack.c.l.b16 %v5750
    %v6270 = vunpack.c.l.b16 %v5751
    %v6271 = vunpack.c.l.b16 %v5752
    %v6272 = vunpack.c.l.b16 %v5753
    %v6273 = vunpack.c.l.b16 %v5754
    %v6274 = vunpack.c.l.b16 %v5755
    %v6275 = vunpack.c.l.b16 %v5756
    %v6276 = vunpack.c.l.b16 %v5757
    %v6277 = vunpack.c.l.b16 %v5758
    %v6278 = vunpack.c.l.b16 %v5759
    %v6279 = vunpack.c.l.b16 %v5760
    %v6280 = vunpack.c.l.b16 %v5761
    %v6281 = vunpack.c.l.b16 %v5762
    %v6282 = vunpack.c.l.b16 %v5763
    %v6283 = vunpack.c.l.b16 %v5764
    %v6284 = vunpack.c.l.b16 %v5765
    %v6285 = vunpack.c.l.b16 %v5766
    %v6286 = vunpack.c.l.b16 %v5767
    %v6287 = vunpack.c.l.b16 %v5768
    %v6288 = vunpack.c.l.b16 %v5769
    %v6289 = vunpack.c.l.b16 %v5770
    %v6290 = vunpack.c.l.b16 %v5771
    %v6291 = vunpack.c.l.b16 %v5772
    %v6292 = vunpack.c.l.b16 %v5773
    %v6293 = vunpack.c.l.b16 %v5774
    %v6294 = vunpack.c.l.b16 %v5775
    %v6295 = vunpack.c.l.b16 %v5776
    %v6296 = vunpack.c.l.b16 %v5777
    %v6297 = vunpack.c.l.b16 %v5778
    %v6298 = vunpack.c.l.b16 %v5779
    %v6299 = vunpack.c.l.b16 %v5780
    %v6300 = vunpack.c.l.b16 %v5781
    %v6301 = vunpack.c.l.b16 %v5782
    %v6302 = vunpack.c.l.b16 %v5783
    %v6303 = vunpack.c.l.b16 %v5784
    %v6304 = vunpack.c.l.b16 %v5785
    %v6305 = vunpack.c.l.b16 %v5786
    %v6306 = vunpack.c.l.b16 %v5787
    %v6307 = vunpack.c.l.b16 %v5788
    %v6308 = vunpack.c.l.b16 %v5789
    %v6309 = vunpack.c.l.b16 %v5790
    %v6310 = vunpack.c.l.b16 %v5791
    %v6311 = vunpack.c.l.b16 %v5792
    %v6312 = vunpack.c.l.b16 %v5793
    %v6313 = vunpack.c.l.b16 %v5794
    %v6314 = vunpack.c.l.b16 %v5795
    %v6315 = vunpack.c.l.b16 %v5796
    %v6316 = vunpack.c.l.b16 %v5797
    %v6317 = vunpack.c.l.b16 %v5798
    %v6318 = vunpack.c.l.b16 %v5799
    %v6319 = vunpack.c.l.b16 %v5800
    %v6320 = vunpack.c.l.b16 %v5801
    %v6321 = vunpack.c.l.b16 %v5802
    %v6322 = vunpack.c.l.b16 %v5803
    %v6323 = vunpack.c.l.b16 %v5804
    %v6324 = vunpack.c.l.b16 %v5805
    %v6325 = vunpack.c.l.b16 %v5806
    %v6326 = vunpack.c.l.b16 %v5807
    %v6327 = vunpack.c.l.b16 %v5808
    %v6328 = vunpack.c.l.b16 %v5809
    %v6329 = vunpack.c.l.b16 %v5810
    %v6330 = vunpack.c.l.b16 %v5811
    %v6331 = vunpack.c.l.b16 %v5812
    %v6332 = vunpack.c.l.b16 %v5813
    %v6333 = vunpack.c.l.b16 %v5814
    %v6334 = vunpack.c.l.b16 %v5815
    %v6335 = vunpack.c.l.b16 %v5816
    %v6336 = vunpack.c.l.b16 %v5817
    %v6337 = vunpack.c.l.b16 %v5818
    %v6338 = vunpack.c.l.b16 %v5819
    %v6339 = vunpack.c.l.b16 %v5820
    %v6340 = vunpack.c.l.b16 %v5821
    %v6341 = vunpack.c.l.b16 %v5822
    %v6342 = vunpack.c.l.b16 %v5823
    %v6343 = vunpack.c.l.b16 %v5824
    %v6344 = vunpack.c.l.b16 %v5825
    %v6345 = vunpack.c.l.b16 %v5826
    %v6346 = vunpack.c.l.b16 %v5827
    %v6347 = vunpack.c.l.b16 %v5828
    %v6348 = vunpack.c.l.b16 %v5829
    %v6349 = vunpack.c.l.b16 %v5830
    %v6350 = vunpack.c.l.b16 %v5831
    %v6351 = vunpack.c.l.b16 %v5832
    %v6352 = vunpack.c.l.b16 %v5833
    %v6353 = vunpack.c.l.b16 %v5834
    %v6354 = vunpack.c.l.b16 %v5835
    %v6355 = vunpack.c.l.b16 %v5836
    %v6356 = vunpack.c.l.b16 %v5837
    %v6357 = vunpack.c.l.b16 %v5838
    %v6358 = vunpack.c.l.b16 %v5839
    %v6359 = vunpack.c.l.b16 %v5840
    %v6360 = vunpack.c.l.b16 %v5841
    %v6361 = vunpack.c.l.b16 %v5842
    %v6362 = vunpack.c.l.b16 %v5843
    %v6363 = vunpack.c.l.b16 %v5844
    %v6364 = vunpack.c.l.b16 %v5845
    %v6365 = vunpack.c.l.b16 %v5846
    %v6366 = vunpack.c.l.b16 %v5847
    %v6367 = vunpack.c.l.b16 %v5848
    %v6368 = vunpack.c.l.b16 %v5849
    %v6369 = vunpack.c.l.b16 %v5850
    %v6370 = vunpack.c.l.b16 %v5851
    %v6371 = vunpack.c.l.b16 %v5852
    %v6372 = vunpack.c.l.b16 %v5853
    %v6373 = vunpack.c.l.b16 %v5854
    %v6374 = vunpack.c.l.b16 %v5855
    %v6375 = vunpack.c.l.b16 %v5856
    %v6376 = vunpack.c.l.b16 %v5857
    %v6377 = vunpack.c.l.b16 %v5858
    %v6378 = vunpack.c.l.b16 %v5859
    %v6379 = vunpack.c.l.b16 %v5860
    %v6380 = vunpack.c.l.b16 %v5861
    %v6381 = vunpack.c.l.b16 %v5862
    %v6382 = vunpack.c.l.b16 %v5863
    %v6383 = vunpack.c.l.b16 %v5864
    %v6384 = vunpack.c.l.b16 %v5865
    %v6385 = vunpack.c.l.b16 %v5866
    %v6386 = vunpack.c.l.b16 %v5867
    %v6387 = vunpack.c.l.b16 %v5868
    %v6388 = vunpack.c.l.b16 %v5869
    %v6389 = vunpack.c.l.b16 %v5870
    %v6390 = vunpack.c.l.b16 %v5871
    %v6391 = vunpack.c.l.b16 %v5872
    %v6392 = vunpack.c.l.b16 %v5873
    %v6393 = vunpack.c.l.b16 %v5874
    %v6394 = vunpack.c.l.b16 %v5875
    %v6395 = vunpack.c.l.b16 %v5876
    %v6396 = vunpack.c.l.b16 %v5877
    %v6397 = vunpack.c.l.b16 %v5878
    %v6398 = vunpack.c.l.b16 %v5879
    %v6399 = vunpack.c.l.b16 %v5880
    %v6400 = vunpack.c.l.b16 %v5881
    %v6401 = vunpack.c.l.b16 %v5882
    %v6402 = vunpack.c.l.b16 %v5883
    %v6403 = vunpack.c.l.b16 %v5884
    %v6404 = vunpack.c.l.b16 %v5885
    %v6405 = vunpack.c.l.b16 %v5886
    %v6406 = vunpack.c.l.b16 %v5887
    %v6407 = vunpack.c.l.b16 %v5888
    %v6408 = vunpack.c.l.b16 %v5889
    %v6409 = vunpack.c.l.b16 %v5890
    %v6410 = vunpack.c.l.b16 %v5891
    %v6411 = vunpack.c.l.b16 %v5892
    %v6412 = vunpack.c.l.b16 %v5893
    %v6413 = vunpack.c.l.b16 %v5894
    %v6414 = vunpack.c.l.b16 %v5895
    %v6415 = vunpack.c.l.b16 %v5896
    %v6416 = vunpack.c.l.b16 %v5897
    %v6417 = vunpack.c.l.b16 %v5898
    %v6418 = vunpack.c.l.b16 %v5899
    %v6419 = vunpack.c.l.b16 %v5900
    %v6420 = vunpack.c.l.b16 %v5901
    %v6421 = vunpack.c.l.b16 %v5902
    %v6422 = vunpack.c.l.b16 %v5903
    %v6423 = vunpack.c.l.b16 %v5904
    %v6424 = vunpack.c.l.b16 %v5905
    %v6425 = vunpack.c.l.b16 %v5906
    %v6426 = vunpack.c.l.b16 %v5907
    %v6427 = vunpack.c.l.b16 %v5908
    %v6428 = vunpack.c.l.b16 %v5909
    %v6429 = vunpack.c.l.b16 %v5910
    %v6430 = vunpack.c.l.b16 %v5911
    %v6431 = vunpack.c.l.b16 %v5912
    %v6432 = vunpack.c.l.b16 %v5913
    %v6433 = vunpack.c.l.b16 %v5914
    %v6434 = vunpack.c.l.b16 %v5915
    %v6435 = vunpack.c.l.b16 %v5916
    %v6436 = vunpack.c.l.b16 %v5917
    %v6437 = vunpack.c.l.b16 %v5918
    %v6438 = vunpack.c.l.b16 %v5919
    %v6439 = vunpack.c.l.b16 %v5920
    %v6440 = vunpack.c.l.b16 %v5921
    %v6441 = vunpack.c.l.b16 %v5922
    %v6442 = vunpack.c.l.b16 %v5923
    %v6443 = vunpack.c.l.b16 %v5924
    %v6444 = vunpack.c.l.b16 %v5925
    %v6445 = vunpack.c.l.b16 %v5926
    %v6446 = vunpack.c.l.b16 %v5927
    %v6447 = vunpack.c.l.b16 %v5928
    %v6448 = vunpack.c.l.b16 %v5929
    %v6449 = vunpack.c.l.b16 %v5930
    %v6450 = vunpack.c.l.b16 %v5931
    %v6451 = vunpack.c.l.b16 %v5932
    %v6452 = vunpack.c.l.b16 %v5933
    %v6453 = vunpack.c.l.b16 %v5934
    %v6454 = vunpack.c.l.b16 %v5935
    %v6455 = vunpack.c.l.b16 %v5936
    %v6456 = vunpack.c.l.b16 %v5937
    %v6457 = vunpack.c.l.b16 %v5938
    %v6458 = vunpack.c.l.b16 %v5939
    %v6459 = vunpack.c.l.b16 %v5940
    %v6460 = vunpack.c.l.b16 %v5941
    %v6461 = vunpack.c.l.b16 %v5942
    %v6462 = vunpack.c.l.b16 %v5943
    %v6463 = vunpack.c.l.b16 %v5944
    %v6464 = vunpack.c.l.b16 %v5945
    %v6465 = vunpack.c.l.b16 %v5946
    %v6466 = vunpack.c.l.b16 %v5947
    %v6467 = vunpack.c.l.b16 %v5948
    %v6468 = vunpack.c.l.b16 %v5949
    %v6469 = vpack.c.b16 %v6214, %v6213
    %v6470 = vpack.c.b16 %v6216, %v6215
    %v6471 = vpack.c.b16 %v6218, %v6217
    %v6472 = vpack.c.b16 %v6220, %v6219
    %v6473 = vpack.c.b16 %v6222, %v6221
    %v6474 = vpack.c.b16 %v6224, %v6223
    %v6475 = vpack.c.b16 %v6226, %v6225
    %v6476 = vpack.c.b16 %v6228, %v6227
    %v6477 = vpack.c.b16 %v6230, %v6229
    %v6478 = vpack.c.b16 %v6232, %v6231
    %v6479 = vpack.c.b16 %v6234, %v6233
    %v6480 = vpack.c.b16 %v6236, %v6235
    %v6481 = vpack.c.b16 %v6238, %v6237
    %v6482 = vpack.c.b16 %v6240, %v6239
    %v6483 = vpack.c.b16 %v6242, %v6241
    %v6484 = vpack.c.b16 %v6244, %v6243
    %v6485 = vpack.c.b16 %v6246, %v6245
    %v6486 = vpack.c.b16 %v6248, %v6247
    %v6487 = vpack.c.b16 %v6250, %v6249
    %v6488 = vpack.c.b16 %v6252, %v6251
    %v6489 = vpack.c.b16 %v6254, %v6253
    %v6490 = vpack.c.b16 %v6256, %v6255
    %v6491 = vpack.c.b16 %v6258, %v6257
    %v6492 = vpack.c.b16 %v6260, %v6259
    %v6493 = vpack.c.b16 %v6262, %v6261
    %v6494 = vpack.c.b16 %v6264, %v6263
    %v6495 = vpack.c.b16 %v6266, %v6265
    %v6496 = vpack.c.b16 %v6268, %v6267
    %v6497 = vpack.c.b16 %v6270, %v6269
    %v6498 = vpack.c.b16 %v6272, %v6271
    %v6499 = vpack.c.b16 %v6274, %v6273
    %v6500 = vpack.c.b16 %v6276, %v6275
    %v6501 = vpack.c.b16 %v6278, %v6277
    %v6502 = vpack.c.b16 %v6280, %v6279
    %v6503 = vpack.c.b16 %v6282, %v6281
    %v6504 = vpack.c.b16 %v6284, %v6283
    %v6505 = vpack.c.b16 %v6286, %v6285
    %v6506 = vpack.c.b16 %v6288, %v6287
    %v6507 = vpack.c.b16 %v6290, %v6289
    %v6508 = vpack.c.b16 %v6292, %v6291
    %v6509 = vpack.c.b16 %v6294, %v6293
    %v6510 = vpack.c.b16 %v6296, %v6295
    %v6511 = vpack.c.b16 %v6298, %v6297
    %v6512 = vpack.c.b16 %v6300, %v6299
    %v6513 = vpack.c.b16 %v6302, %v6301
    %v6514 = vpack.c.b16 %v6304, %v6303
    %v6515 = vpack.c.b16 %v6306, %v6305
    %v6516 = vpack.c.b16 %v6308, %v6307
    %v6517 = vpack.c.b16 %v6310, %v6309
    %v6518 = vpack.c.b16 %v6312, %v6311
    %v6519 = vpack.c.b16 %v6314, %v6313
    %v6520 = vpack.c.b16 %v6316, %v6315
    %v6521 = vpack.c.b16 %v6318, %v6317
    %v6522 = vpack.c.b16 %v6320, %v6319
    %v6523 = vpack.c.b16 %v6322, %v6321
    %v6524 = vpack.c.b16 %v6324, %v6323
    %v6525 = vpack.c.b16 %v6326, %v6325
    %v6526 = vpack.c.b16 %v6328, %v6327
    %v6527 = vpack.c.b16 %v6330, %v6329
    %v6528 = vpack.c.b16 %v6332, %v6331
    %v6529 = vpack.c.b16 %v6334, %v6333
    %v6530 = vpack.c.b16 %v6336, %v6335
    %v6531 = vpack.c.b16 %v6338, %v6337
    %v6532 = vpack.c.b16 %v6340, %v6339
    %v6533 = vpack.c.b16 %v6342, %v6341
    %v6534 = vpack.c.b16 %v6344, %v6343
    %v6535 = vpack.c.b16 %v6346, %v6345
    %v6536 = vpack.c.b16 %v6348, %v6347
    %v6537 = vpack.c.b16 %v6350, %v6349
    %v6538 = vpack.c.b16 %v6352, %v6351
    %v6539 = vpack.c.b16 %v6354, %v6353
    %v6540 = vpack.c.b16 %v6356, %v6355
    %v6541 = vpack.c.b16 %v6358, %v6357
    %v6542 = vpack.c.b16 %v6360, %v6359
    %v6543 = vpack.c.b16 %v6362, %v6361
    %v6544 = vpack.c.b16 %v6364, %v6363
    %v6545 = vpack.c.b16 %v6366, %v6365
    %v6546 = vpack.c.b16 %v6368, %v6367
    %v6547 = vpack.c.b16 %v6370, %v6369
    %v6548 = vpack.c.b16 %v6372, %v6371
    %v6549 = vpack.c.b16 %v6374, %v6373
    %v6550 = vpack.c.b16 %v6376, %v6375
    %v6551 = vpack.c.b16 %v6378, %v6377
    %v6552 = vpack.c.b16 %v6380, %v6379
    %v6553 = vpack.c.b16 %v6382, %v6381
    %v6554 = vpack.c.b16 %v6384, %v6383
    %v6555 = vpack.c.b16 %v6386, %v6385
    %v6556 = vpack.c.b16 %v6388, %v6387
    %v6557 = vpack.c.b16 %v6390, %v6389
    %v6558 = vpack.c.b16 %v6392, %v6391
    %v6559 = vpack.c.b16 %v6394, %v6393
    %v6560 = vpack.c.b16 %v6396, %v6395
    %v6561 = vpack.c.b16 %v6398, %v6397
    %v6562 = vpack.c.b16 %v6400, %v6399
    %v6563 = vpack.c.b16 %v6402, %v6401
    %v6564 = vpack.c.b16 %v6404, %v6403
    %v6565 = vpack.c.b16 %v6406, %v6405
    %v6566 = vpack.c.b16 %v6408, %v6407
    %v6567 = vpack.c.b16 %v6410, %v6409
    %v6568 = vpack.c.b16 %v6412, %v6411
    %v6569 = vpack.c.b16 %v6414, %v6413
    %v6570 = vpack.c.b16 %v6416, %v6415
    %v6571 = vpack.c.b16 %v6418, %v6417
    %v6572 = vpack.c.b16 %v6420, %v6419
    %v6573 = vpack.c.b16 %v6422, %v6421
    %v6574 = vpack.c.b16 %v6424, %v6423
    %v6575 = vpack.c.b16 %v6426, %v6425
    %v6576 = vpack.c.b16 %v6428, %v6427
    %v6577 = vpack.c.b16 %v6430, %v6429
    %v6578 = vpack.c.b16 %v6432, %v6431
    %v6579 = vpack.c.b16 %v6434, %v6433
    %v6580 = vpack.c.b16 %v6436, %v6435
    %v6581 = vpack.c.b16 %v6438, %v6437
    %v6582 = vpack.c.b16 %v6440, %v6439
    %v6583 = vpack.c.b16 %v6442, %v6441
    %v6584 = vpack.c.b16 %v6444, %v6443
    %v6585 = vpack.c.b16 %v6446, %v6445
    %v6586 = vpack.c.b16 %v6448, %v6447
    %v6587 = vpack.c.b16 %v6450, %v6449
    %v6588 = vpack.c.b16 %v6452, %v6451
    %v6589 = vpack.c.b16 %v6454, %v6453
    %v6590 = vpack.c.b16 %v6456, %v6455
    %v6591 = vpack.c.b16 %v6458, %v6457
    %v6592 = vpack.c.b16 %v6460, %v6459
    %v6593 = vpack.c.b16 %v6462, %v6461
    %v6594 = vpack.c.b16 %v6464, %v6463
    %v6595 = vpack.c.b16 %v6466, %v6465
    %v6596 = vpack.c.b16 %v6468, %v6467
    %6725 = vmatprep.subr.bf16.mxu0 0
    %6726 = vmatpush1.bf16.msra.mxu0 %v6476
    %6727 = vmatprep.subr.bf16.mxu0 0
    %6728 = vmatpush1.bf16.msra.mxu0 %v6475
    %6729 = vmatprep.subr.bf16.mxu0 0
    %6730 = vmatpush1.bf16.msra.mxu0 %v6474
    %6731 = vmatprep.subr.bf16.mxu0 0
    %6732 = vmatpush1.bf16.msra.mxu0 %v6473
    %6733 = vmatprep.subr.bf16.mxu0 0
    %6734 = vmatpush1.bf16.msra.mxu0 %v6472
    %6735 = vmatprep.subr.bf16.mxu0 0
    %6736 = vmatpush1.bf16.msra.mxu0 %v6471
    %6737 = vmatprep.subr.bf16.mxu0 0
    %6738 = vmatpush1.bf16.msra.mxu0 %v6470
    %6739 = vmatprep.subr.bf16.mxu0 0
    %6740 = vmatpush1.bf16.msra.mxu0 %v6469
    %6741 = vmatprep.subr.bf16.mxu0 0
    %6742 = vmatpush2.bf16.msra.mxu0 %v6484
    %6743 = vmatprep.subr.bf16.mxu0 0
    %6744 = vmatpush2.bf16.msra.mxu0 %v6483
    %6745 = vmatprep.subr.bf16.mxu0 0
    %6746 = vmatpush2.bf16.msra.mxu0 %v6482
    %6747 = vmatprep.subr.bf16.mxu0 0
    %6748 = vmatpush2.bf16.msra.mxu0 %v6481
    %6749 = vmatprep.subr.bf16.mxu0 0
    %6750 = vmatpush2.bf16.msra.mxu0 %v6480
    %6751 = vmatprep.subr.bf16.mxu0 0
    %6752 = vmatpush2.bf16.msra.mxu0 %v6479
    %6753 = vmatprep.subr.bf16.mxu0 0
    %6754 = vmatpush2.bf16.msra.mxu0 %v6478
    %6755 = vmatprep.subr.bf16.mxu0 0
    %6756 = vmatpush2.bf16.msra.mxu0 %v6477
    %6757 = vmatprep.mubr.bf16.mxu0 %v5679
    %6758 = vmatmul.mubr.bf16.gmra.mxu0 %v5678
    %v6759 = vpop.f32.mrf.mxu0
    %v6760 = vadd.f32 %v5955, %v6759
    %v6761 = vpop.f32.mrf.mxu0
    %v6762 = vpop.f32.mrf.mxu0
    %v6763 = vadd.f32 %v5955, %v6762
    %v6764 = vpop.f32.mrf.mxu0
    %6765 = vdwg.mxu0
    %6766 = vmatprep.subr.bf16.mxu0 0
    %6767 = vmatpush1.bf16.msra.mxu0 %v6492
    %6768 = vmatprep.subr.bf16.mxu0 0
    %6769 = vmatpush1.bf16.msra.mxu0 %v6491
    %6770 = vmatprep.subr.bf16.mxu0 0
    %6771 = vmatpush1.bf16.msra.mxu0 %v6490
    %6772 = vmatprep.subr.bf16.mxu0 0
    %6773 = vmatpush1.bf16.msra.mxu0 %v6489
    %6774 = vmatprep.subr.bf16.mxu0 0
    %6775 = vmatpush1.bf16.msra.mxu0 %v6488
    %6776 = vmatprep.subr.bf16.mxu0 0
    %6777 = vmatpush1.bf16.msra.mxu0 %v6487
    %6778 = vmatprep.subr.bf16.mxu0 0
    %6779 = vmatpush1.bf16.msra.mxu0 %v6486
    %6780 = vmatprep.subr.bf16.mxu0 0
    %6781 = vmatpush1.bf16.msra.mxu0 %v6485
    %6782 = vmatprep.subr.bf16.mxu0 0
    %6783 = vmatpush2.bf16.msra.mxu0 %v6500
    %6784 = vmatprep.subr.bf16.mxu0 0
    %6785 = vmatpush2.bf16.msra.mxu0 %v6499
    %6786 = vmatprep.subr.bf16.mxu0 0
    %6787 = vmatpush2.bf16.msra.mxu0 %v6498
    %6788 = vmatprep.subr.bf16.mxu0 0
    %6789 = vmatpush2.bf16.msra.mxu0 %v6497
    %6790 = vmatprep.subr.bf16.mxu0 0
    %6791 = vmatpush2.bf16.msra.mxu0 %v6496
    %6792 = vmatprep.subr.bf16.mxu0 0
    %6793 = vmatpush2.bf16.msra.mxu0 %v6495
    %6794 = vmatprep.subr.bf16.mxu0 0
    %6795 = vmatpush2.bf16.msra.mxu0 %v6494
    %6796 = vmatprep.subr.bf16.mxu0 0
    %6797 = vmatpush2.bf16.msra.mxu0 %v6493
    %6798 = vmatprep.mubr.bf16.mxu0 %v5681
    %6799 = vmatmul.mubr.bf16.gmra.mxu0 %v5680
    %v6800 = vpop.f32.mrf.mxu0
    %v6801 = vadd.f32 %v6760, %v6800
    %v6802 = vpop.f32.mrf.mxu0
    %v6803 = vpop.f32.mrf.mxu0
    %v6804 = vadd.f32 %v6763, %v6803
    %v6805 = vpop.f32.mrf.mxu0
    %6806 = vdwg.mxu0
    %6807 = vmatprep.subr.bf16.mxu0 0
    %6808 = vmatpush1.bf16.msra.mxu0 %v6508
    %6809 = vmatprep.subr.bf16.mxu0 0
    %6810 = vmatpush1.bf16.msra.mxu0 %v6507
    %6811 = vmatprep.subr.bf16.mxu0 0
    %6812 = vmatpush1.bf16.msra.mxu0 %v6506
    %6813 = vmatprep.subr.bf16.mxu0 0
    %6814 = vmatpush1.bf16.msra.mxu0 %v6505
    %6815 = vmatprep.subr.bf16.mxu0 0
    %6816 = vmatpush1.bf16.msra.mxu0 %v6504
    %6817 = vmatprep.subr.bf16.mxu0 0
    %6818 = vmatpush1.bf16.msra.mxu0 %v6503
    %6819 = vmatprep.subr.bf16.mxu0 0
    %6820 = vmatpush1.bf16.msra.mxu0 %v6502
    %6821 = vmatprep.subr.bf16.mxu0 0
    %6822 = vmatpush1.bf16.msra.mxu0 %v6501
    %6823 = vmatprep.subr.bf16.mxu0 0
    %6824 = vmatpush2.bf16.msra.mxu0 %v6516
    %6825 = vmatprep.subr.bf16.mxu0 0
    %6826 = vmatpush2.bf16.msra.mxu0 %v6515
    %6827 = vmatprep.subr.bf16.mxu0 0
    %6828 = vmatpush2.bf16.msra.mxu0 %v6514
    %6829 = vmatprep.subr.bf16.mxu0 0
    %6830 = vmatpush2.bf16.msra.mxu0 %v6513
    %6831 = vmatprep.subr.bf16.mxu0 0
    %6832 = vmatpush2.bf16.msra.mxu0 %v6512
    %6833 = vmatprep.subr.bf16.mxu0 0
    %6834 = vmatpush2.bf16.msra.mxu0 %v6511
    %6835 = vmatprep.subr.bf16.mxu0 0
    %6836 = vmatpush2.bf16.msra.mxu0 %v6510
    %6837 = vmatprep.subr.bf16.mxu0 0
    %6838 = vmatpush2.bf16.msra.mxu0 %v6509
    %6839 = vmatprep.mubr.bf16.mxu0 %v5683
    %6840 = vmatmul.mubr.bf16.gmra.mxu0 %v5682
    %v6841 = vpop.f32.mrf.mxu0
    %v6842 = vadd.f32 %v6801, %v6841
    %v6843 = vpop.f32.mrf.mxu0
    %v6844 = vpop.f32.mrf.mxu0
    %v6845 = vadd.f32 %v6804, %v6844
    %v6846 = vpop.f32.mrf.mxu0
    %6847 = vdwg.mxu0
    %6848 = vmatprep.subr.bf16.mxu0 0
    %6849 = vmatpush1.bf16.msra.mxu0 %v6524
    %6850 = vmatprep.subr.bf16.mxu0 0
    %6851 = vmatpush1.bf16.msra.mxu0 %v6523
    %6852 = vmatprep.subr.bf16.mxu0 0
    %6853 = vmatpush1.bf16.msra.mxu0 %v6522
    %6854 = vmatprep.subr.bf16.mxu0 0
    %6855 = vmatpush1.bf16.msra.mxu0 %v6521
    %6856 = vmatprep.subr.bf16.mxu0 0
    %6857 = vmatpush1.bf16.msra.mxu0 %v6520
    %6858 = vmatprep.subr.bf16.mxu0 0
    %6859 = vmatpush1.bf16.msra.mxu0 %v6519
    %6860 = vmatprep.subr.bf16.mxu0 0
    %6861 = vmatpush1.bf16.msra.mxu0 %v6518
    %6862 = vmatprep.subr.bf16.mxu0 0
    %6863 = vmatpush1.bf16.msra.mxu0 %v6517
    %6864 = vmatprep.subr.bf16.mxu0 0
    %6865 = vmatpush2.bf16.msra.mxu0 %v6532
    %6866 = vmatprep.subr.bf16.mxu0 0
    %6867 = vmatpush2.bf16.msra.mxu0 %v6531
    %6868 = vmatprep.subr.bf16.mxu0 0
    %6869 = vmatpush2.bf16.msra.mxu0 %v6530
    %6870 = vmatprep.subr.bf16.mxu0 0
    %6871 = vmatpush2.bf16.msra.mxu0 %v6529
    %6872 = vmatprep.subr.bf16.mxu0 0
    %6873 = vmatpush2.bf16.msra.mxu0 %v6528
    %6874 = vmatprep.subr.bf16.mxu0 0
    %6875 = vmatpush2.bf16.msra.mxu0 %v6527
    %6876 = vmatprep.subr.bf16.mxu0 0
    %6877 = vmatpush2.bf16.msra.mxu0 %v6526
    %6878 = vmatprep.subr.bf16.mxu0 0
    %6879 = vmatpush2.bf16.msra.mxu0 %v6525
    %6880 = vmatprep.mubr.bf16.mxu0 %v5685
    %6881 = vmatmul.mubr.bf16.gmra.mxu0 %v5684
    %v6882 = vpop.f32.mrf.mxu0
    %v6883 = vadd.f32 %v6842, %v6882
    %v6884 = vpop.f32.mrf.mxu0
    %v6885 = vpop.f32.mrf.mxu0
    %v6886 = vadd.f32 %v6845, %v6885
    %v6887 = vpop.f32.mrf.mxu0
    %6888 = vdwg.mxu0
    %6889 = vmatprep.subr.bf16.mxu0 0
    %6890 = vmatpush1.bf16.msra.mxu0 %v6540
    %6891 = vmatprep.subr.bf16.mxu0 0
    %6892 = vmatpush1.bf16.msra.mxu0 %v6539
    %6893 = vmatprep.subr.bf16.mxu0 0
    %6894 = vmatpush1.bf16.msra.mxu0 %v6538
    %6895 = vmatprep.subr.bf16.mxu0 0
    %6896 = vmatpush1.bf16.msra.mxu0 %v6537
    %6897 = vmatprep.subr.bf16.mxu0 0
    %6898 = vmatpush1.bf16.msra.mxu0 %v6536
    %6899 = vmatprep.subr.bf16.mxu0 0
    %6900 = vmatpush1.bf16.msra.mxu0 %v6535
    %6901 = vmatprep.subr.bf16.mxu0 0
    %6902 = vmatpush1.bf16.msra.mxu0 %v6534
    %6903 = vmatprep.subr.bf16.mxu0 0
    %6904 = vmatpush1.bf16.msra.mxu0 %v6533
    %6905 = vmatprep.subr.bf16.mxu0 0
    %6906 = vmatpush2.bf16.msra.mxu0 %v6548
    %6907 = vmatprep.subr.bf16.mxu0 0
    %6908 = vmatpush2.bf16.msra.mxu0 %v6547
    %6909 = vmatprep.subr.bf16.mxu0 0
    %6910 = vmatpush2.bf16.msra.mxu0 %v6546
    %6911 = vmatprep.subr.bf16.mxu0 0
    %6912 = vmatpush2.bf16.msra.mxu0 %v6545
    %6913 = vmatprep.subr.bf16.mxu0 0
    %6914 = vmatpush2.bf16.msra.mxu0 %v6544
    %6915 = vmatprep.subr.bf16.mxu0 0
    %6916 = vmatpush2.bf16.msra.mxu0 %v6543
    %6917 = vmatprep.subr.bf16.mxu0 0
    %6918 = vmatpush2.bf16.msra.mxu0 %v6542
    %6919 = vmatprep.subr.bf16.mxu0 0
    %6920 = vmatpush2.bf16.msra.mxu0 %v6541
    %6921 = vmatprep.mubr.bf16.mxu0 %v5687
    %6922 = vmatmul.mubr.bf16.gmra.mxu0 %v5686
    %v6923 = vpop.f32.mrf.mxu0
    %v6924 = vadd.f32 %v6883, %v6923
    %v6925 = vpop.f32.mrf.mxu0
    %v6926 = vpop.f32.mrf.mxu0
    %v6927 = vadd.f32 %v6886, %v6926
    %v6928 = vpop.f32.mrf.mxu0
    %6929 = vdwg.mxu0
    %6930 = vmatprep.subr.bf16.mxu0 0
    %6931 = vmatpush1.bf16.msra.mxu0 %v6556
    %6932 = vmatprep.subr.bf16.mxu0 0
    %6933 = vmatpush1.bf16.msra.mxu0 %v6555
    %6934 = vmatprep.subr.bf16.mxu0 0
    %6935 = vmatpush1.bf16.msra.mxu0 %v6554
    %6936 = vmatprep.subr.bf16.mxu0 0
    %6937 = vmatpush1.bf16.msra.mxu0 %v6553
    %6938 = vmatprep.subr.bf16.mxu0 0
    %6939 = vmatpush1.bf16.msra.mxu0 %v6552
    %6940 = vmatprep.subr.bf16.mxu0 0
    %6941 = vmatpush1.bf16.msra.mxu0 %v6551
    %6942 = vmatprep.subr.bf16.mxu0 0
    %6943 = vmatpush1.bf16.msra.mxu0 %v6550
    %6944 = vmatprep.subr.bf16.mxu0 0
    %6945 = vmatpush1.bf16.msra.mxu0 %v6549
    %6946 = vmatprep.subr.bf16.mxu0 0
    %6947 = vmatpush2.bf16.msra.mxu0 %v6564
    %6948 = vmatprep.subr.bf16.mxu0 0
    %6949 = vmatpush2.bf16.msra.mxu0 %v6563
    %6950 = vmatprep.subr.bf16.mxu0 0
    %6951 = vmatpush2.bf16.msra.mxu0 %v6562
    %6952 = vmatprep.subr.bf16.mxu0 0
    %6953 = vmatpush2.bf16.msra.mxu0 %v6561
    %6954 = vmatprep.subr.bf16.mxu0 0
    %6955 = vmatpush2.bf16.msra.mxu0 %v6560
    %6956 = vmatprep.subr.bf16.mxu0 0
    %6957 = vmatpush2.bf16.msra.mxu0 %v6559
    %6958 = vmatprep.subr.bf16.mxu0 0
    %6959 = vmatpush2.bf16.msra.mxu0 %v6558
    %6960 = vmatprep.subr.bf16.mxu0 0
    %6961 = vmatpush2.bf16.msra.mxu0 %v6557
    %6962 = vmatprep.mubr.bf16.mxu0 %v5689
    %6963 = vmatmul.mubr.bf16.gmra.mxu0 %v5688
    %v6964 = vpop.f32.mrf.mxu0
    %v6965 = vadd.f32 %v6924, %v6964
    %v6966 = vpop.f32.mrf.mxu0
    %v6967 = vpop.f32.mrf.mxu0
    %v6968 = vadd.f32 %v6927, %v6967
    %v6969 = vpop.f32.mrf.mxu0
    %6970 = vdwg.mxu0
    %6971 = vmatprep.subr.bf16.mxu0 0
    %6972 = vmatpush1.bf16.msra.mxu0 %v6572
    %6973 = vmatprep.subr.bf16.mxu0 0
    %6974 = vmatpush1.bf16.msra.mxu0 %v6571
    %6975 = vmatprep.subr.bf16.mxu0 0
    %6976 = vmatpush1.bf16.msra.mxu0 %v6570
    %6977 = vmatprep.subr.bf16.mxu0 0
    %6978 = vmatpush1.bf16.msra.mxu0 %v6569
    %6979 = vmatprep.subr.bf16.mxu0 0
    %6980 = vmatpush1.bf16.msra.mxu0 %v6568
    %6981 = vmatprep.subr.bf16.mxu0 0
    %6982 = vmatpush1.bf16.msra.mxu0 %v6567
    %6983 = vmatprep.subr.bf16.mxu0 0
    %6984 = vmatpush1.bf16.msra.mxu0 %v6566
    %6985 = vmatprep.subr.bf16.mxu0 0
    %6986 = vmatpush1.bf16.msra.mxu0 %v6565
    %6987 = vmatprep.subr.bf16.mxu0 0
    %6988 = vmatpush2.bf16.msra.mxu0 %v6580
    %6989 = vmatprep.subr.bf16.mxu0 0
    %6990 = vmatpush2.bf16.msra.mxu0 %v6579
    %6991 = vmatprep.subr.bf16.mxu0 0
    %6992 = vmatpush2.bf16.msra.mxu0 %v6578
    %6993 = vmatprep.subr.bf16.mxu0 0
    %6994 = vmatpush2.bf16.msra.mxu0 %v6577
    %6995 = vmatprep.subr.bf16.mxu0 0
    %6996 = vmatpush2.bf16.msra.mxu0 %v6576
    %6997 = vmatprep.subr.bf16.mxu0 0
    %6998 = vmatpush2.bf16.msra.mxu0 %v6575
    %6999 = vmatprep.subr.bf16.mxu0 0
    %7000 = vmatpush2.bf16.msra.mxu0 %v6574
    %7001 = vmatprep.subr.bf16.mxu0 0
    %7002 = vmatpush2.bf16.msra.mxu0 %v6573
    %7003 = vmatprep.mubr.bf16.mxu0 %v5691
    %7004 = vmatmul.mubr.bf16.gmra.mxu0 %v5690
    %v7005 = vpop.f32.mrf.mxu0
    %v7006 = vadd.f32 %v6965, %v7005
    %v7007 = vpop.f32.mrf.mxu0
    %v7008 = vpop.f32.mrf.mxu0
    %v7009 = vadd.f32 %v6968, %v7008
    %v7010 = vpop.f32.mrf.mxu0
    %7011 = vdwg.mxu0
    %7012 = vmatprep.subr.bf16.mxu0 0
    %7013 = vmatpush1.bf16.msra.mxu0 %v6588
    %7014 = vmatprep.subr.bf16.mxu0 0
    %7015 = vmatpush1.bf16.msra.mxu0 %v6587
    %7016 = vmatprep.subr.bf16.mxu0 0
    %7017 = vmatpush1.bf16.msra.mxu0 %v6586
    %7018 = vmatprep.subr.bf16.mxu0 0
    %7019 = vmatpush1.bf16.msra.mxu0 %v6585
    %7020 = vmatprep.subr.bf16.mxu0 0
    %7021 = vmatpush1.bf16.msra.mxu0 %v6584
    %7022 = vmatprep.subr.bf16.mxu0 0
    %7023 = vmatpush1.bf16.msra.mxu0 %v6583
    %7024 = vmatprep.subr.bf16.mxu0 0
    %7025 = vmatpush1.bf16.msra.mxu0 %v6582
    %7026 = vmatprep.subr.bf16.mxu0 0
    %7027 = vmatpush1.bf16.msra.mxu0 %v6581
    %7028 = vmatprep.subr.bf16.mxu0 0
    %7029 = vmatpush2.bf16.msra.mxu0 %v6596
    %7030 = vmatprep.subr.bf16.mxu0 0
    %7031 = vmatpush2.bf16.msra.mxu0 %v6595
    %7032 = vmatprep.subr.bf16.mxu0 0
    %7033 = vmatpush2.bf16.msra.mxu0 %v6594
    %7034 = vmatprep.subr.bf16.mxu0 0
    %7035 = vmatpush2.bf16.msra.mxu0 %v6593
    %7036 = vmatprep.subr.bf16.mxu0 0
    %7037 = vmatpush2.bf16.msra.mxu0 %v6592
    %7038 = vmatprep.subr.bf16.mxu0 0
    %7039 = vmatpush2.bf16.msra.mxu0 %v6591
    %7040 = vmatprep.subr.bf16.mxu0 0
    %7041 = vmatpush2.bf16.msra.mxu0 %v6590
    %7042 = vmatprep.subr.bf16.mxu0 0
    %7043 = vmatpush2.bf16.msra.mxu0 %v6589
    %7044 = vmatprep.mubr.bf16.mxu0 %v5693
    %7045 = vmatmul.mubr.bf16.gmra.mxu0 %v5692
    %v7046 = vpop.f32.mrf.mxu0
    %v7047 = vadd.f32 %v7006, %v7046
    %v7048 = vpop.f32.mrf.mxu0
    %v7049 = vpop.f32.mrf.mxu0
    %v7050 = vadd.f32 %v7009, %v7049
    %v7051 = vpop.f32.mrf.mxu0
    %7052 = vdwg.mxu0
    %v7053 = vadd.f32 %v5020, %v7047
    %v7054 = vadd.f32 %v5021, %v7050
    %v7055 = vsel %vm211, %v7053, 0.0
    %7056 = vadd.xlane.f32.xlu0 %v7055
    %v7057 = vpop.xlane.xlu0 %7056
    %v7058 = vsel %vm211, %v7054, 0.0
    %7059 = vadd.xlane.f32.xlu0 %v7058
    %v7060 = vpop.xlane.xlu0 %7059
    %v7061 = vmul.f32 %v7057, %v1529
    %v7062 = vmul.f32 %v7060, %v1529
    %v7063 = vsub.f32 %v7053, %v7061
    %v7064 = vsub.f32 %v7054, %v7062
    %v7065 = vmul.f32 %v7063, %v7063
    %v7066 = vmul.f32 %v7064, %v7064
    %v7067 = vsel %vm211, %v7065, 0.0
    %7068 = vadd.xlane.f32.xlu0 %v7067
    %v7069 = vpop.xlane.xlu0 %7068
    %v7070 = vsel %vm211, %v7066, 0.0
    %7071 = vadd.xlane.f32.xlu0 %v7070
    %v7072 = vpop.xlane.xlu0 %7071
    %v7073 = vmul.f32 %v7069, %v1529
    %v7074 = vmul.f32 %v7072, %v1529
    %v7075 = vadd.f32 %v7073, 1e-05
    %v7076 = vadd.f32 %v7074, 1e-05
    %v7077 = vrsqrt.pop %v7075
    %v7078 = vrsqrt.pop %v7076
    %v7079 = vmul.f32 %v7063, %v7077
    %v7080 = vmul.f32 %v7064, %v7078
    %v7081 = vld [vmem:[%s51] sm:$0x1]
    %v7083 = vlaneseq
    %v7084 = vshrl.u32 %v7083, 7
    %v7085 = vsub.s32 0, %v7084
    %v7086 = vrot.slane %v7081, %v7085
    %v7088 = vmul.f32 %v7079, %v7086
    %v7089 = vmul.f32 %v7080, %v7086
    %v7090 = vld [vmem:[%s53] sm:$0x1]
    %v7092 = vlaneseq
    %v7093 = vshrl.u32 %v7092, 7
    %v7094 = vsub.s32 0, %v7093
    %v7095 = vrot.slane %v7090, %v7094
    %v7097 = vadd.f32 %v7088, %v7095
    %v7098 = vadd.f32 %v7089, %v7095
    %v7099 = vsel %vm211, %v7097, 0.0
    %v7100 = vrot.slane %v7099, 4
    %v7101 = vadd.f32 %v7099, %v7100
    %v7102 = vrot.slane %v7101, 2
    %v7103 = vadd.f32 %v7101, %v7102
    %v7104 = vrot.slane %v7103, 1
    %v7105 = vadd.f32 %v7103, %v7104
    %v7106 = vrcp.pop 8.0
    %v7107 = vmul.f32 %v7105, %v7106
    %v7108 = vsel %vm211, %v7098, 0.0
    %v7109 = vrot.slane %v7108, 4
    %v7110 = vadd.f32 %v7108, %v7109
    %v7111 = vrot.slane %v7110, 2
    %v7112 = vadd.f32 %v7110, %v7111
    %v7113 = vrot.slane %v7112, 1
    %v7114 = vadd.f32 %v7112, %v7113
    %v7115 = vmul.f32 %v7114, %v7106
    %vm7116 = vcmask 1040384
    %v7117 = vsel %vm7116, %v7107, %v7115
    %v7118 = vpack.c.bf16 %v7117, %v7117
    %v7119 = vld [vmem:[%s55] sm:$0xf]
    %v7120 = vld [vmem:[%s55 + $0x4] sm:$0xf]
    %v7121 = vld [vmem:[%s55 + $0x8] sm:$0xf]
    %v7122 = vld [vmem:[%s55 + $0xc] sm:$0xf]
    %v7123 = vld [vmem:[%s57] sm:$0x1]
    %v7125 = vlaneseq
    %v7126 = vshrl.u32 %v7125, 7
    %v7127 = vsub.s32 0, %v7126
    %v7128 = vrot.slane %v7123, %v7127
    %v7134 = vunpack.c.l.b16 %v7119
    %v7135 = vunpack.c.l.b16 %v7120
    %v7136 = vunpack.c.l.b16 %v7121
    %v7137 = vunpack.c.l.b16 %v7122
    %v7138 = vpack.c.b16 %v7135, %v7134
    %v7139 = vpack.c.b16 %v7137, %v7136
    %v7143 = vsel %vm211, %v7118, 0
    %7145 = vmatprep.subr.bf16.mxu0 0
    %7146 = vmatpush1.bf16.msra.mxu0 0
    %7147 = vmatprep.subr.bf16.mxu0 0
    %7148 = vmatpush1.bf16.msra.mxu0 0
    %7149 = vmatprep.subr.bf16.mxu0 0
    %7150 = vmatpush1.bf16.msra.mxu0 0
    %7151 = vmatprep.subr.bf16.mxu0 0
    %7152 = vmatpush1.bf16.msra.mxu0 0
    %7153 = vmatprep.subr.bf16.mxu0 0
    %7154 = vmatpush1.bf16.msra.mxu0 0
    %7155 = vmatprep.subr.bf16.mxu0 0
    %7156 = vmatpush1.bf16.msra.mxu0 0
    %7157 = vmatprep.subr.bf16.mxu0 0
    %7158 = vmatpush1.bf16.msra.mxu0 %v7139
    %7159 = vmatprep.subr.bf16.mxu0 0
    %7160 = vmatpush1.bf16.msra.mxu0 %v7138
    %7161 = vmatprep.subr.bf16.mxu0 0
    %7162 = vmatpush2.bf16.msra.mxu0 0
    %7163 = vmatprep.subr.bf16.mxu0 0
    %7164 = vmatpush2.bf16.msra.mxu0 0
    %7165 = vmatprep.subr.bf16.mxu0 0
    %7166 = vmatpush2.bf16.msra.mxu0 0
    %7167 = vmatprep.subr.bf16.mxu0 0
    %7168 = vmatpush2.bf16.msra.mxu0 0
    %7169 = vmatprep.subr.bf16.mxu0 0
    %7170 = vmatpush2.bf16.msra.mxu0 0
    %7171 = vmatprep.subr.bf16.mxu0 0
    %7172 = vmatpush2.bf16.msra.mxu0 0
    %7173 = vmatprep.subr.bf16.mxu0 0
    %7174 = vmatpush2.bf16.msra.mxu0 0
    %7175 = vmatprep.subr.bf16.mxu0 0
    %7176 = vmatpush2.bf16.msra.mxu0 0
    %7177 = vmatprep.mubr.bf16.mxu0 0
    %7178 = vmatmul.mubr.bf16.gmra.mxu0 %v7143
    %v7179 = vpop.f32.mrf.mxu0
    %v7180 = vadd.f32 %v7128, %v7179
    %v7181 = vpop.f32.mrf.mxu0
    %v7182 = vpop.f32.mrf.mxu0
    %v7183 = vpop.f32.mrf.mxu0
    %7184 = vdwg.mxu0
    %vm7185 = vcmask 254976
    %7186 = vst.msk [vmem:[#allocation2] sm:$0x3] %vm7185, %v7180
    // Predicated region
    $region118: #{tpu_custom_call.1} parent=1 // pred_check
      _
    $region119: #{tpu_custom_call.1} parent=1 // pred_check_branch
      %7188 = sbr.rel (0) target = $region121
    $region120: #{tpu_custom_call.1} parent=1 // pred_region
      %s7190 = ssub.s32 32, 32
      %7191 = vsyncadd [#allocation3], %s7190
      %s7193 = sshll.u32 [#allocation2], 4
      %s7194 = int_to_ptr.vmem [resolvable:$true] %s7193
      %7196 = dma.vmem_to_hbm [thread:$0]  %s7194, 32, %s59, [#allocation3]
    $region121: #{tpu_custom_call.1} parent=1 // pred_fallthru
      _
    // Predicated region
    $region122: #{tpu_custom_call.1} parent=1 // pred_check
      _
    $region123: #{tpu_custom_call.1} parent=1 // pred_check_branch
      %7198 = sbr.rel (0) target = $region125
    $region124: #{tpu_custom_call.1} parent=1 // pred_region
      %7199 = dma.done [#allocation3], 32
    $region125: #{tpu_custom_call.1} parent=1 // pred_fallthru
      _
    %7200 = vsyncpa [#allocation3], 1

</llo_original>
